<compile_context>
chip_gen: v6e
topology: v6e:2x2x1
jax: 0.10.0
libtpu: 0.0.40
codegen_flags: <defaults>
</compile_context>

<pallas_src>
import functools

import jax
import jax.numpy as jnp
from jax.experimental import pallas as pl
from jax.experimental.pallas import tpu as pltpu

VMEM = pltpu.MemorySpace.VMEM
LANE = 128
# Conservative scoped-VMEM cap: safe on v5e/v6e (128 MiB) AND v7x (64 MiB).
# TODO(synk): on v6e this could be raised to ~64-96 MiB with a 1024-row tile cap.
_VMEM_LIMIT = 32 * 1024 * 1024


def _row_tile(rows, cap=512):
    """Largest multiple-of-8 divisor of `rows` that is <= cap (else `rows`)."""
    if rows <= cap:
        return rows
    t = (cap // 8) * 8
    while t > 8 and rows % t != 0:
        t -= 8
    return t if rows % t == 0 else rows


def _dw_row_tile(h, cap=16):
    """Row tile for the depthwise conv: largest divisor of h that is <= cap and
    yields >= 2 tiles (so the halo / pool-accumulation path is exercised)."""
    for t in range(min(h // 2, cap), 0, -1):
        if h % t == 0:
            return t
    return h


# ----------------------------------------------------------------------------
# Pallas kernels
# ----------------------------------------------------------------------------
def _pw_kernel(x_ref, w_ref, sh_ref, o_ref, *, act):
    """y = act(x @ W' + shift) with BN scale pre-folded into W'."""
    xb = x_ref[0].astype(jnp.bfloat16)
    y = jnp.dot(xb, w_ref[...], preferred_element_type=jnp.float32) + sh_ref[...]
    if act == "silu":
        y = y * jax.nn.sigmoid(y)
    o_ref[0] = y.astype(o_ref.dtype)


def _gated_pw2_kernel(x_ref, g_ref, w1_ref, s1_ref, w2_ref, s2_ref, o_ref):
    """Fused: (x * SE-gate) @ W1' + s1 (MBConv project, no act)
              -> @ W2' + s2 -> SiLU (next block's expand)."""
    xg = x_ref[0] * g_ref[0]                                   # bf16 * bf16
    h = jnp.dot(xg, w1_ref[...], preferred_element_type=jnp.float32) + s1_ref[...]
    h = jnp.dot(h.astype(jnp.bfloat16), w2_ref[...],
                preferred_element_type=jnp.float32) + s2_ref[...]
    h = h * jax.nn.sigmoid(h)
    o_ref[0] = h.astype(o_ref.dtype)


def _gated_pw_head_pool_kernel(x_ref, g_ref, wp_ref, sp_ref, wh_ref, shh_ref,
                               pool_ref, *, inv_hw):
    """Fused: (x * SE-gate) @ Wp' + sp (project, no act)
              -> @ Wh' + sh -> SiLU (head 1x1 conv)
              -> partial global-average-pool accumulated across row tiles.
    The (N,HW,1280) head activation never leaves VMEM."""
    t = pl.program_id(1)
    xg = x_ref[0] * g_ref[0]                                   # bf16 * bf16
    z = jnp.dot(xg, wp_ref[...], preferred_element_type=jnp.float32) + sp_ref[...]
    z = jnp.dot(z.astype(jnp.bfloat16), wh_ref[...],
                preferred_element_type=jnp.float32) + shh_ref[...]
    z = z * jax.nn.sigmoid(z)                                  # (tile, 1280) f32
    part = jnp.sum(z, axis=0, keepdims=True) * inv_hw          # (1, 1280)

    @pl.when(t == 0)
    def _():
        pool_ref[...] = jnp.zeros_like(pool_ref)

    pool_ref[...] += part.reshape(1, 1, -1)


def _dwconv_kernel(x_ref, w_ref, sh_ref, y_ref, pool_ref, *, th, w, w_pad, inv_hw):
    """Depthwise 3x3 (stride 1) + folded-BN shift + SiLU on one H row tile.
    dx taps are built in-kernel with pltpu.roll along W (XLU slot, no 3x input
    copy); the SE squeeze mean accumulates across row tiles."""
    t = pl.program_id(1)
    start = pl.multiple_of(t * th, th)
    x = x_ref[0, pl.ds(start, th + 2)].astype(jnp.float32)     # (th+2, w_pad, c)
    # roll by -1 / -2 (as positive shifts); zero-pad columns absorb the taps at
    # the image border and the [0:w] slice below never sees wrapped lanes.
    x1 = pltpu.roll(x, shift=w_pad - 1, axis=1)
    x2 = pltpu.roll(x, shift=w_pad - 2, axis=1)
    taps = (x, x1, x2)
    wt = w_ref[...].astype(jnp.float32)                        # (9, c), BN-folded
    c = x.shape[-1]
    acc = jnp.zeros((th, w, c), jnp.float32)
    for k in range(9):                                         # static unroll
        dy, dx = k // 3, k % 3
        acc = acc + taps[dx][dy:dy + th, 0:w, :] * wt[k]
    y = acc + sh_ref[...]
    y = y * jax.nn.sigmoid(y)
    y_ref[0] = y.astype(y_ref.dtype)

    @pl.when(t == 0)
    def _():
        pool_ref[...] = jnp.zeros_like(pool_ref)

    pool_ref[...] += (jnp.sum(y, axis=(0, 1)) * inv_hw).reshape(1, 1, c)


def _se_gate_kernel(p_ref, w1_ref, b1_ref, w2_ref, b2_ref, g_ref, *, real_c):
    """SE gate from the pre-pooled vector: g = sigmoid(W2 @ silu(W1 @ p + b1) + b2).
    Padded lanes are masked to 0 so they can never leak through the projection."""
    p = p_ref[...][:, 0, :]                                    # (N, C) f32
    h = jnp.dot(p.astype(jnp.bfloat16), w1_ref[...],
                preferred_element_type=jnp.float32) + b1_ref[...]
    h = h * jax.nn.sigmoid(h)
    g = jax.nn.sigmoid(jnp.dot(h.astype(jnp.bfloat16), w2_ref[...],
                               preferred_element_type=jnp.float32) + b2_ref[...])
    lane = jax.lax.broadcasted_iota(jnp.int32, g.shape, 1)
    g = jnp.where(lane < real_c, g, 0.0)
    g_ref[...] = g[:, None, :].astype(g_ref.dtype)


def _head_fc_kernel(p_ref, w1_ref, b1_ref, w2_ref, b2_ref, o_ref):
    """Backbone classifier (1280 -> 1000) + AgeHead linear (1000 -> classes).
    AgeHead matmul kept in f32 for fidelity. Dropouts are inference no-ops."""
    pooled = p_ref[...][:, 0, :]                               # (N, 1280) f32
    z = jnp.dot(pooled.astype(jnp.bfloat16), w1_ref[...],
                preferred_element_type=jnp.float32) + b1_ref[...]
    z = jnp.dot(z, w2_ref[...], preferred_element_type=jnp.float32) + b2_ref[...]
    o_ref[...] = z


# ----------------------------------------------------------------------------
# Pallas wrappers
# ----------------------------------------------------------------------------
def pointwise(x, w, shift, *, act="none", out_dtype=jnp.bfloat16):
    """(N, HW, Cin) @ (Cin, Cout) + shift (+ SiLU). Resident weight, row-tiled."""
    n, hw, cin = x.shape
    cout = w.shape[1]
    tile = _row_tile(hw)
    grid = (n, hw // tile)
    return pl.pallas_call(
        functools.partial(_pw_kernel, act=act),
        grid=grid,
        in_specs=[pl.BlockSpec((1, tile, cin), lambda b, t: (b, t, 0)),
                  pl.BlockSpec((cin, cout), lambda b, t: (0, 0)),
                  pl.BlockSpec((1, cout), lambda b, t: (0, 0))],
        out_specs=pl.BlockSpec((1, tile, cout), lambda b, t: (b, t, 0)),
        out_shape=jax.ShapeDtypeStruct((n, hw, cout), out_dtype),
        compiler_params=pltpu.CompilerParams(
            dimension_semantics=("parallel", "parallel"),
            vmem_limit_bytes=_VMEM_LIMIT),
    )(x, w, shift)


def gated_double_pointwise(x, gate, w1, s1, w2, s2, *, out_dtype=jnp.bfloat16):
    """Fused (SE-gated project) + (next expand + SiLU); two resident weights."""
    n, hw, cin = x.shape
    cmid, cout = w1.shape[1], w2.shape[1]
    tile = _row_tile(hw)
    grid = (n, hw // tile)
    return pl.pallas_call(
        _gated_pw2_kernel,
        grid=grid,
        in_specs=[pl.BlockSpec((1, tile, cin), lambda b, t: (b, t, 0)),
                  pl.BlockSpec((1, 1, cin), lambda b, t: (b, 0, 0)),
                  pl.BlockSpec((cin, cmid), lambda b, t: (0, 0)),
                  pl.BlockSpec((1, cmid), lambda b, t: (0, 0)),
                  pl.BlockSpec((cmid, cout), lambda b, t: (0, 0)),
                  pl.BlockSpec((1, cout), lambda b, t: (0, 0))],
        out_specs=pl.BlockSpec((1, tile, cout), lambda b, t: (b, t, 0)),
        out_shape=jax.ShapeDtypeStruct((n, hw, cout), out_dtype),
        compiler_params=pltpu.CompilerParams(
            dimension_semantics=("parallel", "parallel"),
            vmem_limit_bytes=_VMEM_LIMIT),
    )(x, gate, w1, s1, w2, s2)


def gated_pw_head_pool(x, gate, wp, sp, wh, shh):
    """Fused (SE-gated project) + head 1x1 (SiLU) + global average pool.
    Only the pooled (N, 1, 1280) f32 vector is emitted."""
    n, hw, cin = x.shape
    cmid, cout = wp.shape[1], wh.shape[1]
    tile = _row_tile(hw)
    grid = (n, hw // tile)
    return pl.pallas_call(
        functools.partial(_gated_pw_head_pool_kernel, inv_hw=1.0 / hw),
        grid=grid,
        in_specs=[pl.BlockSpec((1, tile, cin), lambda b, t: (b, t, 0)),
                  pl.BlockSpec((1, 1, cin), lambda b, t: (b, 0, 0)),
                  pl.BlockSpec((cin, cmid), lambda b, t: (0, 0)),
                  pl.BlockSpec((1, cmid), lambda b, t: (0, 0)),
                  pl.BlockSpec((cmid, cout), lambda b, t: (0, 0)),
                  pl.BlockSpec((1, cout), lambda b, t: (0, 0))],
        out_specs=pl.BlockSpec((1, 1, cout), lambda b, t: (b, 0, 0)),
        out_shape=jax.ShapeDtypeStruct((n, 1, cout), jnp.float32),
        compiler_params=pltpu.CompilerParams(
            dimension_semantics=("parallel", "arbitrary"),
            vmem_limit_bytes=_VMEM_LIMIT),
    )(x, gate, wp, sp, wh, shh)


def dwconv3x3_bn_silu(x, w9c, shift):
    """Depthwise 3x3 s1 + folded-BN + SiLU on (N, H, W, C); row-tiled over H.
    Returns (features (N,H,W,C) bf16, SE spatial mean (N,1,C) f32)."""
    n, h, w, c = x.shape
    w_pad = ((w + 2 + 7) // 8) * 8          # sublane-aligned padded width
    xp = jnp.pad(x, ((0, 0), (1, 1), (1, w_pad - w - 1), (0, 0)))  # stays bf16
    th = _dw_row_tile(h)
    grid = (n, h // th)
    return pl.pallas_call(
        functools.partial(_dwconv_kernel, th=th, w=w, w_pad=w_pad,
                          inv_hw=1.0 / (h * w)),
        grid=grid,
        in_specs=[
            # whole padded image resident per batch element (constant over t);
            # only the th+2-row halo window is read into vregs per tile.
            pl.BlockSpec((1, h + 2, w_pad, c), lambda b, t: (b, 0, 0, 0)),
            pl.BlockSpec((9, c), lambda b, t: (0, 0)),
            pl.BlockSpec((1, c), lambda b, t: (0, 0)),
        ],
        out_specs=(
            pl.BlockSpec((1, th, w, c), lambda b, t: (b, t, 0, 0)),
            pl.BlockSpec((1, 1, c), lambda b, t: (b, 0, 0)),
        ),
        out_shape=(
            jax.ShapeDtypeStruct((n, h, w, c), jnp.bfloat16),
            jax.ShapeDtypeStruct((n, 1, c), jnp.float32),
        ),
        compiler_params=pltpu.CompilerParams(
            dimension_semantics=("parallel", "arbitrary"),
            vmem_limit_bytes=_VMEM_LIMIT),
    )(xp, w9c, shift)


def se_gate(pooled, w1, b1, w2, b2, *, real_c):
    """Tiny (N, C)-only SE gate kernel; emits a bf16 gate with padded lanes zeroed."""
    n, _, c = pooled.shape
    return pl.pallas_call(
        functools.partial(_se_gate_kernel, real_c=real_c),
        in_specs=[pl.BlockSpec(memory_space=VMEM)] * 5,
        out_specs=pl.BlockSpec(memory_space=VMEM),
        out_shape=jax.ShapeDtypeStruct((n, 1, c), jnp.bfloat16),
    )(pooled, w1, b1, w2, b2)


def classifier_agehead(pooled, w_cls, b_cls, w_age, b_age):
    """Backbone classifier + AgeHead linear on the pooled feature vector."""
    n = pooled.shape[0]
    return pl.pallas_call(
        _head_fc_kernel,
        in_specs=[pl.BlockSpec(memory_space=VMEM)] * 5,
        out_specs=pl.BlockSpec(memory_space=VMEM),
        out_shape=jax.ShapeDtypeStruct((n, w_age.shape[1]), jnp.float32),
    )(pooled, w_cls, b_cls, w_age, b_age)


# ----------------------------------------------------------------------------
# Stem im2col (stride 2), built in bf16.
# TODO(synk): at real B0 resolution replace with an in-kernel direct conv; with
# C_in=3 and stride 2 the bf16 column tensor is a small staging copy.
# ----------------------------------------------------------------------------
def _im2col_3x3_s2(x_nhwc):
    n, h, w, c = x_nhwc.shape
    xp = jnp.pad(x_nhwc, ((0, 0), (1, 1), (1, 1), (0, 0)))
    ho, wo = (h + 2 - 3) // 2 + 1, (w + 2 - 3) // 2 + 1
    taps = [xp[:, dy:dy + 2 * ho:2, dx:dx + 2 * wo:2, :]
            for dy in range(3) for dx in range(3)]
    patches = jnp.stack(taps, axis=-2)                    # (N, Ho, Wo, 9, C)
    return patches.reshape(n, ho * wo, 9 * c), (ho, wo)


# ----------------------------------------------------------------------------
# Parameters (deterministic synthetic, BN scale folded into weights,
# zero-padded to lane-dense widths)
# ----------------------------------------------------------------------------
def init_params(key, num_classes=3):
    keys = iter(jax.random.split(key, 64))

    def nrm(shape, s=0.05):
        return s * jax.random.normal(next(keys), shape, jnp.float32)

    def pad2(m, rows, cols):
        return jnp.pad(m, ((0, rows - m.shape[0]), (0, cols - m.shape[1])))

    def bn_affine(c_true, eps=1e-3):
        gamma = 1.0 + 0.05 * jax.random.normal(next(keys), (c_true,), jnp.float32)
        beta = 0.05 * jax.random.normal(next(keys), (c_true,), jnp.float32)
        # TODO(synk): running_mean=0 / running_var=1 synthetic BN stats.
        scale = gamma / jnp.sqrt(1.0 + eps)
        return scale, beta

    def conv_bn(cin, cout, rows, cols):
        w = nrm((cin, cout))
        scale, beta = bn_affine(cout)
        w_folded = pad2(w * scale[None, :], rows, cols).astype(jnp.bfloat16)
        shift = jnp.pad(beta, (0, cols - cout)).reshape(1, cols)   # padded lanes 0
        return w_folded, shift

    def dw_bn(c_true, c_pad):
        w = nrm((9, c_true))
        scale, beta = bn_affine(c_true)
        w_folded = pad2(w * scale[None, :], 9, c_pad).astype(jnp.bfloat16)
        shift = jnp.pad(beta, (0, c_pad - c_true)).reshape(1, c_pad)
        return w_folded, shift

    def lin(cin, cout, rows, cols, dtype=jnp.bfloat16):
        w = pad2(nrm((cin, cout)), rows, cols).astype(dtype)
        b = jnp.pad(nrm((cout,)), (0, cols - cout)).reshape(1, cols)
        return w, b

    p = {}
    # stem: conv3x3 s2, 3 -> 32 (B0 stem), BN + SiLU
    p["stem_w"], p["stem_sh"] = conv_bn(27, 32, 27, LANE)
    # block1 (MBConv1, expand=1): dw3x3 on 32, SE r=8, project 32 -> 16
    p["b1_dw_w"], p["b1_dw_sh"] = dw_bn(32, LANE)
    p["b1_se_w1"], p["b1_se_b1"] = lin(32, 8, LANE, LANE)
    p["b1_se_w2"], p["b1_se_b2"] = lin(8, 32, LANE, LANE)
    p["b1_pw_w"], p["b1_pw_sh"] = conv_bn(32, 16, LANE, LANE)
    # block2 (MBConv6): expand 16 -> 96, dw3x3, SE r=4, project 96 -> 24
    p["b2_ex_w"], p["b2_ex_sh"] = conv_bn(16, 96, LANE, LANE)
    p["b2_dw_w"], p["b2_dw_sh"] = dw_bn(96, LANE)
    p["b2_se_w1"], p["b2_se_b1"] = lin(96, 4, LANE, LANE)
    p["b2_se_w2"], p["b2_se_b2"] = lin(4, 96, LANE, LANE)
    p["b2_pw_w"], p["b2_pw_sh"] = conv_bn(96, 24, LANE, LANE)
    # head 1x1 conv: 24 -> 1280, BN + SiLU (1280 already lane-dense)
    p["head_w"], p["head_sh"] = conv_bn(24, 1280, LANE, 1280)
    # backbone classifier: 1280 -> 1000 (padded to 1024)
    p["cls_w"], p["cls_b"] = lin(1280, 1000, 1280, 1024)
    # AgeHead: Linear 1000 -> num_classes (padded 1024 -> 128), kept f32
    p["age_w"], p["age_b"] = lin(1000, num_classes, 1024, LANE, dtype=jnp.float32)
    return p


# ----------------------------------------------------------------------------
# Forward pass: AgeModel.forward(x) = AgeHead(EfficientNetB0(x))
# ----------------------------------------------------------------------------
@functools.partial(jax.jit, static_argnames=("num_classes",))
def age_model_forward(params, x_nchw, num_classes=3):
    x = jnp.transpose(x_nchw, (0, 2, 3, 1)).astype(jnp.bfloat16)   # NCHW -> NHWC, bf16
    n = x.shape[0]

    # --- stem: conv3x3 s2 + folded BN + SiLU ---
    cols, (ho, wo) = _im2col_3x3_s2(x)
    y = pointwise(cols, params["stem_w"], params["stem_sh"], act="silu")

    # --- block1: dwconv (+fused SE pool) -> SE gate -> [gated project + block2 expand] ---
    y4, pooled = dwconv3x3_bn_silu(y.reshape(n, ho, wo, LANE),
                                   params["b1_dw_w"], params["b1_dw_sh"])
    gate = se_gate(pooled, params["b1_se_w1"], params["b1_se_b1"],
                   params["b1_se_w2"], params["b1_se_b2"], real_c=32)
    y = gated_double_pointwise(y4.reshape(n, ho * wo, LANE), gate,
                               params["b1_pw_w"], params["b1_pw_sh"],
                               params["b2_ex_w"], params["b2_ex_sh"])

    # --- block2: dwconv (+fused SE pool) -> SE gate -> [gated project + head 1x1 + global pool] ---
    y4, pooled = dwconv3x3_bn_silu(y.reshape(n, ho, wo, LANE),
                                   params["b2_dw_w"], params["b2_dw_sh"])
    gate = se_gate(pooled, params["b2_se_w1"], params["b2_se_b1"],
                   params["b2_se_w2"], params["b2_se_b2"], real_c=96)
    pooled_feat = gated_pw_head_pool(y4.reshape(n, ho * wo, LANE), gate,
                                     params["b2_pw_w"], params["b2_pw_sh"],
                                     params["head_w"], params["head_sh"])

    # --- classifier (1000) -> AgeHead linear (dropouts are inference no-ops) ---
    logits = classifier_agehead(pooled_feat, params["cls_w"], params["cls_b"],
                                params["age_w"], params["age_b"])
    return logits[:, :num_classes]


if __name__ == "__main__":
    key = jax.random.PRNGKey(0)
    pkey, xkey = jax.random.split(key)
    num_classes = 3
    params = init_params(pkey, num_classes=num_classes)

    # PyTorch-style NCHW image input at small shapes
    x = jax.random.normal(xkey, (2, 3, 16, 16), jnp.float32)

    out = age_model_forward(params, x, num_classes=num_classes)
    jax.block_until_ready(out)

    assert out.shape == (2, num_classes), out.shape
    assert bool(jnp.all(jnp.isfinite(out)))
    print("KERNEL_OK")
</pallas_src>

<mosaic_0001>
module attributes {stable_mosaic.version = 11 : i64} {
  func.func @_pw_kernel(%arg0: i32, %arg1: i32, %arg2: memref<1x64x27xbf16, #tpu.memory_space<vmem>>, %arg3: memref<27x128xbf16, #tpu.memory_space<vmem>>, %arg4: memref<1x128xf32, #tpu.memory_space<vmem>>, %arg5: memref<1x64x128xbf16, #tpu.memory_space<vmem>>) attributes {dimension_semantics = [#tpu.dimension_semantics<parallel>, #tpu.dimension_semantics<parallel>], iteration_bounds = array<i64: 2, 1>, scalar_prefetch = 0 : i64, scratch_operands = 0 : i64, tpu.core_type = #tpu.core_type<tc>, window_params = [{transform_indices = @transform_0, window_bounds = array<i64: 1, 64, 27>}, {pipeline_mode = #tpu.pipeline_mode<synchronous>, transform_indices = @transform_1, window_bounds = array<i64: 27, 128>}, {pipeline_mode = #tpu.pipeline_mode<synchronous>, transform_indices = @transform_2, window_bounds = array<i64: 1, 128>}, {transform_indices = @transform_3, window_bounds = array<i64: 1, 64, 128>}]} {
    %c0 = arith.constant 0 : index
    %c0_0 = arith.constant 0 : index
    %c0_1 = arith.constant 0 : index
    %0 = vector.load %arg2[%c0, %c0_0, %c0_1] : memref<1x64x27xbf16, #tpu.memory_space<vmem>>, vector<1x64x27xbf16>
    %1 = vector.shape_cast %0 : vector<1x64x27xbf16> to vector<64x27xbf16>
    %c0_2 = arith.constant 0 : index
    %c0_3 = arith.constant 0 : index
    %2 = vector.load %arg3[%c0_2, %c0_3] : memref<27x128xbf16, #tpu.memory_space<vmem>>, vector<27x128xbf16>
    %cst = arith.constant dense<0.000000e+00> : vector<64x128xf32>
    %3 = tpu.matmul %1, %2, %cst {dimension_numbers = #tpu.dot_dimension_numbers<[1], [0], [0], [1], [0, 0, 1, 1], [], []>} : vector<64x27xbf16>, vector<27x128xbf16>, vector<64x128xf32> -> vector<64x128xf32>
    %c0_4 = arith.constant 0 : index
    %c0_5 = arith.constant 0 : index
    %4 = vector.load %arg4[%c0_4, %c0_5] : memref<1x128xf32, #tpu.memory_space<vmem>>, vector<1x128xf32>
    %5 = vector.broadcast %4 : vector<1x128xf32> to vector<64x128xf32>
    %6 = arith.addf %3, %5 : vector<64x128xf32>
    %7 = arith.negf %6 : vector<64x128xf32>
    %8 = math.exp %7 : vector<64x128xf32>
    %cst_6 = arith.constant 1.000000e+00 : f32
    %9 = vector.broadcast %cst_6 : f32 to vector<64x128xf32>
    %10 = arith.addf %9, %8 : vector<64x128xf32>
    %11 = arith.divf %9, %10 : vector<64x128xf32>
    %12 = arith.mulf %6, %11 : vector<64x128xf32>
    %13 = arith.truncf %12 : vector<64x128xf32> to vector<64x128xbf16>
    %c0_7 = arith.constant 0 : index
    %c0_8 = arith.constant 0 : index
    %c0_9 = arith.constant 0 : index
    %14 = vector.load %arg5[%c0_7, %c0_8, %c0_9] : memref<1x64x128xbf16, #tpu.memory_space<vmem>>, vector<1x64x128xbf16>
    %15 = vector.shape_cast %14 : vector<1x64x128xbf16> to vector<64x128xbf16>
    %16 = vector.shape_cast %13 : vector<64x128xbf16> to vector<1x64x128xbf16>
    tpu.vector_store %arg5[%c0_7, %c0_8, %c0_9], %16 {strides = array<i32>} : memref<1x64x128xbf16, #tpu.memory_space<vmem>>, vector<1x64x128xbf16>,
    return
  }
  func.func @transform_0(%arg0: i32, %arg1: i32) -> (i32, i32, i32) {
    %c0_i32 = arith.constant 0 : i32
    %c0_i32_0 = arith.constant 0 : i32
    return %arg0, %arg1, %c0_i32 : i32, i32, i32
  }
  func.func @transform_1(%arg0: i32, %arg1: i32) -> (i32, i32) {
    %c0_i32 = arith.constant 0 : i32
    %c0_i32_0 = arith.constant 0 : i32
    %c0_i32_1 = arith.constant 0 : i32
    return %c0_i32, %c0_i32_0 : i32, i32
  }
  func.func @transform_2(%arg0: i32, %arg1: i32) -> (i32, i32) {
    %c0_i32 = arith.constant 0 : i32
    %c0_i32_0 = arith.constant 0 : i32
    %c0_i32_1 = arith.constant 0 : i32
    return %c0_i32, %c0_i32_0 : i32, i32
  }
  func.func @transform_3(%arg0: i32, %arg1: i32) -> (i32, i32, i32) {
    %c0_i32 = arith.constant 0 : i32
    %c0_i32_0 = arith.constant 0 : i32
    return %arg0, %arg1, %c0_i32 : i32, i32, i32
  }
}

module attributes {stable_mosaic.version = 11 : i64} {
  func.func @_dwconv_kernel(%arg0: i32, %arg1: i32, %arg2: memref<1x10x16x128xbf16, #tpu.memory_space<vmem>>, %arg3: memref<9x128xbf16, #tpu.memory_space<vmem>>, %arg4: memref<1x128xf32, #tpu.memory_space<vmem>>, %arg5: memref<1x4x8x128xbf16, #tpu.memory_space<vmem>>, %arg6: memref<1x1x128xf32, #tpu.memory_space<vmem>>) attributes {dimension_semantics = [#tpu.dimension_semantics<parallel>, #tpu.dimension_semantics<arbitrary>], iteration_bounds = array<i64: 2, 2>, scalar_prefetch = 0 : i64, scratch_operands = 0 : i64, tpu.core_type = #tpu.core_type<tc>, window_params = [{transform_indices = @transform_0, window_bounds = array<i64: 1, 10, 16, 128>}, {pipeline_mode = #tpu.pipeline_mode<synchronous>, transform_indices = @transform_1, window_bounds = array<i64: 9, 128>}, {pipeline_mode = #tpu.pipeline_mode<synchronous>, transform_indices = @transform_2, window_bounds = array<i64: 1, 128>}, {transform_indices = @transform_3, window_bounds = array<i64: 1, 4, 8, 128>}, {transform_indices = @transform_4, window_bounds = array<i64: 1, 1, 128>}]} {
    %c4_i32 = arith.constant 4 : i32
    %0 = arith.muli %arg1, %c4_i32 : i32
    %1 = tpu.assume_multiple %0, 4 : i32
    %c0 = arith.constant 0 : index
    %2 = arith.index_cast %1 : i32 to index
    %c0_0 = arith.constant 0 : index
    %c0_1 = arith.constant 0 : index
    %3 = vector.load %arg2[%c0, %2, %c0_0, %c0_1] : memref<1x10x16x128xbf16, #tpu.memory_space<vmem>>, vector<1x6x16x128xbf16>
    %4 = vector.shape_cast %3 : vector<1x6x16x128xbf16> to vector<6x16x128xbf16>
    %5 = arith.extf %4 : vector<6x16x128xbf16> to vector<6x16x128xf32>
    %c15_i32 = arith.constant 15 : i32
    %6 = tpu.dynamic_rotate %5 by %c15_i32 dim 1 : vector<6x16x128xf32>, i32 -> vector<6x16x128xf32>
    %c14_i32 = arith.constant 14 : i32
    %7 = tpu.dynamic_rotate %5 by %c14_i32 dim 1 : vector<6x16x128xf32>, i32 -> vector<6x16x128xf32>
    %c0_2 = arith.constant 0 : index
    %c0_3 = arith.constant 0 : index
    %8 = vector.load %arg3[%c0_2, %c0_3] : memref<9x128xbf16, #tpu.memory_space<vmem>>, vector<9x128xbf16>
    %9 = arith.extf %8 : vector<9x128xbf16> to vector<9x128xf32>
    %cst = arith.constant 0.000000e+00 : f32
    %10 = vector.broadcast %cst : f32 to vector<4x8x128xf32>
    %11 = vector.extract_strided_slice %5 {offsets = [0, 0, 0], sizes = [4, 8, 128], strides = [1, 1, 1]} : vector<6x16x128xf32> to vector<4x8x128xf32>
    %12 = vector.extract_strided_slice %9 {offsets = [0, 0], sizes = [1, 128], strides = [1, 1]} : vector<9x128xf32> to vector<1x128xf32>
    %13 = vector.shape_cast %12 : vector<1x128xf32> to vector<128xf32>
    %14 = vector.shape_cast %13 : vector<128xf32> to vector<1x1x128xf32>
    %15 = vector.broadcast %14 : vector<1x1x128xf32> to vector<4x8x128xf32>
    %16 = arith.mulf %11, %15 : vector<4x8x128xf32>
    %17 = arith.addf %10, %16 : vector<4x8x128xf32>
    %18 = vector.extract_strided_slice %6 {offsets = [0, 0, 0], sizes = [4, 8, 128], strides = [1, 1, 1]} : vector<6x16x128xf32> to vector<4x8x128xf32>
    %19 = vector.extract_strided_slice %9 {offsets = [1, 0], sizes = [1, 128], strides = [1, 1]} : vector<9x128xf32> to vector<1x128xf32>
    %20 = vector.shape_cast %19 : vector<1x128xf32> to vector<128xf32>
    %21 = vector.shape_cast %20 : vector<128xf32> to vector<1x1x128xf32>
    %22 = vector.broadcast %21 : vector<1x1x128xf32> to vector<4x8x128xf32>
    %23 = arith.mulf %18, %22 : vector<4x8x128xf32>
    %24 = arith.addf %17, %23 : vector<4x8x128xf32>
    %25 = vector.extract_strided_slice %7 {offsets = [0, 0, 0], sizes = [4, 8, 128], strides = [1, 1, 1]} : vector<6x16x128xf32> to vector<4x8x128xf32>
    %26 = vector.extract_strided_slice %9 {offsets = [2, 0], sizes = [1, 128], strides = [1, 1]} : vector<9x128xf32> to vector<1x128xf32>
    %27 = vector.shape_cast %26 : vector<1x128xf32> to vector<128xf32>
    %28 = vector.shape_cast %27 : vector<128xf32> to vector<1x1x128xf32>
    %29 = vector.broadcast %28 : vector<1x1x128xf32> to vector<4x8x128xf32>
    %30 = arith.mulf %25, %29 : vector<4x8x128xf32>
    %31 = arith.addf %24, %30 : vector<4x8x128xf32>
    %32 = vector.extract_strided_slice %5 {offsets = [1, 0, 0], sizes = [4, 8, 128], strides = [1, 1, 1]} : vector<6x16x128xf32> to vector<4x8x128xf32>
    %33 = vector.extract_strided_slice %9 {offsets = [3, 0], sizes = [1, 128], strides = [1, 1]} : vector<9x128xf32> to vector<1x128xf32>
    %34 = vector.shape_cast %33 : vector<1x128xf32> to vector<128xf32>
    %35 = vector.shape_cast %34 : vector<128xf32> to vector<1x1x128xf32>
    %36 = vector.broadcast %35 : vector<1x1x128xf32> to vector<4x8x128xf32>
    %37 = arith.mulf %32, %36 : vector<4x8x128xf32>
    %38 = arith.addf %31, %37 : vector<4x8x128xf32>
    %39 = vector.extract_strided_slice %6 {offsets = [1, 0, 0], sizes = [4, 8, 128], strides = [1, 1, 1]} : vector<6x16x128xf32> to vector<4x8x128xf32>
    %40 = vector.extract_strided_slice %9 {offsets = [4, 0], sizes = [1, 128], strides = [1, 1]} : vector<9x128xf32> to vector<1x128xf32>
    %41 = vector.shape_cast %40 : vector<1x128xf32> to vector<128xf32>
    %42 = vector.shape_cast %41 : vector<128xf32> to vector<1x1x128xf32>
    %43 = vector.broadcast %42 : vector<1x1x128xf32> to vector<4x8x128xf32>
    %44 = arith.mulf %39, %43 : vector<4x8x128xf32>
    %45 = arith.addf %38, %44 : vector<4x8x128xf32>
    %46 = vector.extract_strided_slice %7 {offsets = [1, 0, 0], sizes = [4, 8, 128], strides = [1, 1, 1]} : vector<6x16x128xf32> to vector<4x8x128xf32>
    %47 = vector.extract_strided_slice %9 {offsets = [5, 0], sizes = [1, 128], strides = [1, 1]} : vector<9x128xf32> to vector<1x128xf32>
    %48 = vector.shape_cast %47 : vector<1x128xf32> to vector<128xf32>
    %49 = vector.shape_cast %48 : vector<128xf32> to vector<1x1x128xf32>
    %50 = vector.broadcast %49 : vector<1x1x128xf32> to vector<4x8x128xf32>
    %51 = arith.mulf %46, %50 : vector<4x8x128xf32>
    %52 = arith.addf %45, %51 : vector<4x8x128xf32>
    %53 = vector.extract_strided_slice %5 {offsets = [2, 0, 0], sizes = [4, 8, 128], strides = [1, 1, 1]} : vector<6x16x128xf32> to vector<4x8x128xf32>
    %54 = vector.extract_strided_slice %9 {offsets = [6, 0], sizes = [1, 128], strides = [1, 1]} : vector<9x128xf32> to vector<1x128xf32>
    %55 = vector.shape_cast %54 : vector<1x128xf32> to vector<128xf32>
    %56 = vector.shape_cast %55 : vector<128xf32> to vector<1x1x128xf32>
    %57 = vector.broadcast %56 : vector<1x1x128xf32> to vector<4x8x128xf32>
    %58 = arith.mulf %53, %57 : vector<4x8x128xf32>
    %59 = arith.addf %52, %58 : vector<4x8x128xf32>
    %60 = vector.extract_strided_slice %6 {offsets = [2, 0, 0], sizes = [4, 8, 128], strides = [1, 1, 1]} : vector<6x16x128xf32> to vector<4x8x128xf32>
    %61 = vector.extract_strided_slice %9 {offsets = [7, 0], sizes = [1, 128], strides = [1, 1]} : vector<9x128xf32> to vector<1x128xf32>
    %62 = vector.shape_cast %61 : vector<1x128xf32> to vector<128xf32>
    %63 = vector.shape_cast %62 : vector<128xf32> to vector<1x1x128xf32>
    %64 = vector.broadcast %63 : vector<1x1x128xf32> to vector<4x8x128xf32>
    %65 = arith.mulf %60, %64 : vector<4x8x128xf32>
    %66 = arith.addf %59, %65 : vector<4x8x128xf32>
    %67 = vector.extract_strided_slice %7 {offsets = [2, 0, 0], sizes = [4, 8, 128], strides = [1, 1, 1]} : vector<6x16x128xf32> to vector<4x8x128xf32>
    %68 = vector.extract_strided_slice %9 {offsets = [8, 0], sizes = [1, 128], strides = [1, 1]} : vector<9x128xf32> to vector<1x128xf32>
    %69 = vector.shape_cast %68 : vector<1x128xf32> to vector<128xf32>
    %70 = vector.shape_cast %69 : vector<128xf32> to vector<1x1x128xf32>
    %71 = vector.broadcast %70 : vector<1x1x128xf32> to vector<4x8x128xf32>
    %72 = arith.mulf %67, %71 : vector<4x8x128xf32>
    %73 = arith.addf %66, %72 : vector<4x8x128xf32>
    %c0_4 = arith.constant 0 : index
    %c0_5 = arith.constant 0 : index
    %74 = vector.load %arg4[%c0_4, %c0_5] : memref<1x128xf32, #tpu.memory_space<vmem>>, vector<1x128xf32>
    %75 = vector.shape_cast %74 : vector<1x128xf32> to vector<1x1x128xf32>
    %76 = vector.broadcast %75 : vector<1x1x128xf32> to vector<4x8x128xf32>
    %77 = arith.addf %73, %76 : vector<4x8x128xf32>
    %78 = arith.negf %77 : vector<4x8x128xf32>
    %79 = math.exp %78 : vector<4x8x128xf32>
    %cst_6 = arith.constant 1.000000e+00 : f32
    %80 = vector.broadcast %cst_6 : f32 to vector<4x8x128xf32>
    %81 = arith.addf %80, %79 : vector<4x8x128xf32>
    %82 = arith.divf %80, %81 : vector<4x8x128xf32>
    %83 = arith.mulf %77, %82 : vector<4x8x128xf32>
    %84 = arith.truncf %83 : vector<4x8x128xf32> to vector<4x8x128xbf16>
    %c0_7 = arith.constant 0 : index
    %c0_8 = arith.constant 0 : index
    %c0_9 = arith.constant 0 : index
    %c0_10 = arith.constant 0 : index
    %85 = vector.load %arg5[%c0_7, %c0_8, %c0_9, %c0_10] : memref<1x4x8x128xbf16, #tpu.memory_space<vmem>>, vector<1x4x8x128xbf16>
    %86 = vector.shape_cast %85 : vector<1x4x8x128xbf16> to vector<4x8x128xbf16>
    %87 = vector.shape_cast %84 : vector<4x8x128xbf16> to vector<1x4x8x128xbf16>
    tpu.vector_store %arg5[%c0_7, %c0_8, %c0_9, %c0_10], %87 {strides = array<i32>} : memref<1x4x8x128xbf16, #tpu.memory_space<vmem>>, vector<1x4x8x128xbf16>,
    %c0_i32 = arith.constant 0 : i32
    %88 = arith.cmpi eq, %arg1, %c0_i32 : i32
    %89 = arith.extui %88 : i1 to i32
    %c0_i32_11 = arith.constant 0 : i32
    %90 = arith.cmpi ne, %89, %c0_i32_11 : i32
    scf.if %90 {
      %cst_20 = arith.constant 0.000000e+00 : f32
      %98 = vector.broadcast %cst_20 : f32 to vector<1x1x128xf32>
      %c0_21 = arith.constant 0 : index
      %c0_22 = arith.constant 0 : index
      %c0_23 = arith.constant 0 : index
      %99 = vector.load %arg6[%c0_21, %c0_22, %c0_23] : memref<1x1x128xf32, #tpu.memory_space<vmem>>, vector<1x1x128xf32>
      tpu.vector_store %arg6[%c0_21, %c0_22, %c0_23], %98 {strides = array<i32>} : memref<1x1x128xf32, #tpu.memory_space<vmem>>, vector<1x1x128xf32>,
    } else {
    }
    %c0_12 = arith.constant 0 : index
    %c0_13 = arith.constant 0 : index
    %c0_14 = arith.constant 0 : index
    %91 = vector.load %arg6[%c0_12, %c0_13, %c0_14] : memref<1x1x128xf32, #tpu.memory_space<vmem>>, vector<1x1x128xf32>
    %cst_15 = arith.constant dense<0.000000e+00> : vector<128xf32>
    %92 = vector.multi_reduction <add>, %83, %cst_15 [0, 1] : vector<4x8x128xf32> to vector<128xf32>
    %cst_16 = arith.constant 1.562500e-02 : f32
    %93 = vector.broadcast %cst_16 : f32 to vector<128xf32>
    %94 = arith.mulf %92, %93 : vector<128xf32>
    %95 = vector.shape_cast %94 : vector<128xf32> to vector<1x1x128xf32>
    %96 = arith.addf %91, %95 : vector<1x1x128xf32>
    %c0_17 = arith.constant 0 : index
    %c0_18 = arith.constant 0 : index
    %c0_19 = arith.constant 0 : index
    %97 = vector.load %arg6[%c0_17, %c0_18, %c0_19] : memref<1x1x128xf32, #tpu.memory_space<vmem>>, vector<1x1x128xf32>
    tpu.vector_store %arg6[%c0_17, %c0_18, %c0_19], %96 {strides = array<i32>} : memref<1x1x128xf32, #tpu.memory_space<vmem>>, vector<1x1x128xf32>,
    return
  }
  func.func @transform_0(%arg0: i32, %arg1: i32) -> (i32, i32, i32, i32) {
    %c0_i32 = arith.constant 0 : i32
    %c0_i32_0 = arith.constant 0 : i32
    %c0_i32_1 = arith.constant 0 : i32
    %c0_i32_2 = arith.constant 0 : i32
    return %arg0, %c0_i32, %c0_i32_0, %c0_i32_1 : i32, i32, i32, i32
  }
  func.func @transform_1(%arg0: i32, %arg1: i32) -> (i32, i32) {
    %c0_i32 = arith.constant 0 : i32
    %c0_i32_0 = arith.constant 0 : i32
    %c0_i32_1 = arith.constant 0 : i32
    return %c0_i32, %c0_i32_0 : i32, i32
  }
  func.func @transform_2(%arg0: i32, %arg1: i32) -> (i32, i32) {
    %c0_i32 = arith.constant 0 : i32
    %c0_i32_0 = arith.constant 0 : i32
    %c0_i32_1 = arith.constant 0 : i32
    return %c0_i32, %c0_i32_0 : i32, i32
  }
  func.func @transform_3(%arg0: i32, %arg1: i32) -> (i32, i32, i32, i32) {
    %c0_i32 = arith.constant 0 : i32
    %c0_i32_0 = arith.constant 0 : i32
    %c0_i32_1 = arith.constant 0 : i32
    return %arg0, %arg1, %c0_i32, %c0_i32_0 : i32, i32, i32, i32
  }
  func.func @transform_4(%arg0: i32, %arg1: i32) -> (i32, i32, i32) {
    %c0_i32 = arith.constant 0 : i32
    %c0_i32_0 = arith.constant 0 : i32
    %c0_i32_1 = arith.constant 0 : i32
    return %arg0, %c0_i32, %c0_i32_0 : i32, i32, i32
  }
}

module attributes {stable_mosaic.version = 11 : i64} {
  func.func @_se_gate_kernel(%arg0: memref<2x1x128xf32, #tpu.memory_space<vmem>>, %arg1: memref<128x128xbf16, #tpu.memory_space<vmem>>, %arg2: memref<1x128xf32, #tpu.memory_space<vmem>>, %arg3: memref<128x128xbf16, #tpu.memory_space<vmem>>, %arg4: memref<1x128xf32, #tpu.memory_space<vmem>>, %arg5: memref<2x1x128xbf16, #tpu.memory_space<vmem>>) attributes {dimension_semantics = [], scalar_prefetch = 0 : i64, scratch_operands = 0 : i64, tpu.core_type = #tpu.core_type<tc>} {
    %c0 = arith.constant 0 : index
    %c0_0 = arith.constant 0 : index
    %c0_1 = arith.constant 0 : index
    %0 = vector.load %arg0[%c0, %c0_0, %c0_1] : memref<2x1x128xf32, #tpu.memory_space<vmem>>, vector<2x1x128xf32>
    %1 = vector.shape_cast %0 : vector<2x1x128xf32> to vector<2x128xf32>
    %2 = arith.truncf %1 : vector<2x128xf32> to vector<2x128xbf16>
    %c0_2 = arith.constant 0 : index
    %c0_3 = arith.constant 0 : index
    %3 = vector.load %arg1[%c0_2, %c0_3] : memref<128x128xbf16, #tpu.memory_space<vmem>>, vector<128x128xbf16>
    %cst = arith.constant dense<0.000000e+00> : vector<2x128xf32>
    %4 = tpu.matmul %2, %3, %cst {dimension_numbers = #tpu.dot_dimension_numbers<[1], [0], [0], [1], [0, 0, 1, 1], [], []>} : vector<2x128xbf16>, vector<128x128xbf16>, vector<2x128xf32> -> vector<2x128xf32>
    %c0_4 = arith.constant 0 : index
    %c0_5 = arith.constant 0 : index
    %5 = vector.load %arg2[%c0_4, %c0_5] : memref<1x128xf32, #tpu.memory_space<vmem>>, vector<1x128xf32>
    %6 = vector.broadcast %5 : vector<1x128xf32> to vector<2x128xf32>
    %7 = arith.addf %4, %6 : vector<2x128xf32>
    %8 = arith.negf %7 : vector<2x128xf32>
    %9 = math.exp %8 : vector<2x128xf32>
    %cst_6 = arith.constant 1.000000e+00 : f32
    %10 = vector.broadcast %cst_6 : f32 to vector<2x128xf32>
    %11 = arith.addf %10, %9 : vector<2x128xf32>
    %12 = arith.divf %10, %11 : vector<2x128xf32>
    %13 = arith.mulf %7, %12 : vector<2x128xf32>
    %14 = arith.truncf %13 : vector<2x128xf32> to vector<2x128xbf16>
    %c0_7 = arith.constant 0 : index
    %c0_8 = arith.constant 0 : index
    %15 = vector.load %arg3[%c0_7, %c0_8] : memref<128x128xbf16, #tpu.memory_space<vmem>>, vector<128x128xbf16>
    %cst_9 = arith.constant dense<0.000000e+00> : vector<2x128xf32>
    %16 = tpu.matmul %14, %15, %cst_9 {dimension_numbers = #tpu.dot_dimension_numbers<[1], [0], [0], [1], [0, 0, 1, 1], [], []>} : vector<2x128xbf16>, vector<128x128xbf16>, vector<2x128xf32> -> vector<2x128xf32>
    %c0_10 = arith.constant 0 : index
    %c0_11 = arith.constant 0 : index
    %17 = vector.load %arg4[%c0_10, %c0_11] : memref<1x128xf32, #tpu.memory_space<vmem>>, vector<1x128xf32>
    %18 = vector.broadcast %17 : vector<1x128xf32> to vector<2x128xf32>
    %19 = arith.addf %16, %18 : vector<2x128xf32>
    %20 = arith.negf %19 : vector<2x128xf32>
    %21 = math.exp %20 : vector<2x128xf32>
    %cst_12 = arith.constant 1.000000e+00 : f32
    %22 = vector.broadcast %cst_12 : f32 to vector<2x128xf32>
    %23 = arith.addf %22, %21 : vector<2x128xf32>
    %24 = arith.divf %22, %23 : vector<2x128xf32>
    %25 = tpu.iota {dimensions = array<i32: 1>} : vector<2x128xi32>
    %c32_i32 = arith.constant 32 : i32
    %26 = vector.broadcast %c32_i32 : i32 to vector<2x128xi32>
    %27 = arith.cmpi slt, %25, %26 : vector<2x128xi32>
    %cst_13 = arith.constant 0.000000e+00 : f32
    %28 = vector.broadcast %cst_13 : f32 to vector<2x128xf32>
    %29 = arith.select %27, %24, %28 : vector<2x128xi1>, vector<2x128xf32>
    %30 = vector.shape_cast %29 : vector<2x128xf32> to vector<2x1x128xf32>
    %31 = arith.truncf %30 : vector<2x1x128xf32> to vector<2x1x128xbf16>
    %c0_14 = arith.constant 0 : index
    %c0_15 = arith.constant 0 : index
    %c0_16 = arith.constant 0 : index
    %32 = vector.load %arg5[%c0_14, %c0_15, %c0_16] : memref<2x1x128xbf16, #tpu.memory_space<vmem>>, vector<2x1x128xbf16>
    tpu.vector_store %arg5[%c0_14, %c0_15, %c0_16], %31 {strides = array<i32>} : memref<2x1x128xbf16, #tpu.memory_space<vmem>>, vector<2x1x128xbf16>,
    return
  }
}

module attributes {stable_mosaic.version = 11 : i64} {
  func.func @_gated_pw2_kernel(%arg0: i32, %arg1: i32, %arg2: memref<1x64x128xbf16, #tpu.memory_space<vmem>>, %arg3: memref<1x1x128xbf16, #tpu.memory_space<vmem>>, %arg4: memref<128x128xbf16, #tpu.memory_space<vmem>>, %arg5: memref<1x128xf32, #tpu.memory_space<vmem>>, %arg6: memref<128x128xbf16, #tpu.memory_space<vmem>>, %arg7: memref<1x128xf32, #tpu.memory_space<vmem>>, %arg8: memref<1x64x128xbf16, #tpu.memory_space<vmem>>) attributes {dimension_semantics = [#tpu.dimension_semantics<parallel>, #tpu.dimension_semantics<parallel>], iteration_bounds = array<i64: 2, 1>, scalar_prefetch = 0 : i64, scratch_operands = 0 : i64, tpu.core_type = #tpu.core_type<tc>, window_params = [{transform_indices = @transform_0, window_bounds = array<i64: 1, 64, 128>}, {transform_indices = @transform_1, window_bounds = array<i64: 1, 1, 128>}, {pipeline_mode = #tpu.pipeline_mode<synchronous>, transform_indices = @transform_2, window_bounds = array<i64: 128, 128>}, {pipeline_mode = #tpu.pipeline_mode<synchronous>, transform_indices = @transform_3, window_bounds = array<i64: 1, 128>}, {pipeline_mode = #tpu.pipeline_mode<synchronous>, transform_indices = @transform_4, window_bounds = array<i64: 128, 128>}, {pipeline_mode = #tpu.pipeline_mode<synchronous>, transform_indices = @transform_5, window_bounds = array<i64: 1, 128>}, {transform_indices = @transform_6, window_bounds = array<i64: 1, 64, 128>}]} {
    %c0 = arith.constant 0 : index
    %c0_0 = arith.constant 0 : index
    %c0_1 = arith.constant 0 : index
    %0 = vector.load %arg2[%c0, %c0_0, %c0_1] : memref<1x64x128xbf16, #tpu.memory_space<vmem>>, vector<1x64x128xbf16>
    %1 = vector.shape_cast %0 : vector<1x64x128xbf16> to vector<64x128xbf16>
    %c0_2 = arith.constant 0 : index
    %c0_3 = arith.constant 0 : index
    %c0_4 = arith.constant 0 : index
    %2 = vector.load %arg3[%c0_2, %c0_3, %c0_4] : memref<1x1x128xbf16, #tpu.memory_space<vmem>>, vector<1x1x128xbf16>
    %3 = vector.shape_cast %2 : vector<1x1x128xbf16> to vector<1x128xbf16>
    %4 = vector.broadcast %3 : vector<1x128xbf16> to vector<64x128xbf16>
    %5 = arith.mulf %1, %4 : vector<64x128xbf16>
    %c0_5 = arith.constant 0 : index
    %c0_6 = arith.constant 0 : index
    %6 = vector.load %arg4[%c0_5, %c0_6] : memref<128x128xbf16, #tpu.memory_space<vmem>>, vector<128x128xbf16>
    %cst = arith.constant dense<0.000000e+00> : vector<64x128xf32>
    %7 = tpu.matmul %5, %6, %cst {dimension_numbers = #tpu.dot_dimension_numbers<[1], [0], [0], [1], [0, 0, 1, 1], [], []>} : vector<64x128xbf16>, vector<128x128xbf16>, vector<64x128xf32> -> vector<64x128xf32>
    %c0_7 = arith.constant 0 : index
    %c0_8 = arith.constant 0 : index
    %8 = vector.load %arg5[%c0_7, %c0_8] : memref<1x128xf32, #tpu.memory_space<vmem>>, vector<1x128xf32>
    %9 = vector.broadcast %8 : vector<1x128xf32> to vector<64x128xf32>
    %10 = arith.addf %7, %9 : vector<64x128xf32>
    %11 = arith.truncf %10 : vector<64x128xf32> to vector<64x128xbf16>
    %c0_9 = arith.constant 0 : index
    %c0_10 = arith.constant 0 : index
    %12 = vector.load %arg6[%c0_9, %c0_10] : memref<128x128xbf16, #tpu.memory_space<vmem>>, vector<128x128xbf16>
    %cst_11 = arith.constant dense<0.000000e+00> : vector<64x128xf32>
    %13 = tpu.matmul %11, %12, %cst_11 {dimension_numbers = #tpu.dot_dimension_numbers<[1], [0], [0], [1], [0, 0, 1, 1], [], []>} : vector<64x128xbf16>, vector<128x128xbf16>, vector<64x128xf32> -> vector<64x128xf32>
    %c0_12 = arith.constant 0 : index
    %c0_13 = arith.constant 0 : index
    %14 = vector.load %arg7[%c0_12, %c0_13] : memref<1x128xf32, #tpu.memory_space<vmem>>, vector<1x128xf32>
    %15 = vector.broadcast %14 : vector<1x128xf32> to vector<64x128xf32>
    %16 = arith.addf %13, %15 : vector<64x128xf32>
    %17 = arith.negf %16 : vector<64x128xf32>
    %18 = math.exp %17 : vector<64x128xf32>
    %cst_14 = arith.constant 1.000000e+00 : f32
    %19 = vector.broadcast %cst_14 : f32 to vector<64x128xf32>
    %20 = arith.addf %19, %18 : vector<64x128xf32>
    %21 = arith.divf %19, %20 : vector<64x128xf32>
    %22 = arith.mulf %16, %21 : vector<64x128xf32>
    %23 = arith.truncf %22 : vector<64x128xf32> to vector<64x128xbf16>
    %c0_15 = arith.constant 0 : index
    %c0_16 = arith.constant 0 : index
    %c0_17 = arith.constant 0 : index
    %24 = vector.load %arg8[%c0_15, %c0_16, %c0_17] : memref<1x64x128xbf16, #tpu.memory_space<vmem>>, vector<1x64x128xbf16>
    %25 = vector.shape_cast %24 : vector<1x64x128xbf16> to vector<64x128xbf16>
    %26 = vector.shape_cast %23 : vector<64x128xbf16> to vector<1x64x128xbf16>
    tpu.vector_store %arg8[%c0_15, %c0_16, %c0_17], %26 {strides = array<i32>} : memref<1x64x128xbf16, #tpu.memory_space<vmem>>, vector<1x64x128xbf16>,
    return
  }
  func.func @transform_0(%arg0: i32, %arg1: i32) -> (i32, i32, i32) {
    %c0_i32 = arith.constant 0 : i32
    %c0_i32_0 = arith.constant 0 : i32
    return %arg0, %arg1, %c0_i32 : i32, i32, i32
  }
  func.func @transform_1(%arg0: i32, %arg1: i32) -> (i32, i32, i32) {
    %c0_i32 = arith.constant 0 : i32
    %c0_i32_0 = arith.constant 0 : i32
    %c0_i32_1 = arith.constant 0 : i32
    return %arg0, %c0_i32, %c0_i32_0 : i32, i32, i32
  }
  func.func @transform_2(%arg0: i32, %arg1: i32) -> (i32, i32) {
    %c0_i32 = arith.constant 0 : i32
    %c0_i32_0 = arith.constant 0 : i32
    %c0_i32_1 = arith.constant 0 : i32
    return %c0_i32, %c0_i32_0 : i32, i32
  }
  func.func @transform_3(%arg0: i32, %arg1: i32) -> (i32, i32) {
    %c0_i32 = arith.constant 0 : i32
    %c0_i32_0 = arith.constant 0 : i32
    %c0_i32_1 = arith.constant 0 : i32
    return %c0_i32, %c0_i32_0 : i32, i32
  }
  func.func @transform_4(%arg0: i32, %arg1: i32) -> (i32, i32) {
    %c0_i32 = arith.constant 0 : i32
    %c0_i32_0 = arith.constant 0 : i32
    %c0_i32_1 = arith.constant 0 : i32
    return %c0_i32, %c0_i32_0 : i32, i32
  }
  func.func @transform_5(%arg0: i32, %arg1: i32) -> (i32, i32) {
    %c0_i32 = arith.constant 0 : i32
    %c0_i32_0 = arith.constant 0 : i32
    %c0_i32_1 = arith.constant 0 : i32
    return %c0_i32, %c0_i32_0 : i32, i32
  }
  func.func @transform_6(%arg0: i32, %arg1: i32) -> (i32, i32, i32) {
    %c0_i32 = arith.constant 0 : i32
    %c0_i32_0 = arith.constant 0 : i32
    return %arg0, %arg1, %c0_i32 : i32, i32, i32
  }
}

module attributes {stable_mosaic.version = 11 : i64} {
  func.func @_se_gate_kernel(%arg0: memref<2x1x128xf32, #tpu.memory_space<vmem>>, %arg1: memref<128x128xbf16, #tpu.memory_space<vmem>>, %arg2: memref<1x128xf32, #tpu.memory_space<vmem>>, %arg3: memref<128x128xbf16, #tpu.memory_space<vmem>>, %arg4: memref<1x128xf32, #tpu.memory_space<vmem>>, %arg5: memref<2x1x128xbf16, #tpu.memory_space<vmem>>) attributes {dimension_semantics = [], scalar_prefetch = 0 : i64, scratch_operands = 0 : i64, tpu.core_type = #tpu.core_type<tc>} {
    %c0 = arith.constant 0 : index
    %c0_0 = arith.constant 0 : index
    %c0_1 = arith.constant 0 : index
    %0 = vector.load %arg0[%c0, %c0_0, %c0_1] : memref<2x1x128xf32, #tpu.memory_space<vmem>>, vector<2x1x128xf32>
    %1 = vector.shape_cast %0 : vector<2x1x128xf32> to vector<2x128xf32>
    %2 = arith.truncf %1 : vector<2x128xf32> to vector<2x128xbf16>
    %c0_2 = arith.constant 0 : index
    %c0_3 = arith.constant 0 : index
    %3 = vector.load %arg1[%c0_2, %c0_3] : memref<128x128xbf16, #tpu.memory_space<vmem>>, vector<128x128xbf16>
    %cst = arith.constant dense<0.000000e+00> : vector<2x128xf32>
    %4 = tpu.matmul %2, %3, %cst {dimension_numbers = #tpu.dot_dimension_numbers<[1], [0], [0], [1], [0, 0, 1, 1], [], []>} : vector<2x128xbf16>, vector<128x128xbf16>, vector<2x128xf32> -> vector<2x128xf32>
    %c0_4 = arith.constant 0 : index
    %c0_5 = arith.constant 0 : index
    %5 = vector.load %arg2[%c0_4, %c0_5] : memref<1x128xf32, #tpu.memory_space<vmem>>, vector<1x128xf32>
    %6 = vector.broadcast %5 : vector<1x128xf32> to vector<2x128xf32>
    %7 = arith.addf %4, %6 : vector<2x128xf32>
    %8 = arith.negf %7 : vector<2x128xf32>
    %9 = math.exp %8 : vector<2x128xf32>
    %cst_6 = arith.constant 1.000000e+00 : f32
    %10 = vector.broadcast %cst_6 : f32 to vector<2x128xf32>
    %11 = arith.addf %10, %9 : vector<2x128xf32>
    %12 = arith.divf %10, %11 : vector<2x128xf32>
    %13 = arith.mulf %7, %12 : vector<2x128xf32>
    %14 = arith.truncf %13 : vector<2x128xf32> to vector<2x128xbf16>
    %c0_7 = arith.constant 0 : index
    %c0_8 = arith.constant 0 : index
    %15 = vector.load %arg3[%c0_7, %c0_8] : memref<128x128xbf16, #tpu.memory_space<vmem>>, vector<128x128xbf16>
    %cst_9 = arith.constant dense<0.000000e+00> : vector<2x128xf32>
    %16 = tpu.matmul %14, %15, %cst_9 {dimension_numbers = #tpu.dot_dimension_numbers<[1], [0], [0], [1], [0, 0, 1, 1], [], []>} : vector<2x128xbf16>, vector<128x128xbf16>, vector<2x128xf32> -> vector<2x128xf32>
    %c0_10 = arith.constant 0 : index
    %c0_11 = arith.constant 0 : index
    %17 = vector.load %arg4[%c0_10, %c0_11] : memref<1x128xf32, #tpu.memory_space<vmem>>, vector<1x128xf32>
    %18 = vector.broadcast %17 : vector<1x128xf32> to vector<2x128xf32>
    %19 = arith.addf %16, %18 : vector<2x128xf32>
    %20 = arith.negf %19 : vector<2x128xf32>
    %21 = math.exp %20 : vector<2x128xf32>
    %cst_12 = arith.constant 1.000000e+00 : f32
    %22 = vector.broadcast %cst_12 : f32 to vector<2x128xf32>
    %23 = arith.addf %22, %21 : vector<2x128xf32>
    %24 = arith.divf %22, %23 : vector<2x128xf32>
    %25 = tpu.iota {dimensions = array<i32: 1>} : vector<2x128xi32>
    %c96_i32 = arith.constant 96 : i32
    %26 = vector.broadcast %c96_i32 : i32 to vector<2x128xi32>
    %27 = arith.cmpi slt, %25, %26 : vector<2x128xi32>
    %cst_13 = arith.constant 0.000000e+00 : f32
    %28 = vector.broadcast %cst_13 : f32 to vector<2x128xf32>
    %29 = arith.select %27, %24, %28 : vector<2x128xi1>, vector<2x128xf32>
    %30 = vector.shape_cast %29 : vector<2x128xf32> to vector<2x1x128xf32>
    %31 = arith.truncf %30 : vector<2x1x128xf32> to vector<2x1x128xbf16>
    %c0_14 = arith.constant 0 : index
    %c0_15 = arith.constant 0 : index
    %c0_16 = arith.constant 0 : index
    %32 = vector.load %arg5[%c0_14, %c0_15, %c0_16] : memref<2x1x128xbf16, #tpu.memory_space<vmem>>, vector<2x1x128xbf16>
    tpu.vector_store %arg5[%c0_14, %c0_15, %c0_16], %31 {strides = array<i32>} : memref<2x1x128xbf16, #tpu.memory_space<vmem>>, vector<2x1x128xbf16>,
    return
  }
}

module attributes {stable_mosaic.version = 11 : i64} {
  func.func @_head_fc_kernel(%arg0: memref<2x1x1280xf32, #tpu.memory_space<vmem>>, %arg1: memref<1280x1024xbf16, #tpu.memory_space<vmem>>, %arg2: memref<1x1024xf32, #tpu.memory_space<vmem>>, %arg3: memref<1024x128xf32, #tpu.memory_space<vmem>>, %arg4: memref<1x128xf32, #tpu.memory_space<vmem>>, %arg5: memref<2x128xf32, #tpu.memory_space<vmem>>) attributes {dimension_semantics = [], scalar_prefetch = 0 : i64, scratch_operands = 0 : i64, tpu.core_type = #tpu.core_type<tc>} {
    %c0 = arith.constant 0 : index
    %c0_0 = arith.constant 0 : index
    %c0_1 = arith.constant 0 : index
    %0 = vector.load %arg0[%c0, %c0_0, %c0_1] : memref<2x1x1280xf32, #tpu.memory_space<vmem>>, vector<2x1x1280xf32>
    %1 = vector.shape_cast %0 : vector<2x1x1280xf32> to vector<2x1280xf32>
    %2 = arith.truncf %1 : vector<2x1280xf32> to vector<2x1280xbf16>
    %c0_2 = arith.constant 0 : index
    %c0_3 = arith.constant 0 : index
    %3 = vector.load %arg1[%c0_2, %c0_3] : memref<1280x1024xbf16, #tpu.memory_space<vmem>>, vector<1280x1024xbf16>
    %cst = arith.constant dense<0.000000e+00> : vector<2x1024xf32>
    %4 = tpu.matmul %2, %3, %cst {dimension_numbers = #tpu.dot_dimension_numbers<[1], [0], [0], [1], [0, 0, 1, 1], [], []>} : vector<2x1280xbf16>, vector<1280x1024xbf16>, vector<2x1024xf32> -> vector<2x1024xf32>
    %c0_4 = arith.constant 0 : index
    %c0_5 = arith.constant 0 : index
    %5 = vector.load %arg2[%c0_4, %c0_5] : memref<1x1024xf32, #tpu.memory_space<vmem>>, vector<1x1024xf32>
    %6 = vector.broadcast %5 : vector<1x1024xf32> to vector<2x1024xf32>
    %7 = arith.addf %4, %6 : vector<2x1024xf32>
    %c0_6 = arith.constant 0 : index
    %c0_7 = arith.constant 0 : index
    %8 = vector.load %arg3[%c0_6, %c0_7] : memref<1024x128xf32, #tpu.memory_space<vmem>>, vector<1024x128xf32>
    %cst_8 = arith.constant dense<0.000000e+00> : vector<2x128xf32>
    %9 = tpu.matmul %7, %8, %cst_8 {dimension_numbers = #tpu.dot_dimension_numbers<[1], [0], [0], [1], [0, 0, 1, 1], [], []>} : vector<2x1024xf32>, vector<1024x128xf32>, vector<2x128xf32> -> vector<2x128xf32>
    %c0_9 = arith.constant 0 : index
    %c0_10 = arith.constant 0 : index
    %10 = vector.load %arg4[%c0_9, %c0_10] : memref<1x128xf32, #tpu.memory_space<vmem>>, vector<1x128xf32>
    %11 = vector.broadcast %10 : vector<1x128xf32> to vector<2x128xf32>
    %12 = arith.addf %9, %11 : vector<2x128xf32>
    %c0_11 = arith.constant 0 : index
    %c0_12 = arith.constant 0 : index
    %13 = vector.load %arg5[%c0_11, %c0_12] : memref<2x128xf32, #tpu.memory_space<vmem>>, vector<2x128xf32>
    tpu.vector_store %arg5[%c0_11, %c0_12], %12 {strides = array<i32>} : memref<2x128xf32, #tpu.memory_space<vmem>>, vector<2x128xf32>,
    return
  }
}

module attributes {stable_mosaic.version = 11 : i64} {
  func.func @_gated_pw_head_pool_kernel(%arg0: i32, %arg1: i32, %arg2: memref<1x64x128xbf16, #tpu.memory_space<vmem>>, %arg3: memref<1x1x128xbf16, #tpu.memory_space<vmem>>, %arg4: memref<128x128xbf16, #tpu.memory_space<vmem>>, %arg5: memref<1x128xf32, #tpu.memory_space<vmem>>, %arg6: memref<128x1280xbf16, #tpu.memory_space<vmem>>, %arg7: memref<1x1280xf32, #tpu.memory_space<vmem>>, %arg8: memref<1x1x1280xf32, #tpu.memory_space<vmem>>) attributes {dimension_semantics = [#tpu.dimension_semantics<parallel>, #tpu.dimension_semantics<arbitrary>], iteration_bounds = array<i64: 2, 1>, scalar_prefetch = 0 : i64, scratch_operands = 0 : i64, tpu.core_type = #tpu.core_type<tc>, window_params = [{transform_indices = @transform_0, window_bounds = array<i64: 1, 64, 128>}, {transform_indices = @transform_1, window_bounds = array<i64: 1, 1, 128>}, {pipeline_mode = #tpu.pipeline_mode<synchronous>, transform_indices = @transform_2, window_bounds = array<i64: 128, 128>}, {pipeline_mode = #tpu.pipeline_mode<synchronous>, transform_indices = @transform_3, window_bounds = array<i64: 1, 128>}, {pipeline_mode = #tpu.pipeline_mode<synchronous>, transform_indices = @transform_4, window_bounds = array<i64: 128, 1280>}, {pipeline_mode = #tpu.pipeline_mode<synchronous>, transform_indices = @transform_5, window_bounds = array<i64: 1, 1280>}, {transform_indices = @transform_6, window_bounds = array<i64: 1, 1, 1280>}]} {
    %c0 = arith.constant 0 : index
    %c0_0 = arith.constant 0 : index
    %c0_1 = arith.constant 0 : index
    %0 = vector.load %arg2[%c0, %c0_0, %c0_1] : memref<1x64x128xbf16, #tpu.memory_space<vmem>>, vector<1x64x128xbf16>
    %1 = vector.shape_cast %0 : vector<1x64x128xbf16> to vector<64x128xbf16>
    %c0_2 = arith.constant 0 : index
    %c0_3 = arith.constant 0 : index
    %c0_4 = arith.constant 0 : index
    %2 = vector.load %arg3[%c0_2, %c0_3, %c0_4] : memref<1x1x128xbf16, #tpu.memory_space<vmem>>, vector<1x1x128xbf16>
    %3 = vector.shape_cast %2 : vector<1x1x128xbf16> to vector<1x128xbf16>
    %4 = vector.broadcast %3 : vector<1x128xbf16> to vector<64x128xbf16>
    %5 = arith.mulf %1, %4 : vector<64x128xbf16>
    %c0_5 = arith.constant 0 : index
    %c0_6 = arith.constant 0 : index
    %6 = vector.load %arg4[%c0_5, %c0_6] : memref<128x128xbf16, #tpu.memory_space<vmem>>, vector<128x128xbf16>
    %cst = arith.constant dense<0.000000e+00> : vector<64x128xf32>
    %7 = tpu.matmul %5, %6, %cst {dimension_numbers = #tpu.dot_dimension_numbers<[1], [0], [0], [1], [0, 0, 1, 1], [], []>} : vector<64x128xbf16>, vector<128x128xbf16>, vector<64x128xf32> -> vector<64x128xf32>
    %c0_7 = arith.constant 0 : index
    %c0_8 = arith.constant 0 : index
    %8 = vector.load %arg5[%c0_7, %c0_8] : memref<1x128xf32, #tpu.memory_space<vmem>>, vector<1x128xf32>
    %9 = vector.broadcast %8 : vector<1x128xf32> to vector<64x128xf32>
    %10 = arith.addf %7, %9 : vector<64x128xf32>
    %11 = arith.truncf %10 : vector<64x128xf32> to vector<64x128xbf16>
    %c0_9 = arith.constant 0 : index
    %c0_10 = arith.constant 0 : index
    %12 = vector.load %arg6[%c0_9, %c0_10] : memref<128x1280xbf16, #tpu.memory_space<vmem>>, vector<128x1280xbf16>
    %cst_11 = arith.constant dense<0.000000e+00> : vector<64x1280xf32>
    %13 = tpu.matmul %11, %12, %cst_11 {dimension_numbers = #tpu.dot_dimension_numbers<[1], [0], [0], [1], [0, 0, 1, 1], [], []>} : vector<64x128xbf16>, vector<128x1280xbf16>, vector<64x1280xf32> -> vector<64x1280xf32>
    %c0_12 = arith.constant 0 : index
    %c0_13 = arith.constant 0 : index
    %14 = vector.load %arg7[%c0_12, %c0_13] : memref<1x1280xf32, #tpu.memory_space<vmem>>, vector<1x1280xf32>
    %15 = vector.broadcast %14 : vector<1x1280xf32> to vector<64x1280xf32>
    %16 = arith.addf %13, %15 : vector<64x1280xf32>
    %17 = arith.negf %16 : vector<64x1280xf32>
    %18 = math.exp %17 : vector<64x1280xf32>
    %cst_14 = arith.constant 1.000000e+00 : f32
    %19 = vector.broadcast %cst_14 : f32 to vector<64x1280xf32>
    %20 = arith.addf %19, %18 : vector<64x1280xf32>
    %21 = arith.divf %19, %20 : vector<64x1280xf32>
    %22 = arith.mulf %16, %21 : vector<64x1280xf32>
    %cst_15 = arith.constant dense<0.000000e+00> : vector<1280xf32>
    %23 = vector.multi_reduction <add>, %22, %cst_15 [0] : vector<64x1280xf32> to vector<1280xf32>
    %24 = vector.shape_cast %23 : vector<1280xf32> to vector<1x1280xf32>
    %cst_16 = arith.constant 1.562500e-02 : f32
    %25 = vector.broadcast %cst_16 : f32 to vector<1x1280xf32>
    %26 = arith.mulf %24, %25 : vector<1x1280xf32>
    %c0_i32 = arith.constant 0 : i32
    %27 = arith.cmpi eq, %arg1, %c0_i32 : i32
    %28 = arith.extui %27 : i1 to i32
    %c0_i32_17 = arith.constant 0 : i32
    %29 = arith.cmpi ne, %28, %c0_i32_17 : i32
    scf.if %29 {
      %cst_24 = arith.constant 0.000000e+00 : f32
      %34 = vector.broadcast %cst_24 : f32 to vector<1x1x1280xf32>
      %c0_25 = arith.constant 0 : index
      %c0_26 = arith.constant 0 : index
      %c0_27 = arith.constant 0 : index
      %35 = vector.load %arg8[%c0_25, %c0_26, %c0_27] : memref<1x1x1280xf32, #tpu.memory_space<vmem>>, vector<1x1x1280xf32>
      tpu.vector_store %arg8[%c0_25, %c0_26, %c0_27], %34 {strides = array<i32>} : memref<1x1x1280xf32, #tpu.memory_space<vmem>>, vector<1x1x1280xf32>,
    } else {
    }
    %c0_18 = arith.constant 0 : index
    %c0_19 = arith.constant 0 : index
    %c0_20 = arith.constant 0 : index
    %30 = vector.load %arg8[%c0_18, %c0_19, %c0_20] : memref<1x1x1280xf32, #tpu.memory_space<vmem>>, vector<1x1x1280xf32>
    %31 = vector.shape_cast %26 : vector<1x1280xf32> to vector<1x1x1280xf32>
    %32 = arith.addf %30, %31 : vector<1x1x1280xf32>
    %c0_21 = arith.constant 0 : index
    %c0_22 = arith.constant 0 : index
    %c0_23 = arith.constant 0 : index
    %33 = vector.load %arg8[%c0_21, %c0_22, %c0_23] : memref<1x1x1280xf32, #tpu.memory_space<vmem>>, vector<1x1x1280xf32>
    tpu.vector_store %arg8[%c0_21, %c0_22, %c0_23], %32 {strides = array<i32>} : memref<1x1x1280xf32, #tpu.memory_space<vmem>>, vector<1x1x1280xf32>,
    return
  }
  func.func @transform_0(%arg0: i32, %arg1: i32) -> (i32, i32, i32) {
    %c0_i32 = arith.constant 0 : i32
    %c0_i32_0 = arith.constant 0 : i32
    return %arg0, %arg1, %c0_i32 : i32, i32, i32
  }
  func.func @transform_1(%arg0: i32, %arg1: i32) -> (i32, i32, i32) {
    %c0_i32 = arith.constant 0 : i32
    %c0_i32_0 = arith.constant 0 : i32
    %c0_i32_1 = arith.constant 0 : i32
    return %arg0, %c0_i32, %c0_i32_0 : i32, i32, i32
  }
  func.func @transform_2(%arg0: i32, %arg1: i32) -> (i32, i32) {
    %c0_i32 = arith.constant 0 : i32
    %c0_i32_0 = arith.constant 0 : i32
    %c0_i32_1 = arith.constant 0 : i32
    return %c0_i32, %c0_i32_0 : i32, i32
  }
  func.func @transform_3(%arg0: i32, %arg1: i32) -> (i32, i32) {
    %c0_i32 = arith.constant 0 : i32
    %c0_i32_0 = arith.constant 0 : i32
    %c0_i32_1 = arith.constant 0 : i32
    return %c0_i32, %c0_i32_0 : i32, i32
  }
  func.func @transform_4(%arg0: i32, %arg1: i32) -> (i32, i32) {
    %c0_i32 = arith.constant 0 : i32
    %c0_i32_0 = arith.constant 0 : i32
    %c0_i32_1 = arith.constant 0 : i32
    return %c0_i32, %c0_i32_0 : i32, i32
  }
  func.func @transform_5(%arg0: i32, %arg1: i32) -> (i32, i32) {
    %c0_i32 = arith.constant 0 : i32
    %c0_i32_0 = arith.constant 0 : i32
    %c0_i32_1 = arith.constant 0 : i32
    return %c0_i32, %c0_i32_0 : i32, i32
  }
  func.func @transform_6(%arg0: i32, %arg1: i32) -> (i32, i32, i32) {
    %c0_i32 = arith.constant 0 : i32
    %c0_i32_0 = arith.constant 0 : i32
    %c0_i32_1 = arith.constant 0 : i32
    return %arg0, %c0_i32, %c0_i32_0 : i32, i32, i32
  }
}

</mosaic_0001>

<llo_original>
// kernel: age_model_forward.9
$region0: #{age_model_forward.9}
  #allocation0 [shape = 'u32[]', space=smem, size = 0x4, offset = 0x4, fixed_abs, tag = 'smem constant byte address 0x4 - core index']
  #allocation1 [shape = 'u32[144,128]{1,0:T(1,128)}', space=vmem, size = 0x12000, scoped, tag = 'internal scratch']
  %s0 = inlined_call_operand.vmem [shape: bf16[2,10,16,128], index: 0, kind: input, shape index: {}]
  %s1 = inlined_call_operand.hbm [shape: bf16[9,128], index: 1, kind: input, shape index: {}]
  %s2 = inlined_call_operand.hbm [shape: f32[1,128], index: 2, kind: input, shape index: {}]
  %s3 = inlined_call_operand.vmem [shape: bf16[2,8,8,128], index: 3, kind: output, shape index: {0}]
  %s4 = inlined_call_operand.vmem [shape: f32[2,1,128], index: 4, kind: output, shape index: {1}]
  %5 = xla_tuple %s3, %s4
  %s6 = sld [smem:[#allocation0]]
  $region65: #{age_model_forward.9} parent=0
    _
  %s8 = ssub.s32 1, %s6
  %s9 = scalar_select 0, %s8, %s6
  $region1: #{age_model_forward.9} parent=0
    #allocation2 [shape = 'u8[4096]{0}', space=vmem, size = 0x1000, scoped, tag = 'input window, operand 1, single buffered']
    #allocation3 [shape = 's32[2]{0}', space=sflag, size = 0x8, scoped, tag = 'scoped memory for age_model_forward.9']
    #allocation4 [shape = 'u8[512]{0}', space=vmem, size = 0x400, scoped, tag = 'input window, operand 2, single buffered']
    #allocation5 [shape = 's32[1]{0}', space=sflag, size = 0x4, scoped, tag = 'scoped memory for age_model_forward.9']
    %10 = vsyncpa [#allocation3], 0
    %11 = vsyncpa [#allocation5], 0
    loop: start=0, step=1, limit=6
    $region2: #{age_model_forward.9} parent=1 // loop_pre_header
      _
    $region3: #{age_model_forward.9} parent=1 // loop_header
      %s13 = sphi 0, %s17
      %p14 = scmp.ge.s32.totalorder %s13, 6
      %s20 = sphi 0, %s32
      %s21 = sphi 0, %s28
      %s22 = sphi 0, %s20
      %s23 = sphi 0, %s21
      %s24 = sphi 0, %s22
      %s25 = sphi 0, %s23
      %s35 = sphi 0, %s37
      %s38 = sphi 0, %s35
      %s39 = sphi 0, %s38
      %s55 = sphi 0, %s39
      %s59 = sphi 0, %s59
      %s61 = sphi 0, %s59
      %s62 = sphi 0, %s61
      %s76 = sphi 0, %s62
      %s80 = sphi 0, %s80
      %s82 = sphi 0, %s80
      %s83 = sphi 0, %s82
      %s97 = sphi 0, %s83
      %s105 = sphi 0, %s107
      %s108 = sphi 0, %s105
      %s109 = sphi 0, %s108
      %s125 = sphi 0, %s109
      %s131 = sphi 0, %s133
      %s134 = sphi 0, %s131
      %s135 = sphi 0, %s134
      %s151 = sphi 0, %s135
    $region4: #{age_model_forward.9} parent=1 // loop_header_branch
      %16 = sbr.rel (%p14) target = $region8
    $region5: #{age_model_forward.9} parent=1 // loop_body
      %s18 = ssub.s32 %s13, 1
      %s19 = ssub.s32 %s13, 2
      %s26 = sadd.s32 1, %s21
      %p27 = scmp.ge.s32.totalorder %s26, 2
      %s28 = scalar_select %p27, 0, %s26
      %s29 = sadd.s32 1, %s20
      %s30 = scalar_select %p27, %s29, %s20
      %p31 = scmp.ge.s32.totalorder %s30, 2
      %s32 = scalar_select %p31, 0, %s30
      %s33 = ssub.s32 %s20, %s32
      %p34 = scmp.eq.s32.totalorder %s33, 0
      %s36 = sadd.s32 %s35, 1
      %s37 = scalar_select %p34, %s35, %s36
      %p40 = pneg %p34
      %p41 = scmp.eq.s32.totalorder %s13, 3
      %p42 = por %p40, %p41
      %p43 = scmp.ne.s32.totalorder %s35, %s38
      %p44 = scmp.eq.s32.totalorder %s13, 0
      %p45 = por %p43, %p44
      %p46 = scmp.ne.s32.totalorder %s35, %s38
      %p47 = scmp.eq.s32.totalorder %s18, 3
      %p48 = por %p46, %p47
      %p49 = scmp.ne.s32.totalorder %s38, %s39
      %p50 = scmp.eq.s32.totalorder %s18, 0
      %p51 = por %p49, %p50
      %p52 = scmp.ne.s32.totalorder %s38, %s39
      %p53 = scmp.eq.s32.totalorder %s19, 3
      %p54 = por %p52, %p53
      %p56 = scmp.ne.s32.totalorder %s39, %s55
      %p57 = scmp.eq.s32.totalorder %s19, 0
      %p58 = por %p56, %p57
      %s60 = sadd.s32 %s59, 1
      %p63 = scmp.eq.s32.totalorder %s13, 3
      %p64 = scmp.ne.s32.totalorder %s59, %s61
      %p65 = scmp.eq.s32.totalorder %s13, 0
      %p66 = por %p64, %p65
      %p67 = scmp.ne.s32.totalorder %s59, %s61
      %p68 = scmp.eq.s32.totalorder %s18, 3
      %p69 = por %p67, %p68
      %p70 = scmp.ne.s32.totalorder %s61, %s62
      %p71 = scmp.eq.s32.totalorder %s18, 0
      %p72 = por %p70, %p71
      %p73 = scmp.ne.s32.totalorder %s61, %s62
      %p74 = scmp.eq.s32.totalorder %s19, 3
      %p75 = por %p73, %p74
      %p77 = scmp.ne.s32.totalorder %s62, %s76
      %p78 = scmp.eq.s32.totalorder %s19, 0
      %p79 = por %p77, %p78
      %s81 = sadd.s32 %s80, 1
      %p84 = scmp.eq.s32.totalorder %s13, 3
      %p85 = scmp.ne.s32.totalorder %s80, %s82
      %p86 = scmp.eq.s32.totalorder %s13, 0
      %p87 = por %p85, %p86
      %p88 = scmp.ne.s32.totalorder %s80, %s82
      %p89 = scmp.eq.s32.totalorder %s18, 3
      %p90 = por %p88, %p89
      %p91 = scmp.ne.s32.totalorder %s82, %s83
      %p92 = scmp.eq.s32.totalorder %s18, 0
      %p93 = por %p91, %p92
      %p94 = scmp.ne.s32.totalorder %s82, %s83
      %p95 = scmp.eq.s32.totalorder %s19, 3
      %p96 = por %p94, %p95
      %p98 = scmp.ne.s32.totalorder %s83, %s97
      %p99 = scmp.eq.s32.totalorder %s19, 0
      %p100 = por %p98, %p99
      %s101 = ssub.s32 %s20, %s32
      %s102 = ssub.s32 %s21, %s28
      %s103 = sor.u32 %s101, %s102
      %p104 = scmp.eq.s32.totalorder %s103, 0
      %s106 = sadd.s32 %s105, 1
      %s107 = scalar_select %p104, %s105, %s106
      %p110 = pneg %p104
      %p111 = scmp.eq.s32.totalorder %s13, 3
      %p112 = por %p110, %p111
      %p113 = scmp.ne.s32.totalorder %s105, %s108
      %p114 = scmp.eq.s32.totalorder %s13, 0
      %p115 = por %p113, %p114
      %p116 = scmp.ne.s32.totalorder %s105, %s108
      %p117 = scmp.eq.s32.totalorder %s18, 3
      %p118 = por %p116, %p117
      %p119 = scmp.ne.s32.totalorder %s108, %s109
      %p120 = scmp.eq.s32.totalorder %s18, 0
      %p121 = por %p119, %p120
      %p122 = scmp.ne.s32.totalorder %s108, %s109
      %p123 = scmp.eq.s32.totalorder %s19, 3
      %p124 = por %p122, %p123
      %p126 = scmp.ne.s32.totalorder %s109, %s125
      %p127 = scmp.eq.s32.totalorder %s19, 0
      %p128 = por %p126, %p127
      %s129 = ssub.s32 %s20, %s32
      %p130 = scmp.eq.s32.totalorder %s129, 0
      %s132 = sadd.s32 %s131, 1
      %s133 = scalar_select %p130, %s131, %s132
      %p136 = pneg %p130
      %p137 = scmp.eq.s32.totalorder %s13, 3
      %p138 = por %p136, %p137
      %p139 = scmp.ne.s32.totalorder %s131, %s134
      %p140 = scmp.eq.s32.totalorder %s13, 0
      %p141 = por %p139, %p140
      %p142 = scmp.ne.s32.totalorder %s131, %s134
      %p143 = scmp.eq.s32.totalorder %s18, 3
      %p144 = por %p142, %p143
      %p145 = scmp.ne.s32.totalorder %s134, %s135
      %p146 = scmp.eq.s32.totalorder %s18, 0
      %p147 = por %p145, %p146
      %p148 = scmp.ne.s32.totalorder %s134, %s135
      %p149 = scmp.eq.s32.totalorder %s19, 3
      %p150 = por %p148, %p149
      %p152 = scmp.ne.s32.totalorder %s135, %s151
      %p153 = scmp.eq.s32.totalorder %s19, 0
      %p154 = por %p152, %p153
      %p155 = scmp.le.s32.totalorder 1, %s13
      %p156 = scmp.lt.s32.totalorder %s13, 5
      %p157 = pnand %p155, %p156
      %p158 = pneg %p157
      // Predicated region
      $region9: #{age_model_forward.9} parent=5 // pred_check
        _
      $region10: #{age_model_forward.9} parent=5 // pred_check_branch
        %160 = sbr.rel (%p157) target = $region12
      $region11: #{age_model_forward.9} parent=5 // pred_region
        %s161 = ssub.s32 %s13, 1
        // Predicated region
        $region13: #{age_model_forward.9} parent=11 // pred_check
          %p162 = pneg %p72
        $region14: #{age_model_forward.9} parent=11 // pred_check_branch
          %164 = sbr.rel (%p162) target = $region16
        $region15: #{age_model_forward.9} parent=11 // pred_region
          %s166 = ssub.s32 128, 128
          %167 = vsyncadd [#allocation3], %s166
          %s168 = sshll.u32 [#allocation2], 4
          %s169 = int_to_ptr.vmem [resolvable:$true] %s168
          %174 = dma.hbm_to_vmem [thread:$0]  %s1, 128, %s169, [#allocation3], 64, 64, 4
        $region16: #{age_model_forward.9} parent=11 // pred_fallthru
          _
        // Predicated region
        $region17: #{age_model_forward.9} parent=11 // pred_check
          %p175 = pneg %p93
        $region18: #{age_model_forward.9} parent=11 // pred_check_branch
          %177 = sbr.rel (%p175) target = $region20
        $region19: #{age_model_forward.9} parent=11 // pred_region
          %s179 = ssub.s32 16, 16
          %180 = vsyncadd [#allocation5], %s179
          %s182 = sshll.u32 [#allocation4], 4
          %s183 = int_to_ptr.vmem [resolvable:$true] %s182
          %185 = dma.hbm_to_vmem [thread:$0]  %s2, 16, %s183, [#allocation5]
        $region20: #{age_model_forward.9} parent=11 // pred_fallthru
          _
      $region12: #{age_model_forward.9} parent=5 // pred_fallthru
        _
      %p186 = scmp.lt.s32.totalorder %s13, 4
      // Predicated region
      $region21: #{age_model_forward.9} parent=5 // pred_check
        %p187 = pneg %p186
      $region22: #{age_model_forward.9} parent=5 // pred_check_branch
        %189 = sbr.rel (%p187) target = $region24
      $region23: #{age_model_forward.9} parent=5 // pred_region
        // Predicated region
        $region25: #{age_model_forward.9} parent=23 // pred_check
          %p190 = pneg %p45
        $region26: #{age_model_forward.9} parent=23 // pred_check_branch
          %192 = sbr.rel (%p190) target = $region28
        $region27: #{age_model_forward.9} parent=23 // pred_region
          %p193 = scmp.lt.s32.totalorder %s20, 1
          %s194 = scalar_select %p193, %s20, 1
          %s195 = smul.addr %s194, 20
          %s196 = smul.addr %s195, 4
          %s197 = scalar_lea.vmem %s0, %s196
        $region28: #{age_model_forward.9} parent=23 // pred_fallthru
          _
      $region24: #{age_model_forward.9} parent=5 // pred_fallthru
        _
      %p198 = scmp.le.s32.totalorder 1, %s13
      %p199 = scmp.lt.s32.totalorder %s13, 5
      %p200 = pnand %p198, %p199
      %p201 = pneg %p200
      // Predicated region
      $region29: #{age_model_forward.9} parent=5 // pred_check
        _
      $region30: #{age_model_forward.9} parent=5 // pred_check_branch
        %203 = sbr.rel (%p200) target = $region32
      $region31: #{age_model_forward.9} parent=5 // pred_region
        %s204 = ssub.s32 %s13, 1
        // Predicated region
        $region33: #{age_model_forward.9} parent=31 // pred_check
          %p205 = pneg %p72
        $region34: #{age_model_forward.9} parent=31 // pred_check_branch
          %207 = sbr.rel (%p205) target = $region36
        $region35: #{age_model_forward.9} parent=31 // pred_region
          %208 = dma.done [#allocation3], 128
        $region36: #{age_model_forward.9} parent=31 // pred_fallthru
          _
        // Predicated region
        $region37: #{age_model_forward.9} parent=31 // pred_check
          %p209 = pneg %p93
        $region38: #{age_model_forward.9} parent=31 // pred_check_branch
          %211 = sbr.rel (%p209) target = $region40
        $region39: #{age_model_forward.9} parent=31 // pred_region
          %212 = dma.done [#allocation5], 16
        $region40: #{age_model_forward.9} parent=31 // pred_fallthru
          _
        %p213 = scmp.lt.s32.totalorder %s22, 1
        %s214 = scalar_select %p213, %s22, 1
        %s215 = smul.addr %s214, 20
        %s216 = smul.addr %s215, 4
        %s217 = scalar_lea.vmem %s0, %s216
        %p218 = pneg %p51
        %p219 = pneg %p48
        %p220 = pneg %p72
        %p221 = pneg %p69
        %p222 = pneg %p93
        %p223 = pneg %p90
        %p224 = pneg %p121
        %p225 = pneg %p118
        %s226 = smul.u32 4, %s23
        %p227 = scmp.lt.s32.totalorder %s22, 1
        %s228 = scalar_select %p227, %s22, 1
        %p229 = scmp.lt.s32.totalorder %s226, 7
        %s230 = scalar_select %p229, %s226, 7
        %s231 = smul.addr %s228, 8
        %s232 = sadd.s32 %s230, %s231
        %s233 = smul.addr %s232, 4
        %s234 = scalar_lea.vmem %s3, %s233
        %p235 = pneg %p147
        %p236 = pneg %p144
        %p237 = scmp.lt.s32.totalorder %s22, 1
        %s238 = scalar_select %p237, %s22, 1
        %s239 = scalar_lea.vmem %s4, %s238
        %p240 = scmp.lt.s32.totalorder %s22, 1
        %s241 = scalar_select %p240, %s22, 1
        %s242 = smul.addr %s241, 20
        %s243 = smul.addr %s242, 4
        %s244 = scalar_lea.vmem %s0, %s243
        %s245 = smul.u32 4, %s23
        %p246 = scmp.lt.s32.totalorder %s22, 1
        %s247 = scalar_select %p246, %s22, 1
        %p248 = scmp.lt.s32.totalorder %s245, 7
        %s249 = scalar_select %p248, %s245, 7
        %s250 = smul.addr %s247, 8
        %s251 = sadd.s32 %s249, %s250
        %s252 = smul.addr %s251, 4
        %s253 = scalar_lea.vmem %s3, %s252
        %s254 = smul.u32 4, %s23
        %p255 = scmp.lt.s32.totalorder %s22, 1
        %s256 = scalar_select %p255, %s22, 1
        %s257 = scalar_lea.vmem %s4, %s256
        %s258 = smul.u32 %s23, 4
        %s259 = smul.u32 %s258, 2
        %s260 = smul.addr %s259, 4
        %s261 = scalar_lea.vmem %s244, %s260
        %v262 = vld [vmem:[%s261] sm:$0xf]
        %v263 = vld [vmem:[%s261 + $0x4] sm:$0xf]
        %v264 = vld [vmem:[%s261 + $0x8] sm:$0xf]
        %v265 = vld [vmem:[%s261 + $0xc] sm:$0xf]
        %v266 = vld [vmem:[%s261 + $0x10] sm:$0xf]
        %v267 = vld [vmem:[%s261 + $0x14] sm:$0xf]
        %v268 = vld [vmem:[%s261 + $0x18] sm:$0xf]
        %v269 = vld [vmem:[%s261 + $0x1c] sm:$0xf]
        %v270 = vld [vmem:[%s261 + $0x20] sm:$0xf]
        %v271 = vld [vmem:[%s261 + $0x24] sm:$0xf]
        %v272 = vld [vmem:[%s261 + $0x28] sm:$0xf]
        %v273 = vld [vmem:[%s261 + $0x2c] sm:$0xf]
        %v274 = vunpack.c.l.bf16 %v262
        %v275 = vunpack.c.l.bf16 %v263
        %v276 = vunpack.c.l.bf16 %v264
        %v277 = vunpack.c.l.bf16 %v265
        %v278 = vunpack.c.l.bf16 %v266
        %v279 = vunpack.c.l.bf16 %v267
        %v280 = vunpack.c.l.bf16 %v268
        %v281 = vunpack.c.l.bf16 %v269
        %v282 = vunpack.c.l.bf16 %v270
        %v283 = vunpack.c.l.bf16 %v271
        %v284 = vunpack.c.l.bf16 %v272
        %v285 = vunpack.c.l.bf16 %v273
        %v286 = vrot.slane %v274, 1
        %v287 = vrot.slane %v276, 1
        %v288 = vrot.slane %v278, 1
        %v289 = vrot.slane %v280, 1
        %v290 = vrot.slane %v282, 1
        %v291 = vrot.slane %v284, 1
        %v292 = vrot.slane %v275, 1
        %v293 = vrot.slane %v277, 1
        %v294 = vrot.slane %v279, 1
        %v295 = vrot.slane %v281, 1
        %v296 = vrot.slane %v283, 1
        %v297 = vrot.slane %v285, 1
        %v298 = vlaneseq
        %v299 = vshrl.u32 %v298, 7
        %vm300 = vcmp.lt.s32.totalorder %v299, 7
        %v301 = vsel %vm300, %v286, %v292
        %v302 = vsel %vm300, %v287, %v293
        %v303 = vsel %vm300, %v288, %v294
        %v304 = vsel %vm300, %v289, %v295
        %v305 = vsel %vm300, %v290, %v296
        %v306 = vsel %vm300, %v291, %v297
        %v307 = vrot.slane %v274, 2
        %v308 = vrot.slane %v276, 2
        %v309 = vrot.slane %v278, 2
        %v310 = vrot.slane %v280, 2
        %v311 = vrot.slane %v282, 2
        %v312 = vrot.slane %v284, 2
        %v313 = vrot.slane %v275, 2
        %v314 = vrot.slane %v277, 2
        %v315 = vrot.slane %v279, 2
        %v316 = vrot.slane %v281, 2
        %v317 = vrot.slane %v283, 2
        %v318 = vrot.slane %v285, 2
        %vm319 = vcmp.lt.s32.totalorder %v299, 6
        %v320 = vsel %vm319, %v307, %v313
        %v321 = vsel %vm319, %v308, %v314
        %v322 = vsel %vm319, %v309, %v315
        %v323 = vsel %vm319, %v310, %v316
        %v324 = vsel %vm319, %v311, %v317
        %v325 = vsel %vm319, %v312, %v318
        %v326 = vld [vmem:[#allocation2] sm:$0xf]
        %v327 = vld [vmem:[#allocation2 + $0x4] sm:$0x1]
        %v328 = vunpack.c.l.bf16 %v326
        %v329 = vunpack.c.l.bf16 %v327
        %v330 = vlaneseq
        %v331 = vshrl.u32 %v330, 7
        %v332 = vsub.s32 0, %v331
        %v333 = vrot.slane %v328, %v332
        %v334 = vmul.f32 %v274, %v333
        %v335 = vmul.f32 %v276, %v333
        %v336 = vmul.f32 %v278, %v333
        %v337 = vmul.f32 %v280, %v333
        %v338 = vadd.f32 %v334, 0.0
        %v339 = vadd.f32 %v335, 0.0
        %v340 = vadd.f32 %v336, 0.0
        %v341 = vadd.f32 %v337, 0.0
        %v342 = vlaneseq
        %v343 = vshrl.u32 %v342, 7
        %v344 = vsub.s32 1, %v343
        %v345 = vrot.slane %v328, %v344
        %v346 = vmul.f32 %v301, %v345
        %v347 = vmul.f32 %v302, %v345
        %v348 = vmul.f32 %v303, %v345
        %v349 = vmul.f32 %v304, %v345
        %v350 = vadd.f32 %v338, %v346
        %v351 = vadd.f32 %v339, %v347
        %v352 = vadd.f32 %v340, %v348
        %v353 = vadd.f32 %v341, %v349
        %v354 = vlaneseq
        %v355 = vshrl.u32 %v354, 7
        %v356 = vsub.s32 2, %v355
        %v357 = vrot.slane %v328, %v356
        %v358 = vmul.f32 %v320, %v357
        %v359 = vmul.f32 %v321, %v357
        %v360 = vmul.f32 %v322, %v357
        %v361 = vmul.f32 %v323, %v357
        %v362 = vadd.f32 %v350, %v358
        %v363 = vadd.f32 %v351, %v359
        %v364 = vadd.f32 %v352, %v360
        %v365 = vadd.f32 %v353, %v361
        %v366 = vlaneseq
        %v367 = vshrl.u32 %v366, 7
        %v368 = vsub.s32 3, %v367
        %v369 = vrot.slane %v328, %v368
        %v370 = vmul.f32 %v276, %v369
        %v371 = vmul.f32 %v278, %v369
        %v372 = vmul.f32 %v280, %v369
        %v373 = vmul.f32 %v282, %v369
        %v374 = vadd.f32 %v362, %v370
        %v375 = vadd.f32 %v363, %v371
        %v376 = vadd.f32 %v364, %v372
        %v377 = vadd.f32 %v365, %v373
        %v378 = vlaneseq
        %v379 = vshrl.u32 %v378, 7
        %v380 = vsub.s32 4, %v379
        %v381 = vrot.slane %v328, %v380
        %v382 = vmul.f32 %v302, %v381
        %v383 = vmul.f32 %v303, %v381
        %v384 = vmul.f32 %v304, %v381
        %v385 = vmul.f32 %v305, %v381
        %v386 = vadd.f32 %v374, %v382
        %v387 = vadd.f32 %v375, %v383
        %v388 = vadd.f32 %v376, %v384
        %v389 = vadd.f32 %v377, %v385
        %v390 = vlaneseq
        %v391 = vshrl.u32 %v390, 7
        %v392 = vsub.s32 5, %v391
        %v393 = vrot.slane %v328, %v392
        %v394 = vmul.f32 %v321, %v393
        %v395 = vmul.f32 %v322, %v393
        %v396 = vmul.f32 %v323, %v393
        %v397 = vmul.f32 %v324, %v393
        %v398 = vadd.f32 %v386, %v394
        %v399 = vadd.f32 %v387, %v395
        %v400 = vadd.f32 %v388, %v396
        %v401 = vadd.f32 %v389, %v397
        %v402 = vlaneseq
        %v403 = vshrl.u32 %v402, 7
        %v404 = vsub.s32 6, %v403
        %v405 = vrot.slane %v328, %v404
        %v406 = vmul.f32 %v278, %v405
        %v407 = vmul.f32 %v280, %v405
        %v408 = vmul.f32 %v282, %v405
        %v409 = vmul.f32 %v284, %v405
        %v410 = vadd.f32 %v398, %v406
        %v411 = vadd.f32 %v399, %v407
        %v412 = vadd.f32 %v400, %v408
        %v413 = vadd.f32 %v401, %v409
        %v414 = vlaneseq
        %v415 = vshrl.u32 %v414, 7
        %v416 = vsub.s32 7, %v415
        %v417 = vrot.slane %v328, %v416
        %v418 = vmul.f32 %v303, %v417
        %v419 = vmul.f32 %v304, %v417
        %v420 = vmul.f32 %v305, %v417
        %v421 = vmul.f32 %v306, %v417
        %v422 = vadd.f32 %v410, %v418
        %v423 = vadd.f32 %v411, %v419
        %v424 = vadd.f32 %v412, %v420
        %v425 = vadd.f32 %v413, %v421
        %v426 = vlaneseq
        %v427 = vshrl.u32 %v426, 7
        %v428 = vsub.s32 0, %v427
        %v429 = vrot.slane %v329, %v428
        %v430 = vmul.f32 %v322, %v429
        %v431 = vmul.f32 %v323, %v429
        %v432 = vmul.f32 %v324, %v429
        %v433 = vmul.f32 %v325, %v429
        %v434 = vadd.f32 %v422, %v430
        %v435 = vadd.f32 %v423, %v431
        %v436 = vadd.f32 %v424, %v432
        %v437 = vadd.f32 %v425, %v433
        %v438 = vld [vmem:[#allocation4] sm:$0x1]
        %v440 = vlaneseq
        %v441 = vshrl.u32 %v440, 7
        %v442 = vsub.s32 0, %v441
        %v443 = vrot.slane %v438, %v442
        %v445 = vadd.f32 %v434, %v443
        %v446 = vadd.f32 %v435, %v443
        %v447 = vadd.f32 %v436, %v443
        %v448 = vadd.f32 %v437, %v443
        %v449 = vxor.u32 %v445, 2147483648
        %v450 = vxor.u32 %v446, 2147483648
        %v451 = vxor.u32 %v447, 2147483648
        %v452 = vxor.u32 %v448, 2147483648
        %v453 = vmul.f32 %v449, 1.442695
        %v454 = vpow.pop %v453
        %v455 = vmul.f32 %v450, 1.442695
        %v456 = vpow.pop %v455
        %v457 = vmul.f32 %v451, 1.442695
        %v458 = vpow.pop %v457
        %v459 = vmul.f32 %v452, 1.442695
        %v460 = vpow.pop %v459
        %v461 = vadd.f32 %v454, 1.0
        %v462 = vadd.f32 %v456, 1.0
        %v463 = vadd.f32 %v458, 1.0
        %v464 = vadd.f32 %v460, 1.0
        %v465 = vrcp.pop %v461
        %v466 = vmul.f32 1.0, %v465
        %v467 = vrcp.pop %v462
        %v468 = vmul.f32 1.0, %v467
        %v469 = vrcp.pop %v463
        %v470 = vmul.f32 1.0, %v469
        %v471 = vrcp.pop %v464
        %v472 = vmul.f32 1.0, %v471
        %v473 = vmul.f32 %v445, %v466
        %v474 = vmul.f32 %v446, %v468
        %v475 = vmul.f32 %v447, %v470
        %v476 = vmul.f32 %v448, %v472
        %v477 = vpack.c.bf16 %v473, %v473
        %v478 = vpack.c.bf16 %v474, %v474
        %v479 = vpack.c.bf16 %v475, %v475
        %v480 = vpack.c.bf16 %v476, %v476
        %481 = vst [vmem:[%s253] sm:$0xf] %v477
        %482 = vst [vmem:[%s253 + $0x4] sm:$0xf] %v478
        %483 = vst [vmem:[%s253 + $0x8] sm:$0xf] %v479
        %484 = vst [vmem:[%s253 + $0xc] sm:$0xf] %v480
        %p485 = scmp.eq.s32.totalorder %s23, 0
        // Predicated region
        $region41: #{age_model_forward.9} parent=31 // pred_check
          %p486 = pneg %p485
        $region42: #{age_model_forward.9} parent=31 // pred_check_branch
          %488 = sbr.rel (%p486) target = $region44
        $region43: #{age_model_forward.9} parent=31 // pred_region
          %489 = vst [vmem:[%s257] sm:$0x1] 0.0
        $region44: #{age_model_forward.9} parent=31 // pred_fallthru
          _
        %v490 = vld [vmem:[%s257] sm:$0x1]
        %v491 = vadd.f32 %v473, %v474
        %v492 = vadd.f32 %v491, %v475
        %v493 = vadd.f32 %v492, %v476
        %v494 = vrot.slane %v493, 4
        %v495 = vadd.f32 %v493, %v494
        %v496 = vrot.slane %v495, 2
        %v497 = vadd.f32 %v495, %v496
        %v498 = vrot.slane %v497, 1
        %v499 = vadd.f32 %v497, %v498
        %v500 = vmul.f32 %v499, 0.015625
        %v501 = vadd.f32 %v490, %v500
        %502 = vst [vmem:[%s257] sm:$0x1] %v501
        %s503 = smul.u32 4, %s23
        %p504 = scmp.lt.s32.totalorder %s22, 1
        %s505 = scalar_select %p504, %s22, 1
        %p506 = scmp.lt.s32.totalorder %s503, 7
        %s507 = scalar_select %p506, %s503, 7
        %s508 = smul.addr %s505, 8
        %s509 = sadd.s32 %s507, %s508
        %s510 = smul.addr %s509, 4
        %s511 = scalar_lea.vmem %s3, %s510
        %p512 = scmp.lt.s32.totalorder %s22, 1
        %s513 = scalar_select %p512, %s22, 1
        %s514 = scalar_lea.vmem %s4, %s513
        // Predicated region
        $region45: #{age_model_forward.9} parent=31 // pred_check
          %p515 = pneg %p118
        $region46: #{age_model_forward.9} parent=31 // pred_check_branch
          %517 = sbr.rel (%p515) target = $region48
        $region47: #{age_model_forward.9} parent=31 // pred_region
          %s518 = smul.u32 4, %s23
        $region48: #{age_model_forward.9} parent=31 // pred_fallthru
          _
        // Predicated region
        $region49: #{age_model_forward.9} parent=31 // pred_check
          %p519 = pneg %p144
        $region50: #{age_model_forward.9} parent=31 // pred_check_branch
          %521 = sbr.rel (%p519) target = $region52
        $region51: #{age_model_forward.9} parent=31 // pred_region
          _
        $region52: #{age_model_forward.9} parent=31 // pred_fallthru
          _
      $region32: #{age_model_forward.9} parent=5 // pred_fallthru
        _
      %p522 = scmp.le.s32.totalorder 2, %s13
      // Predicated region
      $region53: #{age_model_forward.9} parent=5 // pred_check
        %p523 = pneg %p522
      $region54: #{age_model_forward.9} parent=5 // pred_check_branch
        %525 = sbr.rel (%p523) target = $region56
      $region55: #{age_model_forward.9} parent=5 // pred_region
        %s526 = ssub.s32 %s13, 2
        // Predicated region
        $region57: #{age_model_forward.9} parent=55 // pred_check
          %p527 = pneg %p124
        $region58: #{age_model_forward.9} parent=55 // pred_check_branch
          %529 = sbr.rel (%p527) target = $region60
        $region59: #{age_model_forward.9} parent=55 // pred_region
          %s530 = smul.u32 4, %s25
          %p531 = scmp.lt.s32.totalorder %s24, 1
          %s532 = scalar_select %p531, %s24, 1
          %p533 = scmp.lt.s32.totalorder %s530, 7
          %s534 = scalar_select %p533, %s530, 7
          %s535 = smul.addr %s532, 8
          %s536 = sadd.s32 %s534, %s535
          %s537 = smul.addr %s536, 4
          %s538 = scalar_lea.vmem %s3, %s537
        $region60: #{age_model_forward.9} parent=55 // pred_fallthru
          _
        // Predicated region
        $region61: #{age_model_forward.9} parent=55 // pred_check
          %p539 = pneg %p150
        $region62: #{age_model_forward.9} parent=55 // pred_check_branch
          %541 = sbr.rel (%p539) target = $region64
        $region63: #{age_model_forward.9} parent=55 // pred_region
          %p542 = scmp.lt.s32.totalorder %s24, 1
          %s543 = scalar_select %p542, %s24, 1
          %s544 = scalar_lea.vmem %s4, %s543
        $region64: #{age_model_forward.9} parent=55 // pred_fallthru
          _
      $region56: #{age_model_forward.9} parent=5 // pred_fallthru
        _
    $region6: #{age_model_forward.9} parent=1 // loop_footer
      %s17 = sadd.s32 1, %s13
    $region7: #{age_model_forward.9} parent=1 // loop_footer_branch
      %12 = sbr.rel target = $region3
    $region8: #{age_model_forward.9} parent=1 // loop_exit
      _
    %545 = vsyncpa [#allocation3], 1
    %s546 = scalar_lea.sflag [#allocation3], 1
    %547 = vsyncpa %s546, 1
    %548 = vsyncpa [#allocation5], 1

// kernel: age_model_forward.8
$region0: #{age_model_forward.8}
  #allocation0 [shape = 'u32[]', space=smem, size = 0x4, offset = 0x4, fixed_abs, tag = 'smem constant byte address 0x4 - core index']
  #allocation1 [shape = 'u32[144,128]{1,0:T(1,128)}', space=vmem, size = 0x12000, scoped, tag = 'internal scratch']
  %s0 = inlined_call_operand.vmem [shape: bf16[2,64,27], index: 0, kind: input, shape index: {}]
  %s1 = inlined_call_operand.hbm [shape: bf16[27,128], index: 1, kind: input, shape index: {}]
  %s2 = inlined_call_operand.hbm [shape: f32[1,128], index: 2, kind: input, shape index: {}]
  %s3 = inlined_call_operand.vmem [shape: bf16[2,64,128], index: 3, kind: output, shape index: {}]
  %s4 = sld [smem:[#allocation0]]
  $region53: #{age_model_forward.8} parent=0
    _
  %s6 = ssub.s32 1, %s4
  %s7 = scalar_select 0, %s6, %s4
  $region1: #{age_model_forward.8} parent=0
    #allocation2 [shape = 'u8[8192]{0}', space=vmem, size = 0x2000, scoped, tag = 'input window, operand 1, single buffered']
    #allocation3 [shape = 's32[2]{0}', space=sflag, size = 0x8, scoped, tag = 'scoped memory for age_model_forward.8']
    #allocation4 [shape = 'u8[512]{0}', space=vmem, size = 0x400, scoped, tag = 'input window, operand 2, single buffered']
    #allocation5 [shape = 's32[1]{0}', space=sflag, size = 0x4, scoped, tag = 'scoped memory for age_model_forward.8']
    %8 = vsyncpa [#allocation3], 0
    %9 = vsyncpa [#allocation5], 0
    loop: start=0, step=1, limit=4
    $region2: #{age_model_forward.8} parent=1 // loop_pre_header
      _
    $region3: #{age_model_forward.8} parent=1 // loop_header
      %s11 = sphi 0, %s15
      %p12 = scmp.ge.s32.totalorder %s11, 4
      %s18 = sphi 0, %s30
      %s19 = sphi 0, %s26
      %s20 = sphi 0, %s18
      %s21 = sphi 0, %s19
      %s22 = sphi 0, %s20
      %s23 = sphi 0, %s21
      %s35 = sphi 0, %s37
      %s38 = sphi 0, %s35
      %s39 = sphi 0, %s38
      %s55 = sphi 0, %s39
      %s59 = sphi 0, %s59
      %s61 = sphi 0, %s59
      %s62 = sphi 0, %s61
      %s76 = sphi 0, %s62
      %s80 = sphi 0, %s80
      %s82 = sphi 0, %s80
      %s83 = sphi 0, %s82
      %s97 = sphi 0, %s83
      %s105 = sphi 0, %s107
      %s108 = sphi 0, %s105
      %s109 = sphi 0, %s108
      %s125 = sphi 0, %s109
    $region4: #{age_model_forward.8} parent=1 // loop_header_branch
      %14 = sbr.rel (%p12) target = $region8
    $region5: #{age_model_forward.8} parent=1 // loop_body
      %s16 = ssub.s32 %s11, 1
      %s17 = ssub.s32 %s11, 2
      %s24 = sadd.s32 1, %s19
      %p25 = scmp.ge.s32.totalorder %s24, 1
      %s26 = scalar_select %p25, 0, %s24
      %s27 = sadd.s32 1, %s18
      %s28 = scalar_select %p25, %s27, %s18
      %p29 = scmp.ge.s32.totalorder %s28, 2
      %s30 = scalar_select %p29, 0, %s28
      %s31 = ssub.s32 %s18, %s30
      %s32 = ssub.s32 %s19, %s26
      %s33 = sor.u32 %s31, %s32
      %p34 = scmp.eq.s32.totalorder %s33, 0
      %s36 = sadd.s32 %s35, 1
      %s37 = scalar_select %p34, %s35, %s36
      %p40 = pneg %p34
      %p41 = scmp.eq.s32.totalorder %s11, 1
      %p42 = por %p40, %p41
      %p43 = scmp.ne.s32.totalorder %s35, %s38
      %p44 = scmp.eq.s32.totalorder %s11, 0
      %p45 = por %p43, %p44
      %p46 = scmp.ne.s32.totalorder %s35, %s38
      %p47 = scmp.eq.s32.totalorder %s16, 1
      %p48 = por %p46, %p47
      %p49 = scmp.ne.s32.totalorder %s38, %s39
      %p50 = scmp.eq.s32.totalorder %s16, 0
      %p51 = por %p49, %p50
      %p52 = scmp.ne.s32.totalorder %s38, %s39
      %p53 = scmp.eq.s32.totalorder %s17, 1
      %p54 = por %p52, %p53
      %p56 = scmp.ne.s32.totalorder %s39, %s55
      %p57 = scmp.eq.s32.totalorder %s17, 0
      %p58 = por %p56, %p57
      %s60 = sadd.s32 %s59, 1
      %p63 = scmp.eq.s32.totalorder %s11, 1
      %p64 = scmp.ne.s32.totalorder %s59, %s61
      %p65 = scmp.eq.s32.totalorder %s11, 0
      %p66 = por %p64, %p65
      %p67 = scmp.ne.s32.totalorder %s59, %s61
      %p68 = scmp.eq.s32.totalorder %s16, 1
      %p69 = por %p67, %p68
      %p70 = scmp.ne.s32.totalorder %s61, %s62
      %p71 = scmp.eq.s32.totalorder %s16, 0
      %p72 = por %p70, %p71
      %p73 = scmp.ne.s32.totalorder %s61, %s62
      %p74 = scmp.eq.s32.totalorder %s17, 1
      %p75 = por %p73, %p74
      %p77 = scmp.ne.s32.totalorder %s62, %s76
      %p78 = scmp.eq.s32.totalorder %s17, 0
      %p79 = por %p77, %p78
      %s81 = sadd.s32 %s80, 1
      %p84 = scmp.eq.s32.totalorder %s11, 1
      %p85 = scmp.ne.s32.totalorder %s80, %s82
      %p86 = scmp.eq.s32.totalorder %s11, 0
      %p87 = por %p85, %p86
      %p88 = scmp.ne.s32.totalorder %s80, %s82
      %p89 = scmp.eq.s32.totalorder %s16, 1
      %p90 = por %p88, %p89
      %p91 = scmp.ne.s32.totalorder %s82, %s83
      %p92 = scmp.eq.s32.totalorder %s16, 0
      %p93 = por %p91, %p92
      %p94 = scmp.ne.s32.totalorder %s82, %s83
      %p95 = scmp.eq.s32.totalorder %s17, 1
      %p96 = por %p94, %p95
      %p98 = scmp.ne.s32.totalorder %s83, %s97
      %p99 = scmp.eq.s32.totalorder %s17, 0
      %p100 = por %p98, %p99
      %s101 = ssub.s32 %s18, %s30
      %s102 = ssub.s32 %s19, %s26
      %s103 = sor.u32 %s101, %s102
      %p104 = scmp.eq.s32.totalorder %s103, 0
      %s106 = sadd.s32 %s105, 1
      %s107 = scalar_select %p104, %s105, %s106
      %p110 = pneg %p104
      %p111 = scmp.eq.s32.totalorder %s11, 1
      %p112 = por %p110, %p111
      %p113 = scmp.ne.s32.totalorder %s105, %s108
      %p114 = scmp.eq.s32.totalorder %s11, 0
      %p115 = por %p113, %p114
      %p116 = scmp.ne.s32.totalorder %s105, %s108
      %p117 = scmp.eq.s32.totalorder %s16, 1
      %p118 = por %p116, %p117
      %p119 = scmp.ne.s32.totalorder %s108, %s109
      %p120 = scmp.eq.s32.totalorder %s16, 0
      %p121 = por %p119, %p120
      %p122 = scmp.ne.s32.totalorder %s108, %s109
      %p123 = scmp.eq.s32.totalorder %s17, 1
      %p124 = por %p122, %p123
      %p126 = scmp.ne.s32.totalorder %s109, %s125
      %p127 = scmp.eq.s32.totalorder %s17, 0
      %p128 = por %p126, %p127
      %p129 = scmp.le.s32.totalorder 1, %s11
      %p130 = scmp.lt.s32.totalorder %s11, 3
      %p131 = pnand %p129, %p130
      %p132 = pneg %p131
      // Predicated region
      $region9: #{age_model_forward.8} parent=5 // pred_check
        _
      $region10: #{age_model_forward.8} parent=5 // pred_check_branch
        %134 = sbr.rel (%p131) target = $region12
      $region11: #{age_model_forward.8} parent=5 // pred_region
        %s135 = ssub.s32 %s11, 1
        // Predicated region
        $region13: #{age_model_forward.8} parent=11 // pred_check
          %p136 = pneg %p72
        $region14: #{age_model_forward.8} parent=11 // pred_check_branch
          %138 = sbr.rel (%p136) target = $region16
        $region15: #{age_model_forward.8} parent=11 // pred_region
          %s140 = ssub.s32 256, 256
          %141 = vsyncadd [#allocation3], %s140
          %s142 = sshll.u32 [#allocation2], 4
          %s143 = int_to_ptr.vmem [resolvable:$true] %s142
          %148 = dma.hbm_to_vmem [thread:$0]  %s1, 256, %s143, [#allocation3], 64, 64, 4
        $region16: #{age_model_forward.8} parent=11 // pred_fallthru
          _
        // Predicated region
        $region17: #{age_model_forward.8} parent=11 // pred_check
          %p149 = pneg %p93
        $region18: #{age_model_forward.8} parent=11 // pred_check_branch
          %151 = sbr.rel (%p149) target = $region20
        $region19: #{age_model_forward.8} parent=11 // pred_region
          %s153 = ssub.s32 16, 16
          %154 = vsyncadd [#allocation5], %s153
          %s156 = sshll.u32 [#allocation4], 4
          %s157 = int_to_ptr.vmem [resolvable:$true] %s156
          %159 = dma.hbm_to_vmem [thread:$0]  %s2, 16, %s157, [#allocation5]
        $region20: #{age_model_forward.8} parent=11 // pred_fallthru
          _
      $region12: #{age_model_forward.8} parent=5 // pred_fallthru
        _
      %p160 = scmp.lt.s32.totalorder %s11, 2
      // Predicated region
      $region21: #{age_model_forward.8} parent=5 // pred_check
        %p161 = pneg %p160
      $region22: #{age_model_forward.8} parent=5 // pred_check_branch
        %163 = sbr.rel (%p161) target = $region24
      $region23: #{age_model_forward.8} parent=5 // pred_region
        // Predicated region
        $region25: #{age_model_forward.8} parent=23 // pred_check
          %p164 = pneg %p45
        $region26: #{age_model_forward.8} parent=23 // pred_check_branch
          %166 = sbr.rel (%p164) target = $region28
        $region27: #{age_model_forward.8} parent=23 // pred_region
          %s167 = smul.u32 8, %s19
          %p168 = scmp.lt.s32.totalorder %s18, 1
          %s169 = scalar_select %p168, %s18, 1
          %p170 = scmp.lt.s32.totalorder %s167, 7
          %s171 = scalar_select %p170, %s167, 7
          %s172 = smul.addr %s169, 8
          %s173 = sadd.s32 %s171, %s172
          %s174 = smul.addr %s173, 4
          %s175 = scalar_lea.vmem %s0, %s174
          %s176 = smul.u32 8, %s19
        $region28: #{age_model_forward.8} parent=23 // pred_fallthru
          _
      $region24: #{age_model_forward.8} parent=5 // pred_fallthru
        _
      %p177 = scmp.le.s32.totalorder 1, %s11
      %p178 = scmp.lt.s32.totalorder %s11, 3
      %p179 = pnand %p177, %p178
      %p180 = pneg %p179
      // Predicated region
      $region29: #{age_model_forward.8} parent=5 // pred_check
        _
      $region30: #{age_model_forward.8} parent=5 // pred_check_branch
        %182 = sbr.rel (%p179) target = $region32
      $region31: #{age_model_forward.8} parent=5 // pred_region
        %s183 = ssub.s32 %s11, 1
        // Predicated region
        $region33: #{age_model_forward.8} parent=31 // pred_check
          %p184 = pneg %p72
        $region34: #{age_model_forward.8} parent=31 // pred_check_branch
          %186 = sbr.rel (%p184) target = $region36
        $region35: #{age_model_forward.8} parent=31 // pred_region
          %187 = dma.done [#allocation3], 256
        $region36: #{age_model_forward.8} parent=31 // pred_fallthru
          _
        // Predicated region
        $region37: #{age_model_forward.8} parent=31 // pred_check
          %p188 = pneg %p93
        $region38: #{age_model_forward.8} parent=31 // pred_check_branch
          %190 = sbr.rel (%p188) target = $region40
        $region39: #{age_model_forward.8} parent=31 // pred_region
          %191 = dma.done [#allocation5], 16
        $region40: #{age_model_forward.8} parent=31 // pred_fallthru
          _
        %s192 = smul.u32 8, %s21
        %p193 = scmp.lt.s32.totalorder %s20, 1
        %s194 = scalar_select %p193, %s20, 1
        %p195 = scmp.lt.s32.totalorder %s192, 7
        %s196 = scalar_select %p195, %s192, 7
        %s197 = smul.addr %s194, 8
        %s198 = sadd.s32 %s196, %s197
        %s199 = smul.addr %s198, 4
        %s200 = scalar_lea.vmem %s0, %s199
        %p201 = pneg %p51
        %p202 = pneg %p48
        %p203 = pneg %p72
        %p204 = pneg %p69
        %p205 = pneg %p93
        %p206 = pneg %p90
        %p207 = pneg %p121
        %p208 = pneg %p118
        %s209 = smul.u32 8, %s21
        %p210 = scmp.lt.s32.totalorder %s20, 1
        %s211 = scalar_select %p210, %s20, 1
        %p212 = scmp.lt.s32.totalorder %s209, 7
        %s213 = scalar_select %p212, %s209, 7
        %s214 = smul.addr %s211, 8
        %s215 = sadd.s32 %s213, %s214
        %s216 = smul.addr %s215, 4
        %s217 = scalar_lea.vmem %s3, %s216
        %s218 = smul.u32 8, %s21
        %p219 = scmp.lt.s32.totalorder %s20, 1
        %s220 = scalar_select %p219, %s20, 1
        %p221 = scmp.lt.s32.totalorder %s218, 7
        %s222 = scalar_select %p221, %s218, 7
        %s223 = smul.addr %s220, 8
        %s224 = sadd.s32 %s222, %s223
        %s225 = smul.addr %s224, 4
        %s226 = scalar_lea.vmem %s0, %s225
        %s227 = smul.u32 8, %s21
        %s228 = smul.u32 8, %s21
        %p229 = scmp.lt.s32.totalorder %s20, 1
        %s230 = scalar_select %p229, %s20, 1
        %p231 = scmp.lt.s32.totalorder %s228, 7
        %s232 = scalar_select %p231, %s228, 7
        %s233 = smul.addr %s230, 8
        %s234 = sadd.s32 %s232, %s233
        %s235 = smul.addr %s234, 4
        %s236 = scalar_lea.vmem %s3, %s235
        %s237 = smul.u32 8, %s21
        %v239 = vld [vmem:[%s226] sm:$0xf]
        %v240 = vld [vmem:[%s226 + $0x4] sm:$0xf]
        %v241 = vld [vmem:[%s226 + $0x8] sm:$0xf]
        %v242 = vld [vmem:[%s226 + $0xc] sm:$0xf]
        %v243 = vld [vmem:[%s226 + $0x10] sm:$0xf]
        %v244 = vld [vmem:[%s226 + $0x14] sm:$0xf]
        %v245 = vld [vmem:[%s226 + $0x18] sm:$0xf]
        %v246 = vld [vmem:[%s226 + $0x1c] sm:$0xf]
        %v247 = vld [vmem:[#allocation2] sm:$0xf]
        %v248 = vld [vmem:[#allocation2 + $0x4] sm:$0xf]
        %v249 = vld [vmem:[#allocation2 + $0x8] sm:$0xf]
        %v250 = vld [vmem:[#allocation2 + $0xc] sm:$0x3]
        %v251 = vld [vmem:[#allocation4] sm:$0x1]
        %v253 = vlaneseq
        %v254 = vshrl.u32 %v253, 7
        %v255 = vsub.s32 0, %v254
        %v256 = vrot.slane %v251, %v255
        %v266 = vunpack.c.l.b16 %v239
        %v267 = vunpack.c.l.b16 %v240
        %v268 = vunpack.c.l.b16 %v241
        %v269 = vunpack.c.l.b16 %v242
        %v270 = vunpack.c.l.b16 %v243
        %v271 = vunpack.c.l.b16 %v244
        %v272 = vunpack.c.l.b16 %v245
        %v273 = vunpack.c.l.b16 %v246
        %v274 = vpack.c.b16 %v267, %v266
        %v275 = vpack.c.b16 %v269, %v268
        %v276 = vpack.c.b16 %v271, %v270
        %v277 = vpack.c.b16 %v273, %v272
        %v282 = vunpack.c.l.b16 %v247
        %v283 = vunpack.c.l.b16 %v248
        %v284 = vunpack.c.l.b16 %v249
        %v285 = vunpack.c.l.b16 %v250
        %v286 = vpack.c.b16 %v283, %v282
        %v287 = vpack.c.b16 %v285, %v284
        %vm289 = vcmask 220160
        %v291 = vsel %vm289, %v274, 0
        %v294 = vsel %vm289, %v275, 0
        %v297 = vsel %vm289, %v276, 0
        %v300 = vsel %vm289, %v277, 0
        %vm302 = vcmask 1044480
        %vm303 = vcmask 1045504
        %v304 = vsel %vm302, 4294967295, 65535
        %v305 = vsel %vm303, %v304, 0
        %v307 = vand.u32 %v287, %v305
        %309 = vmatprep.subr.bf16.mxu0 0
        %310 = vmatpush1.bf16.msra.mxu0 0
        %311 = vmatprep.subr.bf16.mxu0 0
        %312 = vmatpush1.bf16.msra.mxu0 0
        %313 = vmatprep.subr.bf16.mxu0 0
        %314 = vmatpush1.bf16.msra.mxu0 0
        %315 = vmatprep.subr.bf16.mxu0 0
        %316 = vmatpush1.bf16.msra.mxu0 0
        %317 = vmatprep.subr.bf16.mxu0 0
        %318 = vmatpush1.bf16.msra.mxu0 0
        %319 = vmatprep.subr.bf16.mxu0 0
        %320 = vmatpush1.bf16.msra.mxu0 0
        %321 = vmatprep.subr.bf16.mxu0 0
        %322 = vmatpush1.bf16.msra.mxu0 %v307
        %323 = vmatprep.subr.bf16.mxu0 0
        %324 = vmatpush1.bf16.msra.mxu0 %v286
        %325 = vmatprep.subr.bf16.mxu0 0
        %326 = vmatpush2.bf16.msra.mxu0 0
        %327 = vmatprep.subr.bf16.mxu0 0
        %328 = vmatpush2.bf16.msra.mxu0 0
        %329 = vmatprep.subr.bf16.mxu0 0
        %330 = vmatpush2.bf16.msra.mxu0 0
        %331 = vmatprep.subr.bf16.mxu0 0
        %332 = vmatpush2.bf16.msra.mxu0 0
        %333 = vmatprep.subr.bf16.mxu0 0
        %334 = vmatpush2.bf16.msra.mxu0 0
        %335 = vmatprep.subr.bf16.mxu0 0
        %336 = vmatpush2.bf16.msra.mxu0 0
        %337 = vmatprep.subr.bf16.mxu0 0
        %338 = vmatpush2.bf16.msra.mxu0 0
        %339 = vmatprep.subr.bf16.mxu0 0
        %340 = vmatpush2.bf16.msra.mxu0 0
        %341 = vmatprep.mubr.bf16.mxu0 0
        %342 = vmatmul.mubr.bf16.gmra.mxu0 %v291
        %v343 = vpop.f32.mrf.mxu0
        %v344 = vadd.f32 %v256, %v343
        %v345 = vpop.f32.mrf.mxu0
        %v346 = vpop.f32.mrf.mxu0
        %v347 = vadd.f32 %v256, %v346
        %v348 = vpop.f32.mrf.mxu0
        %349 = vmatprep.mubr.bf16.mxu0 0
        %350 = vmatmul.mubr.bf16.gmra.mxu0 %v294
        %v351 = vpop.f32.mrf.mxu0
        %v352 = vadd.f32 %v256, %v351
        %v353 = vpop.f32.mrf.mxu0
        %v354 = vpop.f32.mrf.mxu0
        %v355 = vadd.f32 %v256, %v354
        %v356 = vpop.f32.mrf.mxu0
        %357 = vmatprep.mubr.bf16.mxu0 0
        %358 = vmatmul.mubr.bf16.gmra.mxu0 %v297
        %v359 = vpop.f32.mrf.mxu0
        %v360 = vadd.f32 %v256, %v359
        %v361 = vpop.f32.mrf.mxu0
        %v362 = vpop.f32.mrf.mxu0
        %v363 = vadd.f32 %v256, %v362
        %v364 = vpop.f32.mrf.mxu0
        %365 = vmatprep.mubr.bf16.mxu0 0
        %366 = vmatmul.mubr.bf16.gmra.mxu0 %v300
        %v367 = vpop.f32.mrf.mxu0
        %v368 = vadd.f32 %v256, %v367
        %v369 = vpop.f32.mrf.mxu0
        %v370 = vpop.f32.mrf.mxu0
        %v371 = vadd.f32 %v256, %v370
        %v372 = vpop.f32.mrf.mxu0
        %373 = vdwg.mxu0
        %v374 = vxor.u32 %v344, 2147483648
        %v375 = vxor.u32 %v347, 2147483648
        %v376 = vxor.u32 %v352, 2147483648
        %v377 = vxor.u32 %v355, 2147483648
        %v378 = vxor.u32 %v360, 2147483648
        %v379 = vxor.u32 %v363, 2147483648
        %v380 = vxor.u32 %v368, 2147483648
        %v381 = vxor.u32 %v371, 2147483648
        %v382 = vmul.f32 %v374, 1.442695
        %v383 = vpow.pop %v382
        %v384 = vmul.f32 %v375, 1.442695
        %v385 = vpow.pop %v384
        %v386 = vmul.f32 %v376, 1.442695
        %v387 = vpow.pop %v386
        %v388 = vmul.f32 %v377, 1.442695
        %v389 = vpow.pop %v388
        %v390 = vmul.f32 %v378, 1.442695
        %v391 = vpow.pop %v390
        %v392 = vmul.f32 %v379, 1.442695
        %v393 = vpow.pop %v392
        %v394 = vmul.f32 %v380, 1.442695
        %v395 = vpow.pop %v394
        %v396 = vmul.f32 %v381, 1.442695
        %v397 = vpow.pop %v396
        %v398 = vadd.f32 %v383, 1.0
        %v399 = vadd.f32 %v385, 1.0
        %v400 = vadd.f32 %v387, 1.0
        %v401 = vadd.f32 %v389, 1.0
        %v402 = vadd.f32 %v391, 1.0
        %v403 = vadd.f32 %v393, 1.0
        %v404 = vadd.f32 %v395, 1.0
        %v405 = vadd.f32 %v397, 1.0
        %v406 = vrcp.pop %v398
        %v407 = vmul.f32 1.0, %v406
        %v408 = vrcp.pop %v399
        %v409 = vmul.f32 1.0, %v408
        %v410 = vrcp.pop %v400
        %v411 = vmul.f32 1.0, %v410
        %v412 = vrcp.pop %v401
        %v413 = vmul.f32 1.0, %v412
        %v414 = vrcp.pop %v402
        %v415 = vmul.f32 1.0, %v414
        %v416 = vrcp.pop %v403
        %v417 = vmul.f32 1.0, %v416
        %v418 = vrcp.pop %v404
        %v419 = vmul.f32 1.0, %v418
        %v420 = vrcp.pop %v405
        %v421 = vmul.f32 1.0, %v420
        %v422 = vmul.f32 %v344, %v407
        %v423 = vmul.f32 %v347, %v409
        %v424 = vmul.f32 %v352, %v411
        %v425 = vmul.f32 %v355, %v413
        %v426 = vmul.f32 %v360, %v415
        %v427 = vmul.f32 %v363, %v417
        %v428 = vmul.f32 %v368, %v419
        %v429 = vmul.f32 %v371, %v421
        %v430 = vpack.c.bf16 %v423, %v422
        %v431 = vpack.c.bf16 %v425, %v424
        %v432 = vpack.c.bf16 %v427, %v426
        %v433 = vpack.c.bf16 %v429, %v428
        %v438 = vunpack.c.l.b16 %v430
        %v439 = vunpack.c.h.b16 %v430
        %v440 = vunpack.c.l.b16 %v431
        %v441 = vunpack.c.h.b16 %v431
        %v442 = vunpack.c.l.b16 %v432
        %v443 = vunpack.c.h.b16 %v432
        %v444 = vunpack.c.l.b16 %v433
        %v445 = vunpack.c.h.b16 %v433
        %v446 = vpack.c.b16 %v438, %v438
        %v447 = vpack.c.b16 %v439, %v439
        %v448 = vpack.c.b16 %v440, %v440
        %v449 = vpack.c.b16 %v441, %v441
        %v450 = vpack.c.b16 %v442, %v442
        %v451 = vpack.c.b16 %v443, %v443
        %v452 = vpack.c.b16 %v444, %v444
        %v453 = vpack.c.b16 %v445, %v445
        %462 = vst [vmem:[%s236] sm:$0xf] %v446
        %463 = vst [vmem:[%s236 + $0x4] sm:$0xf] %v447
        %464 = vst [vmem:[%s236 + $0x8] sm:$0xf] %v448
        %465 = vst [vmem:[%s236 + $0xc] sm:$0xf] %v449
        %466 = vst [vmem:[%s236 + $0x10] sm:$0xf] %v450
        %467 = vst [vmem:[%s236 + $0x14] sm:$0xf] %v451
        %468 = vst [vmem:[%s236 + $0x18] sm:$0xf] %v452
        %469 = vst [vmem:[%s236 + $0x1c] sm:$0xf] %v453
        %s470 = smul.u32 8, %s21
        %p471 = scmp.lt.s32.totalorder %s20, 1
        %s472 = scalar_select %p471, %s20, 1
        %p473 = scmp.lt.s32.totalorder %s470, 7
        %s474 = scalar_select %p473, %s470, 7
        %s475 = smul.addr %s472, 8
        %s476 = sadd.s32 %s474, %s475
        %s477 = smul.addr %s476, 4
        %s478 = scalar_lea.vmem %s3, %s477
        // Predicated region
        $region41: #{age_model_forward.8} parent=31 // pred_check
          %p479 = pneg %p118
        $region42: #{age_model_forward.8} parent=31 // pred_check_branch
          %481 = sbr.rel (%p479) target = $region44
        $region43: #{age_model_forward.8} parent=31 // pred_region
          %s482 = smul.u32 8, %s21
        $region44: #{age_model_forward.8} parent=31 // pred_fallthru
          _
      $region32: #{age_model_forward.8} parent=5 // pred_fallthru
        _
      %p483 = scmp.le.s32.totalorder 2, %s11
      // Predicated region
      $region45: #{age_model_forward.8} parent=5 // pred_check
        %p484 = pneg %p483
      $region46: #{age_model_forward.8} parent=5 // pred_check_branch
        %486 = sbr.rel (%p484) target = $region48
      $region47: #{age_model_forward.8} parent=5 // pred_region
        %s487 = ssub.s32 %s11, 2
        // Predicated region
        $region49: #{age_model_forward.8} parent=47 // pred_check
          %p488 = pneg %p124
        $region50: #{age_model_forward.8} parent=47 // pred_check_branch
          %490 = sbr.rel (%p488) target = $region52
        $region51: #{age_model_forward.8} parent=47 // pred_region
          %s491 = smul.u32 8, %s23
          %p492 = scmp.lt.s32.totalorder %s22, 1
          %s493 = scalar_select %p492, %s22, 1
          %p494 = scmp.lt.s32.totalorder %s491, 7
          %s495 = scalar_select %p494, %s491, 7
          %s496 = smul.addr %s493, 8
          %s497 = sadd.s32 %s495, %s496
          %s498 = smul.addr %s497, 4
          %s499 = scalar_lea.vmem %s3, %s498
        $region52: #{age_model_forward.8} parent=47 // pred_fallthru
          _
      $region48: #{age_model_forward.8} parent=5 // pred_fallthru
        _
    $region6: #{age_model_forward.8} parent=1 // loop_footer
      %s15 = sadd.s32 1, %s11
    $region7: #{age_model_forward.8} parent=1 // loop_footer_branch
      %10 = sbr.rel target = $region3
    $region8: #{age_model_forward.8} parent=1 // loop_exit
      _
    %500 = vsyncpa [#allocation3], 1
    %s501 = scalar_lea.sflag [#allocation3], 1
    %502 = vsyncpa %s501, 1
    %503 = vsyncpa [#allocation5], 1

// kernel: age_model_forward.10
$region0: #{age_model_forward.10}
  #allocation0 [shape = 'u32[]', space=smem, size = 0x4, offset = 0x4, fixed_abs, tag = 'smem constant byte address 0x4 - core index']
  #allocation1 [shape = 'u32[144,128]{1,0:T(1,128)}', space=vmem, size = 0x12000, scoped, tag = 'internal scratch']
  %s0 = inlined_call_operand.vmem [shape: f32[2,1,128], index: 0, kind: input, shape index: {}]
  %s1 = inlined_call_operand.hbm [shape: bf16[128,128], index: 1, kind: input, shape index: {}]
  %s2 = inlined_call_operand.hbm [shape: f32[1,128], index: 2, kind: input, shape index: {}]
  %s3 = inlined_call_operand.hbm [shape: bf16[128,128], index: 3, kind: input, shape index: {}]
  %s4 = inlined_call_operand.hbm [shape: f32[1,128], index: 4, kind: input, shape index: {}]
  %s5 = inlined_call_operand.vmem [shape: bf16[2,1,128], index: 5, kind: output, shape index: {}]
  %s6 = sld [smem:[#allocation0]]
  $region46: #{age_model_forward.10} parent=0
    _
  %s8 = ssub.s32 1, %s6
  %s9 = scalar_select 0, %s8, %s6
  $region1: #{age_model_forward.10} parent=0
    #allocation2 [shape = 'u8[32768]{0}', space=vmem, size = 0x8000, scoped, tag = 'input window, operand 1, single buffered']
    #allocation3 [shape = 's32[1]{0}', space=sflag, size = 0x4, scoped, tag = 'scoped memory for age_model_forward.10']
    #allocation4 [shape = 'u8[512]{0}', space=vmem, size = 0x400, scoped, tag = 'input window, operand 2, single buffered']
    #allocation5 [shape = 's32[1]{0}', space=sflag, size = 0x4, scoped, tag = 'scoped memory for age_model_forward.10']
    #allocation6 [shape = 'u8[32768]{0}', space=vmem, size = 0x8000, scoped, tag = 'input window, operand 3, single buffered']
    #allocation7 [shape = 'u8[512]{0}', space=vmem, size = 0x400, scoped, tag = 'input window, operand 4, single buffered']
    #allocation8 [shape = 's32[1]{0}', space=sflag, size = 0x4, scoped, tag = 'scoped memory for age_model_forward.10']
    %10 = vsyncpa [#allocation3], 0
    %11 = vsyncpa [#allocation5], 0
    %12 = vsyncpa [#allocation8], 0
    // Predicated region
    $region2: #{age_model_forward.10} parent=1 // pred_check
      _
    $region3: #{age_model_forward.10} parent=1 // pred_check_branch
      %14 = sbr.rel (0) target = $region5
    $region4: #{age_model_forward.10} parent=1 // pred_region
      _
    $region5: #{age_model_forward.10} parent=1 // pred_fallthru
      _
    // Predicated region
    $region6: #{age_model_forward.10} parent=1 // pred_check
      _
    $region7: #{age_model_forward.10} parent=1 // pred_check_branch
      %16 = sbr.rel (0) target = $region9
    $region8: #{age_model_forward.10} parent=1 // pred_region
      %s18 = ssub.s32 1024, 1024
      %19 = vsyncadd [#allocation3], %s18
      %s20 = sshll.u32 [#allocation2], 4
      %s21 = int_to_ptr.vmem [resolvable:$true] %s20
      %26 = dma.hbm_to_vmem [thread:$0]  %s1, 1024, %s21, [#allocation3], 64, 64, 4
    $region9: #{age_model_forward.10} parent=1 // pred_fallthru
      _
    // Predicated region
    $region10: #{age_model_forward.10} parent=1 // pred_check
      _
    $region11: #{age_model_forward.10} parent=1 // pred_check_branch
      %28 = sbr.rel (0) target = $region13
    $region12: #{age_model_forward.10} parent=1 // pred_region
      %s30 = ssub.s32 16, 16
      %31 = vsyncadd [#allocation5], %s30
      %s33 = sshll.u32 [#allocation4], 4
      %s34 = int_to_ptr.vmem [resolvable:$true] %s33
      %36 = dma.hbm_to_vmem [thread:$0]  %s2, 16, %s34, [#allocation5]
    $region13: #{age_model_forward.10} parent=1 // pred_fallthru
      _
    // Predicated region
    $region14: #{age_model_forward.10} parent=1 // pred_check
      _
    $region15: #{age_model_forward.10} parent=1 // pred_check_branch
      %38 = sbr.rel (0) target = $region17
    $region16: #{age_model_forward.10} parent=1 // pred_region
      %s40 = ssub.s32 1024, 1024
      %41 = vsyncadd [#allocation5], %s40
      %s42 = sshll.u32 [#allocation6], 4
      %s43 = int_to_ptr.vmem [resolvable:$true] %s42
      %48 = dma.hbm_to_vmem [thread:$0]  %s3, 1024, %s43, [#allocation5], 64, 64, 4
    $region17: #{age_model_forward.10} parent=1 // pred_fallthru
      _
    // Predicated region
    $region18: #{age_model_forward.10} parent=1 // pred_check
      _
    $region19: #{age_model_forward.10} parent=1 // pred_check_branch
      %50 = sbr.rel (0) target = $region21
    $region20: #{age_model_forward.10} parent=1 // pred_region
      %s52 = ssub.s32 16, 16
      %53 = vsyncadd [#allocation8], %s52
      %s55 = sshll.u32 [#allocation7], 4
      %s56 = int_to_ptr.vmem [resolvable:$true] %s55
      %58 = dma.hbm_to_vmem [thread:$0]  %s4, 16, %s56, [#allocation8]
    $region21: #{age_model_forward.10} parent=1 // pred_fallthru
      _
    // Predicated region
    $region22: #{age_model_forward.10} parent=1 // pred_check
      _
    $region23: #{age_model_forward.10} parent=1 // pred_check_branch
      %60 = sbr.rel (0) target = $region25
    $region24: #{age_model_forward.10} parent=1 // pred_region
      %61 = dma.done [#allocation3], 1024
    $region25: #{age_model_forward.10} parent=1 // pred_fallthru
      _
    // Predicated region
    $region26: #{age_model_forward.10} parent=1 // pred_check
      _
    $region27: #{age_model_forward.10} parent=1 // pred_check_branch
      %63 = sbr.rel (0) target = $region29
    $region28: #{age_model_forward.10} parent=1 // pred_region
      %64 = dma.done [#allocation5], 16
    $region29: #{age_model_forward.10} parent=1 // pred_fallthru
      _
    // Predicated region
    $region30: #{age_model_forward.10} parent=1 // pred_check
      _
    $region31: #{age_model_forward.10} parent=1 // pred_check_branch
      %66 = sbr.rel (0) target = $region33
    $region32: #{age_model_forward.10} parent=1 // pred_region
      %67 = dma.done [#allocation5], 1024
    $region33: #{age_model_forward.10} parent=1 // pred_fallthru
      _
    // Predicated region
    $region34: #{age_model_forward.10} parent=1 // pred_check
      _
    $region35: #{age_model_forward.10} parent=1 // pred_check_branch
      %69 = sbr.rel (0) target = $region37
    $region36: #{age_model_forward.10} parent=1 // pred_region
      %70 = dma.done [#allocation8], 16
    $region37: #{age_model_forward.10} parent=1 // pred_fallthru
      _
    %v72 = vld [vmem:[%s0] sm:$0x1]
    %v73 = vld [vmem:[%s0 + $0x1] sm:$0x1]
    %v74 = vpack.c.bf16 %v72, %v72
    %v75 = vpack.c.bf16 %v73, %v73
    %v76 = vld [vmem:[#allocation2] sm:$0xf]
    %v77 = vld [vmem:[#allocation2 + $0x4] sm:$0xf]
    %v78 = vld [vmem:[#allocation2 + $0x8] sm:$0xf]
    %v79 = vld [vmem:[#allocation2 + $0xc] sm:$0xf]
    %v80 = vld [vmem:[#allocation2 + $0x10] sm:$0xf]
    %v81 = vld [vmem:[#allocation2 + $0x14] sm:$0xf]
    %v82 = vld [vmem:[#allocation2 + $0x18] sm:$0xf]
    %v83 = vld [vmem:[#allocation2 + $0x1c] sm:$0xf]
    %v84 = vld [vmem:[#allocation2 + $0x20] sm:$0xf]
    %v85 = vld [vmem:[#allocation2 + $0x24] sm:$0xf]
    %v86 = vld [vmem:[#allocation2 + $0x28] sm:$0xf]
    %v87 = vld [vmem:[#allocation2 + $0x2c] sm:$0xf]
    %v88 = vld [vmem:[#allocation2 + $0x30] sm:$0xf]
    %v89 = vld [vmem:[#allocation2 + $0x34] sm:$0xf]
    %v90 = vld [vmem:[#allocation2 + $0x38] sm:$0xf]
    %v91 = vld [vmem:[#allocation2 + $0x3c] sm:$0xf]
    %v92 = vld [vmem:[#allocation4] sm:$0x1]
    %v94 = vlaneseq
    %v95 = vshrl.u32 %v94, 7
    %v96 = vsub.s32 0, %v95
    %v97 = vrot.slane %v92, %v96
    %v101 = vunpack.c.l.b16 %v74
    %v102 = vunpack.c.l.b16 %v75
    %v103 = vrot.slane %v102, 7
    %vm104 = vcmask 1041409
    %v105 = vsel %vm104, %v103, %v101
    %v106 = vpack.c.b16 %v105, %v105
    %v124 = vunpack.c.l.b16 %v76
    %v125 = vunpack.c.l.b16 %v77
    %v126 = vunpack.c.l.b16 %v78
    %v127 = vunpack.c.l.b16 %v79
    %v128 = vunpack.c.l.b16 %v80
    %v129 = vunpack.c.l.b16 %v81
    %v130 = vunpack.c.l.b16 %v82
    %v131 = vunpack.c.l.b16 %v83
    %v132 = vunpack.c.l.b16 %v84
    %v133 = vunpack.c.l.b16 %v85
    %v134 = vunpack.c.l.b16 %v86
    %v135 = vunpack.c.l.b16 %v87
    %v136 = vunpack.c.l.b16 %v88
    %v137 = vunpack.c.l.b16 %v89
    %v138 = vunpack.c.l.b16 %v90
    %v139 = vunpack.c.l.b16 %v91
    %v140 = vpack.c.b16 %v125, %v124
    %v141 = vpack.c.b16 %v127, %v126
    %v142 = vpack.c.b16 %v129, %v128
    %v143 = vpack.c.b16 %v131, %v130
    %v144 = vpack.c.b16 %v133, %v132
    %v145 = vpack.c.b16 %v135, %v134
    %v146 = vpack.c.b16 %v137, %v136
    %v147 = vpack.c.b16 %v139, %v138
    %156 = vmatprep.subr.bf16.mxu0 0
    %157 = vmatpush1.bf16.msra.mxu0 %v147
    %158 = vmatprep.subr.bf16.mxu0 0
    %159 = vmatpush1.bf16.msra.mxu0 %v146
    %160 = vmatprep.subr.bf16.mxu0 0
    %161 = vmatpush1.bf16.msra.mxu0 %v145
    %162 = vmatprep.subr.bf16.mxu0 0
    %163 = vmatpush1.bf16.msra.mxu0 %v144
    %164 = vmatprep.subr.bf16.mxu0 0
    %165 = vmatpush1.bf16.msra.mxu0 %v143
    %166 = vmatprep.subr.bf16.mxu0 0
    %167 = vmatpush1.bf16.msra.mxu0 %v142
    %168 = vmatprep.subr.bf16.mxu0 0
    %169 = vmatpush1.bf16.msra.mxu0 %v141
    %170 = vmatprep.subr.bf16.mxu0 0
    %171 = vmatpush1.bf16.msra.mxu0 %v140
    %172 = vmatprep.subr.bf16.mxu0 0
    %173 = vmatpush2.bf16.msra.mxu0 0
    %174 = vmatprep.subr.bf16.mxu0 0
    %175 = vmatpush2.bf16.msra.mxu0 0
    %176 = vmatprep.subr.bf16.mxu0 0
    %177 = vmatpush2.bf16.msra.mxu0 0
    %178 = vmatprep.subr.bf16.mxu0 0
    %179 = vmatpush2.bf16.msra.mxu0 0
    %180 = vmatprep.subr.bf16.mxu0 0
    %181 = vmatpush2.bf16.msra.mxu0 0
    %182 = vmatprep.subr.bf16.mxu0 0
    %183 = vmatpush2.bf16.msra.mxu0 0
    %184 = vmatprep.subr.bf16.mxu0 0
    %185 = vmatpush2.bf16.msra.mxu0 0
    %186 = vmatprep.subr.bf16.mxu0 0
    %187 = vmatpush2.bf16.msra.mxu0 0
    %188 = vmatprep.mubr.bf16.mxu0 0
    %189 = vmatmul.mubr.bf16.gmra.mxu0 %v106
    %v190 = vpop.f32.mrf.mxu0
    %v191 = vadd.f32 %v97, %v190
    %v192 = vpop.f32.mrf.mxu0
    %v193 = vpop.f32.mrf.mxu0
    %v194 = vpop.f32.mrf.mxu0
    %195 = vdwg.mxu0
    %v196 = vxor.u32 %v191, 2147483648
    %v197 = vmul.f32 %v196, 1.442695
    %v198 = vpow.pop %v197
    %v199 = vadd.f32 %v198, 1.0
    %v200 = vrcp.pop %v199
    %v201 = vmul.f32 1.0, %v200
    %v202 = vmul.f32 %v191, %v201
    %v203 = vpack.c.bf16 %v202, %v202
    %v204 = vld [vmem:[#allocation6] sm:$0xf]
    %v205 = vld [vmem:[#allocation6 + $0x4] sm:$0xf]
    %v206 = vld [vmem:[#allocation6 + $0x8] sm:$0xf]
    %v207 = vld [vmem:[#allocation6 + $0xc] sm:$0xf]
    %v208 = vld [vmem:[#allocation6 + $0x10] sm:$0xf]
    %v209 = vld [vmem:[#allocation6 + $0x14] sm:$0xf]
    %v210 = vld [vmem:[#allocation6 + $0x18] sm:$0xf]
    %v211 = vld [vmem:[#allocation6 + $0x1c] sm:$0xf]
    %v212 = vld [vmem:[#allocation6 + $0x20] sm:$0xf]
    %v213 = vld [vmem:[#allocation6 + $0x24] sm:$0xf]
    %v214 = vld [vmem:[#allocation6 + $0x28] sm:$0xf]
    %v215 = vld [vmem:[#allocation6 + $0x2c] sm:$0xf]
    %v216 = vld [vmem:[#allocation6 + $0x30] sm:$0xf]
    %v217 = vld [vmem:[#allocation6 + $0x34] sm:$0xf]
    %v218 = vld [vmem:[#allocation6 + $0x38] sm:$0xf]
    %v219 = vld [vmem:[#allocation6 + $0x3c] sm:$0xf]
    %v220 = vld [vmem:[#allocation7] sm:$0x1]
    %v222 = vlaneseq
    %v223 = vshrl.u32 %v222, 7
    %v224 = vsub.s32 0, %v223
    %v225 = vrot.slane %v220, %v224
    %v243 = vunpack.c.l.b16 %v204
    %v244 = vunpack.c.l.b16 %v205
    %v245 = vunpack.c.l.b16 %v206
    %v246 = vunpack.c.l.b16 %v207
    %v247 = vunpack.c.l.b16 %v208
    %v248 = vunpack.c.l.b16 %v209
    %v249 = vunpack.c.l.b16 %v210
    %v250 = vunpack.c.l.b16 %v211
    %v251 = vunpack.c.l.b16 %v212
    %v252 = vunpack.c.l.b16 %v213
    %v253 = vunpack.c.l.b16 %v214
    %v254 = vunpack.c.l.b16 %v215
    %v255 = vunpack.c.l.b16 %v216
    %v256 = vunpack.c.l.b16 %v217
    %v257 = vunpack.c.l.b16 %v218
    %v258 = vunpack.c.l.b16 %v219
    %v259 = vpack.c.b16 %v244, %v243
    %v260 = vpack.c.b16 %v246, %v245
    %v261 = vpack.c.b16 %v248, %v247
    %v262 = vpack.c.b16 %v250, %v249
    %v263 = vpack.c.b16 %v252, %v251
    %v264 = vpack.c.b16 %v254, %v253
    %v265 = vpack.c.b16 %v256, %v255
    %v266 = vpack.c.b16 %v258, %v257
    %275 = vmatprep.subr.bf16.mxu0 0
    %276 = vmatpush1.bf16.msra.mxu0 %v266
    %277 = vmatprep.subr.bf16.mxu0 0
    %278 = vmatpush1.bf16.msra.mxu0 %v265
    %279 = vmatprep.subr.bf16.mxu0 0
    %280 = vmatpush1.bf16.msra.mxu0 %v264
    %281 = vmatprep.subr.bf16.mxu0 0
    %282 = vmatpush1.bf16.msra.mxu0 %v263
    %283 = vmatprep.subr.bf16.mxu0 0
    %284 = vmatpush1.bf16.msra.mxu0 %v262
    %285 = vmatprep.subr.bf16.mxu0 0
    %286 = vmatpush1.bf16.msra.mxu0 %v261
    %287 = vmatprep.subr.bf16.mxu0 0
    %288 = vmatpush1.bf16.msra.mxu0 %v260
    %289 = vmatprep.subr.bf16.mxu0 0
    %290 = vmatpush1.bf16.msra.mxu0 %v259
    %291 = vmatprep.subr.bf16.mxu0 0
    %292 = vmatpush2.bf16.msra.mxu0 0
    %293 = vmatprep.subr.bf16.mxu0 0
    %294 = vmatpush2.bf16.msra.mxu0 0
    %295 = vmatprep.subr.bf16.mxu0 0
    %296 = vmatpush2.bf16.msra.mxu0 0
    %297 = vmatprep.subr.bf16.mxu0 0
    %298 = vmatpush2.bf16.msra.mxu0 0
    %299 = vmatprep.subr.bf16.mxu0 0
    %300 = vmatpush2.bf16.msra.mxu0 0
    %301 = vmatprep.subr.bf16.mxu0 0
    %302 = vmatpush2.bf16.msra.mxu0 0
    %303 = vmatprep.subr.bf16.mxu0 0
    %304 = vmatpush2.bf16.msra.mxu0 0
    %305 = vmatprep.subr.bf16.mxu0 0
    %306 = vmatpush2.bf16.msra.mxu0 0
    %307 = vmatprep.mubr.bf16.mxu0 0
    %308 = vmatmul.mubr.bf16.gmra.mxu0 %v203
    %v309 = vpop.f32.mrf.mxu0
    %v310 = vadd.f32 %v225, %v309
    %v311 = vpop.f32.mrf.mxu0
    %v312 = vpop.f32.mrf.mxu0
    %v313 = vpop.f32.mrf.mxu0
    %314 = vdwg.mxu0
    %v315 = vxor.u32 %v310, 2147483648
    %v316 = vmul.f32 %v315, 1.442695
    %v317 = vpow.pop %v316
    %v318 = vadd.f32 %v317, 1.0
    %v319 = vrcp.pop %v318
    %v320 = vmul.f32 1.0, %v319
    %v321 = vlaneseq
    %v322 = vand.u32 %v321, 127
    %vm323 = vcmp.lt.s32.totalorder %v322, 32
    %v324 = vsel %vm323, %v320, 0.0
    %v327 = vunpack.c.l.s4 1966171168
    %v328 = vunpack.c.0.s8 %v327
    %v329 = vlaneseq
    %v330 = vshrl.u32 %v329, 7
    %v331 = vsub.s32 %v328, %v330
    %v332 = vrot.slane %v324, %v331
    %v333 = vcombine.high %v332, %v332
    %v335 = vunpack.c.l.s4 1966171168
    %v336 = vunpack.c.0.s8 %v335
    %v337 = vlaneseq
    %v338 = vshrl.u32 %v337, 7
    %v339 = vsub.s32 %v336, %v338
    %v340 = vrot.slane %v332, %v339
    %v342 = vunpack.c.l.s4 1966171168
    %v343 = vunpack.c.0.s8 %v342
    %v344 = vlaneseq
    %v345 = vshrl.u32 %v344, 7
    %v346 = vsub.s32 %v343, %v345
    %v347 = vrot.slane %v333, %v346
    %v350 = vpack.c.bf16 %v340, %v340
    %v351 = vpack.c.bf16 %v347, %v347
    %vm352 = vcmask 1040384
    %vm353 = vsmask.f32 256
    %vm354 = vmand %vm352, %vm353
    %v355 = vld [vmem:[%s5] sm:$0x1]
    %v356 = vsel %vm354, %v350, %v355
    %357 = vst [vmem:[%s5] sm:$0x1] %v356
    %v358 = vld [vmem:[%s5 + $0x1] sm:$0x1]
    %v359 = vsel %vm354, %v351, %v358
    %360 = vst [vmem:[%s5 + $0x1] sm:$0x1] %v359
    // Predicated region
    $region38: #{age_model_forward.10} parent=1 // pred_check
      _
    $region39: #{age_model_forward.10} parent=1 // pred_check_branch
      %362 = sbr.rel (0) target = $region41
    $region40: #{age_model_forward.10} parent=1 // pred_region
      _
    $region41: #{age_model_forward.10} parent=1 // pred_fallthru
      _
    // Predicated region
    $region42: #{age_model_forward.10} parent=1 // pred_check
      _
    $region43: #{age_model_forward.10} parent=1 // pred_check_branch
      %364 = sbr.rel (0) target = $region45
    $region44: #{age_model_forward.10} parent=1 // pred_region
      _
    $region45: #{age_model_forward.10} parent=1 // pred_fallthru
      _
    %365 = vsyncpa [#allocation3], 1
    %366 = vsyncpa [#allocation5], 1
    %367 = vsyncpa [#allocation8], 1

// kernel: age_model_forward.13
$region0: #{age_model_forward.13}
  #allocation0 [shape = 'u32[]', space=smem, size = 0x4, offset = 0x4, fixed_abs, tag = 'smem constant byte address 0x4 - core index']
  #allocation1 [shape = 'u32[144,128]{1,0:T(1,128)}', space=vmem, size = 0x12000, scoped, tag = 'internal scratch']
  %s0 = inlined_call_operand.vmem [shape: f32[2,1,128], index: 0, kind: input, shape index: {}]
  %s1 = inlined_call_operand.hbm [shape: bf16[128,128], index: 1, kind: input, shape index: {}]
  %s2 = inlined_call_operand.hbm [shape: f32[1,128], index: 2, kind: input, shape index: {}]
  %s3 = inlined_call_operand.hbm [shape: bf16[128,128], index: 3, kind: input, shape index: {}]
  %s4 = inlined_call_operand.hbm [shape: f32[1,128], index: 4, kind: input, shape index: {}]
  %s5 = inlined_call_operand.vmem [shape: bf16[2,1,128], index: 5, kind: output, shape index: {}]
  %s6 = sld [smem:[#allocation0]]
  $region46: #{age_model_forward.13} parent=0
    _
  %s8 = ssub.s32 1, %s6
  %s9 = scalar_select 0, %s8, %s6
  $region1: #{age_model_forward.13} parent=0
    #allocation2 [shape = 'u8[32768]{0}', space=vmem, size = 0x8000, scoped, tag = 'input window, operand 1, single buffered']
    #allocation3 [shape = 's32[1]{0}', space=sflag, size = 0x4, scoped, tag = 'scoped memory for age_model_forward.13']
    #allocation4 [shape = 'u8[512]{0}', space=vmem, size = 0x400, scoped, tag = 'input window, operand 2, single buffered']
    #allocation5 [shape = 's32[1]{0}', space=sflag, size = 0x4, scoped, tag = 'scoped memory for age_model_forward.13']
    #allocation6 [shape = 'u8[32768]{0}', space=vmem, size = 0x8000, scoped, tag = 'input window, operand 3, single buffered']
    #allocation7 [shape = 'u8[512]{0}', space=vmem, size = 0x400, scoped, tag = 'input window, operand 4, single buffered']
    #allocation8 [shape = 's32[1]{0}', space=sflag, size = 0x4, scoped, tag = 'scoped memory for age_model_forward.13']
    %10 = vsyncpa [#allocation3], 0
    %11 = vsyncpa [#allocation5], 0
    %12 = vsyncpa [#allocation8], 0
    // Predicated region
    $region2: #{age_model_forward.13} parent=1 // pred_check
      _
    $region3: #{age_model_forward.13} parent=1 // pred_check_branch
      %14 = sbr.rel (0) target = $region5
    $region4: #{age_model_forward.13} parent=1 // pred_region
      _
    $region5: #{age_model_forward.13} parent=1 // pred_fallthru
      _
    // Predicated region
    $region6: #{age_model_forward.13} parent=1 // pred_check
      _
    $region7: #{age_model_forward.13} parent=1 // pred_check_branch
      %16 = sbr.rel (0) target = $region9
    $region8: #{age_model_forward.13} parent=1 // pred_region
      %s18 = ssub.s32 1024, 1024
      %19 = vsyncadd [#allocation3], %s18
      %s20 = sshll.u32 [#allocation2], 4
      %s21 = int_to_ptr.vmem [resolvable:$true] %s20
      %26 = dma.hbm_to_vmem [thread:$0]  %s1, 1024, %s21, [#allocation3], 64, 64, 4
    $region9: #{age_model_forward.13} parent=1 // pred_fallthru
      _
    // Predicated region
    $region10: #{age_model_forward.13} parent=1 // pred_check
      _
    $region11: #{age_model_forward.13} parent=1 // pred_check_branch
      %28 = sbr.rel (0) target = $region13
    $region12: #{age_model_forward.13} parent=1 // pred_region
      %s30 = ssub.s32 16, 16
      %31 = vsyncadd [#allocation5], %s30
      %s33 = sshll.u32 [#allocation4], 4
      %s34 = int_to_ptr.vmem [resolvable:$true] %s33
      %36 = dma.hbm_to_vmem [thread:$0]  %s2, 16, %s34, [#allocation5]
    $region13: #{age_model_forward.13} parent=1 // pred_fallthru
      _
    // Predicated region
    $region14: #{age_model_forward.13} parent=1 // pred_check
      _
    $region15: #{age_model_forward.13} parent=1 // pred_check_branch
      %38 = sbr.rel (0) target = $region17
    $region16: #{age_model_forward.13} parent=1 // pred_region
      %s40 = ssub.s32 1024, 1024
      %41 = vsyncadd [#allocation5], %s40
      %s42 = sshll.u32 [#allocation6], 4
      %s43 = int_to_ptr.vmem [resolvable:$true] %s42
      %48 = dma.hbm_to_vmem [thread:$0]  %s3, 1024, %s43, [#allocation5], 64, 64, 4
    $region17: #{age_model_forward.13} parent=1 // pred_fallthru
      _
    // Predicated region
    $region18: #{age_model_forward.13} parent=1 // pred_check
      _
    $region19: #{age_model_forward.13} parent=1 // pred_check_branch
      %50 = sbr.rel (0) target = $region21
    $region20: #{age_model_forward.13} parent=1 // pred_region
      %s52 = ssub.s32 16, 16
      %53 = vsyncadd [#allocation8], %s52
      %s55 = sshll.u32 [#allocation7], 4
      %s56 = int_to_ptr.vmem [resolvable:$true] %s55
      %58 = dma.hbm_to_vmem [thread:$0]  %s4, 16, %s56, [#allocation8]
    $region21: #{age_model_forward.13} parent=1 // pred_fallthru
      _
    // Predicated region
    $region22: #{age_model_forward.13} parent=1 // pred_check
      _
    $region23: #{age_model_forward.13} parent=1 // pred_check_branch
      %60 = sbr.rel (0) target = $region25
    $region24: #{age_model_forward.13} parent=1 // pred_region
      %61 = dma.done [#allocation3], 1024
    $region25: #{age_model_forward.13} parent=1 // pred_fallthru
      _
    // Predicated region
    $region26: #{age_model_forward.13} parent=1 // pred_check
      _
    $region27: #{age_model_forward.13} parent=1 // pred_check_branch
      %63 = sbr.rel (0) target = $region29
    $region28: #{age_model_forward.13} parent=1 // pred_region
      %64 = dma.done [#allocation5], 16
    $region29: #{age_model_forward.13} parent=1 // pred_fallthru
      _
    // Predicated region
    $region30: #{age_model_forward.13} parent=1 // pred_check
      _
    $region31: #{age_model_forward.13} parent=1 // pred_check_branch
      %66 = sbr.rel (0) target = $region33
    $region32: #{age_model_forward.13} parent=1 // pred_region
      %67 = dma.done [#allocation5], 1024
    $region33: #{age_model_forward.13} parent=1 // pred_fallthru
      _
    // Predicated region
    $region34: #{age_model_forward.13} parent=1 // pred_check
      _
    $region35: #{age_model_forward.13} parent=1 // pred_check_branch
      %69 = sbr.rel (0) target = $region37
    $region36: #{age_model_forward.13} parent=1 // pred_region
      %70 = dma.done [#allocation8], 16
    $region37: #{age_model_forward.13} parent=1 // pred_fallthru
      _
    %v72 = vld [vmem:[%s0] sm:$0x1]
    %v73 = vld [vmem:[%s0 + $0x1] sm:$0x1]
    %v74 = vpack.c.bf16 %v72, %v72
    %v75 = vpack.c.bf16 %v73, %v73
    %v76 = vld [vmem:[#allocation2] sm:$0xf]
    %v77 = vld [vmem:[#allocation2 + $0x4] sm:$0xf]
    %v78 = vld [vmem:[#allocation2 + $0x8] sm:$0xf]
    %v79 = vld [vmem:[#allocation2 + $0xc] sm:$0xf]
    %v80 = vld [vmem:[#allocation2 + $0x10] sm:$0xf]
    %v81 = vld [vmem:[#allocation2 + $0x14] sm:$0xf]
    %v82 = vld [vmem:[#allocation2 + $0x18] sm:$0xf]
    %v83 = vld [vmem:[#allocation2 + $0x1c] sm:$0xf]
    %v84 = vld [vmem:[#allocation2 + $0x20] sm:$0xf]
    %v85 = vld [vmem:[#allocation2 + $0x24] sm:$0xf]
    %v86 = vld [vmem:[#allocation2 + $0x28] sm:$0xf]
    %v87 = vld [vmem:[#allocation2 + $0x2c] sm:$0xf]
    %v88 = vld [vmem:[#allocation2 + $0x30] sm:$0xf]
    %v89 = vld [vmem:[#allocation2 + $0x34] sm:$0xf]
    %v90 = vld [vmem:[#allocation2 + $0x38] sm:$0xf]
    %v91 = vld [vmem:[#allocation2 + $0x3c] sm:$0xf]
    %v92 = vld [vmem:[#allocation4] sm:$0x1]
    %v94 = vlaneseq
    %v95 = vshrl.u32 %v94, 7
    %v96 = vsub.s32 0, %v95
    %v97 = vrot.slane %v92, %v96
    %v101 = vunpack.c.l.b16 %v74
    %v102 = vunpack.c.l.b16 %v75
    %v103 = vrot.slane %v102, 7
    %vm104 = vcmask 1041409
    %v105 = vsel %vm104, %v103, %v101
    %v106 = vpack.c.b16 %v105, %v105
    %v124 = vunpack.c.l.b16 %v76
    %v125 = vunpack.c.l.b16 %v77
    %v126 = vunpack.c.l.b16 %v78
    %v127 = vunpack.c.l.b16 %v79
    %v128 = vunpack.c.l.b16 %v80
    %v129 = vunpack.c.l.b16 %v81
    %v130 = vunpack.c.l.b16 %v82
    %v131 = vunpack.c.l.b16 %v83
    %v132 = vunpack.c.l.b16 %v84
    %v133 = vunpack.c.l.b16 %v85
    %v134 = vunpack.c.l.b16 %v86
    %v135 = vunpack.c.l.b16 %v87
    %v136 = vunpack.c.l.b16 %v88
    %v137 = vunpack.c.l.b16 %v89
    %v138 = vunpack.c.l.b16 %v90
    %v139 = vunpack.c.l.b16 %v91
    %v140 = vpack.c.b16 %v125, %v124
    %v141 = vpack.c.b16 %v127, %v126
    %v142 = vpack.c.b16 %v129, %v128
    %v143 = vpack.c.b16 %v131, %v130
    %v144 = vpack.c.b16 %v133, %v132
    %v145 = vpack.c.b16 %v135, %v134
    %v146 = vpack.c.b16 %v137, %v136
    %v147 = vpack.c.b16 %v139, %v138
    %156 = vmatprep.subr.bf16.mxu0 0
    %157 = vmatpush1.bf16.msra.mxu0 %v147
    %158 = vmatprep.subr.bf16.mxu0 0
    %159 = vmatpush1.bf16.msra.mxu0 %v146
    %160 = vmatprep.subr.bf16.mxu0 0
    %161 = vmatpush1.bf16.msra.mxu0 %v145
    %162 = vmatprep.subr.bf16.mxu0 0
    %163 = vmatpush1.bf16.msra.mxu0 %v144
    %164 = vmatprep.subr.bf16.mxu0 0
    %165 = vmatpush1.bf16.msra.mxu0 %v143
    %166 = vmatprep.subr.bf16.mxu0 0
    %167 = vmatpush1.bf16.msra.mxu0 %v142
    %168 = vmatprep.subr.bf16.mxu0 0
    %169 = vmatpush1.bf16.msra.mxu0 %v141
    %170 = vmatprep.subr.bf16.mxu0 0
    %171 = vmatpush1.bf16.msra.mxu0 %v140
    %172 = vmatprep.subr.bf16.mxu0 0
    %173 = vmatpush2.bf16.msra.mxu0 0
    %174 = vmatprep.subr.bf16.mxu0 0
    %175 = vmatpush2.bf16.msra.mxu0 0
    %176 = vmatprep.subr.bf16.mxu0 0
    %177 = vmatpush2.bf16.msra.mxu0 0
    %178 = vmatprep.subr.bf16.mxu0 0
    %179 = vmatpush2.bf16.msra.mxu0 0
    %180 = vmatprep.subr.bf16.mxu0 0
    %181 = vmatpush2.bf16.msra.mxu0 0
    %182 = vmatprep.subr.bf16.mxu0 0
    %183 = vmatpush2.bf16.msra.mxu0 0
    %184 = vmatprep.subr.bf16.mxu0 0
    %185 = vmatpush2.bf16.msra.mxu0 0
    %186 = vmatprep.subr.bf16.mxu0 0
    %187 = vmatpush2.bf16.msra.mxu0 0
    %188 = vmatprep.mubr.bf16.mxu0 0
    %189 = vmatmul.mubr.bf16.gmra.mxu0 %v106
    %v190 = vpop.f32.mrf.mxu0
    %v191 = vadd.f32 %v97, %v190
    %v192 = vpop.f32.mrf.mxu0
    %v193 = vpop.f32.mrf.mxu0
    %v194 = vpop.f32.mrf.mxu0
    %195 = vdwg.mxu0
    %v196 = vxor.u32 %v191, 2147483648
    %v197 = vmul.f32 %v196, 1.442695
    %v198 = vpow.pop %v197
    %v199 = vadd.f32 %v198, 1.0
    %v200 = vrcp.pop %v199
    %v201 = vmul.f32 1.0, %v200
    %v202 = vmul.f32 %v191, %v201
    %v203 = vpack.c.bf16 %v202, %v202
    %v204 = vld [vmem:[#allocation6] sm:$0xf]
    %v205 = vld [vmem:[#allocation6 + $0x4] sm:$0xf]
    %v206 = vld [vmem:[#allocation6 + $0x8] sm:$0xf]
    %v207 = vld [vmem:[#allocation6 + $0xc] sm:$0xf]
    %v208 = vld [vmem:[#allocation6 + $0x10] sm:$0xf]
    %v209 = vld [vmem:[#allocation6 + $0x14] sm:$0xf]
    %v210 = vld [vmem:[#allocation6 + $0x18] sm:$0xf]
    %v211 = vld [vmem:[#allocation6 + $0x1c] sm:$0xf]
    %v212 = vld [vmem:[#allocation6 + $0x20] sm:$0xf]
    %v213 = vld [vmem:[#allocation6 + $0x24] sm:$0xf]
    %v214 = vld [vmem:[#allocation6 + $0x28] sm:$0xf]
    %v215 = vld [vmem:[#allocation6 + $0x2c] sm:$0xf]
    %v216 = vld [vmem:[#allocation6 + $0x30] sm:$0xf]
    %v217 = vld [vmem:[#allocation6 + $0x34] sm:$0xf]
    %v218 = vld [vmem:[#allocation6 + $0x38] sm:$0xf]
    %v219 = vld [vmem:[#allocation6 + $0x3c] sm:$0xf]
    %v220 = vld [vmem:[#allocation7] sm:$0x1]
    %v222 = vlaneseq
    %v223 = vshrl.u32 %v222, 7
    %v224 = vsub.s32 0, %v223
    %v225 = vrot.slane %v220, %v224
    %v243 = vunpack.c.l.b16 %v204
    %v244 = vunpack.c.l.b16 %v205
    %v245 = vunpack.c.l.b16 %v206
    %v246 = vunpack.c.l.b16 %v207
    %v247 = vunpack.c.l.b16 %v208
    %v248 = vunpack.c.l.b16 %v209
    %v249 = vunpack.c.l.b16 %v210
    %v250 = vunpack.c.l.b16 %v211
    %v251 = vunpack.c.l.b16 %v212
    %v252 = vunpack.c.l.b16 %v213
    %v253 = vunpack.c.l.b16 %v214
    %v254 = vunpack.c.l.b16 %v215
    %v255 = vunpack.c.l.b16 %v216
    %v256 = vunpack.c.l.b16 %v217
    %v257 = vunpack.c.l.b16 %v218
    %v258 = vunpack.c.l.b16 %v219
    %v259 = vpack.c.b16 %v244, %v243
    %v260 = vpack.c.b16 %v246, %v245
    %v261 = vpack.c.b16 %v248, %v247
    %v262 = vpack.c.b16 %v250, %v249
    %v263 = vpack.c.b16 %v252, %v251
    %v264 = vpack.c.b16 %v254, %v253
    %v265 = vpack.c.b16 %v256, %v255
    %v266 = vpack.c.b16 %v258, %v257
    %275 = vmatprep.subr.bf16.mxu0 0
    %276 = vmatpush1.bf16.msra.mxu0 %v266
    %277 = vmatprep.subr.bf16.mxu0 0
    %278 = vmatpush1.bf16.msra.mxu0 %v265
    %279 = vmatprep.subr.bf16.mxu0 0
    %280 = vmatpush1.bf16.msra.mxu0 %v264
    %281 = vmatprep.subr.bf16.mxu0 0
    %282 = vmatpush1.bf16.msra.mxu0 %v263
    %283 = vmatprep.subr.bf16.mxu0 0
    %284 = vmatpush1.bf16.msra.mxu0 %v262
    %285 = vmatprep.subr.bf16.mxu0 0
    %286 = vmatpush1.bf16.msra.mxu0 %v261
    %287 = vmatprep.subr.bf16.mxu0 0
    %288 = vmatpush1.bf16.msra.mxu0 %v260
    %289 = vmatprep.subr.bf16.mxu0 0
    %290 = vmatpush1.bf16.msra.mxu0 %v259
    %291 = vmatprep.subr.bf16.mxu0 0
    %292 = vmatpush2.bf16.msra.mxu0 0
    %293 = vmatprep.subr.bf16.mxu0 0
    %294 = vmatpush2.bf16.msra.mxu0 0
    %295 = vmatprep.subr.bf16.mxu0 0
    %296 = vmatpush2.bf16.msra.mxu0 0
    %297 = vmatprep.subr.bf16.mxu0 0
    %298 = vmatpush2.bf16.msra.mxu0 0
    %299 = vmatprep.subr.bf16.mxu0 0
    %300 = vmatpush2.bf16.msra.mxu0 0
    %301 = vmatprep.subr.bf16.mxu0 0
    %302 = vmatpush2.bf16.msra.mxu0 0
    %303 = vmatprep.subr.bf16.mxu0 0
    %304 = vmatpush2.bf16.msra.mxu0 0
    %305 = vmatprep.subr.bf16.mxu0 0
    %306 = vmatpush2.bf16.msra.mxu0 0
    %307 = vmatprep.mubr.bf16.mxu0 0
    %308 = vmatmul.mubr.bf16.gmra.mxu0 %v203
    %v309 = vpop.f32.mrf.mxu0
    %v310 = vadd.f32 %v225, %v309
    %v311 = vpop.f32.mrf.mxu0
    %v312 = vpop.f32.mrf.mxu0
    %v313 = vpop.f32.mrf.mxu0
    %314 = vdwg.mxu0
    %v315 = vxor.u32 %v310, 2147483648
    %v316 = vmul.f32 %v315, 1.442695
    %v317 = vpow.pop %v316
    %v318 = vadd.f32 %v317, 1.0
    %v319 = vrcp.pop %v318
    %v320 = vmul.f32 1.0, %v319
    %v321 = vlaneseq
    %v322 = vand.u32 %v321, 127
    %vm323 = vcmp.lt.s32.totalorder %v322, 96
    %v324 = vsel %vm323, %v320, 0.0
    %v327 = vunpack.c.l.s4 1966171168
    %v328 = vunpack.c.0.s8 %v327
    %v329 = vlaneseq
    %v330 = vshrl.u32 %v329, 7
    %v331 = vsub.s32 %v328, %v330
    %v332 = vrot.slane %v324, %v331
    %v333 = vcombine.high %v332, %v332
    %v335 = vunpack.c.l.s4 1966171168
    %v336 = vunpack.c.0.s8 %v335
    %v337 = vlaneseq
    %v338 = vshrl.u32 %v337, 7
    %v339 = vsub.s32 %v336, %v338
    %v340 = vrot.slane %v332, %v339
    %v342 = vunpack.c.l.s4 1966171168
    %v343 = vunpack.c.0.s8 %v342
    %v344 = vlaneseq
    %v345 = vshrl.u32 %v344, 7
    %v346 = vsub.s32 %v343, %v345
    %v347 = vrot.slane %v333, %v346
    %v350 = vpack.c.bf16 %v340, %v340
    %v351 = vpack.c.bf16 %v347, %v347
    %vm352 = vcmask 1040384
    %vm353 = vsmask.f32 256
    %vm354 = vmand %vm352, %vm353
    %v355 = vld [vmem:[%s5] sm:$0x1]
    %v356 = vsel %vm354, %v350, %v355
    %357 = vst [vmem:[%s5] sm:$0x1] %v356
    %v358 = vld [vmem:[%s5 + $0x1] sm:$0x1]
    %v359 = vsel %vm354, %v351, %v358
    %360 = vst [vmem:[%s5 + $0x1] sm:$0x1] %v359
    // Predicated region
    $region38: #{age_model_forward.13} parent=1 // pred_check
      _
    $region39: #{age_model_forward.13} parent=1 // pred_check_branch
      %362 = sbr.rel (0) target = $region41
    $region40: #{age_model_forward.13} parent=1 // pred_region
      _
    $region41: #{age_model_forward.13} parent=1 // pred_fallthru
      _
    // Predicated region
    $region42: #{age_model_forward.13} parent=1 // pred_check
      _
    $region43: #{age_model_forward.13} parent=1 // pred_check_branch
      %364 = sbr.rel (0) target = $region45
    $region44: #{age_model_forward.13} parent=1 // pred_region
      _
    $region45: #{age_model_forward.13} parent=1 // pred_fallthru
      _
    %365 = vsyncpa [#allocation3], 1
    %366 = vsyncpa [#allocation5], 1
    %367 = vsyncpa [#allocation8], 1

// kernel: age_model_forward.11
$region0: #{age_model_forward.11}
  #allocation0 [shape = 'u32[]', space=smem, size = 0x4, offset = 0x4, fixed_abs, tag = 'smem constant byte address 0x4 - core index']
  #allocation1 [shape = 'u32[144,128]{1,0:T(1,128)}', space=vmem, size = 0x12000, scoped, tag = 'internal scratch']
  %s0 = inlined_call_operand.vmem [shape: bf16[2,64,128], index: 0, kind: input, shape index: {}]
  %s1 = inlined_call_operand.vmem [shape: bf16[2,1,128], index: 1, kind: input, shape index: {}]
  %s2 = inlined_call_operand.hbm [shape: bf16[128,128], index: 2, kind: input, shape index: {}]
  %s3 = inlined_call_operand.hbm [shape: f32[1,128], index: 3, kind: input, shape index: {}]
  %s4 = inlined_call_operand.hbm [shape: bf16[128,128], index: 4, kind: input, shape index: {}]
  %s5 = inlined_call_operand.hbm [shape: f32[1,128], index: 5, kind: input, shape index: {}]
  %s6 = inlined_call_operand.vmem [shape: bf16[2,64,128], index: 6, kind: output, shape index: {}]
  %s7 = sld [smem:[#allocation0]]
  $region73: #{age_model_forward.11} parent=0
    _
  %s9 = ssub.s32 1, %s7
  %s10 = scalar_select 0, %s9, %s7
  $region1: #{age_model_forward.11} parent=0
    #allocation2 [shape = 'u8[32768]{0}', space=vmem, size = 0x8000, scoped, tag = 'input window, operand 2, single buffered']
    #allocation3 [shape = 's32[2]{0}', space=sflag, size = 0x8, scoped, tag = 'scoped memory for age_model_forward.11']
    #allocation4 [shape = 'u8[512]{0}', space=vmem, size = 0x400, scoped, tag = 'input window, operand 3, single buffered']
    #allocation5 [shape = 's32[1]{0}', space=sflag, size = 0x4, scoped, tag = 'scoped memory for age_model_forward.11']
    #allocation6 [shape = 'u8[32768]{0}', space=vmem, size = 0x8000, scoped, tag = 'input window, operand 4, single buffered']
    #allocation7 [shape = 'u8[512]{0}', space=vmem, size = 0x400, scoped, tag = 'input window, operand 5, single buffered']
    #allocation8 [shape = 's32[1]{0}', space=sflag, size = 0x4, scoped, tag = 'scoped memory for age_model_forward.11']
    %11 = vsyncpa [#allocation3], 0
    %12 = vsyncpa [#allocation5], 0
    %13 = vsyncpa [#allocation8], 0
    loop: start=0, step=1, limit=4
    $region2: #{age_model_forward.11} parent=1 // loop_pre_header
      _
    $region3: #{age_model_forward.11} parent=1 // loop_header
      %s15 = sphi 0, %s19
      %p16 = scmp.ge.s32.totalorder %s15, 4
      %s22 = sphi 0, %s34
      %s23 = sphi 0, %s30
      %s24 = sphi 0, %s22
      %s25 = sphi 0, %s23
      %s26 = sphi 0, %s24
      %s27 = sphi 0, %s25
      %s39 = sphi 0, %s41
      %s42 = sphi 0, %s39
      %s43 = sphi 0, %s42
      %s59 = sphi 0, %s43
      %s65 = sphi 0, %s67
      %s68 = sphi 0, %s65
      %s69 = sphi 0, %s68
      %s85 = sphi 0, %s69
      %s89 = sphi 0, %s89
      %s91 = sphi 0, %s89
      %s92 = sphi 0, %s91
      %s106 = sphi 0, %s92
      %s110 = sphi 0, %s110
      %s112 = sphi 0, %s110
      %s113 = sphi 0, %s112
      %s127 = sphi 0, %s113
      %s131 = sphi 0, %s131
      %s133 = sphi 0, %s131
      %s134 = sphi 0, %s133
      %s148 = sphi 0, %s134
      %s152 = sphi 0, %s152
      %s154 = sphi 0, %s152
      %s155 = sphi 0, %s154
      %s169 = sphi 0, %s155
      %s177 = sphi 0, %s179
      %s180 = sphi 0, %s177
      %s181 = sphi 0, %s180
      %s197 = sphi 0, %s181
    $region4: #{age_model_forward.11} parent=1 // loop_header_branch
      %18 = sbr.rel (%p16) target = $region8
    $region5: #{age_model_forward.11} parent=1 // loop_body
      %s20 = ssub.s32 %s15, 1
      %s21 = ssub.s32 %s15, 2
      %s28 = sadd.s32 1, %s23
      %p29 = scmp.ge.s32.totalorder %s28, 1
      %s30 = scalar_select %p29, 0, %s28
      %s31 = sadd.s32 1, %s22
      %s32 = scalar_select %p29, %s31, %s22
      %p33 = scmp.ge.s32.totalorder %s32, 2
      %s34 = scalar_select %p33, 0, %s32
      %s35 = ssub.s32 %s22, %s34
      %s36 = ssub.s32 %s23, %s30
      %s37 = sor.u32 %s35, %s36
      %p38 = scmp.eq.s32.totalorder %s37, 0
      %s40 = sadd.s32 %s39, 1
      %s41 = scalar_select %p38, %s39, %s40
      %p44 = pneg %p38
      %p45 = scmp.eq.s32.totalorder %s15, 1
      %p46 = por %p44, %p45
      %p47 = scmp.ne.s32.totalorder %s39, %s42
      %p48 = scmp.eq.s32.totalorder %s15, 0
      %p49 = por %p47, %p48
      %p50 = scmp.ne.s32.totalorder %s39, %s42
      %p51 = scmp.eq.s32.totalorder %s20, 1
      %p52 = por %p50, %p51
      %p53 = scmp.ne.s32.totalorder %s42, %s43
      %p54 = scmp.eq.s32.totalorder %s20, 0
      %p55 = por %p53, %p54
      %p56 = scmp.ne.s32.totalorder %s42, %s43
      %p57 = scmp.eq.s32.totalorder %s21, 1
      %p58 = por %p56, %p57
      %p60 = scmp.ne.s32.totalorder %s43, %s59
      %p61 = scmp.eq.s32.totalorder %s21, 0
      %p62 = por %p60, %p61
      %s63 = ssub.s32 %s22, %s34
      %p64 = scmp.eq.s32.totalorder %s63, 0
      %s66 = sadd.s32 %s65, 1
      %s67 = scalar_select %p64, %s65, %s66
      %p70 = pneg %p64
      %p71 = scmp.eq.s32.totalorder %s15, 1
      %p72 = por %p70, %p71
      %p73 = scmp.ne.s32.totalorder %s65, %s68
      %p74 = scmp.eq.s32.totalorder %s15, 0
      %p75 = por %p73, %p74
      %p76 = scmp.ne.s32.totalorder %s65, %s68
      %p77 = scmp.eq.s32.totalorder %s20, 1
      %p78 = por %p76, %p77
      %p79 = scmp.ne.s32.totalorder %s68, %s69
      %p80 = scmp.eq.s32.totalorder %s20, 0
      %p81 = por %p79, %p80
      %p82 = scmp.ne.s32.totalorder %s68, %s69
      %p83 = scmp.eq.s32.totalorder %s21, 1
      %p84 = por %p82, %p83
      %p86 = scmp.ne.s32.totalorder %s69, %s85
      %p87 = scmp.eq.s32.totalorder %s21, 0
      %p88 = por %p86, %p87
      %s90 = sadd.s32 %s89, 1
      %p93 = scmp.eq.s32.totalorder %s15, 1
      %p94 = scmp.ne.s32.totalorder %s89, %s91
      %p95 = scmp.eq.s32.totalorder %s15, 0
      %p96 = por %p94, %p95
      %p97 = scmp.ne.s32.totalorder %s89, %s91
      %p98 = scmp.eq.s32.totalorder %s20, 1
      %p99 = por %p97, %p98
      %p100 = scmp.ne.s32.totalorder %s91, %s92
      %p101 = scmp.eq.s32.totalorder %s20, 0
      %p102 = por %p100, %p101
      %p103 = scmp.ne.s32.totalorder %s91, %s92
      %p104 = scmp.eq.s32.totalorder %s21, 1
      %p105 = por %p103, %p104
      %p107 = scmp.ne.s32.totalorder %s92, %s106
      %p108 = scmp.eq.s32.totalorder %s21, 0
      %p109 = por %p107, %p108
      %s111 = sadd.s32 %s110, 1
      %p114 = scmp.eq.s32.totalorder %s15, 1
      %p115 = scmp.ne.s32.totalorder %s110, %s112
      %p116 = scmp.eq.s32.totalorder %s15, 0
      %p117 = por %p115, %p116
      %p118 = scmp.ne.s32.totalorder %s110, %s112
      %p119 = scmp.eq.s32.totalorder %s20, 1
      %p120 = por %p118, %p119
      %p121 = scmp.ne.s32.totalorder %s112, %s113
      %p122 = scmp.eq.s32.totalorder %s20, 0
      %p123 = por %p121, %p122
      %p124 = scmp.ne.s32.totalorder %s112, %s113
      %p125 = scmp.eq.s32.totalorder %s21, 1
      %p126 = por %p124, %p125
      %p128 = scmp.ne.s32.totalorder %s113, %s127
      %p129 = scmp.eq.s32.totalorder %s21, 0
      %p130 = por %p128, %p129
      %s132 = sadd.s32 %s131, 1
      %p135 = scmp.eq.s32.totalorder %s15, 1
      %p136 = scmp.ne.s32.totalorder %s131, %s133
      %p137 = scmp.eq.s32.totalorder %s15, 0
      %p138 = por %p136, %p137
      %p139 = scmp.ne.s32.totalorder %s131, %s133
      %p140 = scmp.eq.s32.totalorder %s20, 1
      %p141 = por %p139, %p140
      %p142 = scmp.ne.s32.totalorder %s133, %s134
      %p143 = scmp.eq.s32.totalorder %s20, 0
      %p144 = por %p142, %p143
      %p145 = scmp.ne.s32.totalorder %s133, %s134
      %p146 = scmp.eq.s32.totalorder %s21, 1
      %p147 = por %p145, %p146
      %p149 = scmp.ne.s32.totalorder %s134, %s148
      %p150 = scmp.eq.s32.totalorder %s21, 0
      %p151 = por %p149, %p150
      %s153 = sadd.s32 %s152, 1
      %p156 = scmp.eq.s32.totalorder %s15, 1
      %p157 = scmp.ne.s32.totalorder %s152, %s154
      %p158 = scmp.eq.s32.totalorder %s15, 0
      %p159 = por %p157, %p158
      %p160 = scmp.ne.s32.totalorder %s152, %s154
      %p161 = scmp.eq.s32.totalorder %s20, 1
      %p162 = por %p160, %p161
      %p163 = scmp.ne.s32.totalorder %s154, %s155
      %p164 = scmp.eq.s32.totalorder %s20, 0
      %p165 = por %p163, %p164
      %p166 = scmp.ne.s32.totalorder %s154, %s155
      %p167 = scmp.eq.s32.totalorder %s21, 1
      %p168 = por %p166, %p167
      %p170 = scmp.ne.s32.totalorder %s155, %s169
      %p171 = scmp.eq.s32.totalorder %s21, 0
      %p172 = por %p170, %p171
      %s173 = ssub.s32 %s22, %s34
      %s174 = ssub.s32 %s23, %s30
      %s175 = sor.u32 %s173, %s174
      %p176 = scmp.eq.s32.totalorder %s175, 0
      %s178 = sadd.s32 %s177, 1
      %s179 = scalar_select %p176, %s177, %s178
      %p182 = pneg %p176
      %p183 = scmp.eq.s32.totalorder %s15, 1
      %p184 = por %p182, %p183
      %p185 = scmp.ne.s32.totalorder %s177, %s180
      %p186 = scmp.eq.s32.totalorder %s15, 0
      %p187 = por %p185, %p186
      %p188 = scmp.ne.s32.totalorder %s177, %s180
      %p189 = scmp.eq.s32.totalorder %s20, 1
      %p190 = por %p188, %p189
      %p191 = scmp.ne.s32.totalorder %s180, %s181
      %p192 = scmp.eq.s32.totalorder %s20, 0
      %p193 = por %p191, %p192
      %p194 = scmp.ne.s32.totalorder %s180, %s181
      %p195 = scmp.eq.s32.totalorder %s21, 1
      %p196 = por %p194, %p195
      %p198 = scmp.ne.s32.totalorder %s181, %s197
      %p199 = scmp.eq.s32.totalorder %s21, 0
      %p200 = por %p198, %p199
      %p201 = scmp.le.s32.totalorder 1, %s15
      %p202 = scmp.lt.s32.totalorder %s15, 3
      %p203 = pnand %p201, %p202
      %p204 = pneg %p203
      // Predicated region
      $region9: #{age_model_forward.11} parent=5 // pred_check
        _
      $region10: #{age_model_forward.11} parent=5 // pred_check_branch
        %206 = sbr.rel (%p203) target = $region12
      $region11: #{age_model_forward.11} parent=5 // pred_region
        %s207 = ssub.s32 %s15, 1
        // Predicated region
        $region13: #{age_model_forward.11} parent=11 // pred_check
          %p208 = pneg %p102
        $region14: #{age_model_forward.11} parent=11 // pred_check_branch
          %210 = sbr.rel (%p208) target = $region16
        $region15: #{age_model_forward.11} parent=11 // pred_region
          %s212 = ssub.s32 1024, 1024
          %213 = vsyncadd [#allocation3], %s212
          %s214 = sshll.u32 [#allocation2], 4
          %s215 = int_to_ptr.vmem [resolvable:$true] %s214
          %220 = dma.hbm_to_vmem [thread:$0]  %s2, 1024, %s215, [#allocation3], 64, 64, 4
        $region16: #{age_model_forward.11} parent=11 // pred_fallthru
          _
        // Predicated region
        $region17: #{age_model_forward.11} parent=11 // pred_check
          %p221 = pneg %p123
        $region18: #{age_model_forward.11} parent=11 // pred_check_branch
          %223 = sbr.rel (%p221) target = $region20
        $region19: #{age_model_forward.11} parent=11 // pred_region
          %s225 = ssub.s32 16, 16
          %226 = vsyncadd [#allocation5], %s225
          %s228 = sshll.u32 [#allocation4], 4
          %s229 = int_to_ptr.vmem [resolvable:$true] %s228
          %231 = dma.hbm_to_vmem [thread:$0]  %s3, 16, %s229, [#allocation5]
        $region20: #{age_model_forward.11} parent=11 // pred_fallthru
          _
        // Predicated region
        $region21: #{age_model_forward.11} parent=11 // pred_check
          %p232 = pneg %p144
        $region22: #{age_model_forward.11} parent=11 // pred_check_branch
          %234 = sbr.rel (%p232) target = $region24
        $region23: #{age_model_forward.11} parent=11 // pred_region
          %s236 = ssub.s32 1024, 1024
          %237 = vsyncadd [#allocation5], %s236
          %s238 = sshll.u32 [#allocation6], 4
          %s239 = int_to_ptr.vmem [resolvable:$true] %s238
          %244 = dma.hbm_to_vmem [thread:$0]  %s4, 1024, %s239, [#allocation5], 64, 64, 4
        $region24: #{age_model_forward.11} parent=11 // pred_fallthru
          _
        // Predicated region
        $region25: #{age_model_forward.11} parent=11 // pred_check
          %p245 = pneg %p165
        $region26: #{age_model_forward.11} parent=11 // pred_check_branch
          %247 = sbr.rel (%p245) target = $region28
        $region27: #{age_model_forward.11} parent=11 // pred_region
          %s249 = ssub.s32 16, 16
          %250 = vsyncadd [#allocation8], %s249
          %s252 = sshll.u32 [#allocation7], 4
          %s253 = int_to_ptr.vmem [resolvable:$true] %s252
          %255 = dma.hbm_to_vmem [thread:$0]  %s5, 16, %s253, [#allocation8]
        $region28: #{age_model_forward.11} parent=11 // pred_fallthru
          _
      $region12: #{age_model_forward.11} parent=5 // pred_fallthru
        _
      %p256 = scmp.lt.s32.totalorder %s15, 2
      // Predicated region
      $region29: #{age_model_forward.11} parent=5 // pred_check
        %p257 = pneg %p256
      $region30: #{age_model_forward.11} parent=5 // pred_check_branch
        %259 = sbr.rel (%p257) target = $region32
      $region31: #{age_model_forward.11} parent=5 // pred_region
        // Predicated region
        $region33: #{age_model_forward.11} parent=31 // pred_check
          %p260 = pneg %p49
        $region34: #{age_model_forward.11} parent=31 // pred_check_branch
          %262 = sbr.rel (%p260) target = $region36
        $region35: #{age_model_forward.11} parent=31 // pred_region
          %s263 = smul.u32 8, %s23
          %p264 = scmp.lt.s32.totalorder %s22, 1
          %s265 = scalar_select %p264, %s22, 1
          %p266 = scmp.lt.s32.totalorder %s263, 7
          %s267 = scalar_select %p266, %s263, 7
          %s268 = smul.addr %s265, 8
          %s269 = sadd.s32 %s267, %s268
          %s270 = smul.addr %s269, 4
          %s271 = scalar_lea.vmem %s0, %s270
          %s272 = smul.u32 8, %s23
        $region36: #{age_model_forward.11} parent=31 // pred_fallthru
          _
        // Predicated region
        $region37: #{age_model_forward.11} parent=31 // pred_check
          %p273 = pneg %p75
        $region38: #{age_model_forward.11} parent=31 // pred_check_branch
          %275 = sbr.rel (%p273) target = $region40
        $region39: #{age_model_forward.11} parent=31 // pred_region
          %p276 = scmp.lt.s32.totalorder %s22, 1
          %s277 = scalar_select %p276, %s22, 1
          %s278 = scalar_lea.vmem %s1, %s277
        $region40: #{age_model_forward.11} parent=31 // pred_fallthru
          _
      $region32: #{age_model_forward.11} parent=5 // pred_fallthru
        _
      %p279 = scmp.le.s32.totalorder 1, %s15
      %p280 = scmp.lt.s32.totalorder %s15, 3
      %p281 = pnand %p279, %p280
      %p282 = pneg %p281
      // Predicated region
      $region41: #{age_model_forward.11} parent=5 // pred_check
        _
      $region42: #{age_model_forward.11} parent=5 // pred_check_branch
        %284 = sbr.rel (%p281) target = $region44
      $region43: #{age_model_forward.11} parent=5 // pred_region
        %s285 = ssub.s32 %s15, 1
        // Predicated region
        $region45: #{age_model_forward.11} parent=43 // pred_check
          %p286 = pneg %p102
        $region46: #{age_model_forward.11} parent=43 // pred_check_branch
          %288 = sbr.rel (%p286) target = $region48
        $region47: #{age_model_forward.11} parent=43 // pred_region
          %289 = dma.done [#allocation3], 1024
        $region48: #{age_model_forward.11} parent=43 // pred_fallthru
          _
        // Predicated region
        $region49: #{age_model_forward.11} parent=43 // pred_check
          %p290 = pneg %p123
        $region50: #{age_model_forward.11} parent=43 // pred_check_branch
          %292 = sbr.rel (%p290) target = $region52
        $region51: #{age_model_forward.11} parent=43 // pred_region
          %293 = dma.done [#allocation5], 16
        $region52: #{age_model_forward.11} parent=43 // pred_fallthru
          _
        // Predicated region
        $region53: #{age_model_forward.11} parent=43 // pred_check
          %p294 = pneg %p144
        $region54: #{age_model_forward.11} parent=43 // pred_check_branch
          %296 = sbr.rel (%p294) target = $region56
        $region55: #{age_model_forward.11} parent=43 // pred_region
          %297 = dma.done [#allocation5], 1024
        $region56: #{age_model_forward.11} parent=43 // pred_fallthru
          _
        // Predicated region
        $region57: #{age_model_forward.11} parent=43 // pred_check
          %p298 = pneg %p165
        $region58: #{age_model_forward.11} parent=43 // pred_check_branch
          %300 = sbr.rel (%p298) target = $region60
        $region59: #{age_model_forward.11} parent=43 // pred_region
          %301 = dma.done [#allocation8], 16
        $region60: #{age_model_forward.11} parent=43 // pred_fallthru
          _
        %s302 = smul.u32 8, %s25
        %p303 = scmp.lt.s32.totalorder %s24, 1
        %s304 = scalar_select %p303, %s24, 1
        %p305 = scmp.lt.s32.totalorder %s302, 7
        %s306 = scalar_select %p305, %s302, 7
        %s307 = smul.addr %s304, 8
        %s308 = sadd.s32 %s306, %s307
        %s309 = smul.addr %s308, 4
        %s310 = scalar_lea.vmem %s0, %s309
        %p311 = pneg %p55
        %p312 = pneg %p52
        %p313 = scmp.lt.s32.totalorder %s24, 1
        %s314 = scalar_select %p313, %s24, 1
        %s315 = scalar_lea.vmem %s1, %s314
        %p316 = pneg %p81
        %p317 = pneg %p78
        %p318 = pneg %p102
        %p319 = pneg %p99
        %p320 = pneg %p123
        %p321 = pneg %p120
        %p322 = pneg %p144
        %p323 = pneg %p141
        %p324 = pneg %p165
        %p325 = pneg %p162
        %p326 = pneg %p193
        %p327 = pneg %p190
        %s328 = smul.u32 8, %s25
        %p329 = scmp.lt.s32.totalorder %s24, 1
        %s330 = scalar_select %p329, %s24, 1
        %p331 = scmp.lt.s32.totalorder %s328, 7
        %s332 = scalar_select %p331, %s328, 7
        %s333 = smul.addr %s330, 8
        %s334 = sadd.s32 %s332, %s333
        %s335 = smul.addr %s334, 4
        %s336 = scalar_lea.vmem %s6, %s335
        %s337 = smul.u32 8, %s25
        %p338 = scmp.lt.s32.totalorder %s24, 1
        %s339 = scalar_select %p338, %s24, 1
        %p340 = scmp.lt.s32.totalorder %s337, 7
        %s341 = scalar_select %p340, %s337, 7
        %s342 = smul.addr %s339, 8
        %s343 = sadd.s32 %s341, %s342
        %s344 = smul.addr %s343, 4
        %s345 = scalar_lea.vmem %s0, %s344
        %s346 = smul.u32 8, %s25
        %p347 = scmp.lt.s32.totalorder %s24, 1
        %s348 = scalar_select %p347, %s24, 1
        %s349 = scalar_lea.vmem %s1, %s348
        %s350 = smul.u32 8, %s25
        %p351 = scmp.lt.s32.totalorder %s24, 1
        %s352 = scalar_select %p351, %s24, 1
        %p353 = scmp.lt.s32.totalorder %s350, 7
        %s354 = scalar_select %p353, %s350, 7
        %s355 = smul.addr %s352, 8
        %s356 = sadd.s32 %s354, %s355
        %s357 = smul.addr %s356, 4
        %s358 = scalar_lea.vmem %s6, %s357
        %s359 = smul.u32 8, %s25
        %v361 = vld [vmem:[%s345] sm:$0xf]
        %v362 = vld [vmem:[%s345 + $0x4] sm:$0xf]
        %v363 = vld [vmem:[%s345 + $0x8] sm:$0xf]
        %v364 = vld [vmem:[%s345 + $0xc] sm:$0xf]
        %v365 = vld [vmem:[%s345 + $0x10] sm:$0xf]
        %v366 = vld [vmem:[%s345 + $0x14] sm:$0xf]
        %v367 = vld [vmem:[%s345 + $0x18] sm:$0xf]
        %v368 = vld [vmem:[%s345 + $0x1c] sm:$0xf]
        %v369 = vld [vmem:[%s349] sm:$0x1]
        %v371 = vpack.i.b16 %v369, %v369
        %v373 = vlaneseq
        %v374 = vshrl.u32 %v373, 7
        %v375 = vsub.s32 0, %v374
        %v376 = vrot.slane %v371, %v375
        %v378 = vunpack.c.l.b16 %v376
        %v379 = vpack.c.b16 %v378, %v378
        %v381 = vmul.bf16 %v361, %v379
        %v382 = vmul.bf16 %v362, %v379
        %v383 = vmul.bf16 %v363, %v379
        %v384 = vmul.bf16 %v364, %v379
        %v385 = vmul.bf16 %v365, %v379
        %v386 = vmul.bf16 %v366, %v379
        %v387 = vmul.bf16 %v367, %v379
        %v388 = vmul.bf16 %v368, %v379
        %v389 = vld [vmem:[#allocation2] sm:$0xf]
        %v390 = vld [vmem:[#allocation2 + $0x4] sm:$0xf]
        %v391 = vld [vmem:[#allocation2 + $0x8] sm:$0xf]
        %v392 = vld [vmem:[#allocation2 + $0xc] sm:$0xf]
        %v393 = vld [vmem:[#allocation2 + $0x10] sm:$0xf]
        %v394 = vld [vmem:[#allocation2 + $0x14] sm:$0xf]
        %v395 = vld [vmem:[#allocation2 + $0x18] sm:$0xf]
        %v396 = vld [vmem:[#allocation2 + $0x1c] sm:$0xf]
        %v397 = vld [vmem:[#allocation2 + $0x20] sm:$0xf]
        %v398 = vld [vmem:[#allocation2 + $0x24] sm:$0xf]
        %v399 = vld [vmem:[#allocation2 + $0x28] sm:$0xf]
        %v400 = vld [vmem:[#allocation2 + $0x2c] sm:$0xf]
        %v401 = vld [vmem:[#allocation2 + $0x30] sm:$0xf]
        %v402 = vld [vmem:[#allocation2 + $0x34] sm:$0xf]
        %v403 = vld [vmem:[#allocation2 + $0x38] sm:$0xf]
        %v404 = vld [vmem:[#allocation2 + $0x3c] sm:$0xf]
        %v405 = vld [vmem:[#allocation4] sm:$0x1]
        %v407 = vlaneseq
        %v408 = vshrl.u32 %v407, 7
        %v409 = vsub.s32 0, %v408
        %v410 = vrot.slane %v405, %v409
        %v420 = vunpack.c.l.b16 %v381
        %v421 = vunpack.c.l.b16 %v382
        %v422 = vunpack.c.l.b16 %v383
        %v423 = vunpack.c.l.b16 %v384
        %v424 = vunpack.c.l.b16 %v385
        %v425 = vunpack.c.l.b16 %v386
        %v426 = vunpack.c.l.b16 %v387
        %v427 = vunpack.c.l.b16 %v388
        %v428 = vpack.c.b16 %v421, %v420
        %v429 = vpack.c.b16 %v423, %v422
        %v430 = vpack.c.b16 %v425, %v424
        %v431 = vpack.c.b16 %v427, %v426
        %v452 = vunpack.c.l.b16 %v389
        %v453 = vunpack.c.l.b16 %v390
        %v454 = vunpack.c.l.b16 %v391
        %v455 = vunpack.c.l.b16 %v392
        %v456 = vunpack.c.l.b16 %v393
        %v457 = vunpack.c.l.b16 %v394
        %v458 = vunpack.c.l.b16 %v395
        %v459 = vunpack.c.l.b16 %v396
        %v460 = vunpack.c.l.b16 %v397
        %v461 = vunpack.c.l.b16 %v398
        %v462 = vunpack.c.l.b16 %v399
        %v463 = vunpack.c.l.b16 %v400
        %v464 = vunpack.c.l.b16 %v401
        %v465 = vunpack.c.l.b16 %v402
        %v466 = vunpack.c.l.b16 %v403
        %v467 = vunpack.c.l.b16 %v404
        %v468 = vpack.c.b16 %v453, %v452
        %v469 = vpack.c.b16 %v455, %v454
        %v470 = vpack.c.b16 %v457, %v456
        %v471 = vpack.c.b16 %v459, %v458
        %v472 = vpack.c.b16 %v461, %v460
        %v473 = vpack.c.b16 %v463, %v462
        %v474 = vpack.c.b16 %v465, %v464
        %v475 = vpack.c.b16 %v467, %v466
        %484 = vmatprep.subr.bf16.mxu0 0
        %485 = vmatpush1.bf16.msra.mxu0 %v475
        %486 = vmatprep.subr.bf16.mxu0 0
        %487 = vmatpush1.bf16.msra.mxu0 %v474
        %488 = vmatprep.subr.bf16.mxu0 0
        %489 = vmatpush1.bf16.msra.mxu0 %v473
        %490 = vmatprep.subr.bf16.mxu0 0
        %491 = vmatpush1.bf16.msra.mxu0 %v472
        %492 = vmatprep.subr.bf16.mxu0 0
        %493 = vmatpush1.bf16.msra.mxu0 %v471
        %494 = vmatprep.subr.bf16.mxu0 0
        %495 = vmatpush1.bf16.msra.mxu0 %v470
        %496 = vmatprep.subr.bf16.mxu0 0
        %497 = vmatpush1.bf16.msra.mxu0 %v469
        %498 = vmatprep.subr.bf16.mxu0 0
        %499 = vmatpush1.bf16.msra.mxu0 %v468
        %500 = vmatprep.subr.bf16.mxu0 0
        %501 = vmatpush2.bf16.msra.mxu0 0
        %502 = vmatprep.subr.bf16.mxu0 0
        %503 = vmatpush2.bf16.msra.mxu0 0
        %504 = vmatprep.subr.bf16.mxu0 0
        %505 = vmatpush2.bf16.msra.mxu0 0
        %506 = vmatprep.subr.bf16.mxu0 0
        %507 = vmatpush2.bf16.msra.mxu0 0
        %508 = vmatprep.subr.bf16.mxu0 0
        %509 = vmatpush2.bf16.msra.mxu0 0
        %510 = vmatprep.subr.bf16.mxu0 0
        %511 = vmatpush2.bf16.msra.mxu0 0
        %512 = vmatprep.subr.bf16.mxu0 0
        %513 = vmatpush2.bf16.msra.mxu0 0
        %514 = vmatprep.subr.bf16.mxu0 0
        %515 = vmatpush2.bf16.msra.mxu0 0
        %516 = vmatprep.mubr.bf16.mxu0 0
        %517 = vmatmul.mubr.bf16.gmra.mxu0 %v428
        %v518 = vpop.f32.mrf.mxu0
        %v519 = vadd.f32 %v410, %v518
        %v520 = vpop.f32.mrf.mxu0
        %v521 = vpop.f32.mrf.mxu0
        %v522 = vadd.f32 %v410, %v521
        %v523 = vpop.f32.mrf.mxu0
        %524 = vmatprep.mubr.bf16.mxu0 0
        %525 = vmatmul.mubr.bf16.gmra.mxu0 %v429
        %v526 = vpop.f32.mrf.mxu0
        %v527 = vadd.f32 %v410, %v526
        %v528 = vpop.f32.mrf.mxu0
        %v529 = vpop.f32.mrf.mxu0
        %v530 = vadd.f32 %v410, %v529
        %v531 = vpop.f32.mrf.mxu0
        %532 = vmatprep.mubr.bf16.mxu0 0
        %533 = vmatmul.mubr.bf16.gmra.mxu0 %v430
        %v534 = vpop.f32.mrf.mxu0
        %v535 = vadd.f32 %v410, %v534
        %v536 = vpop.f32.mrf.mxu0
        %v537 = vpop.f32.mrf.mxu0
        %v538 = vadd.f32 %v410, %v537
        %v539 = vpop.f32.mrf.mxu0
        %540 = vmatprep.mubr.bf16.mxu0 0
        %541 = vmatmul.mubr.bf16.gmra.mxu0 %v431
        %v542 = vpop.f32.mrf.mxu0
        %v543 = vadd.f32 %v410, %v542
        %v544 = vpop.f32.mrf.mxu0
        %v545 = vpop.f32.mrf.mxu0
        %v546 = vadd.f32 %v410, %v545
        %v547 = vpop.f32.mrf.mxu0
        %548 = vdwg.mxu0
        %v549 = vpack.c.bf16 %v522, %v519
        %v550 = vpack.c.bf16 %v530, %v527
        %v551 = vpack.c.bf16 %v538, %v535
        %v552 = vpack.c.bf16 %v546, %v543
        %v553 = vld [vmem:[#allocation6] sm:$0xf]
        %v554 = vld [vmem:[#allocation6 + $0x4] sm:$0xf]
        %v555 = vld [vmem:[#allocation6 + $0x8] sm:$0xf]
        %v556 = vld [vmem:[#allocation6 + $0xc] sm:$0xf]
        %v557 = vld [vmem:[#allocation6 + $0x10] sm:$0xf]
        %v558 = vld [vmem:[#allocation6 + $0x14] sm:$0xf]
        %v559 = vld [vmem:[#allocation6 + $0x18] sm:$0xf]
        %v560 = vld [vmem:[#allocation6 + $0x1c] sm:$0xf]
        %v561 = vld [vmem:[#allocation6 + $0x20] sm:$0xf]
        %v562 = vld [vmem:[#allocation6 + $0x24] sm:$0xf]
        %v563 = vld [vmem:[#allocation6 + $0x28] sm:$0xf]
        %v564 = vld [vmem:[#allocation6 + $0x2c] sm:$0xf]
        %v565 = vld [vmem:[#allocation6 + $0x30] sm:$0xf]
        %v566 = vld [vmem:[#allocation6 + $0x34] sm:$0xf]
        %v567 = vld [vmem:[#allocation6 + $0x38] sm:$0xf]
        %v568 = vld [vmem:[#allocation6 + $0x3c] sm:$0xf]
        %v569 = vld [vmem:[#allocation7] sm:$0x1]
        %v571 = vlaneseq
        %v572 = vshrl.u32 %v571, 7
        %v573 = vsub.s32 0, %v572
        %v574 = vrot.slane %v569, %v573
        %v592 = vunpack.c.l.b16 %v553
        %v593 = vunpack.c.l.b16 %v554
        %v594 = vunpack.c.l.b16 %v555
        %v595 = vunpack.c.l.b16 %v556
        %v596 = vunpack.c.l.b16 %v557
        %v597 = vunpack.c.l.b16 %v558
        %v598 = vunpack.c.l.b16 %v559
        %v599 = vunpack.c.l.b16 %v560
        %v600 = vunpack.c.l.b16 %v561
        %v601 = vunpack.c.l.b16 %v562
        %v602 = vunpack.c.l.b16 %v563
        %v603 = vunpack.c.l.b16 %v564
        %v604 = vunpack.c.l.b16 %v565
        %v605 = vunpack.c.l.b16 %v566
        %v606 = vunpack.c.l.b16 %v567
        %v607 = vunpack.c.l.b16 %v568
        %v608 = vpack.c.b16 %v593, %v592
        %v609 = vpack.c.b16 %v595, %v594
        %v610 = vpack.c.b16 %v597, %v596
        %v611 = vpack.c.b16 %v599, %v598
        %v612 = vpack.c.b16 %v601, %v600
        %v613 = vpack.c.b16 %v603, %v602
        %v614 = vpack.c.b16 %v605, %v604
        %v615 = vpack.c.b16 %v607, %v606
        %624 = vmatprep.subr.bf16.mxu0 0
        %625 = vmatpush1.bf16.msra.mxu0 %v615
        %626 = vmatprep.subr.bf16.mxu0 0
        %627 = vmatpush1.bf16.msra.mxu0 %v614
        %628 = vmatprep.subr.bf16.mxu0 0
        %629 = vmatpush1.bf16.msra.mxu0 %v613
        %630 = vmatprep.subr.bf16.mxu0 0
        %631 = vmatpush1.bf16.msra.mxu0 %v612
        %632 = vmatprep.subr.bf16.mxu0 0
        %633 = vmatpush1.bf16.msra.mxu0 %v611
        %634 = vmatprep.subr.bf16.mxu0 0
        %635 = vmatpush1.bf16.msra.mxu0 %v610
        %636 = vmatprep.subr.bf16.mxu0 0
        %637 = vmatpush1.bf16.msra.mxu0 %v609
        %638 = vmatprep.subr.bf16.mxu0 0
        %639 = vmatpush1.bf16.msra.mxu0 %v608
        %640 = vmatprep.subr.bf16.mxu0 0
        %641 = vmatpush2.bf16.msra.mxu0 0
        %642 = vmatprep.subr.bf16.mxu0 0
        %643 = vmatpush2.bf16.msra.mxu0 0
        %644 = vmatprep.subr.bf16.mxu0 0
        %645 = vmatpush2.bf16.msra.mxu0 0
        %646 = vmatprep.subr.bf16.mxu0 0
        %647 = vmatpush2.bf16.msra.mxu0 0
        %648 = vmatprep.subr.bf16.mxu0 0
        %649 = vmatpush2.bf16.msra.mxu0 0
        %650 = vmatprep.subr.bf16.mxu0 0
        %651 = vmatpush2.bf16.msra.mxu0 0
        %652 = vmatprep.subr.bf16.mxu0 0
        %653 = vmatpush2.bf16.msra.mxu0 0
        %654 = vmatprep.subr.bf16.mxu0 0
        %655 = vmatpush2.bf16.msra.mxu0 0
        %656 = vmatprep.mubr.bf16.mxu0 0
        %657 = vmatmul.mubr.bf16.gmra.mxu0 %v549
        %v658 = vpop.f32.mrf.mxu0
        %v659 = vadd.f32 %v574, %v658
        %v660 = vpop.f32.mrf.mxu0
        %v661 = vpop.f32.mrf.mxu0
        %v662 = vadd.f32 %v574, %v661
        %v663 = vpop.f32.mrf.mxu0
        %664 = vmatprep.mubr.bf16.mxu0 0
        %665 = vmatmul.mubr.bf16.gmra.mxu0 %v550
        %v666 = vpop.f32.mrf.mxu0
        %v667 = vadd.f32 %v574, %v666
        %v668 = vpop.f32.mrf.mxu0
        %v669 = vpop.f32.mrf.mxu0
        %v670 = vadd.f32 %v574, %v669
        %v671 = vpop.f32.mrf.mxu0
        %672 = vmatprep.mubr.bf16.mxu0 0
        %673 = vmatmul.mubr.bf16.gmra.mxu0 %v551
        %v674 = vpop.f32.mrf.mxu0
        %v675 = vadd.f32 %v574, %v674
        %v676 = vpop.f32.mrf.mxu0
        %v677 = vpop.f32.mrf.mxu0
        %v678 = vadd.f32 %v574, %v677
        %v679 = vpop.f32.mrf.mxu0
        %680 = vmatprep.mubr.bf16.mxu0 0
        %681 = vmatmul.mubr.bf16.gmra.mxu0 %v552
        %v682 = vpop.f32.mrf.mxu0
        %v683 = vadd.f32 %v574, %v682
        %v684 = vpop.f32.mrf.mxu0
        %v685 = vpop.f32.mrf.mxu0
        %v686 = vadd.f32 %v574, %v685
        %v687 = vpop.f32.mrf.mxu0
        %688 = vdwg.mxu0
        %v689 = vxor.u32 %v659, 2147483648
        %v690 = vxor.u32 %v662, 2147483648
        %v691 = vxor.u32 %v667, 2147483648
        %v692 = vxor.u32 %v670, 2147483648
        %v693 = vxor.u32 %v675, 2147483648
        %v694 = vxor.u32 %v678, 2147483648
        %v695 = vxor.u32 %v683, 2147483648
        %v696 = vxor.u32 %v686, 2147483648
        %v697 = vmul.f32 %v689, 1.442695
        %v698 = vpow.pop %v697
        %v699 = vmul.f32 %v690, 1.442695
        %v700 = vpow.pop %v699
        %v701 = vmul.f32 %v691, 1.442695
        %v702 = vpow.pop %v701
        %v703 = vmul.f32 %v692, 1.442695
        %v704 = vpow.pop %v703
        %v705 = vmul.f32 %v693, 1.442695
        %v706 = vpow.pop %v705
        %v707 = vmul.f32 %v694, 1.442695
        %v708 = vpow.pop %v707
        %v709 = vmul.f32 %v695, 1.442695
        %v710 = vpow.pop %v709
        %v711 = vmul.f32 %v696, 1.442695
        %v712 = vpow.pop %v711
        %v713 = vadd.f32 %v698, 1.0
        %v714 = vadd.f32 %v700, 1.0
        %v715 = vadd.f32 %v702, 1.0
        %v716 = vadd.f32 %v704, 1.0
        %v717 = vadd.f32 %v706, 1.0
        %v718 = vadd.f32 %v708, 1.0
        %v719 = vadd.f32 %v710, 1.0
        %v720 = vadd.f32 %v712, 1.0
        %v721 = vrcp.pop %v713
        %v722 = vmul.f32 1.0, %v721
        %v723 = vrcp.pop %v714
        %v724 = vmul.f32 1.0, %v723
        %v725 = vrcp.pop %v715
        %v726 = vmul.f32 1.0, %v725
        %v727 = vrcp.pop %v716
        %v728 = vmul.f32 1.0, %v727
        %v729 = vrcp.pop %v717
        %v730 = vmul.f32 1.0, %v729
        %v731 = vrcp.pop %v718
        %v732 = vmul.f32 1.0, %v731
        %v733 = vrcp.pop %v719
        %v734 = vmul.f32 1.0, %v733
        %v735 = vrcp.pop %v720
        %v736 = vmul.f32 1.0, %v735
        %v737 = vmul.f32 %v659, %v722
        %v738 = vmul.f32 %v662, %v724
        %v739 = vmul.f32 %v667, %v726
        %v740 = vmul.f32 %v670, %v728
        %v741 = vmul.f32 %v675, %v730
        %v742 = vmul.f32 %v678, %v732
        %v743 = vmul.f32 %v683, %v734
        %v744 = vmul.f32 %v686, %v736
        %v745 = vpack.c.bf16 %v738, %v737
        %v746 = vpack.c.bf16 %v740, %v739
        %v747 = vpack.c.bf16 %v742, %v741
        %v748 = vpack.c.bf16 %v744, %v743
        %v753 = vunpack.c.l.b16 %v745
        %v754 = vunpack.c.h.b16 %v745
        %v755 = vunpack.c.l.b16 %v746
        %v756 = vunpack.c.h.b16 %v746
        %v757 = vunpack.c.l.b16 %v747
        %v758 = vunpack.c.h.b16 %v747
        %v759 = vunpack.c.l.b16 %v748
        %v760 = vunpack.c.h.b16 %v748
        %v761 = vpack.c.b16 %v753, %v753
        %v762 = vpack.c.b16 %v754, %v754
        %v763 = vpack.c.b16 %v755, %v755
        %v764 = vpack.c.b16 %v756, %v756
        %v765 = vpack.c.b16 %v757, %v757
        %v766 = vpack.c.b16 %v758, %v758
        %v767 = vpack.c.b16 %v759, %v759
        %v768 = vpack.c.b16 %v760, %v760
        %777 = vst [vmem:[%s358] sm:$0xf] %v761
        %778 = vst [vmem:[%s358 + $0x4] sm:$0xf] %v762
        %779 = vst [vmem:[%s358 + $0x8] sm:$0xf] %v763
        %780 = vst [vmem:[%s358 + $0xc] sm:$0xf] %v764
        %781 = vst [vmem:[%s358 + $0x10] sm:$0xf] %v765
        %782 = vst [vmem:[%s358 + $0x14] sm:$0xf] %v766
        %783 = vst [vmem:[%s358 + $0x18] sm:$0xf] %v767
        %784 = vst [vmem:[%s358 + $0x1c] sm:$0xf] %v768
        %s785 = smul.u32 8, %s25
        %p786 = scmp.lt.s32.totalorder %s24, 1
        %s787 = scalar_select %p786, %s24, 1
        %p788 = scmp.lt.s32.totalorder %s785, 7
        %s789 = scalar_select %p788, %s785, 7
        %s790 = smul.addr %s787, 8
        %s791 = sadd.s32 %s789, %s790
        %s792 = smul.addr %s791, 4
        %s793 = scalar_lea.vmem %s6, %s792
        // Predicated region
        $region61: #{age_model_forward.11} parent=43 // pred_check
          %p794 = pneg %p190
        $region62: #{age_model_forward.11} parent=43 // pred_check_branch
          %796 = sbr.rel (%p794) target = $region64
        $region63: #{age_model_forward.11} parent=43 // pred_region
          %s797 = smul.u32 8, %s25
        $region64: #{age_model_forward.11} parent=43 // pred_fallthru
          _
      $region44: #{age_model_forward.11} parent=5 // pred_fallthru
        _
      %p798 = scmp.le.s32.totalorder 2, %s15
      // Predicated region
      $region65: #{age_model_forward.11} parent=5 // pred_check
        %p799 = pneg %p798
      $region66: #{age_model_forward.11} parent=5 // pred_check_branch
        %801 = sbr.rel (%p799) target = $region68
      $region67: #{age_model_forward.11} parent=5 // pred_region
        %s802 = ssub.s32 %s15, 2
        // Predicated region
        $region69: #{age_model_forward.11} parent=67 // pred_check
          %p803 = pneg %p196
        $region70: #{age_model_forward.11} parent=67 // pred_check_branch
          %805 = sbr.rel (%p803) target = $region72
        $region71: #{age_model_forward.11} parent=67 // pred_region
          %s806 = smul.u32 8, %s27
          %p807 = scmp.lt.s32.totalorder %s26, 1
          %s808 = scalar_select %p807, %s26, 1
          %p809 = scmp.lt.s32.totalorder %s806, 7
          %s810 = scalar_select %p809, %s806, 7
          %s811 = smul.addr %s808, 8
          %s812 = sadd.s32 %s810, %s811
          %s813 = smul.addr %s812, 4
          %s814 = scalar_lea.vmem %s6, %s813
        $region72: #{age_model_forward.11} parent=67 // pred_fallthru
          _
      $region68: #{age_model_forward.11} parent=5 // pred_fallthru
        _
    $region6: #{age_model_forward.11} parent=1 // loop_footer
      %s19 = sadd.s32 1, %s15
    $region7: #{age_model_forward.11} parent=1 // loop_footer_branch
      %14 = sbr.rel target = $region3
    $region8: #{age_model_forward.11} parent=1 // loop_exit
      _
    %815 = vsyncpa [#allocation3], 1
    %s816 = scalar_lea.sflag [#allocation3], 1
    %817 = vsyncpa %s816, 1
    %818 = vsyncpa [#allocation5], 1
    %819 = vsyncpa [#allocation8], 1

// kernel: age_model_forward.14
$region0: #{age_model_forward.14}
  #allocation0 [shape = 'u32[]', space=smem, size = 0x4, offset = 0x4, fixed_abs, tag = 'smem constant byte address 0x4 - core index']
  #allocation1 [shape = 'u32[144,128]{1,0:T(1,128)}', space=vmem, size = 0x12000, scoped, tag = 'internal scratch']
  %s0 = inlined_call_operand.vmem [shape: bf16[2,64,128], index: 0, kind: input, shape index: {}]
  %s1 = inlined_call_operand.vmem [shape: bf16[2,1,128], index: 1, kind: input, shape index: {}]
  %s2 = inlined_call_operand.hbm [shape: bf16[128,128], index: 2, kind: input, shape index: {}]
  %s3 = inlined_call_operand.hbm [shape: f32[1,128], index: 3, kind: input, shape index: {}]
  %s4 = inlined_call_operand.hbm [shape: bf16[128,1280], index: 4, kind: input, shape index: {}]
  %s5 = inlined_call_operand.hbm [shape: f32[1,1280], index: 5, kind: input, shape index: {}]
  %s6 = inlined_call_operand.vmem [shape: f32[2,1,1280], index: 6, kind: output, shape index: {}]
  %s7 = sld [smem:[#allocation0]]
  $region77: #{age_model_forward.14} parent=0
    _
  %s9 = ssub.s32 1, %s7
  %s10 = scalar_select 0, %s9, %s7
  $region1: #{age_model_forward.14} parent=0
    #allocation2 [shape = 'u8[32768]{0}', space=vmem, size = 0x8000, scoped, tag = 'input window, operand 2, single buffered']
    #allocation3 [shape = 's32[2]{0}', space=sflag, size = 0x8, scoped, tag = 'scoped memory for age_model_forward.14']
    #allocation4 [shape = 'u8[512]{0}', space=vmem, size = 0x400, scoped, tag = 'input window, operand 3, single buffered']
    #allocation5 [shape = 's32[1]{0}', space=sflag, size = 0x4, scoped, tag = 'scoped memory for age_model_forward.14']
    #allocation6 [shape = 'u8[327680]{0}', space=vmem, size = 0x50000, scoped, tag = 'input window, operand 4, single buffered']
    #allocation7 [shape = 'u8[5120]{0}', space=vmem, size = 0x1400, scoped, tag = 'input window, operand 5, single buffered']
    #allocation8 [shape = 's32[1]{0}', space=sflag, size = 0x4, scoped, tag = 'scoped memory for age_model_forward.14']
    %11 = vsyncpa [#allocation3], 0
    %12 = vsyncpa [#allocation5], 0
    %13 = vsyncpa [#allocation8], 0
    loop: start=0, step=1, limit=4
    $region2: #{age_model_forward.14} parent=1 // loop_pre_header
      _
    $region3: #{age_model_forward.14} parent=1 // loop_header
      %s15 = sphi 0, %s19
      %p16 = scmp.ge.s32.totalorder %s15, 4
      %s22 = sphi 0, %s34
      %s23 = sphi 0, %s30
      %s24 = sphi 0, %s22
      %s25 = sphi 0, %s23
      %s26 = sphi 0, %s24
      %s27 = sphi 0, %s25
      %s39 = sphi 0, %s41
      %s42 = sphi 0, %s39
      %s43 = sphi 0, %s42
      %s59 = sphi 0, %s43
      %s65 = sphi 0, %s67
      %s68 = sphi 0, %s65
      %s69 = sphi 0, %s68
      %s85 = sphi 0, %s69
      %s89 = sphi 0, %s89
      %s91 = sphi 0, %s89
      %s92 = sphi 0, %s91
      %s106 = sphi 0, %s92
      %s110 = sphi 0, %s110
      %s112 = sphi 0, %s110
      %s113 = sphi 0, %s112
      %s127 = sphi 0, %s113
      %s131 = sphi 0, %s131
      %s133 = sphi 0, %s131
      %s134 = sphi 0, %s133
      %s148 = sphi 0, %s134
      %s152 = sphi 0, %s152
      %s154 = sphi 0, %s152
      %s155 = sphi 0, %s154
      %s169 = sphi 0, %s155
      %s175 = sphi 0, %s177
      %s178 = sphi 0, %s175
      %s179 = sphi 0, %s178
      %s195 = sphi 0, %s179
    $region4: #{age_model_forward.14} parent=1 // loop_header_branch
      %18 = sbr.rel (%p16) target = $region8
    $region5: #{age_model_forward.14} parent=1 // loop_body
      %s20 = ssub.s32 %s15, 1
      %s21 = ssub.s32 %s15, 2
      %s28 = sadd.s32 1, %s23
      %p29 = scmp.ge.s32.totalorder %s28, 1
      %s30 = scalar_select %p29, 0, %s28
      %s31 = sadd.s32 1, %s22
      %s32 = scalar_select %p29, %s31, %s22
      %p33 = scmp.ge.s32.totalorder %s32, 2
      %s34 = scalar_select %p33, 0, %s32
      %s35 = ssub.s32 %s22, %s34
      %s36 = ssub.s32 %s23, %s30
      %s37 = sor.u32 %s35, %s36
      %p38 = scmp.eq.s32.totalorder %s37, 0
      %s40 = sadd.s32 %s39, 1
      %s41 = scalar_select %p38, %s39, %s40
      %p44 = pneg %p38
      %p45 = scmp.eq.s32.totalorder %s15, 1
      %p46 = por %p44, %p45
      %p47 = scmp.ne.s32.totalorder %s39, %s42
      %p48 = scmp.eq.s32.totalorder %s15, 0
      %p49 = por %p47, %p48
      %p50 = scmp.ne.s32.totalorder %s39, %s42
      %p51 = scmp.eq.s32.totalorder %s20, 1
      %p52 = por %p50, %p51
      %p53 = scmp.ne.s32.totalorder %s42, %s43
      %p54 = scmp.eq.s32.totalorder %s20, 0
      %p55 = por %p53, %p54
      %p56 = scmp.ne.s32.totalorder %s42, %s43
      %p57 = scmp.eq.s32.totalorder %s21, 1
      %p58 = por %p56, %p57
      %p60 = scmp.ne.s32.totalorder %s43, %s59
      %p61 = scmp.eq.s32.totalorder %s21, 0
      %p62 = por %p60, %p61
      %s63 = ssub.s32 %s22, %s34
      %p64 = scmp.eq.s32.totalorder %s63, 0
      %s66 = sadd.s32 %s65, 1
      %s67 = scalar_select %p64, %s65, %s66
      %p70 = pneg %p64
      %p71 = scmp.eq.s32.totalorder %s15, 1
      %p72 = por %p70, %p71
      %p73 = scmp.ne.s32.totalorder %s65, %s68
      %p74 = scmp.eq.s32.totalorder %s15, 0
      %p75 = por %p73, %p74
      %p76 = scmp.ne.s32.totalorder %s65, %s68
      %p77 = scmp.eq.s32.totalorder %s20, 1
      %p78 = por %p76, %p77
      %p79 = scmp.ne.s32.totalorder %s68, %s69
      %p80 = scmp.eq.s32.totalorder %s20, 0
      %p81 = por %p79, %p80
      %p82 = scmp.ne.s32.totalorder %s68, %s69
      %p83 = scmp.eq.s32.totalorder %s21, 1
      %p84 = por %p82, %p83
      %p86 = scmp.ne.s32.totalorder %s69, %s85
      %p87 = scmp.eq.s32.totalorder %s21, 0
      %p88 = por %p86, %p87
      %s90 = sadd.s32 %s89, 1
      %p93 = scmp.eq.s32.totalorder %s15, 1
      %p94 = scmp.ne.s32.totalorder %s89, %s91
      %p95 = scmp.eq.s32.totalorder %s15, 0
      %p96 = por %p94, %p95
      %p97 = scmp.ne.s32.totalorder %s89, %s91
      %p98 = scmp.eq.s32.totalorder %s20, 1
      %p99 = por %p97, %p98
      %p100 = scmp.ne.s32.totalorder %s91, %s92
      %p101 = scmp.eq.s32.totalorder %s20, 0
      %p102 = por %p100, %p101
      %p103 = scmp.ne.s32.totalorder %s91, %s92
      %p104 = scmp.eq.s32.totalorder %s21, 1
      %p105 = por %p103, %p104
      %p107 = scmp.ne.s32.totalorder %s92, %s106
      %p108 = scmp.eq.s32.totalorder %s21, 0
      %p109 = por %p107, %p108
      %s111 = sadd.s32 %s110, 1
      %p114 = scmp.eq.s32.totalorder %s15, 1
      %p115 = scmp.ne.s32.totalorder %s110, %s112
      %p116 = scmp.eq.s32.totalorder %s15, 0
      %p117 = por %p115, %p116
      %p118 = scmp.ne.s32.totalorder %s110, %s112
      %p119 = scmp.eq.s32.totalorder %s20, 1
      %p120 = por %p118, %p119
      %p121 = scmp.ne.s32.totalorder %s112, %s113
      %p122 = scmp.eq.s32.totalorder %s20, 0
      %p123 = por %p121, %p122
      %p124 = scmp.ne.s32.totalorder %s112, %s113
      %p125 = scmp.eq.s32.totalorder %s21, 1
      %p126 = por %p124, %p125
      %p128 = scmp.ne.s32.totalorder %s113, %s127
      %p129 = scmp.eq.s32.totalorder %s21, 0
      %p130 = por %p128, %p129
      %s132 = sadd.s32 %s131, 1
      %p135 = scmp.eq.s32.totalorder %s15, 1
      %p136 = scmp.ne.s32.totalorder %s131, %s133
      %p137 = scmp.eq.s32.totalorder %s15, 0
      %p138 = por %p136, %p137
      %p139 = scmp.ne.s32.totalorder %s131, %s133
      %p140 = scmp.eq.s32.totalorder %s20, 1
      %p141 = por %p139, %p140
      %p142 = scmp.ne.s32.totalorder %s133, %s134
      %p143 = scmp.eq.s32.totalorder %s20, 0
      %p144 = por %p142, %p143
      %p145 = scmp.ne.s32.totalorder %s133, %s134
      %p146 = scmp.eq.s32.totalorder %s21, 1
      %p147 = por %p145, %p146
      %p149 = scmp.ne.s32.totalorder %s134, %s148
      %p150 = scmp.eq.s32.totalorder %s21, 0
      %p151 = por %p149, %p150
      %s153 = sadd.s32 %s152, 1
      %p156 = scmp.eq.s32.totalorder %s15, 1
      %p157 = scmp.ne.s32.totalorder %s152, %s154
      %p158 = scmp.eq.s32.totalorder %s15, 0
      %p159 = por %p157, %p158
      %p160 = scmp.ne.s32.totalorder %s152, %s154
      %p161 = scmp.eq.s32.totalorder %s20, 1
      %p162 = por %p160, %p161
      %p163 = scmp.ne.s32.totalorder %s154, %s155
      %p164 = scmp.eq.s32.totalorder %s20, 0
      %p165 = por %p163, %p164
      %p166 = scmp.ne.s32.totalorder %s154, %s155
      %p167 = scmp.eq.s32.totalorder %s21, 1
      %p168 = por %p166, %p167
      %p170 = scmp.ne.s32.totalorder %s155, %s169
      %p171 = scmp.eq.s32.totalorder %s21, 0
      %p172 = por %p170, %p171
      %s173 = ssub.s32 %s22, %s34
      %p174 = scmp.eq.s32.totalorder %s173, 0
      %s176 = sadd.s32 %s175, 1
      %s177 = scalar_select %p174, %s175, %s176
      %p180 = pneg %p174
      %p181 = scmp.eq.s32.totalorder %s15, 1
      %p182 = por %p180, %p181
      %p183 = scmp.ne.s32.totalorder %s175, %s178
      %p184 = scmp.eq.s32.totalorder %s15, 0
      %p185 = por %p183, %p184
      %p186 = scmp.ne.s32.totalorder %s175, %s178
      %p187 = scmp.eq.s32.totalorder %s20, 1
      %p188 = por %p186, %p187
      %p189 = scmp.ne.s32.totalorder %s178, %s179
      %p190 = scmp.eq.s32.totalorder %s20, 0
      %p191 = por %p189, %p190
      %p192 = scmp.ne.s32.totalorder %s178, %s179
      %p193 = scmp.eq.s32.totalorder %s21, 1
      %p194 = por %p192, %p193
      %p196 = scmp.ne.s32.totalorder %s179, %s195
      %p197 = scmp.eq.s32.totalorder %s21, 0
      %p198 = por %p196, %p197
      %p199 = scmp.le.s32.totalorder 1, %s15
      %p200 = scmp.lt.s32.totalorder %s15, 3
      %p201 = pnand %p199, %p200
      %p202 = pneg %p201
      // Predicated region
      $region9: #{age_model_forward.14} parent=5 // pred_check
        _
      $region10: #{age_model_forward.14} parent=5 // pred_check_branch
        %204 = sbr.rel (%p201) target = $region12
      $region11: #{age_model_forward.14} parent=5 // pred_region
        %s205 = ssub.s32 %s15, 1
        // Predicated region
        $region13: #{age_model_forward.14} parent=11 // pred_check
          %p206 = pneg %p102
        $region14: #{age_model_forward.14} parent=11 // pred_check_branch
          %208 = sbr.rel (%p206) target = $region16
        $region15: #{age_model_forward.14} parent=11 // pred_region
          %s210 = ssub.s32 1024, 1024
          %211 = vsyncadd [#allocation3], %s210
          %s212 = sshll.u32 [#allocation2], 4
          %s213 = int_to_ptr.vmem [resolvable:$true] %s212
          %218 = dma.hbm_to_vmem [thread:$0]  %s2, 1024, %s213, [#allocation3], 64, 64, 4
        $region16: #{age_model_forward.14} parent=11 // pred_fallthru
          _
        // Predicated region
        $region17: #{age_model_forward.14} parent=11 // pred_check
          %p219 = pneg %p123
        $region18: #{age_model_forward.14} parent=11 // pred_check_branch
          %221 = sbr.rel (%p219) target = $region20
        $region19: #{age_model_forward.14} parent=11 // pred_region
          %s223 = ssub.s32 16, 16
          %224 = vsyncadd [#allocation5], %s223
          %s226 = sshll.u32 [#allocation4], 4
          %s227 = int_to_ptr.vmem [resolvable:$true] %s226
          %229 = dma.hbm_to_vmem [thread:$0]  %s3, 16, %s227, [#allocation5]
        $region20: #{age_model_forward.14} parent=11 // pred_fallthru
          _
        // Predicated region
        $region21: #{age_model_forward.14} parent=11 // pred_check
          %p230 = pneg %p144
        $region22: #{age_model_forward.14} parent=11 // pred_check_branch
          %232 = sbr.rel (%p230) target = $region24
        $region23: #{age_model_forward.14} parent=11 // pred_region
          %s234 = ssub.s32 10240, 10240
          %235 = vsyncadd [#allocation5], %s234
          %s236 = sshll.u32 [#allocation6], 4
          %s237 = int_to_ptr.vmem [resolvable:$true] %s236
          %242 = dma.hbm_to_vmem [thread:$0]  %s4, 10240, %s237, [#allocation5], 640, 640, 40
        $region24: #{age_model_forward.14} parent=11 // pred_fallthru
          _
        // Predicated region
        $region25: #{age_model_forward.14} parent=11 // pred_check
          %p243 = pneg %p165
        $region26: #{age_model_forward.14} parent=11 // pred_check_branch
          %245 = sbr.rel (%p243) target = $region28
        $region27: #{age_model_forward.14} parent=11 // pred_region
          %s247 = ssub.s32 160, 160
          %248 = vsyncadd [#allocation8], %s247
          %s250 = sshll.u32 [#allocation7], 4
          %s251 = int_to_ptr.vmem [resolvable:$true] %s250
          %253 = dma.hbm_to_vmem [thread:$0]  %s5, 160, %s251, [#allocation8]
        $region28: #{age_model_forward.14} parent=11 // pred_fallthru
          _
      $region12: #{age_model_forward.14} parent=5 // pred_fallthru
        _
      %p254 = scmp.lt.s32.totalorder %s15, 2
      // Predicated region
      $region29: #{age_model_forward.14} parent=5 // pred_check
        %p255 = pneg %p254
      $region30: #{age_model_forward.14} parent=5 // pred_check_branch
        %257 = sbr.rel (%p255) target = $region32
      $region31: #{age_model_forward.14} parent=5 // pred_region
        // Predicated region
        $region33: #{age_model_forward.14} parent=31 // pred_check
          %p258 = pneg %p49
        $region34: #{age_model_forward.14} parent=31 // pred_check_branch
          %260 = sbr.rel (%p258) target = $region36
        $region35: #{age_model_forward.14} parent=31 // pred_region
          %s261 = smul.u32 8, %s23
          %p262 = scmp.lt.s32.totalorder %s22, 1
          %s263 = scalar_select %p262, %s22, 1
          %p264 = scmp.lt.s32.totalorder %s261, 7
          %s265 = scalar_select %p264, %s261, 7
          %s266 = smul.addr %s263, 8
          %s267 = sadd.s32 %s265, %s266
          %s268 = smul.addr %s267, 4
          %s269 = scalar_lea.vmem %s0, %s268
          %s270 = smul.u32 8, %s23
        $region36: #{age_model_forward.14} parent=31 // pred_fallthru
          _
        // Predicated region
        $region37: #{age_model_forward.14} parent=31 // pred_check
          %p271 = pneg %p75
        $region38: #{age_model_forward.14} parent=31 // pred_check_branch
          %273 = sbr.rel (%p271) target = $region40
        $region39: #{age_model_forward.14} parent=31 // pred_region
          %p274 = scmp.lt.s32.totalorder %s22, 1
          %s275 = scalar_select %p274, %s22, 1
          %s276 = scalar_lea.vmem %s1, %s275
        $region40: #{age_model_forward.14} parent=31 // pred_fallthru
          _
      $region32: #{age_model_forward.14} parent=5 // pred_fallthru
        _
      %p277 = scmp.le.s32.totalorder 1, %s15
      %p278 = scmp.lt.s32.totalorder %s15, 3
      %p279 = pnand %p277, %p278
      %p280 = pneg %p279
      // Predicated region
      $region41: #{age_model_forward.14} parent=5 // pred_check
        _
      $region42: #{age_model_forward.14} parent=5 // pred_check_branch
        %282 = sbr.rel (%p279) target = $region44
      $region43: #{age_model_forward.14} parent=5 // pred_region
        %s283 = ssub.s32 %s15, 1
        // Predicated region
        $region45: #{age_model_forward.14} parent=43 // pred_check
          %p284 = pneg %p102
        $region46: #{age_model_forward.14} parent=43 // pred_check_branch
          %286 = sbr.rel (%p284) target = $region48
        $region47: #{age_model_forward.14} parent=43 // pred_region
          %287 = dma.done [#allocation3], 1024
        $region48: #{age_model_forward.14} parent=43 // pred_fallthru
          _
        // Predicated region
        $region49: #{age_model_forward.14} parent=43 // pred_check
          %p288 = pneg %p123
        $region50: #{age_model_forward.14} parent=43 // pred_check_branch
          %290 = sbr.rel (%p288) target = $region52
        $region51: #{age_model_forward.14} parent=43 // pred_region
          %291 = dma.done [#allocation5], 16
        $region52: #{age_model_forward.14} parent=43 // pred_fallthru
          _
        // Predicated region
        $region53: #{age_model_forward.14} parent=43 // pred_check
          %p292 = pneg %p144
        $region54: #{age_model_forward.14} parent=43 // pred_check_branch
          %294 = sbr.rel (%p292) target = $region56
        $region55: #{age_model_forward.14} parent=43 // pred_region
          %295 = dma.done [#allocation5], 10240
        $region56: #{age_model_forward.14} parent=43 // pred_fallthru
          _
        // Predicated region
        $region57: #{age_model_forward.14} parent=43 // pred_check
          %p296 = pneg %p165
        $region58: #{age_model_forward.14} parent=43 // pred_check_branch
          %298 = sbr.rel (%p296) target = $region60
        $region59: #{age_model_forward.14} parent=43 // pred_region
          %299 = dma.done [#allocation8], 160
        $region60: #{age_model_forward.14} parent=43 // pred_fallthru
          _
        %s300 = smul.u32 8, %s25
        %p301 = scmp.lt.s32.totalorder %s24, 1
        %s302 = scalar_select %p301, %s24, 1
        %p303 = scmp.lt.s32.totalorder %s300, 7
        %s304 = scalar_select %p303, %s300, 7
        %s305 = smul.addr %s302, 8
        %s306 = sadd.s32 %s304, %s305
        %s307 = smul.addr %s306, 4
        %s308 = scalar_lea.vmem %s0, %s307
        %p309 = pneg %p55
        %p310 = pneg %p52
        %p311 = scmp.lt.s32.totalorder %s24, 1
        %s312 = scalar_select %p311, %s24, 1
        %s313 = scalar_lea.vmem %s1, %s312
        %p314 = pneg %p81
        %p315 = pneg %p78
        %p316 = pneg %p102
        %p317 = pneg %p99
        %p318 = pneg %p123
        %p319 = pneg %p120
        %p320 = pneg %p144
        %p321 = pneg %p141
        %p322 = pneg %p165
        %p323 = pneg %p162
        %p324 = pneg %p191
        %p325 = pneg %p188
        %p326 = scmp.lt.s32.totalorder %s24, 1
        %s327 = scalar_select %p326, %s24, 1
        %s328 = smul.addr %s327, 10
        %s329 = scalar_lea.vmem %s6, %s328
        %s330 = smul.u32 8, %s25
        %p331 = scmp.lt.s32.totalorder %s24, 1
        %s332 = scalar_select %p331, %s24, 1
        %p333 = scmp.lt.s32.totalorder %s330, 7
        %s334 = scalar_select %p333, %s330, 7
        %s335 = smul.addr %s332, 8
        %s336 = sadd.s32 %s334, %s335
        %s337 = smul.addr %s336, 4
        %s338 = scalar_lea.vmem %s0, %s337
        %s339 = smul.u32 8, %s25
        %p340 = scmp.lt.s32.totalorder %s24, 1
        %s341 = scalar_select %p340, %s24, 1
        %s342 = scalar_lea.vmem %s1, %s341
        %p343 = scmp.lt.s32.totalorder %s24, 1
        %s344 = scalar_select %p343, %s24, 1
        %s345 = smul.addr %s344, 10
        %s346 = scalar_lea.vmem %s6, %s345
        %v348 = vld [vmem:[%s338] sm:$0xf]
        %v349 = vld [vmem:[%s338 + $0x4] sm:$0xf]
        %v350 = vld [vmem:[%s338 + $0x8] sm:$0xf]
        %v351 = vld [vmem:[%s338 + $0xc] sm:$0xf]
        %v352 = vld [vmem:[%s338 + $0x10] sm:$0xf]
        %v353 = vld [vmem:[%s338 + $0x14] sm:$0xf]
        %v354 = vld [vmem:[%s338 + $0x18] sm:$0xf]
        %v355 = vld [vmem:[%s338 + $0x1c] sm:$0xf]
        %v356 = vld [vmem:[%s342] sm:$0x1]
        %v358 = vpack.i.b16 %v356, %v356
        %v360 = vlaneseq
        %v361 = vshrl.u32 %v360, 7
        %v362 = vsub.s32 0, %v361
        %v363 = vrot.slane %v358, %v362
        %v365 = vunpack.c.l.b16 %v363
        %v366 = vpack.c.b16 %v365, %v365
        %v368 = vmul.bf16 %v348, %v366
        %v369 = vmul.bf16 %v349, %v366
        %v370 = vmul.bf16 %v350, %v366
        %v371 = vmul.bf16 %v351, %v366
        %v372 = vmul.bf16 %v352, %v366
        %v373 = vmul.bf16 %v353, %v366
        %v374 = vmul.bf16 %v354, %v366
        %v375 = vmul.bf16 %v355, %v366
        %v376 = vld [vmem:[#allocation2] sm:$0xf]
        %v377 = vld [vmem:[#allocation2 + $0x4] sm:$0xf]
        %v378 = vld [vmem:[#allocation2 + $0x8] sm:$0xf]
        %v379 = vld [vmem:[#allocation2 + $0xc] sm:$0xf]
        %v380 = vld [vmem:[#allocation2 + $0x10] sm:$0xf]
        %v381 = vld [vmem:[#allocation2 + $0x14] sm:$0xf]
        %v382 = vld [vmem:[#allocation2 + $0x18] sm:$0xf]
        %v383 = vld [vmem:[#allocation2 + $0x1c] sm:$0xf]
        %v384 = vld [vmem:[#allocation2 + $0x20] sm:$0xf]
        %v385 = vld [vmem:[#allocation2 + $0x24] sm:$0xf]
        %v386 = vld [vmem:[#allocation2 + $0x28] sm:$0xf]
        %v387 = vld [vmem:[#allocation2 + $0x2c] sm:$0xf]
        %v388 = vld [vmem:[#allocation2 + $0x30] sm:$0xf]
        %v389 = vld [vmem:[#allocation2 + $0x34] sm:$0xf]
        %v390 = vld [vmem:[#allocation2 + $0x38] sm:$0xf]
        %v391 = vld [vmem:[#allocation2 + $0x3c] sm:$0xf]
        %v392 = vld [vmem:[#allocation4] sm:$0x1]
        %v394 = vlaneseq
        %v395 = vshrl.u32 %v394, 7
        %v396 = vsub.s32 0, %v395
        %v397 = vrot.slane %v392, %v396
        %v407 = vunpack.c.l.b16 %v368
        %v408 = vunpack.c.l.b16 %v369
        %v409 = vunpack.c.l.b16 %v370
        %v410 = vunpack.c.l.b16 %v371
        %v411 = vunpack.c.l.b16 %v372
        %v412 = vunpack.c.l.b16 %v373
        %v413 = vunpack.c.l.b16 %v374
        %v414 = vunpack.c.l.b16 %v375
        %v415 = vpack.c.b16 %v408, %v407
        %v416 = vpack.c.b16 %v410, %v409
        %v417 = vpack.c.b16 %v412, %v411
        %v418 = vpack.c.b16 %v414, %v413
        %v439 = vunpack.c.l.b16 %v376
        %v440 = vunpack.c.l.b16 %v377
        %v441 = vunpack.c.l.b16 %v378
        %v442 = vunpack.c.l.b16 %v379
        %v443 = vunpack.c.l.b16 %v380
        %v444 = vunpack.c.l.b16 %v381
        %v445 = vunpack.c.l.b16 %v382
        %v446 = vunpack.c.l.b16 %v383
        %v447 = vunpack.c.l.b16 %v384
        %v448 = vunpack.c.l.b16 %v385
        %v449 = vunpack.c.l.b16 %v386
        %v450 = vunpack.c.l.b16 %v387
        %v451 = vunpack.c.l.b16 %v388
        %v452 = vunpack.c.l.b16 %v389
        %v453 = vunpack.c.l.b16 %v390
        %v454 = vunpack.c.l.b16 %v391
        %v455 = vpack.c.b16 %v440, %v439
        %v456 = vpack.c.b16 %v442, %v441
        %v457 = vpack.c.b16 %v444, %v443
        %v458 = vpack.c.b16 %v446, %v445
        %v459 = vpack.c.b16 %v448, %v447
        %v460 = vpack.c.b16 %v450, %v449
        %v461 = vpack.c.b16 %v452, %v451
        %v462 = vpack.c.b16 %v454, %v453
        %471 = vmatprep.subr.bf16.mxu0 0
        %472 = vmatpush1.bf16.msra.mxu0 %v462
        %473 = vmatprep.subr.bf16.mxu0 0
        %474 = vmatpush1.bf16.msra.mxu0 %v461
        %475 = vmatprep.subr.bf16.mxu0 0
        %476 = vmatpush1.bf16.msra.mxu0 %v460
        %477 = vmatprep.subr.bf16.mxu0 0
        %478 = vmatpush1.bf16.msra.mxu0 %v459
        %479 = vmatprep.subr.bf16.mxu0 0
        %480 = vmatpush1.bf16.msra.mxu0 %v458
        %481 = vmatprep.subr.bf16.mxu0 0
        %482 = vmatpush1.bf16.msra.mxu0 %v457
        %483 = vmatprep.subr.bf16.mxu0 0
        %484 = vmatpush1.bf16.msra.mxu0 %v456
        %485 = vmatprep.subr.bf16.mxu0 0
        %486 = vmatpush1.bf16.msra.mxu0 %v455
        %487 = vmatprep.subr.bf16.mxu0 0
        %488 = vmatpush2.bf16.msra.mxu0 0
        %489 = vmatprep.subr.bf16.mxu0 0
        %490 = vmatpush2.bf16.msra.mxu0 0
        %491 = vmatprep.subr.bf16.mxu0 0
        %492 = vmatpush2.bf16.msra.mxu0 0
        %493 = vmatprep.subr.bf16.mxu0 0
        %494 = vmatpush2.bf16.msra.mxu0 0
        %495 = vmatprep.subr.bf16.mxu0 0
        %496 = vmatpush2.bf16.msra.mxu0 0
        %497 = vmatprep.subr.bf16.mxu0 0
        %498 = vmatpush2.bf16.msra.mxu0 0
        %499 = vmatprep.subr.bf16.mxu0 0
        %500 = vmatpush2.bf16.msra.mxu0 0
        %501 = vmatprep.subr.bf16.mxu0 0
        %502 = vmatpush2.bf16.msra.mxu0 0
        %503 = vmatprep.mubr.bf16.mxu0 0
        %504 = vmatmul.mubr.bf16.gmra.mxu0 %v415
        %v505 = vpop.f32.mrf.mxu0
        %v506 = vadd.f32 %v397, %v505
        %v507 = vpop.f32.mrf.mxu0
        %v508 = vpop.f32.mrf.mxu0
        %v509 = vadd.f32 %v397, %v508
        %v510 = vpop.f32.mrf.mxu0
        %511 = vmatprep.mubr.bf16.mxu0 0
        %512 = vmatmul.mubr.bf16.gmra.mxu0 %v416
        %v513 = vpop.f32.mrf.mxu0
        %v514 = vadd.f32 %v397, %v513
        %v515 = vpop.f32.mrf.mxu0
        %v516 = vpop.f32.mrf.mxu0
        %v517 = vadd.f32 %v397, %v516
        %v518 = vpop.f32.mrf.mxu0
        %519 = vmatprep.mubr.bf16.mxu0 0
        %520 = vmatmul.mubr.bf16.gmra.mxu0 %v417
        %v521 = vpop.f32.mrf.mxu0
        %v522 = vadd.f32 %v397, %v521
        %v523 = vpop.f32.mrf.mxu0
        %v524 = vpop.f32.mrf.mxu0
        %v525 = vadd.f32 %v397, %v524
        %v526 = vpop.f32.mrf.mxu0
        %527 = vmatprep.mubr.bf16.mxu0 0
        %528 = vmatmul.mubr.bf16.gmra.mxu0 %v418
        %v529 = vpop.f32.mrf.mxu0
        %v530 = vadd.f32 %v397, %v529
        %v531 = vpop.f32.mrf.mxu0
        %v532 = vpop.f32.mrf.mxu0
        %v533 = vadd.f32 %v397, %v532
        %v534 = vpop.f32.mrf.mxu0
        %535 = vdwg.mxu0
        %v536 = vpack.c.bf16 %v509, %v506
        %v537 = vpack.c.bf16 %v517, %v514
        %v538 = vpack.c.bf16 %v525, %v522
        %v539 = vpack.c.bf16 %v533, %v530
        %v540 = vld [vmem:[#allocation6] sm:$0xff]
        %v541 = vld [vmem:[#allocation6 + $0x8] sm:$0xff]
        %v542 = vld [vmem:[#allocation6 + $0x10] sm:$0xff]
        %v543 = vld [vmem:[#allocation6 + $0x18] sm:$0xff]
        %v544 = vld [vmem:[#allocation6 + $0x20] sm:$0xff]
        %v545 = vld [vmem:[#allocation6 + $0x28] sm:$0xff]
        %v546 = vld [vmem:[#allocation6 + $0x30] sm:$0xff]
        %v547 = vld [vmem:[#allocation6 + $0x38] sm:$0xff]
        %v548 = vld [vmem:[#allocation6 + $0x40] sm:$0xff]
        %v549 = vld [vmem:[#allocation6 + $0x48] sm:$0xff]
        %v550 = vld [vmem:[#allocation6 + $0x50] sm:$0xff]
        %v551 = vld [vmem:[#allocation6 + $0x58] sm:$0xff]
        %v552 = vld [vmem:[#allocation6 + $0x60] sm:$0xff]
        %v553 = vld [vmem:[#allocation6 + $0x68] sm:$0xff]
        %v554 = vld [vmem:[#allocation6 + $0x70] sm:$0xff]
        %v555 = vld [vmem:[#allocation6 + $0x78] sm:$0xff]
        %v556 = vld [vmem:[#allocation6 + $0x80] sm:$0xff]
        %v557 = vld [vmem:[#allocation6 + $0x88] sm:$0xff]
        %v558 = vld [vmem:[#allocation6 + $0x90] sm:$0xff]
        %v559 = vld [vmem:[#allocation6 + $0x98] sm:$0xff]
        %v560 = vld [vmem:[#allocation6 + $0xa0] sm:$0xff]
        %v561 = vld [vmem:[#allocation6 + $0xa8] sm:$0xff]
        %v562 = vld [vmem:[#allocation6 + $0xb0] sm:$0xff]
        %v563 = vld [vmem:[#allocation6 + $0xb8] sm:$0xff]
        %v564 = vld [vmem:[#allocation6 + $0xc0] sm:$0xff]
        %v565 = vld [vmem:[#allocation6 + $0xc8] sm:$0xff]
        %v566 = vld [vmem:[#allocation6 + $0xd0] sm:$0xff]
        %v567 = vld [vmem:[#allocation6 + $0xd8] sm:$0xff]
        %v568 = vld [vmem:[#allocation6 + $0xe0] sm:$0xff]
        %v569 = vld [vmem:[#allocation6 + $0xe8] sm:$0xff]
        %v570 = vld [vmem:[#allocation6 + $0xf0] sm:$0xff]
        %v571 = vld [vmem:[#allocation6 + $0xf8] sm:$0xff]
        %v572 = vld [vmem:[#allocation6 + $0x100] sm:$0xff]
        %v573 = vld [vmem:[#allocation6 + $0x108] sm:$0xff]
        %v574 = vld [vmem:[#allocation6 + $0x110] sm:$0xff]
        %v575 = vld [vmem:[#allocation6 + $0x118] sm:$0xff]
        %v576 = vld [vmem:[#allocation6 + $0x120] sm:$0xff]
        %v577 = vld [vmem:[#allocation6 + $0x128] sm:$0xff]
        %v578 = vld [vmem:[#allocation6 + $0x130] sm:$0xff]
        %v579 = vld [vmem:[#allocation6 + $0x138] sm:$0xff]
        %v580 = vld [vmem:[#allocation6 + $0x140] sm:$0xff]
        %v581 = vld [vmem:[#allocation6 + $0x148] sm:$0xff]
        %v582 = vld [vmem:[#allocation6 + $0x150] sm:$0xff]
        %v583 = vld [vmem:[#allocation6 + $0x158] sm:$0xff]
        %v584 = vld [vmem:[#allocation6 + $0x160] sm:$0xff]
        %v585 = vld [vmem:[#allocation6 + $0x168] sm:$0xff]
        %v586 = vld [vmem:[#allocation6 + $0x170] sm:$0xff]
        %v587 = vld [vmem:[#allocation6 + $0x178] sm:$0xff]
        %v588 = vld [vmem:[#allocation6 + $0x180] sm:$0xff]
        %v589 = vld [vmem:[#allocation6 + $0x188] sm:$0xff]
        %v590 = vld [vmem:[#allocation6 + $0x190] sm:$0xff]
        %v591 = vld [vmem:[#allocation6 + $0x198] sm:$0xff]
        %v592 = vld [vmem:[#allocation6 + $0x1a0] sm:$0xff]
        %v593 = vld [vmem:[#allocation6 + $0x1a8] sm:$0xff]
        %v594 = vld [vmem:[#allocation6 + $0x1b0] sm:$0xff]
        %v595 = vld [vmem:[#allocation6 + $0x1b8] sm:$0xff]
        %v596 = vld [vmem:[#allocation6 + $0x1c0] sm:$0xff]
        %v597 = vld [vmem:[#allocation6 + $0x1c8] sm:$0xff]
        %v598 = vld [vmem:[#allocation6 + $0x1d0] sm:$0xff]
        %v599 = vld [vmem:[#allocation6 + $0x1d8] sm:$0xff]
        %v600 = vld [vmem:[#allocation6 + $0x1e0] sm:$0xff]
        %v601 = vld [vmem:[#allocation6 + $0x1e8] sm:$0xff]
        %v602 = vld [vmem:[#allocation6 + $0x1f0] sm:$0xff]
        %v603 = vld [vmem:[#allocation6 + $0x1f8] sm:$0xff]
        %v604 = vld [vmem:[#allocation6 + $0x200] sm:$0xff]
        %v605 = vld [vmem:[#allocation6 + $0x208] sm:$0xff]
        %v606 = vld [vmem:[#allocation6 + $0x210] sm:$0xff]
        %v607 = vld [vmem:[#allocation6 + $0x218] sm:$0xff]
        %v608 = vld [vmem:[#allocation6 + $0x220] sm:$0xff]
        %v609 = vld [vmem:[#allocation6 + $0x228] sm:$0xff]
        %v610 = vld [vmem:[#allocation6 + $0x230] sm:$0xff]
        %v611 = vld [vmem:[#allocation6 + $0x238] sm:$0xff]
        %v612 = vld [vmem:[#allocation6 + $0x240] sm:$0xff]
        %v613 = vld [vmem:[#allocation6 + $0x248] sm:$0xff]
        %v614 = vld [vmem:[#allocation6 + $0x250] sm:$0xff]
        %v615 = vld [vmem:[#allocation6 + $0x258] sm:$0xff]
        %v616 = vld [vmem:[#allocation6 + $0x260] sm:$0xff]
        %v617 = vld [vmem:[#allocation6 + $0x268] sm:$0xff]
        %v618 = vld [vmem:[#allocation6 + $0x270] sm:$0xff]
        %v619 = vld [vmem:[#allocation6 + $0x278] sm:$0xff]
        %v620 = vld [vmem:[#allocation7] sm:$0xff]
        %v621 = vld [vmem:[#allocation7 + $0x8] sm:$0x3]
        %v624 = vlaneseq
        %v625 = vshrl.u32 %v624, 7
        %v626 = vsub.s32 0, %v625
        %v627 = vrot.slane %v620, %v626
        %v628 = vlaneseq
        %v629 = vshrl.u32 %v628, 7
        %v630 = vsub.s32 1, %v629
        %v631 = vrot.slane %v620, %v630
        %v632 = vlaneseq
        %v633 = vshrl.u32 %v632, 7
        %v634 = vsub.s32 2, %v633
        %v635 = vrot.slane %v620, %v634
        %v636 = vlaneseq
        %v637 = vshrl.u32 %v636, 7
        %v638 = vsub.s32 3, %v637
        %v639 = vrot.slane %v620, %v638
        %v640 = vlaneseq
        %v641 = vshrl.u32 %v640, 7
        %v642 = vsub.s32 4, %v641
        %v643 = vrot.slane %v620, %v642
        %v644 = vlaneseq
        %v645 = vshrl.u32 %v644, 7
        %v646 = vsub.s32 5, %v645
        %v647 = vrot.slane %v620, %v646
        %v648 = vlaneseq
        %v649 = vshrl.u32 %v648, 7
        %v650 = vsub.s32 6, %v649
        %v651 = vrot.slane %v620, %v650
        %v652 = vlaneseq
        %v653 = vshrl.u32 %v652, 7
        %v654 = vsub.s32 7, %v653
        %v655 = vrot.slane %v620, %v654
        %v656 = vlaneseq
        %v657 = vshrl.u32 %v656, 7
        %v658 = vsub.s32 0, %v657
        %v659 = vrot.slane %v621, %v658
        %v660 = vlaneseq
        %v661 = vshrl.u32 %v660, 7
        %v662 = vsub.s32 1, %v661
        %v663 = vrot.slane %v621, %v662
        %v754 = vunpack.c.l.b16 %v540
        %v755 = vunpack.c.h.b16 %v540
        %v756 = vunpack.c.l.b16 %v541
        %v757 = vunpack.c.h.b16 %v541
        %v758 = vunpack.c.l.b16 %v542
        %v759 = vunpack.c.h.b16 %v542
        %v760 = vunpack.c.l.b16 %v543
        %v761 = vunpack.c.h.b16 %v543
        %v762 = vunpack.c.l.b16 %v544
        %v763 = vunpack.c.h.b16 %v544
        %v764 = vunpack.c.l.b16 %v545
        %v765 = vunpack.c.h.b16 %v545
        %v766 = vunpack.c.l.b16 %v546
        %v767 = vunpack.c.h.b16 %v546
        %v768 = vunpack.c.l.b16 %v547
        %v769 = vunpack.c.h.b16 %v547
        %v770 = vunpack.c.l.b16 %v548
        %v771 = vunpack.c.h.b16 %v548
        %v772 = vunpack.c.l.b16 %v549
        %v773 = vunpack.c.h.b16 %v549
        %v774 = vunpack.c.l.b16 %v550
        %v775 = vunpack.c.h.b16 %v550
        %v776 = vunpack.c.l.b16 %v551
        %v777 = vunpack.c.h.b16 %v551
        %v778 = vunpack.c.l.b16 %v552
        %v779 = vunpack.c.h.b16 %v552
        %v780 = vunpack.c.l.b16 %v553
        %v781 = vunpack.c.h.b16 %v553
        %v782 = vunpack.c.l.b16 %v554
        %v783 = vunpack.c.h.b16 %v554
        %v784 = vunpack.c.l.b16 %v555
        %v785 = vunpack.c.h.b16 %v555
        %v786 = vunpack.c.l.b16 %v556
        %v787 = vunpack.c.h.b16 %v556
        %v788 = vunpack.c.l.b16 %v557
        %v789 = vunpack.c.h.b16 %v557
        %v790 = vunpack.c.l.b16 %v558
        %v791 = vunpack.c.h.b16 %v558
        %v792 = vunpack.c.l.b16 %v559
        %v793 = vunpack.c.h.b16 %v559
        %v794 = vunpack.c.l.b16 %v560
        %v795 = vunpack.c.h.b16 %v560
        %v796 = vunpack.c.l.b16 %v561
        %v797 = vunpack.c.h.b16 %v561
        %v798 = vunpack.c.l.b16 %v562
        %v799 = vunpack.c.h.b16 %v562
        %v800 = vunpack.c.l.b16 %v563
        %v801 = vunpack.c.h.b16 %v563
        %v802 = vunpack.c.l.b16 %v564
        %v803 = vunpack.c.h.b16 %v564
        %v804 = vunpack.c.l.b16 %v565
        %v805 = vunpack.c.h.b16 %v565
        %v806 = vunpack.c.l.b16 %v566
        %v807 = vunpack.c.h.b16 %v566
        %v808 = vunpack.c.l.b16 %v567
        %v809 = vunpack.c.h.b16 %v567
        %v810 = vunpack.c.l.b16 %v568
        %v811 = vunpack.c.h.b16 %v568
        %v812 = vunpack.c.l.b16 %v569
        %v813 = vunpack.c.h.b16 %v569
        %v814 = vunpack.c.l.b16 %v570
        %v815 = vunpack.c.h.b16 %v570
        %v816 = vunpack.c.l.b16 %v571
        %v817 = vunpack.c.h.b16 %v571
        %v818 = vunpack.c.l.b16 %v572
        %v819 = vunpack.c.h.b16 %v572
        %v820 = vunpack.c.l.b16 %v573
        %v821 = vunpack.c.h.b16 %v573
        %v822 = vunpack.c.l.b16 %v574
        %v823 = vunpack.c.h.b16 %v574
        %v824 = vunpack.c.l.b16 %v575
        %v825 = vunpack.c.h.b16 %v575
        %v826 = vunpack.c.l.b16 %v576
        %v827 = vunpack.c.h.b16 %v576
        %v828 = vunpack.c.l.b16 %v577
        %v829 = vunpack.c.h.b16 %v577
        %v830 = vunpack.c.l.b16 %v578
        %v831 = vunpack.c.h.b16 %v578
        %v832 = vunpack.c.l.b16 %v579
        %v833 = vunpack.c.h.b16 %v579
        %v834 = vunpack.c.l.b16 %v580
        %v835 = vunpack.c.h.b16 %v580
        %v836 = vunpack.c.l.b16 %v581
        %v837 = vunpack.c.h.b16 %v581
        %v838 = vunpack.c.l.b16 %v582
        %v839 = vunpack.c.h.b16 %v582
        %v840 = vunpack.c.l.b16 %v583
        %v841 = vunpack.c.h.b16 %v583
        %v842 = vunpack.c.l.b16 %v584
        %v843 = vunpack.c.h.b16 %v584
        %v844 = vunpack.c.l.b16 %v585
        %v845 = vunpack.c.h.b16 %v585
        %v846 = vunpack.c.l.b16 %v586
        %v847 = vunpack.c.h.b16 %v586
        %v848 = vunpack.c.l.b16 %v587
        %v849 = vunpack.c.h.b16 %v587
        %v850 = vunpack.c.l.b16 %v588
        %v851 = vunpack.c.h.b16 %v588
        %v852 = vunpack.c.l.b16 %v589
        %v853 = vunpack.c.h.b16 %v589
        %v854 = vunpack.c.l.b16 %v590
        %v855 = vunpack.c.h.b16 %v590
        %v856 = vunpack.c.l.b16 %v591
        %v857 = vunpack.c.h.b16 %v591
        %v858 = vunpack.c.l.b16 %v592
        %v859 = vunpack.c.h.b16 %v592
        %v860 = vunpack.c.l.b16 %v593
        %v861 = vunpack.c.h.b16 %v593
        %v862 = vunpack.c.l.b16 %v594
        %v863 = vunpack.c.h.b16 %v594
        %v864 = vunpack.c.l.b16 %v595
        %v865 = vunpack.c.h.b16 %v595
        %v866 = vunpack.c.l.b16 %v596
        %v867 = vunpack.c.h.b16 %v596
        %v868 = vunpack.c.l.b16 %v597
        %v869 = vunpack.c.h.b16 %v597
        %v870 = vunpack.c.l.b16 %v598
        %v871 = vunpack.c.h.b16 %v598
        %v872 = vunpack.c.l.b16 %v599
        %v873 = vunpack.c.h.b16 %v599
        %v874 = vunpack.c.l.b16 %v600
        %v875 = vunpack.c.h.b16 %v600
        %v876 = vunpack.c.l.b16 %v601
        %v877 = vunpack.c.h.b16 %v601
        %v878 = vunpack.c.l.b16 %v602
        %v879 = vunpack.c.h.b16 %v602
        %v880 = vunpack.c.l.b16 %v603
        %v881 = vunpack.c.h.b16 %v603
        %v882 = vunpack.c.l.b16 %v604
        %v883 = vunpack.c.h.b16 %v604
        %v884 = vunpack.c.l.b16 %v605
        %v885 = vunpack.c.h.b16 %v605
        %v886 = vunpack.c.l.b16 %v606
        %v887 = vunpack.c.h.b16 %v606
        %v888 = vunpack.c.l.b16 %v607
        %v889 = vunpack.c.h.b16 %v607
        %v890 = vunpack.c.l.b16 %v608
        %v891 = vunpack.c.h.b16 %v608
        %v892 = vunpack.c.l.b16 %v609
        %v893 = vunpack.c.h.b16 %v609
        %v894 = vunpack.c.l.b16 %v610
        %v895 = vunpack.c.h.b16 %v610
        %v896 = vunpack.c.l.b16 %v611
        %v897 = vunpack.c.h.b16 %v611
        %v898 = vunpack.c.l.b16 %v612
        %v899 = vunpack.c.h.b16 %v612
        %v900 = vunpack.c.l.b16 %v613
        %v901 = vunpack.c.h.b16 %v613
        %v902 = vunpack.c.l.b16 %v614
        %v903 = vunpack.c.h.b16 %v614
        %v904 = vunpack.c.l.b16 %v615
        %v905 = vunpack.c.h.b16 %v615
        %v906 = vunpack.c.l.b16 %v616
        %v907 = vunpack.c.h.b16 %v616
        %v908 = vunpack.c.l.b16 %v617
        %v909 = vunpack.c.h.b16 %v617
        %v910 = vunpack.c.l.b16 %v618
        %v911 = vunpack.c.h.b16 %v618
        %v912 = vunpack.c.l.b16 %v619
        %v913 = vunpack.c.h.b16 %v619
        %v914 = vpack.c.b16 %v764, %v754
        %v915 = vpack.c.b16 %v765, %v755
        %v916 = vpack.c.b16 %v766, %v756
        %v917 = vpack.c.b16 %v767, %v757
        %v918 = vpack.c.b16 %v768, %v758
        %v919 = vpack.c.b16 %v769, %v759
        %v920 = vpack.c.b16 %v770, %v760
        %v921 = vpack.c.b16 %v771, %v761
        %v922 = vpack.c.b16 %v772, %v762
        %v923 = vpack.c.b16 %v773, %v763
        %v924 = vpack.c.b16 %v784, %v774
        %v925 = vpack.c.b16 %v785, %v775
        %v926 = vpack.c.b16 %v786, %v776
        %v927 = vpack.c.b16 %v787, %v777
        %v928 = vpack.c.b16 %v788, %v778
        %v929 = vpack.c.b16 %v789, %v779
        %v930 = vpack.c.b16 %v790, %v780
        %v931 = vpack.c.b16 %v791, %v781
        %v932 = vpack.c.b16 %v792, %v782
        %v933 = vpack.c.b16 %v793, %v783
        %v934 = vpack.c.b16 %v804, %v794
        %v935 = vpack.c.b16 %v805, %v795
        %v936 = vpack.c.b16 %v806, %v796
        %v937 = vpack.c.b16 %v807, %v797
        %v938 = vpack.c.b16 %v808, %v798
        %v939 = vpack.c.b16 %v809, %v799
        %v940 = vpack.c.b16 %v810, %v800
        %v941 = vpack.c.b16 %v811, %v801
        %v942 = vpack.c.b16 %v812, %v802
        %v943 = vpack.c.b16 %v813, %v803
        %v944 = vpack.c.b16 %v824, %v814
        %v945 = vpack.c.b16 %v825, %v815
        %v946 = vpack.c.b16 %v826, %v816
        %v947 = vpack.c.b16 %v827, %v817
        %v948 = vpack.c.b16 %v828, %v818
        %v949 = vpack.c.b16 %v829, %v819
        %v950 = vpack.c.b16 %v830, %v820
        %v951 = vpack.c.b16 %v831, %v821
        %v952 = vpack.c.b16 %v832, %v822
        %v953 = vpack.c.b16 %v833, %v823
        %v954 = vpack.c.b16 %v844, %v834
        %v955 = vpack.c.b16 %v845, %v835
        %v956 = vpack.c.b16 %v846, %v836
        %v957 = vpack.c.b16 %v847, %v837
        %v958 = vpack.c.b16 %v848, %v838
        %v959 = vpack.c.b16 %v849, %v839
        %v960 = vpack.c.b16 %v850, %v840
        %v961 = vpack.c.b16 %v851, %v841
        %v962 = vpack.c.b16 %v852, %v842
        %v963 = vpack.c.b16 %v853, %v843
        %v964 = vpack.c.b16 %v864, %v854
        %v965 = vpack.c.b16 %v865, %v855
        %v966 = vpack.c.b16 %v866, %v856
        %v967 = vpack.c.b16 %v867, %v857
        %v968 = vpack.c.b16 %v868, %v858
        %v969 = vpack.c.b16 %v869, %v859
        %v970 = vpack.c.b16 %v870, %v860
        %v971 = vpack.c.b16 %v871, %v861
        %v972 = vpack.c.b16 %v872, %v862
        %v973 = vpack.c.b16 %v873, %v863
        %v974 = vpack.c.b16 %v884, %v874
        %v975 = vpack.c.b16 %v885, %v875
        %v976 = vpack.c.b16 %v886, %v876
        %v977 = vpack.c.b16 %v887, %v877
        %v978 = vpack.c.b16 %v888, %v878
        %v979 = vpack.c.b16 %v889, %v879
        %v980 = vpack.c.b16 %v890, %v880
        %v981 = vpack.c.b16 %v891, %v881
        %v982 = vpack.c.b16 %v892, %v882
        %v983 = vpack.c.b16 %v893, %v883
        %v984 = vpack.c.b16 %v904, %v894
        %v985 = vpack.c.b16 %v905, %v895
        %v986 = vpack.c.b16 %v906, %v896
        %v987 = vpack.c.b16 %v907, %v897
        %v988 = vpack.c.b16 %v908, %v898
        %v989 = vpack.c.b16 %v909, %v899
        %v990 = vpack.c.b16 %v910, %v900
        %v991 = vpack.c.b16 %v911, %v901
        %v992 = vpack.c.b16 %v912, %v902
        %v993 = vpack.c.b16 %v913, %v903
        %1074 = vmatprep.subr.bf16.mxu0 %v985
        %1075 = vmatpush1.bf16.msra.mxu0 %v984
        %1076 = vmatprep.subr.bf16.mxu0 %v975
        %1077 = vmatpush1.bf16.msra.mxu0 %v974
        %1078 = vmatprep.subr.bf16.mxu0 %v965
        %1079 = vmatpush1.bf16.msra.mxu0 %v964
        %1080 = vmatprep.subr.bf16.mxu0 %v955
        %1081 = vmatpush1.bf16.msra.mxu0 %v954
        %1082 = vmatprep.subr.bf16.mxu0 %v945
        %1083 = vmatpush1.bf16.msra.mxu0 %v944
        %1084 = vmatprep.subr.bf16.mxu0 %v935
        %1085 = vmatpush1.bf16.msra.mxu0 %v934
        %1086 = vmatprep.subr.bf16.mxu0 %v925
        %1087 = vmatpush1.bf16.msra.mxu0 %v924
        %1088 = vmatprep.subr.bf16.mxu0 %v915
        %1089 = vmatpush1.bf16.msra.mxu0 %v914
        %1090 = vmatprep.subr.bf16.mxu0 0
        %1091 = vmatpush2.bf16.msra.mxu0 0
        %1092 = vmatprep.subr.bf16.mxu0 0
        %1093 = vmatpush2.bf16.msra.mxu0 0
        %1094 = vmatprep.subr.bf16.mxu0 0
        %1095 = vmatpush2.bf16.msra.mxu0 0
        %1096 = vmatprep.subr.bf16.mxu0 0
        %1097 = vmatpush2.bf16.msra.mxu0 0
        %1098 = vmatprep.subr.bf16.mxu0 0
        %1099 = vmatpush2.bf16.msra.mxu0 0
        %1100 = vmatprep.subr.bf16.mxu0 0
        %1101 = vmatpush2.bf16.msra.mxu0 0
        %1102 = vmatprep.subr.bf16.mxu0 0
        %1103 = vmatpush2.bf16.msra.mxu0 0
        %1104 = vmatprep.subr.bf16.mxu0 0
        %1105 = vmatpush2.bf16.msra.mxu0 0
        %1106 = vmatprep.mubr.bf16.mxu0 0
        %1107 = vmatmul.mubr.bf16.gmra.mxu0 %v536
        %v1108 = vpop.f32.mrf.mxu0
        %v1109 = vadd.f32 %v627, %v1108
        %v1110 = vpop.f32.mrf.mxu0
        %v1111 = vadd.f32 %v631, %v1110
        %v1112 = vpop.f32.mrf.mxu0
        %v1113 = vadd.f32 %v627, %v1112
        %v1114 = vpop.f32.mrf.mxu0
        %v1115 = vadd.f32 %v631, %v1114
        %1116 = vmatprep.mubr.bf16.mxu0 0
        %1117 = vmatmul.mubr.bf16.gmra.mxu0 %v537
        %v1118 = vpop.f32.mrf.mxu0
        %v1119 = vadd.f32 %v627, %v1118
        %v1120 = vpop.f32.mrf.mxu0
        %v1121 = vadd.f32 %v631, %v1120
        %v1122 = vpop.f32.mrf.mxu0
        %v1123 = vadd.f32 %v627, %v1122
        %v1124 = vpop.f32.mrf.mxu0
        %v1125 = vadd.f32 %v631, %v1124
        %1126 = vmatprep.mubr.bf16.mxu0 0
        %1127 = vmatmul.mubr.bf16.gmra.mxu0 %v538
        %v1128 = vpop.f32.mrf.mxu0
        %v1129 = vadd.f32 %v627, %v1128
        %v1130 = vpop.f32.mrf.mxu0
        %v1131 = vadd.f32 %v631, %v1130
        %v1132 = vpop.f32.mrf.mxu0
        %v1133 = vadd.f32 %v627, %v1132
        %v1134 = vpop.f32.mrf.mxu0
        %v1135 = vadd.f32 %v631, %v1134
        %1136 = vmatprep.mubr.bf16.mxu0 0
        %1137 = vmatmul.mubr.bf16.gmra.mxu0 %v539
        %v1138 = vpop.f32.mrf.mxu0
        %v1139 = vadd.f32 %v627, %v1138
        %v1140 = vpop.f32.mrf.mxu0
        %v1141 = vadd.f32 %v631, %v1140
        %v1142 = vpop.f32.mrf.mxu0
        %v1143 = vadd.f32 %v627, %v1142
        %v1144 = vpop.f32.mrf.mxu0
        %v1145 = vadd.f32 %v631, %v1144
        %1146 = vdwg.mxu0
        %1147 = vmatprep.subr.bf16.mxu0 %v987
        %1148 = vmatpush1.bf16.msra.mxu0 %v986
        %1149 = vmatprep.subr.bf16.mxu0 %v977
        %1150 = vmatpush1.bf16.msra.mxu0 %v976
        %1151 = vmatprep.subr.bf16.mxu0 %v967
        %1152 = vmatpush1.bf16.msra.mxu0 %v966
        %1153 = vmatprep.subr.bf16.mxu0 %v957
        %1154 = vmatpush1.bf16.msra.mxu0 %v956
        %1155 = vmatprep.subr.bf16.mxu0 %v947
        %1156 = vmatpush1.bf16.msra.mxu0 %v946
        %1157 = vmatprep.subr.bf16.mxu0 %v937
        %1158 = vmatpush1.bf16.msra.mxu0 %v936
        %1159 = vmatprep.subr.bf16.mxu0 %v927
        %1160 = vmatpush1.bf16.msra.mxu0 %v926
        %1161 = vmatprep.subr.bf16.mxu0 %v917
        %1162 = vmatpush1.bf16.msra.mxu0 %v916
        %1163 = vmatprep.subr.bf16.mxu0 0
        %1164 = vmatpush2.bf16.msra.mxu0 0
        %1165 = vmatprep.subr.bf16.mxu0 0
        %1166 = vmatpush2.bf16.msra.mxu0 0
        %1167 = vmatprep.subr.bf16.mxu0 0
        %1168 = vmatpush2.bf16.msra.mxu0 0
        %1169 = vmatprep.subr.bf16.mxu0 0
        %1170 = vmatpush2.bf16.msra.mxu0 0
        %1171 = vmatprep.subr.bf16.mxu0 0
        %1172 = vmatpush2.bf16.msra.mxu0 0
        %1173 = vmatprep.subr.bf16.mxu0 0
        %1174 = vmatpush2.bf16.msra.mxu0 0
        %1175 = vmatprep.subr.bf16.mxu0 0
        %1176 = vmatpush2.bf16.msra.mxu0 0
        %1177 = vmatprep.subr.bf16.mxu0 0
        %1178 = vmatpush2.bf16.msra.mxu0 0
        %1179 = vmatprep.mubr.bf16.mxu0 0
        %1180 = vmatmul.mubr.bf16.gmra.mxu0 %v536
        %v1181 = vpop.f32.mrf.mxu0
        %v1182 = vadd.f32 %v635, %v1181
        %v1183 = vpop.f32.mrf.mxu0
        %v1184 = vadd.f32 %v639, %v1183
        %v1185 = vpop.f32.mrf.mxu0
        %v1186 = vadd.f32 %v635, %v1185
        %v1187 = vpop.f32.mrf.mxu0
        %v1188 = vadd.f32 %v639, %v1187
        %1189 = vmatprep.mubr.bf16.mxu0 0
        %1190 = vmatmul.mubr.bf16.gmra.mxu0 %v537
        %v1191 = vpop.f32.mrf.mxu0
        %v1192 = vadd.f32 %v635, %v1191
        %v1193 = vpop.f32.mrf.mxu0
        %v1194 = vadd.f32 %v639, %v1193
        %v1195 = vpop.f32.mrf.mxu0
        %v1196 = vadd.f32 %v635, %v1195
        %v1197 = vpop.f32.mrf.mxu0
        %v1198 = vadd.f32 %v639, %v1197
        %1199 = vmatprep.mubr.bf16.mxu0 0
        %1200 = vmatmul.mubr.bf16.gmra.mxu0 %v538
        %v1201 = vpop.f32.mrf.mxu0
        %v1202 = vadd.f32 %v635, %v1201
        %v1203 = vpop.f32.mrf.mxu0
        %v1204 = vadd.f32 %v639, %v1203
        %v1205 = vpop.f32.mrf.mxu0
        %v1206 = vadd.f32 %v635, %v1205
        %v1207 = vpop.f32.mrf.mxu0
        %v1208 = vadd.f32 %v639, %v1207
        %1209 = vmatprep.mubr.bf16.mxu0 0
        %1210 = vmatmul.mubr.bf16.gmra.mxu0 %v539
        %v1211 = vpop.f32.mrf.mxu0
        %v1212 = vadd.f32 %v635, %v1211
        %v1213 = vpop.f32.mrf.mxu0
        %v1214 = vadd.f32 %v639, %v1213
        %v1215 = vpop.f32.mrf.mxu0
        %v1216 = vadd.f32 %v635, %v1215
        %v1217 = vpop.f32.mrf.mxu0
        %v1218 = vadd.f32 %v639, %v1217
        %1219 = vdwg.mxu0
        %1220 = vmatprep.subr.bf16.mxu0 %v989
        %1221 = vmatpush1.bf16.msra.mxu0 %v988
        %1222 = vmatprep.subr.bf16.mxu0 %v979
        %1223 = vmatpush1.bf16.msra.mxu0 %v978
        %1224 = vmatprep.subr.bf16.mxu0 %v969
        %1225 = vmatpush1.bf16.msra.mxu0 %v968
        %1226 = vmatprep.subr.bf16.mxu0 %v959
        %1227 = vmatpush1.bf16.msra.mxu0 %v958
        %1228 = vmatprep.subr.bf16.mxu0 %v949
        %1229 = vmatpush1.bf16.msra.mxu0 %v948
        %1230 = vmatprep.subr.bf16.mxu0 %v939
        %1231 = vmatpush1.bf16.msra.mxu0 %v938
        %1232 = vmatprep.subr.bf16.mxu0 %v929
        %1233 = vmatpush1.bf16.msra.mxu0 %v928
        %1234 = vmatprep.subr.bf16.mxu0 %v919
        %1235 = vmatpush1.bf16.msra.mxu0 %v918
        %1236 = vmatprep.subr.bf16.mxu0 0
        %1237 = vmatpush2.bf16.msra.mxu0 0
        %1238 = vmatprep.subr.bf16.mxu0 0
        %1239 = vmatpush2.bf16.msra.mxu0 0
        %1240 = vmatprep.subr.bf16.mxu0 0
        %1241 = vmatpush2.bf16.msra.mxu0 0
        %1242 = vmatprep.subr.bf16.mxu0 0
        %1243 = vmatpush2.bf16.msra.mxu0 0
        %1244 = vmatprep.subr.bf16.mxu0 0
        %1245 = vmatpush2.bf16.msra.mxu0 0
        %1246 = vmatprep.subr.bf16.mxu0 0
        %1247 = vmatpush2.bf16.msra.mxu0 0
        %1248 = vmatprep.subr.bf16.mxu0 0
        %1249 = vmatpush2.bf16.msra.mxu0 0
        %1250 = vmatprep.subr.bf16.mxu0 0
        %1251 = vmatpush2.bf16.msra.mxu0 0
        %1252 = vmatprep.mubr.bf16.mxu0 0
        %1253 = vmatmul.mubr.bf16.gmra.mxu0 %v536
        %v1254 = vpop.f32.mrf.mxu0
        %v1255 = vadd.f32 %v643, %v1254
        %v1256 = vpop.f32.mrf.mxu0
        %v1257 = vadd.f32 %v647, %v1256
        %v1258 = vpop.f32.mrf.mxu0
        %v1259 = vadd.f32 %v643, %v1258
        %v1260 = vpop.f32.mrf.mxu0
        %v1261 = vadd.f32 %v647, %v1260
        %1262 = vmatprep.mubr.bf16.mxu0 0
        %1263 = vmatmul.mubr.bf16.gmra.mxu0 %v537
        %v1264 = vpop.f32.mrf.mxu0
        %v1265 = vadd.f32 %v643, %v1264
        %v1266 = vpop.f32.mrf.mxu0
        %v1267 = vadd.f32 %v647, %v1266
        %v1268 = vpop.f32.mrf.mxu0
        %v1269 = vadd.f32 %v643, %v1268
        %v1270 = vpop.f32.mrf.mxu0
        %v1271 = vadd.f32 %v647, %v1270
        %1272 = vmatprep.mubr.bf16.mxu0 0
        %1273 = vmatmul.mubr.bf16.gmra.mxu0 %v538
        %v1274 = vpop.f32.mrf.mxu0
        %v1275 = vadd.f32 %v643, %v1274
        %v1276 = vpop.f32.mrf.mxu0
        %v1277 = vadd.f32 %v647, %v1276
        %v1278 = vpop.f32.mrf.mxu0
        %v1279 = vadd.f32 %v643, %v1278
        %v1280 = vpop.f32.mrf.mxu0
        %v1281 = vadd.f32 %v647, %v1280
        %1282 = vmatprep.mubr.bf16.mxu0 0
        %1283 = vmatmul.mubr.bf16.gmra.mxu0 %v539
        %v1284 = vpop.f32.mrf.mxu0
        %v1285 = vadd.f32 %v643, %v1284
        %v1286 = vpop.f32.mrf.mxu0
        %v1287 = vadd.f32 %v647, %v1286
        %v1288 = vpop.f32.mrf.mxu0
        %v1289 = vadd.f32 %v643, %v1288
        %v1290 = vpop.f32.mrf.mxu0
        %v1291 = vadd.f32 %v647, %v1290
        %1292 = vdwg.mxu0
        %1293 = vmatprep.subr.bf16.mxu0 %v991
        %1294 = vmatpush1.bf16.msra.mxu0 %v990
        %1295 = vmatprep.subr.bf16.mxu0 %v981
        %1296 = vmatpush1.bf16.msra.mxu0 %v980
        %1297 = vmatprep.subr.bf16.mxu0 %v971
        %1298 = vmatpush1.bf16.msra.mxu0 %v970
        %1299 = vmatprep.subr.bf16.mxu0 %v961
        %1300 = vmatpush1.bf16.msra.mxu0 %v960
        %1301 = vmatprep.subr.bf16.mxu0 %v951
        %1302 = vmatpush1.bf16.msra.mxu0 %v950
        %1303 = vmatprep.subr.bf16.mxu0 %v941
        %1304 = vmatpush1.bf16.msra.mxu0 %v940
        %1305 = vmatprep.subr.bf16.mxu0 %v931
        %1306 = vmatpush1.bf16.msra.mxu0 %v930
        %1307 = vmatprep.subr.bf16.mxu0 %v921
        %1308 = vmatpush1.bf16.msra.mxu0 %v920
        %1309 = vmatprep.subr.bf16.mxu0 0
        %1310 = vmatpush2.bf16.msra.mxu0 0
        %1311 = vmatprep.subr.bf16.mxu0 0
        %1312 = vmatpush2.bf16.msra.mxu0 0
        %1313 = vmatprep.subr.bf16.mxu0 0
        %1314 = vmatpush2.bf16.msra.mxu0 0
        %1315 = vmatprep.subr.bf16.mxu0 0
        %1316 = vmatpush2.bf16.msra.mxu0 0
        %1317 = vmatprep.subr.bf16.mxu0 0
        %1318 = vmatpush2.bf16.msra.mxu0 0
        %1319 = vmatprep.subr.bf16.mxu0 0
        %1320 = vmatpush2.bf16.msra.mxu0 0
        %1321 = vmatprep.subr.bf16.mxu0 0
        %1322 = vmatpush2.bf16.msra.mxu0 0
        %1323 = vmatprep.subr.bf16.mxu0 0
        %1324 = vmatpush2.bf16.msra.mxu0 0
        %1325 = vmatprep.mubr.bf16.mxu0 0
        %1326 = vmatmul.mubr.bf16.gmra.mxu0 %v536
        %v1327 = vpop.f32.mrf.mxu0
        %v1328 = vadd.f32 %v651, %v1327
        %v1329 = vpop.f32.mrf.mxu0
        %v1330 = vadd.f32 %v655, %v1329
        %v1331 = vpop.f32.mrf.mxu0
        %v1332 = vadd.f32 %v651, %v1331
        %v1333 = vpop.f32.mrf.mxu0
        %v1334 = vadd.f32 %v655, %v1333
        %1335 = vmatprep.mubr.bf16.mxu0 0
        %1336 = vmatmul.mubr.bf16.gmra.mxu0 %v537
        %v1337 = vpop.f32.mrf.mxu0
        %v1338 = vadd.f32 %v651, %v1337
        %v1339 = vpop.f32.mrf.mxu0
        %v1340 = vadd.f32 %v655, %v1339
        %v1341 = vpop.f32.mrf.mxu0
        %v1342 = vadd.f32 %v651, %v1341
        %v1343 = vpop.f32.mrf.mxu0
        %v1344 = vadd.f32 %v655, %v1343
        %1345 = vmatprep.mubr.bf16.mxu0 0
        %1346 = vmatmul.mubr.bf16.gmra.mxu0 %v538
        %v1347 = vpop.f32.mrf.mxu0
        %v1348 = vadd.f32 %v651, %v1347
        %v1349 = vpop.f32.mrf.mxu0
        %v1350 = vadd.f32 %v655, %v1349
        %v1351 = vpop.f32.mrf.mxu0
        %v1352 = vadd.f32 %v651, %v1351
        %v1353 = vpop.f32.mrf.mxu0
        %v1354 = vadd.f32 %v655, %v1353
        %1355 = vmatprep.mubr.bf16.mxu0 0
        %1356 = vmatmul.mubr.bf16.gmra.mxu0 %v539
        %v1357 = vpop.f32.mrf.mxu0
        %v1358 = vadd.f32 %v651, %v1357
        %v1359 = vpop.f32.mrf.mxu0
        %v1360 = vadd.f32 %v655, %v1359
        %v1361 = vpop.f32.mrf.mxu0
        %v1362 = vadd.f32 %v651, %v1361
        %v1363 = vpop.f32.mrf.mxu0
        %v1364 = vadd.f32 %v655, %v1363
        %1365 = vdwg.mxu0
        %1366 = vmatprep.subr.bf16.mxu0 %v993
        %1367 = vmatpush1.bf16.msra.mxu0 %v992
        %1368 = vmatprep.subr.bf16.mxu0 %v983
        %1369 = vmatpush1.bf16.msra.mxu0 %v982
        %1370 = vmatprep.subr.bf16.mxu0 %v973
        %1371 = vmatpush1.bf16.msra.mxu0 %v972
        %1372 = vmatprep.subr.bf16.mxu0 %v963
        %1373 = vmatpush1.bf16.msra.mxu0 %v962
        %1374 = vmatprep.subr.bf16.mxu0 %v953
        %1375 = vmatpush1.bf16.msra.mxu0 %v952
        %1376 = vmatprep.subr.bf16.mxu0 %v943
        %1377 = vmatpush1.bf16.msra.mxu0 %v942
        %1378 = vmatprep.subr.bf16.mxu0 %v933
        %1379 = vmatpush1.bf16.msra.mxu0 %v932
        %1380 = vmatprep.subr.bf16.mxu0 %v923
        %1381 = vmatpush1.bf16.msra.mxu0 %v922
        %1382 = vmatprep.subr.bf16.mxu0 0
        %1383 = vmatpush2.bf16.msra.mxu0 0
        %1384 = vmatprep.subr.bf16.mxu0 0
        %1385 = vmatpush2.bf16.msra.mxu0 0
        %1386 = vmatprep.subr.bf16.mxu0 0
        %1387 = vmatpush2.bf16.msra.mxu0 0
        %1388 = vmatprep.subr.bf16.mxu0 0
        %1389 = vmatpush2.bf16.msra.mxu0 0
        %1390 = vmatprep.subr.bf16.mxu0 0
        %1391 = vmatpush2.bf16.msra.mxu0 0
        %1392 = vmatprep.subr.bf16.mxu0 0
        %1393 = vmatpush2.bf16.msra.mxu0 0
        %1394 = vmatprep.subr.bf16.mxu0 0
        %1395 = vmatpush2.bf16.msra.mxu0 0
        %1396 = vmatprep.subr.bf16.mxu0 0
        %1397 = vmatpush2.bf16.msra.mxu0 0
        %1398 = vmatprep.mubr.bf16.mxu0 0
        %1399 = vmatmul.mubr.bf16.gmra.mxu0 %v536
        %v1400 = vpop.f32.mrf.mxu0
        %v1401 = vadd.f32 %v659, %v1400
        %v1402 = vpop.f32.mrf.mxu0
        %v1403 = vadd.f32 %v663, %v1402
        %v1404 = vpop.f32.mrf.mxu0
        %v1405 = vadd.f32 %v659, %v1404
        %v1406 = vpop.f32.mrf.mxu0
        %v1407 = vadd.f32 %v663, %v1406
        %1408 = vmatprep.mubr.bf16.mxu0 0
        %1409 = vmatmul.mubr.bf16.gmra.mxu0 %v537
        %v1410 = vpop.f32.mrf.mxu0
        %v1411 = vadd.f32 %v659, %v1410
        %v1412 = vpop.f32.mrf.mxu0
        %v1413 = vadd.f32 %v663, %v1412
        %v1414 = vpop.f32.mrf.mxu0
        %v1415 = vadd.f32 %v659, %v1414
        %v1416 = vpop.f32.mrf.mxu0
        %v1417 = vadd.f32 %v663, %v1416
        %1418 = vmatprep.mubr.bf16.mxu0 0
        %1419 = vmatmul.mubr.bf16.gmra.mxu0 %v538
        %v1420 = vpop.f32.mrf.mxu0
        %v1421 = vadd.f32 %v659, %v1420
        %v1422 = vpop.f32.mrf.mxu0
        %v1423 = vadd.f32 %v663, %v1422
        %v1424 = vpop.f32.mrf.mxu0
        %v1425 = vadd.f32 %v659, %v1424
        %v1426 = vpop.f32.mrf.mxu0
        %v1427 = vadd.f32 %v663, %v1426
        %1428 = vmatprep.mubr.bf16.mxu0 0
        %1429 = vmatmul.mubr.bf16.gmra.mxu0 %v539
        %v1430 = vpop.f32.mrf.mxu0
        %v1431 = vadd.f32 %v659, %v1430
        %v1432 = vpop.f32.mrf.mxu0
        %v1433 = vadd.f32 %v663, %v1432
        %v1434 = vpop.f32.mrf.mxu0
        %v1435 = vadd.f32 %v659, %v1434
        %v1436 = vpop.f32.mrf.mxu0
        %v1437 = vadd.f32 %v663, %v1436
        %1438 = vdwg.mxu0
        %v1439 = vxor.u32 %v1109, 2147483648
        %v1440 = vxor.u32 %v1111, 2147483648
        %v1441 = vxor.u32 %v1182, 2147483648
        %v1442 = vxor.u32 %v1184, 2147483648
        %v1443 = vxor.u32 %v1255, 2147483648
        %v1444 = vxor.u32 %v1257, 2147483648
        %v1445 = vxor.u32 %v1328, 2147483648
        %v1446 = vxor.u32 %v1330, 2147483648
        %v1447 = vxor.u32 %v1401, 2147483648
        %v1448 = vxor.u32 %v1403, 2147483648
        %v1449 = vxor.u32 %v1113, 2147483648
        %v1450 = vxor.u32 %v1115, 2147483648
        %v1451 = vxor.u32 %v1186, 2147483648
        %v1452 = vxor.u32 %v1188, 2147483648
        %v1453 = vxor.u32 %v1259, 2147483648
        %v1454 = vxor.u32 %v1261, 2147483648
        %v1455 = vxor.u32 %v1332, 2147483648
        %v1456 = vxor.u32 %v1334, 2147483648
        %v1457 = vxor.u32 %v1405, 2147483648
        %v1458 = vxor.u32 %v1407, 2147483648
        %v1459 = vxor.u32 %v1119, 2147483648
        %v1460 = vxor.u32 %v1121, 2147483648
        %v1461 = vxor.u32 %v1192, 2147483648
        %v1462 = vxor.u32 %v1194, 2147483648
        %v1463 = vxor.u32 %v1265, 2147483648
        %v1464 = vxor.u32 %v1267, 2147483648
        %v1465 = vxor.u32 %v1338, 2147483648
        %v1466 = vxor.u32 %v1340, 2147483648
        %v1467 = vxor.u32 %v1411, 2147483648
        %v1468 = vxor.u32 %v1413, 2147483648
        %v1469 = vxor.u32 %v1123, 2147483648
        %v1470 = vxor.u32 %v1125, 2147483648
        %v1471 = vxor.u32 %v1196, 2147483648
        %v1472 = vxor.u32 %v1198, 2147483648
        %v1473 = vxor.u32 %v1269, 2147483648
        %v1474 = vxor.u32 %v1271, 2147483648
        %v1475 = vxor.u32 %v1342, 2147483648
        %v1476 = vxor.u32 %v1344, 2147483648
        %v1477 = vxor.u32 %v1415, 2147483648
        %v1478 = vxor.u32 %v1417, 2147483648
        %v1479 = vxor.u32 %v1129, 2147483648
        %v1480 = vxor.u32 %v1131, 2147483648
        %v1481 = vxor.u32 %v1202, 2147483648
        %v1482 = vxor.u32 %v1204, 2147483648
        %v1483 = vxor.u32 %v1275, 2147483648
        %v1484 = vxor.u32 %v1277, 2147483648
        %v1485 = vxor.u32 %v1348, 2147483648
        %v1486 = vxor.u32 %v1350, 2147483648
        %v1487 = vxor.u32 %v1421, 2147483648
        %v1488 = vxor.u32 %v1423, 2147483648
        %v1489 = vxor.u32 %v1133, 2147483648
        %v1490 = vxor.u32 %v1135, 2147483648
        %v1491 = vxor.u32 %v1206, 2147483648
        %v1492 = vxor.u32 %v1208, 2147483648
        %v1493 = vxor.u32 %v1279, 2147483648
        %v1494 = vxor.u32 %v1281, 2147483648
        %v1495 = vxor.u32 %v1352, 2147483648
        %v1496 = vxor.u32 %v1354, 2147483648
        %v1497 = vxor.u32 %v1425, 2147483648
        %v1498 = vxor.u32 %v1427, 2147483648
        %v1499 = vxor.u32 %v1139, 2147483648
        %v1500 = vxor.u32 %v1141, 2147483648
        %v1501 = vxor.u32 %v1212, 2147483648
        %v1502 = vxor.u32 %v1214, 2147483648
        %v1503 = vxor.u32 %v1285, 2147483648
        %v1504 = vxor.u32 %v1287, 2147483648
        %v1505 = vxor.u32 %v1358, 2147483648
        %v1506 = vxor.u32 %v1360, 2147483648
        %v1507 = vxor.u32 %v1431, 2147483648
        %v1508 = vxor.u32 %v1433, 2147483648
        %v1509 = vxor.u32 %v1143, 2147483648
        %v1510 = vxor.u32 %v1145, 2147483648
        %v1511 = vxor.u32 %v1216, 2147483648
        %v1512 = vxor.u32 %v1218, 2147483648
        %v1513 = vxor.u32 %v1289, 2147483648
        %v1514 = vxor.u32 %v1291, 2147483648
        %v1515 = vxor.u32 %v1362, 2147483648
        %v1516 = vxor.u32 %v1364, 2147483648
        %v1517 = vxor.u32 %v1435, 2147483648
        %v1518 = vxor.u32 %v1437, 2147483648
        %v1519 = vmul.f32 %v1439, 1.442695
        %v1520 = vpow.pop %v1519
        %v1521 = vmul.f32 %v1440, 1.442695
        %v1522 = vpow.pop %v1521
        %v1523 = vmul.f32 %v1441, 1.442695
        %v1524 = vpow.pop %v1523
        %v1525 = vmul.f32 %v1442, 1.442695
        %v1526 = vpow.pop %v1525
        %v1527 = vmul.f32 %v1443, 1.442695
        %v1528 = vpow.pop %v1527
        %v1529 = vmul.f32 %v1444, 1.442695
        %v1530 = vpow.pop %v1529
        %v1531 = vmul.f32 %v1445, 1.442695
        %v1532 = vpow.pop %v1531
        %v1533 = vmul.f32 %v1446, 1.442695
        %v1534 = vpow.pop %v1533
        %v1535 = vmul.f32 %v1447, 1.442695
        %v1536 = vpow.pop %v1535
        %v1537 = vmul.f32 %v1448, 1.442695
        %v1538 = vpow.pop %v1537
        %v1539 = vmul.f32 %v1449, 1.442695
        %v1540 = vpow.pop %v1539
        %v1541 = vmul.f32 %v1450, 1.442695
        %v1542 = vpow.pop %v1541
        %v1543 = vmul.f32 %v1451, 1.442695
        %v1544 = vpow.pop %v1543
        %v1545 = vmul.f32 %v1452, 1.442695
        %v1546 = vpow.pop %v1545
        %v1547 = vmul.f32 %v1453, 1.442695
        %v1548 = vpow.pop %v1547
        %v1549 = vmul.f32 %v1454, 1.442695
        %v1550 = vpow.pop %v1549
        %v1551 = vmul.f32 %v1455, 1.442695
        %v1552 = vpow.pop %v1551
        %v1553 = vmul.f32 %v1456, 1.442695
        %v1554 = vpow.pop %v1553
        %v1555 = vmul.f32 %v1457, 1.442695
        %v1556 = vpow.pop %v1555
        %v1557 = vmul.f32 %v1458, 1.442695
        %v1558 = vpow.pop %v1557
        %v1559 = vmul.f32 %v1459, 1.442695
        %v1560 = vpow.pop %v1559
        %v1561 = vmul.f32 %v1460, 1.442695
        %v1562 = vpow.pop %v1561
        %v1563 = vmul.f32 %v1461, 1.442695
        %v1564 = vpow.pop %v1563
        %v1565 = vmul.f32 %v1462, 1.442695
        %v1566 = vpow.pop %v1565
        %v1567 = vmul.f32 %v1463, 1.442695
        %v1568 = vpow.pop %v1567
        %v1569 = vmul.f32 %v1464, 1.442695
        %v1570 = vpow.pop %v1569
        %v1571 = vmul.f32 %v1465, 1.442695
        %v1572 = vpow.pop %v1571
        %v1573 = vmul.f32 %v1466, 1.442695
        %v1574 = vpow.pop %v1573
        %v1575 = vmul.f32 %v1467, 1.442695
        %v1576 = vpow.pop %v1575
        %v1577 = vmul.f32 %v1468, 1.442695
        %v1578 = vpow.pop %v1577
        %v1579 = vmul.f32 %v1469, 1.442695
        %v1580 = vpow.pop %v1579
        %v1581 = vmul.f32 %v1470, 1.442695
        %v1582 = vpow.pop %v1581
        %v1583 = vmul.f32 %v1471, 1.442695
        %v1584 = vpow.pop %v1583
        %v1585 = vmul.f32 %v1472, 1.442695
        %v1586 = vpow.pop %v1585
        %v1587 = vmul.f32 %v1473, 1.442695
        %v1588 = vpow.pop %v1587
        %v1589 = vmul.f32 %v1474, 1.442695
        %v1590 = vpow.pop %v1589
        %v1591 = vmul.f32 %v1475, 1.442695
        %v1592 = vpow.pop %v1591
        %v1593 = vmul.f32 %v1476, 1.442695
        %v1594 = vpow.pop %v1593
        %v1595 = vmul.f32 %v1477, 1.442695
        %v1596 = vpow.pop %v1595
        %v1597 = vmul.f32 %v1478, 1.442695
        %v1598 = vpow.pop %v1597
        %v1599 = vmul.f32 %v1479, 1.442695
        %v1600 = vpow.pop %v1599
        %v1601 = vmul.f32 %v1480, 1.442695
        %v1602 = vpow.pop %v1601
        %v1603 = vmul.f32 %v1481, 1.442695
        %v1604 = vpow.pop %v1603
        %v1605 = vmul.f32 %v1482, 1.442695
        %v1606 = vpow.pop %v1605
        %v1607 = vmul.f32 %v1483, 1.442695
        %v1608 = vpow.pop %v1607
        %v1609 = vmul.f32 %v1484, 1.442695
        %v1610 = vpow.pop %v1609
        %v1611 = vmul.f32 %v1485, 1.442695
        %v1612 = vpow.pop %v1611
        %v1613 = vmul.f32 %v1486, 1.442695
        %v1614 = vpow.pop %v1613
        %v1615 = vmul.f32 %v1487, 1.442695
        %v1616 = vpow.pop %v1615
        %v1617 = vmul.f32 %v1488, 1.442695
        %v1618 = vpow.pop %v1617
        %v1619 = vmul.f32 %v1489, 1.442695
        %v1620 = vpow.pop %v1619
        %v1621 = vmul.f32 %v1490, 1.442695
        %v1622 = vpow.pop %v1621
        %v1623 = vmul.f32 %v1491, 1.442695
        %v1624 = vpow.pop %v1623
        %v1625 = vmul.f32 %v1492, 1.442695
        %v1626 = vpow.pop %v1625
        %v1627 = vmul.f32 %v1493, 1.442695
        %v1628 = vpow.pop %v1627
        %v1629 = vmul.f32 %v1494, 1.442695
        %v1630 = vpow.pop %v1629
        %v1631 = vmul.f32 %v1495, 1.442695
        %v1632 = vpow.pop %v1631
        %v1633 = vmul.f32 %v1496, 1.442695
        %v1634 = vpow.pop %v1633
        %v1635 = vmul.f32 %v1497, 1.442695
        %v1636 = vpow.pop %v1635
        %v1637 = vmul.f32 %v1498, 1.442695
        %v1638 = vpow.pop %v1637
        %v1639 = vmul.f32 %v1499, 1.442695
        %v1640 = vpow.pop %v1639
        %v1641 = vmul.f32 %v1500, 1.442695
        %v1642 = vpow.pop %v1641
        %v1643 = vmul.f32 %v1501, 1.442695
        %v1644 = vpow.pop %v1643
        %v1645 = vmul.f32 %v1502, 1.442695
        %v1646 = vpow.pop %v1645
        %v1647 = vmul.f32 %v1503, 1.442695
        %v1648 = vpow.pop %v1647
        %v1649 = vmul.f32 %v1504, 1.442695
        %v1650 = vpow.pop %v1649
        %v1651 = vmul.f32 %v1505, 1.442695
        %v1652 = vpow.pop %v1651
        %v1653 = vmul.f32 %v1506, 1.442695
        %v1654 = vpow.pop %v1653
        %v1655 = vmul.f32 %v1507, 1.442695
        %v1656 = vpow.pop %v1655
        %v1657 = vmul.f32 %v1508, 1.442695
        %v1658 = vpow.pop %v1657
        %v1659 = vmul.f32 %v1509, 1.442695
        %v1660 = vpow.pop %v1659
        %v1661 = vmul.f32 %v1510, 1.442695
        %v1662 = vpow.pop %v1661
        %v1663 = vmul.f32 %v1511, 1.442695
        %v1664 = vpow.pop %v1663
        %v1665 = vmul.f32 %v1512, 1.442695
        %v1666 = vpow.pop %v1665
        %v1667 = vmul.f32 %v1513, 1.442695
        %v1668 = vpow.pop %v1667
        %v1669 = vmul.f32 %v1514, 1.442695
        %v1670 = vpow.pop %v1669
        %v1671 = vmul.f32 %v1515, 1.442695
        %v1672 = vpow.pop %v1671
        %v1673 = vmul.f32 %v1516, 1.442695
        %v1674 = vpow.pop %v1673
        %v1675 = vmul.f32 %v1517, 1.442695
        %v1676 = vpow.pop %v1675
        %v1677 = vmul.f32 %v1518, 1.442695
        %v1678 = vpow.pop %v1677
        %v1679 = vadd.f32 %v1520, 1.0
        %v1680 = vadd.f32 %v1522, 1.0
        %v1681 = vadd.f32 %v1524, 1.0
        %v1682 = vadd.f32 %v1526, 1.0
        %v1683 = vadd.f32 %v1528, 1.0
        %v1684 = vadd.f32 %v1530, 1.0
        %v1685 = vadd.f32 %v1532, 1.0
        %v1686 = vadd.f32 %v1534, 1.0
        %v1687 = vadd.f32 %v1536, 1.0
        %v1688 = vadd.f32 %v1538, 1.0
        %v1689 = vadd.f32 %v1540, 1.0
        %v1690 = vadd.f32 %v1542, 1.0
        %v1691 = vadd.f32 %v1544, 1.0
        %v1692 = vadd.f32 %v1546, 1.0
        %v1693 = vadd.f32 %v1548, 1.0
        %v1694 = vadd.f32 %v1550, 1.0
        %v1695 = vadd.f32 %v1552, 1.0
        %v1696 = vadd.f32 %v1554, 1.0
        %v1697 = vadd.f32 %v1556, 1.0
        %v1698 = vadd.f32 %v1558, 1.0
        %v1699 = vadd.f32 %v1560, 1.0
        %v1700 = vadd.f32 %v1562, 1.0
        %v1701 = vadd.f32 %v1564, 1.0
        %v1702 = vadd.f32 %v1566, 1.0
        %v1703 = vadd.f32 %v1568, 1.0
        %v1704 = vadd.f32 %v1570, 1.0
        %v1705 = vadd.f32 %v1572, 1.0
        %v1706 = vadd.f32 %v1574, 1.0
        %v1707 = vadd.f32 %v1576, 1.0
        %v1708 = vadd.f32 %v1578, 1.0
        %v1709 = vadd.f32 %v1580, 1.0
        %v1710 = vadd.f32 %v1582, 1.0
        %v1711 = vadd.f32 %v1584, 1.0
        %v1712 = vadd.f32 %v1586, 1.0
        %v1713 = vadd.f32 %v1588, 1.0
        %v1714 = vadd.f32 %v1590, 1.0
        %v1715 = vadd.f32 %v1592, 1.0
        %v1716 = vadd.f32 %v1594, 1.0
        %v1717 = vadd.f32 %v1596, 1.0
        %v1718 = vadd.f32 %v1598, 1.0
        %v1719 = vadd.f32 %v1600, 1.0
        %v1720 = vadd.f32 %v1602, 1.0
        %v1721 = vadd.f32 %v1604, 1.0
        %v1722 = vadd.f32 %v1606, 1.0
        %v1723 = vadd.f32 %v1608, 1.0
        %v1724 = vadd.f32 %v1610, 1.0
        %v1725 = vadd.f32 %v1612, 1.0
        %v1726 = vadd.f32 %v1614, 1.0
        %v1727 = vadd.f32 %v1616, 1.0
        %v1728 = vadd.f32 %v1618, 1.0
        %v1729 = vadd.f32 %v1620, 1.0
        %v1730 = vadd.f32 %v1622, 1.0
        %v1731 = vadd.f32 %v1624, 1.0
        %v1732 = vadd.f32 %v1626, 1.0
        %v1733 = vadd.f32 %v1628, 1.0
        %v1734 = vadd.f32 %v1630, 1.0
        %v1735 = vadd.f32 %v1632, 1.0
        %v1736 = vadd.f32 %v1634, 1.0
        %v1737 = vadd.f32 %v1636, 1.0
        %v1738 = vadd.f32 %v1638, 1.0
        %v1739 = vadd.f32 %v1640, 1.0
        %v1740 = vadd.f32 %v1642, 1.0
        %v1741 = vadd.f32 %v1644, 1.0
        %v1742 = vadd.f32 %v1646, 1.0
        %v1743 = vadd.f32 %v1648, 1.0
        %v1744 = vadd.f32 %v1650, 1.0
        %v1745 = vadd.f32 %v1652, 1.0
        %v1746 = vadd.f32 %v1654, 1.0
        %v1747 = vadd.f32 %v1656, 1.0
        %v1748 = vadd.f32 %v1658, 1.0
        %v1749 = vadd.f32 %v1660, 1.0
        %v1750 = vadd.f32 %v1662, 1.0
        %v1751 = vadd.f32 %v1664, 1.0
        %v1752 = vadd.f32 %v1666, 1.0
        %v1753 = vadd.f32 %v1668, 1.0
        %v1754 = vadd.f32 %v1670, 1.0
        %v1755 = vadd.f32 %v1672, 1.0
        %v1756 = vadd.f32 %v1674, 1.0
        %v1757 = vadd.f32 %v1676, 1.0
        %v1758 = vadd.f32 %v1678, 1.0
        %v1759 = vrcp.pop %v1679
        %v1760 = vmul.f32 1.0, %v1759
        %v1761 = vrcp.pop %v1680
        %v1762 = vmul.f32 1.0, %v1761
        %v1763 = vrcp.pop %v1681
        %v1764 = vmul.f32 1.0, %v1763
        %v1765 = vrcp.pop %v1682
        %v1766 = vmul.f32 1.0, %v1765
        %v1767 = vrcp.pop %v1683
        %v1768 = vmul.f32 1.0, %v1767
        %v1769 = vrcp.pop %v1684
        %v1770 = vmul.f32 1.0, %v1769
        %v1771 = vrcp.pop %v1685
        %v1772 = vmul.f32 1.0, %v1771
        %v1773 = vrcp.pop %v1686
        %v1774 = vmul.f32 1.0, %v1773
        %v1775 = vrcp.pop %v1687
        %v1776 = vmul.f32 1.0, %v1775
        %v1777 = vrcp.pop %v1688
        %v1778 = vmul.f32 1.0, %v1777
        %v1779 = vrcp.pop %v1689
        %v1780 = vmul.f32 1.0, %v1779
        %v1781 = vrcp.pop %v1690
        %v1782 = vmul.f32 1.0, %v1781
        %v1783 = vrcp.pop %v1691
        %v1784 = vmul.f32 1.0, %v1783
        %v1785 = vrcp.pop %v1692
        %v1786 = vmul.f32 1.0, %v1785
        %v1787 = vrcp.pop %v1693
        %v1788 = vmul.f32 1.0, %v1787
        %v1789 = vrcp.pop %v1694
        %v1790 = vmul.f32 1.0, %v1789
        %v1791 = vrcp.pop %v1695
        %v1792 = vmul.f32 1.0, %v1791
        %v1793 = vrcp.pop %v1696
        %v1794 = vmul.f32 1.0, %v1793
        %v1795 = vrcp.pop %v1697
        %v1796 = vmul.f32 1.0, %v1795
        %v1797 = vrcp.pop %v1698
        %v1798 = vmul.f32 1.0, %v1797
        %v1799 = vrcp.pop %v1699
        %v1800 = vmul.f32 1.0, %v1799
        %v1801 = vrcp.pop %v1700
        %v1802 = vmul.f32 1.0, %v1801
        %v1803 = vrcp.pop %v1701
        %v1804 = vmul.f32 1.0, %v1803
        %v1805 = vrcp.pop %v1702
        %v1806 = vmul.f32 1.0, %v1805
        %v1807 = vrcp.pop %v1703
        %v1808 = vmul.f32 1.0, %v1807
        %v1809 = vrcp.pop %v1704
        %v1810 = vmul.f32 1.0, %v1809
        %v1811 = vrcp.pop %v1705
        %v1812 = vmul.f32 1.0, %v1811
        %v1813 = vrcp.pop %v1706
        %v1814 = vmul.f32 1.0, %v1813
        %v1815 = vrcp.pop %v1707
        %v1816 = vmul.f32 1.0, %v1815
        %v1817 = vrcp.pop %v1708
        %v1818 = vmul.f32 1.0, %v1817
        %v1819 = vrcp.pop %v1709
        %v1820 = vmul.f32 1.0, %v1819
        %v1821 = vrcp.pop %v1710
        %v1822 = vmul.f32 1.0, %v1821
        %v1823 = vrcp.pop %v1711
        %v1824 = vmul.f32 1.0, %v1823
        %v1825 = vrcp.pop %v1712
        %v1826 = vmul.f32 1.0, %v1825
        %v1827 = vrcp.pop %v1713
        %v1828 = vmul.f32 1.0, %v1827
        %v1829 = vrcp.pop %v1714
        %v1830 = vmul.f32 1.0, %v1829
        %v1831 = vrcp.pop %v1715
        %v1832 = vmul.f32 1.0, %v1831
        %v1833 = vrcp.pop %v1716
        %v1834 = vmul.f32 1.0, %v1833
        %v1835 = vrcp.pop %v1717
        %v1836 = vmul.f32 1.0, %v1835
        %v1837 = vrcp.pop %v1718
        %v1838 = vmul.f32 1.0, %v1837
        %v1839 = vrcp.pop %v1719
        %v1840 = vmul.f32 1.0, %v1839
        %v1841 = vrcp.pop %v1720
        %v1842 = vmul.f32 1.0, %v1841
        %v1843 = vrcp.pop %v1721
        %v1844 = vmul.f32 1.0, %v1843
        %v1845 = vrcp.pop %v1722
        %v1846 = vmul.f32 1.0, %v1845
        %v1847 = vrcp.pop %v1723
        %v1848 = vmul.f32 1.0, %v1847
        %v1849 = vrcp.pop %v1724
        %v1850 = vmul.f32 1.0, %v1849
        %v1851 = vrcp.pop %v1725
        %v1852 = vmul.f32 1.0, %v1851
        %v1853 = vrcp.pop %v1726
        %v1854 = vmul.f32 1.0, %v1853
        %v1855 = vrcp.pop %v1727
        %v1856 = vmul.f32 1.0, %v1855
        %v1857 = vrcp.pop %v1728
        %v1858 = vmul.f32 1.0, %v1857
        %v1859 = vrcp.pop %v1729
        %v1860 = vmul.f32 1.0, %v1859
        %v1861 = vrcp.pop %v1730
        %v1862 = vmul.f32 1.0, %v1861
        %v1863 = vrcp.pop %v1731
        %v1864 = vmul.f32 1.0, %v1863
        %v1865 = vrcp.pop %v1732
        %v1866 = vmul.f32 1.0, %v1865
        %v1867 = vrcp.pop %v1733
        %v1868 = vmul.f32 1.0, %v1867
        %v1869 = vrcp.pop %v1734
        %v1870 = vmul.f32 1.0, %v1869
        %v1871 = vrcp.pop %v1735
        %v1872 = vmul.f32 1.0, %v1871
        %v1873 = vrcp.pop %v1736
        %v1874 = vmul.f32 1.0, %v1873
        %v1875 = vrcp.pop %v1737
        %v1876 = vmul.f32 1.0, %v1875
        %v1877 = vrcp.pop %v1738
        %v1878 = vmul.f32 1.0, %v1877
        %v1879 = vrcp.pop %v1739
        %v1880 = vmul.f32 1.0, %v1879
        %v1881 = vrcp.pop %v1740
        %v1882 = vmul.f32 1.0, %v1881
        %v1883 = vrcp.pop %v1741
        %v1884 = vmul.f32 1.0, %v1883
        %v1885 = vrcp.pop %v1742
        %v1886 = vmul.f32 1.0, %v1885
        %v1887 = vrcp.pop %v1743
        %v1888 = vmul.f32 1.0, %v1887
        %v1889 = vrcp.pop %v1744
        %v1890 = vmul.f32 1.0, %v1889
        %v1891 = vrcp.pop %v1745
        %v1892 = vmul.f32 1.0, %v1891
        %v1893 = vrcp.pop %v1746
        %v1894 = vmul.f32 1.0, %v1893
        %v1895 = vrcp.pop %v1747
        %v1896 = vmul.f32 1.0, %v1895
        %v1897 = vrcp.pop %v1748
        %v1898 = vmul.f32 1.0, %v1897
        %v1899 = vrcp.pop %v1749
        %v1900 = vmul.f32 1.0, %v1899
        %v1901 = vrcp.pop %v1750
        %v1902 = vmul.f32 1.0, %v1901
        %v1903 = vrcp.pop %v1751
        %v1904 = vmul.f32 1.0, %v1903
        %v1905 = vrcp.pop %v1752
        %v1906 = vmul.f32 1.0, %v1905
        %v1907 = vrcp.pop %v1753
        %v1908 = vmul.f32 1.0, %v1907
        %v1909 = vrcp.pop %v1754
        %v1910 = vmul.f32 1.0, %v1909
        %v1911 = vrcp.pop %v1755
        %v1912 = vmul.f32 1.0, %v1911
        %v1913 = vrcp.pop %v1756
        %v1914 = vmul.f32 1.0, %v1913
        %v1915 = vrcp.pop %v1757
        %v1916 = vmul.f32 1.0, %v1915
        %v1917 = vrcp.pop %v1758
        %v1918 = vmul.f32 1.0, %v1917
        %v1919 = vmul.f32 %v1109, %v1760
        %v1920 = vmul.f32 %v1111, %v1762
        %v1921 = vmul.f32 %v1182, %v1764
        %v1922 = vmul.f32 %v1184, %v1766
        %v1923 = vmul.f32 %v1255, %v1768
        %v1924 = vmul.f32 %v1257, %v1770
        %v1925 = vmul.f32 %v1328, %v1772
        %v1926 = vmul.f32 %v1330, %v1774
        %v1927 = vmul.f32 %v1401, %v1776
        %v1928 = vmul.f32 %v1403, %v1778
        %v1929 = vmul.f32 %v1113, %v1780
        %v1930 = vmul.f32 %v1115, %v1782
        %v1931 = vmul.f32 %v1186, %v1784
        %v1932 = vmul.f32 %v1188, %v1786
        %v1933 = vmul.f32 %v1259, %v1788
        %v1934 = vmul.f32 %v1261, %v1790
        %v1935 = vmul.f32 %v1332, %v1792
        %v1936 = vmul.f32 %v1334, %v1794
        %v1937 = vmul.f32 %v1405, %v1796
        %v1938 = vmul.f32 %v1407, %v1798
        %v1939 = vmul.f32 %v1119, %v1800
        %v1940 = vmul.f32 %v1121, %v1802
        %v1941 = vmul.f32 %v1192, %v1804
        %v1942 = vmul.f32 %v1194, %v1806
        %v1943 = vmul.f32 %v1265, %v1808
        %v1944 = vmul.f32 %v1267, %v1810
        %v1945 = vmul.f32 %v1338, %v1812
        %v1946 = vmul.f32 %v1340, %v1814
        %v1947 = vmul.f32 %v1411, %v1816
        %v1948 = vmul.f32 %v1413, %v1818
        %v1949 = vmul.f32 %v1123, %v1820
        %v1950 = vmul.f32 %v1125, %v1822
        %v1951 = vmul.f32 %v1196, %v1824
        %v1952 = vmul.f32 %v1198, %v1826
        %v1953 = vmul.f32 %v1269, %v1828
        %v1954 = vmul.f32 %v1271, %v1830
        %v1955 = vmul.f32 %v1342, %v1832
        %v1956 = vmul.f32 %v1344, %v1834
        %v1957 = vmul.f32 %v1415, %v1836
        %v1958 = vmul.f32 %v1417, %v1838
        %v1959 = vmul.f32 %v1129, %v1840
        %v1960 = vmul.f32 %v1131, %v1842
        %v1961 = vmul.f32 %v1202, %v1844
        %v1962 = vmul.f32 %v1204, %v1846
        %v1963 = vmul.f32 %v1275, %v1848
        %v1964 = vmul.f32 %v1277, %v1850
        %v1965 = vmul.f32 %v1348, %v1852
        %v1966 = vmul.f32 %v1350, %v1854
        %v1967 = vmul.f32 %v1421, %v1856
        %v1968 = vmul.f32 %v1423, %v1858
        %v1969 = vmul.f32 %v1133, %v1860
        %v1970 = vmul.f32 %v1135, %v1862
        %v1971 = vmul.f32 %v1206, %v1864
        %v1972 = vmul.f32 %v1208, %v1866
        %v1973 = vmul.f32 %v1279, %v1868
        %v1974 = vmul.f32 %v1281, %v1870
        %v1975 = vmul.f32 %v1352, %v1872
        %v1976 = vmul.f32 %v1354, %v1874
        %v1977 = vmul.f32 %v1425, %v1876
        %v1978 = vmul.f32 %v1427, %v1878
        %v1979 = vmul.f32 %v1139, %v1880
        %v1980 = vmul.f32 %v1141, %v1882
        %v1981 = vmul.f32 %v1212, %v1884
        %v1982 = vmul.f32 %v1214, %v1886
        %v1983 = vmul.f32 %v1285, %v1888
        %v1984 = vmul.f32 %v1287, %v1890
        %v1985 = vmul.f32 %v1358, %v1892
        %v1986 = vmul.f32 %v1360, %v1894
        %v1987 = vmul.f32 %v1431, %v1896
        %v1988 = vmul.f32 %v1433, %v1898
        %v1989 = vmul.f32 %v1143, %v1900
        %v1990 = vmul.f32 %v1145, %v1902
        %v1991 = vmul.f32 %v1216, %v1904
        %v1992 = vmul.f32 %v1218, %v1906
        %v1993 = vmul.f32 %v1289, %v1908
        %v1994 = vmul.f32 %v1291, %v1910
        %v1995 = vmul.f32 %v1362, %v1912
        %v1996 = vmul.f32 %v1364, %v1914
        %v1997 = vmul.f32 %v1435, %v1916
        %v1998 = vmul.f32 %v1437, %v1918
        %v1999 = vadd.f32 %v1919, %v1929
        %v2000 = vadd.f32 %v1999, %v1939
        %v2001 = vadd.f32 %v2000, %v1949
        %v2002 = vadd.f32 %v2001, %v1959
        %v2003 = vadd.f32 %v2002, %v1969
        %v2004 = vadd.f32 %v2003, %v1979
        %v2005 = vadd.f32 %v2004, %v1989
        %v2006 = vrot.slane %v2005, 4
        %v2007 = vadd.f32 %v2005, %v2006
        %v2008 = vrot.slane %v2007, 2
        %v2009 = vadd.f32 %v2007, %v2008
        %v2010 = vrot.slane %v2009, 1
        %v2011 = vadd.f32 %v2009, %v2010
        %v2012 = vadd.f32 %v1920, %v1930
        %v2013 = vadd.f32 %v2012, %v1940
        %v2014 = vadd.f32 %v2013, %v1950
        %v2015 = vadd.f32 %v2014, %v1960
        %v2016 = vadd.f32 %v2015, %v1970
        %v2017 = vadd.f32 %v2016, %v1980
        %v2018 = vadd.f32 %v2017, %v1990
        %v2019 = vrot.slane %v2018, 4
        %v2020 = vadd.f32 %v2018, %v2019
        %v2021 = vrot.slane %v2020, 2
        %v2022 = vadd.f32 %v2020, %v2021
        %v2023 = vrot.slane %v2022, 1
        %v2024 = vadd.f32 %v2022, %v2023
        %v2025 = vadd.f32 %v1921, %v1931
        %v2026 = vadd.f32 %v2025, %v1941
        %v2027 = vadd.f32 %v2026, %v1951
        %v2028 = vadd.f32 %v2027, %v1961
        %v2029 = vadd.f32 %v2028, %v1971
        %v2030 = vadd.f32 %v2029, %v1981
        %v2031 = vadd.f32 %v2030, %v1991
        %v2032 = vrot.slane %v2031, 4
        %v2033 = vadd.f32 %v2031, %v2032
        %v2034 = vrot.slane %v2033, 2
        %v2035 = vadd.f32 %v2033, %v2034
        %v2036 = vrot.slane %v2035, 1
        %v2037 = vadd.f32 %v2035, %v2036
        %v2038 = vadd.f32 %v1922, %v1932
        %v2039 = vadd.f32 %v2038, %v1942
        %v2040 = vadd.f32 %v2039, %v1952
        %v2041 = vadd.f32 %v2040, %v1962
        %v2042 = vadd.f32 %v2041, %v1972
        %v2043 = vadd.f32 %v2042, %v1982
        %v2044 = vadd.f32 %v2043, %v1992
        %v2045 = vrot.slane %v2044, 4
        %v2046 = vadd.f32 %v2044, %v2045
        %v2047 = vrot.slane %v2046, 2
        %v2048 = vadd.f32 %v2046, %v2047
        %v2049 = vrot.slane %v2048, 1
        %v2050 = vadd.f32 %v2048, %v2049
        %v2051 = vadd.f32 %v1923, %v1933
        %v2052 = vadd.f32 %v2051, %v1943
        %v2053 = vadd.f32 %v2052, %v1953
        %v2054 = vadd.f32 %v2053, %v1963
        %v2055 = vadd.f32 %v2054, %v1973
        %v2056 = vadd.f32 %v2055, %v1983
        %v2057 = vadd.f32 %v2056, %v1993
        %v2058 = vrot.slane %v2057, 4
        %v2059 = vadd.f32 %v2057, %v2058
        %v2060 = vrot.slane %v2059, 2
        %v2061 = vadd.f32 %v2059, %v2060
        %v2062 = vrot.slane %v2061, 1
        %v2063 = vadd.f32 %v2061, %v2062
        %v2064 = vadd.f32 %v1924, %v1934
        %v2065 = vadd.f32 %v2064, %v1944
        %v2066 = vadd.f32 %v2065, %v1954
        %v2067 = vadd.f32 %v2066, %v1964
        %v2068 = vadd.f32 %v2067, %v1974
        %v2069 = vadd.f32 %v2068, %v1984
        %v2070 = vadd.f32 %v2069, %v1994
        %v2071 = vrot.slane %v2070, 4
        %v2072 = vadd.f32 %v2070, %v2071
        %v2073 = vrot.slane %v2072, 2
        %v2074 = vadd.f32 %v2072, %v2073
        %v2075 = vrot.slane %v2074, 1
        %v2076 = vadd.f32 %v2074, %v2075
        %v2077 = vadd.f32 %v1925, %v1935
        %v2078 = vadd.f32 %v2077, %v1945
        %v2079 = vadd.f32 %v2078, %v1955
        %v2080 = vadd.f32 %v2079, %v1965
        %v2081 = vadd.f32 %v2080, %v1975
        %v2082 = vadd.f32 %v2081, %v1985
        %v2083 = vadd.f32 %v2082, %v1995
        %v2084 = vrot.slane %v2083, 4
        %v2085 = vadd.f32 %v2083, %v2084
        %v2086 = vrot.slane %v2085, 2
        %v2087 = vadd.f32 %v2085, %v2086
        %v2088 = vrot.slane %v2087, 1
        %v2089 = vadd.f32 %v2087, %v2088
        %v2090 = vadd.f32 %v1926, %v1936
        %v2091 = vadd.f32 %v2090, %v1946
        %v2092 = vadd.f32 %v2091, %v1956
        %v2093 = vadd.f32 %v2092, %v1966
        %v2094 = vadd.f32 %v2093, %v1976
        %v2095 = vadd.f32 %v2094, %v1986
        %v2096 = vadd.f32 %v2095, %v1996
        %v2097 = vrot.slane %v2096, 4
        %v2098 = vadd.f32 %v2096, %v2097
        %v2099 = vrot.slane %v2098, 2
        %v2100 = vadd.f32 %v2098, %v2099
        %v2101 = vrot.slane %v2100, 1
        %v2102 = vadd.f32 %v2100, %v2101
        %v2103 = vadd.f32 %v1927, %v1937
        %v2104 = vadd.f32 %v2103, %v1947
        %v2105 = vadd.f32 %v2104, %v1957
        %v2106 = vadd.f32 %v2105, %v1967
        %v2107 = vadd.f32 %v2106, %v1977
        %v2108 = vadd.f32 %v2107, %v1987
        %v2109 = vadd.f32 %v2108, %v1997
        %v2110 = vrot.slane %v2109, 4
        %v2111 = vadd.f32 %v2109, %v2110
        %v2112 = vrot.slane %v2111, 2
        %v2113 = vadd.f32 %v2111, %v2112
        %v2114 = vrot.slane %v2113, 1
        %v2115 = vadd.f32 %v2113, %v2114
        %v2116 = vadd.f32 %v1928, %v1938
        %v2117 = vadd.f32 %v2116, %v1948
        %v2118 = vadd.f32 %v2117, %v1958
        %v2119 = vadd.f32 %v2118, %v1968
        %v2120 = vadd.f32 %v2119, %v1978
        %v2121 = vadd.f32 %v2120, %v1988
        %v2122 = vadd.f32 %v2121, %v1998
        %v2123 = vrot.slane %v2122, 4
        %v2124 = vadd.f32 %v2122, %v2123
        %v2125 = vrot.slane %v2124, 2
        %v2126 = vadd.f32 %v2124, %v2125
        %v2127 = vrot.slane %v2126, 1
        %v2128 = vadd.f32 %v2126, %v2127
        %v2129 = vmul.f32 %v2011, 0.015625
        %v2130 = vmul.f32 %v2024, 0.015625
        %v2131 = vmul.f32 %v2037, 0.015625
        %v2132 = vmul.f32 %v2050, 0.015625
        %v2133 = vmul.f32 %v2063, 0.015625
        %v2134 = vmul.f32 %v2076, 0.015625
        %v2135 = vmul.f32 %v2089, 0.015625
        %v2136 = vmul.f32 %v2102, 0.015625
        %v2137 = vmul.f32 %v2115, 0.015625
        %v2138 = vmul.f32 %v2128, 0.015625
        %p2139 = scmp.eq.s32.totalorder %s25, 0
        // Predicated region
        $region61: #{age_model_forward.14} parent=43 // pred_check
          %p2140 = pneg %p2139
        $region62: #{age_model_forward.14} parent=43 // pred_check_branch
          %2142 = sbr.rel (%p2140) target = $region64
        $region63: #{age_model_forward.14} parent=43 // pred_region
          %2143 = vst [vmem:[%s346] sm:$0xff] 0.0
          %v2144 = vlaneseq
          %vm2145 = vcmp.ge.s32.totalorder %v2144, 0
          %vm2146 = vcmp.lt.s32.totalorder %v2144, 256
          %vm2147 = vmand %vm2145, %vm2146
          %2148 = vst.msk [vmem:[%s346 + $0x8] sm:$0x3] %vm2147, 0.0
        $region64: #{age_model_forward.14} parent=43 // pred_fallthru
          _
        %v2149 = vld [vmem:[%s346] sm:$0xff]
        %v2150 = vld [vmem:[%s346 + $0x8] sm:$0x3]
        %v2161 = vcombine.low %v2129, %v2130
        %v2162 = vcombine.low %v2131, %v2132
        %v2163 = vcombine.low %v2133, %v2134
        %v2164 = vcombine.low %v2135, %v2136
        %v2166 = vunpack.c.l.s4 1966171168
        %v2167 = vunpack.c.0.s8 %v2166
        %v2168 = vlaneseq
        %v2169 = vshrl.u32 %v2168, 7
        %v2170 = vsub.s32 %v2167, %v2169
        %v2171 = vrot.slane %v2161, %v2170
        %v2173 = vunpack.c.l.s4 1966171168
        %v2174 = vunpack.c.0.s8 %v2173
        %v2175 = vlaneseq
        %v2176 = vshrl.u32 %v2175, 7
        %v2177 = vsub.s32 %v2174, %v2176
        %v2178 = vrot.slane %v2162, %v2177
        %v2180 = vunpack.c.l.s4 1966171168
        %v2181 = vunpack.c.0.s8 %v2180
        %v2182 = vlaneseq
        %v2183 = vshrl.u32 %v2182, 7
        %v2184 = vsub.s32 %v2181, %v2183
        %v2185 = vrot.slane %v2163, %v2184
        %v2187 = vunpack.c.l.s4 1966171168
        %v2188 = vunpack.c.0.s8 %v2187
        %v2189 = vlaneseq
        %v2190 = vshrl.u32 %v2189, 7
        %v2191 = vsub.s32 %v2188, %v2190
        %v2192 = vrot.slane %v2164, %v2191
        %v2193 = vcombine.low %v2171, %v2178
        %v2194 = vcombine.low %v2185, %v2192
        %v2196 = vunpack.c.l.s4 1966171168
        %v2197 = vunpack.c.0.s8 %v2196
        %v2198 = vlaneseq
        %v2199 = vshrl.u32 %v2198, 7
        %v2200 = vsub.s32 %v2197, %v2199
        %v2201 = vrot.slane %v2193, %v2200
        %v2203 = vunpack.c.l.s4 1966171168
        %v2204 = vunpack.c.0.s8 %v2203
        %v2205 = vlaneseq
        %v2206 = vshrl.u32 %v2205, 7
        %v2207 = vsub.s32 %v2204, %v2206
        %v2208 = vrot.slane %v2194, %v2207
        %v2209 = vcombine.low %v2201, %v2208
        %v2210 = vcombine.low %v2137, %v2138
        %v2212 = vunpack.c.l.s4 1966171168
        %v2213 = vunpack.c.0.s8 %v2212
        %v2214 = vlaneseq
        %v2215 = vshrl.u32 %v2214, 7
        %v2216 = vsub.s32 %v2213, %v2215
        %v2217 = vrot.slane %v2210, %v2216
        %v2219 = vunpack.c.l.s4 1966171168
        %v2220 = vunpack.c.0.s8 %v2219
        %v2221 = vlaneseq
        %v2222 = vshrl.u32 %v2221, 7
        %v2223 = vsub.s32 %v2220, %v2222
        %v2224 = vrot.slane %v2217, %v2223
        %v2227 = vadd.f32 %v2149, %v2209
        %v2228 = vadd.f32 %v2150, %v2224
        %2229 = vst [vmem:[%s346] sm:$0xff] %v2227
        %v2230 = vlaneseq
        %vm2231 = vcmp.ge.s32.totalorder %v2230, 0
        %vm2232 = vcmp.lt.s32.totalorder %v2230, 256
        %vm2233 = vmand %vm2231, %vm2232
        %2234 = vst.msk [vmem:[%s346 + $0x8] sm:$0x3] %vm2233, %v2228
        %p2235 = scmp.lt.s32.totalorder %s24, 1
        %s2236 = scalar_select %p2235, %s24, 1
        %s2237 = smul.addr %s2236, 10
        %s2238 = scalar_lea.vmem %s6, %s2237
        // Predicated region
        $region65: #{age_model_forward.14} parent=43 // pred_check
          %p2239 = pneg %p188
        $region66: #{age_model_forward.14} parent=43 // pred_check_branch
          %2241 = sbr.rel (%p2239) target = $region68
        $region67: #{age_model_forward.14} parent=43 // pred_region
          _
        $region68: #{age_model_forward.14} parent=43 // pred_fallthru
          _
      $region44: #{age_model_forward.14} parent=5 // pred_fallthru
        _
      %p2242 = scmp.le.s32.totalorder 2, %s15
      // Predicated region
      $region69: #{age_model_forward.14} parent=5 // pred_check
        %p2243 = pneg %p2242
      $region70: #{age_model_forward.14} parent=5 // pred_check_branch
        %2245 = sbr.rel (%p2243) target = $region72
      $region71: #{age_model_forward.14} parent=5 // pred_region
        %s2246 = ssub.s32 %s15, 2
        // Predicated region
        $region73: #{age_model_forward.14} parent=71 // pred_check
          %p2247 = pneg %p194
        $region74: #{age_model_forward.14} parent=71 // pred_check_branch
          %2249 = sbr.rel (%p2247) target = $region76
        $region75: #{age_model_forward.14} parent=71 // pred_region
          %p2250 = scmp.lt.s32.totalorder %s26, 1
          %s2251 = scalar_select %p2250, %s26, 1
          %s2252 = smul.addr %s2251, 10
          %s2253 = scalar_lea.vmem %s6, %s2252
        $region76: #{age_model_forward.14} parent=71 // pred_fallthru
          _
      $region72: #{age_model_forward.14} parent=5 // pred_fallthru
        _
    $region6: #{age_model_forward.14} parent=1 // loop_footer
      %s19 = sadd.s32 1, %s15
    $region7: #{age_model_forward.14} parent=1 // loop_footer_branch
      %14 = sbr.rel target = $region3
    $region8: #{age_model_forward.14} parent=1 // loop_exit
      _
    %2254 = vsyncpa [#allocation3], 1
    %s2255 = scalar_lea.sflag [#allocation3], 1
    %2256 = vsyncpa %s2255, 1
    %2257 = vsyncpa [#allocation5], 1
    %2258 = vsyncpa [#allocation8], 1

// kernel: age_model_forward.15
$region0: #{age_model_forward.15}
  #allocation0 [shape = 'u32[]', space=smem, size = 0x4, offset = 0x4, fixed_abs, tag = 'smem constant byte address 0x4 - core index']
  #allocation1 [shape = 'u32[144,128]{1,0:T(1,128)}', space=vmem, size = 0x12000, scoped, tag = 'internal scratch']
  %s0 = inlined_call_operand.vmem [shape: f32[2,1,1280], index: 0, kind: input, shape index: {}]
  %s1 = inlined_call_operand.hbm [shape: bf16[1280,1024], index: 1, kind: input, shape index: {}]
  %s2 = inlined_call_operand.hbm [shape: f32[1,1024], index: 2, kind: input, shape index: {}]
  %s3 = inlined_call_operand.vmem [shape: f32[1024,128], index: 3, kind: input, shape index: {}]
  %s4 = inlined_call_operand.hbm [shape: f32[1,128], index: 4, kind: input, shape index: {}]
  %s5 = inlined_call_operand.hbm [shape: f32[2,128], index: 5, kind: output, shape index: {}]
  %s6 = sld [smem:[#allocation0]]
  $region42: #{age_model_forward.15} parent=0
    _
  %s8 = ssub.s32 1, %s6
  %s9 = scalar_select 0, %s8, %s6
  $region1: #{age_model_forward.15} parent=0
    #allocation2 [shape = 'u8[2621440]{0}', space=vmem, size = 0x280000, scoped, tag = 'input window, operand 1, single buffered']
    #allocation3 [shape = 's32[1]{0}', space=sflag, size = 0x4, scoped, tag = 'scoped memory for age_model_forward.15']
    #allocation4 [shape = 's32[1]{0}', space=sflag, size = 0x4, scoped, tag = 'scoped memory for age_model_forward.15']
    #allocation5 [shape = 'u8[4096]{0}', space=vmem, size = 0x1000, scoped, tag = 'input window, operand 2, single buffered']
    #allocation6 [shape = 's32[1]{0}', space=sflag, size = 0x4, scoped, tag = 'scoped memory for age_model_forward.15']
    #allocation7 [shape = 'u8[512]{0}', space=vmem, size = 0x400, scoped, tag = 'input window, operand 4, single buffered']
    #allocation8 [shape = 'u8[1024]{0}', space=vmem, size = 0x400, scoped, tag = 'output window, operand 0, single buffered']
    %10 = vsyncpa [#allocation3], 0
    %11 = vsyncpa [#allocation6], 0
    %12 = vsyncpa [#allocation4], 0
    // Predicated region
    $region2: #{age_model_forward.15} parent=1 // pred_check
      _
    $region3: #{age_model_forward.15} parent=1 // pred_check_branch
      %14 = sbr.rel (0) target = $region5
    $region4: #{age_model_forward.15} parent=1 // pred_region
      _
    $region5: #{age_model_forward.15} parent=1 // pred_fallthru
      _
    // Predicated region
    $region6: #{age_model_forward.15} parent=1 // pred_check
      _
    $region7: #{age_model_forward.15} parent=1 // pred_check_branch
      %16 = sbr.rel (0) target = $region9
    $region8: #{age_model_forward.15} parent=1 // pred_region
      %s18 = ssub.s32 81920, 81920
      %19 = vsyncadd [#allocation3], %s18
      %s20 = sshll.u32 [#allocation2], 4
      %s21 = int_to_ptr.vmem [resolvable:$true] %s20
      %26 = dma.hbm_to_vmem [thread:$0]  %s1, 81920, %s21, [#allocation3], 512, 512, 32
    $region9: #{age_model_forward.15} parent=1 // pred_fallthru
      _
    // Predicated region
    $region10: #{age_model_forward.15} parent=1 // pred_check
      _
    $region11: #{age_model_forward.15} parent=1 // pred_check_branch
      %28 = sbr.rel (0) target = $region13
    $region12: #{age_model_forward.15} parent=1 // pred_region
      %s30 = ssub.s32 128, 128
      %31 = vsyncadd [#allocation6], %s30
      %s33 = sshll.u32 [#allocation5], 4
      %s34 = int_to_ptr.vmem [resolvable:$true] %s33
      %36 = dma.hbm_to_vmem [thread:$0]  %s2, 128, %s34, [#allocation6]
    $region13: #{age_model_forward.15} parent=1 // pred_fallthru
      _
    // Predicated region
    $region14: #{age_model_forward.15} parent=1 // pred_check
      _
    $region15: #{age_model_forward.15} parent=1 // pred_check_branch
      %38 = sbr.rel (0) target = $region17
    $region16: #{age_model_forward.15} parent=1 // pred_region
      _
    $region17: #{age_model_forward.15} parent=1 // pred_fallthru
      _
    // Predicated region
    $region18: #{age_model_forward.15} parent=1 // pred_check
      _
    $region19: #{age_model_forward.15} parent=1 // pred_check_branch
      %40 = sbr.rel (0) target = $region21
    $region20: #{age_model_forward.15} parent=1 // pred_region
      %s42 = ssub.s32 16, 16
      %43 = vsyncadd [#allocation6], %s42
      %s45 = sshll.u32 [#allocation7], 4
      %s46 = int_to_ptr.vmem [resolvable:$true] %s45
      %48 = dma.hbm_to_vmem [thread:$0]  %s4, 16, %s46, [#allocation6]
    $region21: #{age_model_forward.15} parent=1 // pred_fallthru
      _
    // Predicated region
    $region22: #{age_model_forward.15} parent=1 // pred_check
      _
    $region23: #{age_model_forward.15} parent=1 // pred_check_branch
      %50 = sbr.rel (0) target = $region25
    $region24: #{age_model_forward.15} parent=1 // pred_region
      %51 = dma.done [#allocation3], 81920
    $region25: #{age_model_forward.15} parent=1 // pred_fallthru
      _
    // Predicated region
    $region26: #{age_model_forward.15} parent=1 // pred_check
      _
    $region27: #{age_model_forward.15} parent=1 // pred_check_branch
      %53 = sbr.rel (0) target = $region29
    $region28: #{age_model_forward.15} parent=1 // pred_region
      %54 = dma.done [#allocation6], 128
    $region29: #{age_model_forward.15} parent=1 // pred_fallthru
      _
    // Predicated region
    $region30: #{age_model_forward.15} parent=1 // pred_check
      _
    $region31: #{age_model_forward.15} parent=1 // pred_check_branch
      %56 = sbr.rel (0) target = $region33
    $region32: #{age_model_forward.15} parent=1 // pred_region
      %57 = dma.done [#allocation6], 16
    $region33: #{age_model_forward.15} parent=1 // pred_fallthru
      _
    %v58 = vld [vmem:[%s0] sm:$0xff]
    %v59 = vld [vmem:[%s0 + $0x8] sm:$0x3]
    %v60 = vld [vmem:[%s0 + $0xa] sm:$0xff]
    %v61 = vld [vmem:[%s0 + $0x12] sm:$0x3]
    %v66 = vlaneseq
    %v67 = vshrl.u32 %v66, 7
    %v68 = vsub.s32 0, %v67
    %v69 = vrot.slane %v58, %v68
    %v70 = vlaneseq
    %v71 = vshrl.u32 %v70, 7
    %v72 = vsub.s32 1, %v71
    %v73 = vrot.slane %v58, %v72
    %v74 = vlaneseq
    %v75 = vshrl.u32 %v74, 7
    %v76 = vsub.s32 2, %v75
    %v77 = vrot.slane %v58, %v76
    %v78 = vlaneseq
    %v79 = vshrl.u32 %v78, 7
    %v80 = vsub.s32 3, %v79
    %v81 = vrot.slane %v58, %v80
    %v82 = vlaneseq
    %v83 = vshrl.u32 %v82, 7
    %v84 = vsub.s32 4, %v83
    %v85 = vrot.slane %v58, %v84
    %v86 = vlaneseq
    %v87 = vshrl.u32 %v86, 7
    %v88 = vsub.s32 5, %v87
    %v89 = vrot.slane %v58, %v88
    %v90 = vlaneseq
    %v91 = vshrl.u32 %v90, 7
    %v92 = vsub.s32 6, %v91
    %v93 = vrot.slane %v58, %v92
    %v94 = vlaneseq
    %v95 = vshrl.u32 %v94, 7
    %v96 = vsub.s32 7, %v95
    %v97 = vrot.slane %v58, %v96
    %v98 = vlaneseq
    %v99 = vshrl.u32 %v98, 7
    %v100 = vsub.s32 0, %v99
    %v101 = vrot.slane %v59, %v100
    %v102 = vlaneseq
    %v103 = vshrl.u32 %v102, 7
    %v104 = vsub.s32 1, %v103
    %v105 = vrot.slane %v59, %v104
    %v106 = vlaneseq
    %v107 = vshrl.u32 %v106, 7
    %v108 = vsub.s32 0, %v107
    %v109 = vrot.slane %v60, %v108
    %v110 = vlaneseq
    %v111 = vshrl.u32 %v110, 7
    %v112 = vsub.s32 1, %v111
    %v113 = vrot.slane %v60, %v112
    %v114 = vlaneseq
    %v115 = vshrl.u32 %v114, 7
    %v116 = vsub.s32 2, %v115
    %v117 = vrot.slane %v60, %v116
    %v118 = vlaneseq
    %v119 = vshrl.u32 %v118, 7
    %v120 = vsub.s32 3, %v119
    %v121 = vrot.slane %v60, %v120
    %v122 = vlaneseq
    %v123 = vshrl.u32 %v122, 7
    %v124 = vsub.s32 4, %v123
    %v125 = vrot.slane %v60, %v124
    %v126 = vlaneseq
    %v127 = vshrl.u32 %v126, 7
    %v128 = vsub.s32 5, %v127
    %v129 = vrot.slane %v60, %v128
    %v130 = vlaneseq
    %v131 = vshrl.u32 %v130, 7
    %v132 = vsub.s32 6, %v131
    %v133 = vrot.slane %v60, %v132
    %v134 = vlaneseq
    %v135 = vshrl.u32 %v134, 7
    %v136 = vsub.s32 7, %v135
    %v137 = vrot.slane %v60, %v136
    %v138 = vlaneseq
    %v139 = vshrl.u32 %v138, 7
    %v140 = vsub.s32 0, %v139
    %v141 = vrot.slane %v61, %v140
    %v142 = vlaneseq
    %v143 = vshrl.u32 %v142, 7
    %v144 = vsub.s32 1, %v143
    %v145 = vrot.slane %v61, %v144
    %v166 = vpack.c.bf16 %v69, %v69
    %v167 = vpack.c.bf16 %v73, %v73
    %v168 = vpack.c.bf16 %v77, %v77
    %v169 = vpack.c.bf16 %v81, %v81
    %v170 = vpack.c.bf16 %v85, %v85
    %v171 = vpack.c.bf16 %v89, %v89
    %v172 = vpack.c.bf16 %v93, %v93
    %v173 = vpack.c.bf16 %v97, %v97
    %v174 = vpack.c.bf16 %v101, %v101
    %v175 = vpack.c.bf16 %v105, %v105
    %v176 = vpack.c.bf16 %v109, %v109
    %v177 = vpack.c.bf16 %v113, %v113
    %v178 = vpack.c.bf16 %v117, %v117
    %v179 = vpack.c.bf16 %v121, %v121
    %v180 = vpack.c.bf16 %v125, %v125
    %v181 = vpack.c.bf16 %v129, %v129
    %v182 = vpack.c.bf16 %v133, %v133
    %v183 = vpack.c.bf16 %v137, %v137
    %v184 = vpack.c.bf16 %v141, %v141
    %v185 = vpack.c.bf16 %v145, %v145
    %v186 = vld [vmem:[#allocation2] sm:$0xff]
    %v187 = vld [vmem:[#allocation2 + $0x8] sm:$0xff]
    %v188 = vld [vmem:[#allocation2 + $0x10] sm:$0xff]
    %v189 = vld [vmem:[#allocation2 + $0x18] sm:$0xff]
    %v190 = vld [vmem:[#allocation2 + $0x20] sm:$0xff]
    %v191 = vld [vmem:[#allocation2 + $0x28] sm:$0xff]
    %v192 = vld [vmem:[#allocation2 + $0x30] sm:$0xff]
    %v193 = vld [vmem:[#allocation2 + $0x38] sm:$0xff]
    %v194 = vld [vmem:[#allocation2 + $0x40] sm:$0xff]
    %v195 = vld [vmem:[#allocation2 + $0x48] sm:$0xff]
    %v196 = vld [vmem:[#allocation2 + $0x50] sm:$0xff]
    %v197 = vld [vmem:[#allocation2 + $0x58] sm:$0xff]
    %v198 = vld [vmem:[#allocation2 + $0x60] sm:$0xff]
    %v199 = vld [vmem:[#allocation2 + $0x68] sm:$0xff]
    %v200 = vld [vmem:[#allocation2 + $0x70] sm:$0xff]
    %v201 = vld [vmem:[#allocation2 + $0x78] sm:$0xff]
    %v202 = vld [vmem:[#allocation2 + $0x80] sm:$0xff]
    %v203 = vld [vmem:[#allocation2 + $0x88] sm:$0xff]
    %v204 = vld [vmem:[#allocation2 + $0x90] sm:$0xff]
    %v205 = vld [vmem:[#allocation2 + $0x98] sm:$0xff]
    %v206 = vld [vmem:[#allocation2 + $0xa0] sm:$0xff]
    %v207 = vld [vmem:[#allocation2 + $0xa8] sm:$0xff]
    %v208 = vld [vmem:[#allocation2 + $0xb0] sm:$0xff]
    %v209 = vld [vmem:[#allocation2 + $0xb8] sm:$0xff]
    %v210 = vld [vmem:[#allocation2 + $0xc0] sm:$0xff]
    %v211 = vld [vmem:[#allocation2 + $0xc8] sm:$0xff]
    %v212 = vld [vmem:[#allocation2 + $0xd0] sm:$0xff]
    %v213 = vld [vmem:[#allocation2 + $0xd8] sm:$0xff]
    %v214 = vld [vmem:[#allocation2 + $0xe0] sm:$0xff]
    %v215 = vld [vmem:[#allocation2 + $0xe8] sm:$0xff]
    %v216 = vld [vmem:[#allocation2 + $0xf0] sm:$0xff]
    %v217 = vld [vmem:[#allocation2 + $0xf8] sm:$0xff]
    %v218 = vld [vmem:[#allocation2 + $0x100] sm:$0xff]
    %v219 = vld [vmem:[#allocation2 + $0x108] sm:$0xff]
    %v220 = vld [vmem:[#allocation2 + $0x110] sm:$0xff]
    %v221 = vld [vmem:[#allocation2 + $0x118] sm:$0xff]
    %v222 = vld [vmem:[#allocation2 + $0x120] sm:$0xff]
    %v223 = vld [vmem:[#allocation2 + $0x128] sm:$0xff]
    %v224 = vld [vmem:[#allocation2 + $0x130] sm:$0xff]
    %v225 = vld [vmem:[#allocation2 + $0x138] sm:$0xff]
    %v226 = vld [vmem:[#allocation2 + $0x140] sm:$0xff]
    %v227 = vld [vmem:[#allocation2 + $0x148] sm:$0xff]
    %v228 = vld [vmem:[#allocation2 + $0x150] sm:$0xff]
    %v229 = vld [vmem:[#allocation2 + $0x158] sm:$0xff]
    %v230 = vld [vmem:[#allocation2 + $0x160] sm:$0xff]
    %v231 = vld [vmem:[#allocation2 + $0x168] sm:$0xff]
    %v232 = vld [vmem:[#allocation2 + $0x170] sm:$0xff]
    %v233 = vld [vmem:[#allocation2 + $0x178] sm:$0xff]
    %v234 = vld [vmem:[#allocation2 + $0x180] sm:$0xff]
    %v235 = vld [vmem:[#allocation2 + $0x188] sm:$0xff]
    %v236 = vld [vmem:[#allocation2 + $0x190] sm:$0xff]
    %v237 = vld [vmem:[#allocation2 + $0x198] sm:$0xff]
    %v238 = vld [vmem:[#allocation2 + $0x1a0] sm:$0xff]
    %v239 = vld [vmem:[#allocation2 + $0x1a8] sm:$0xff]
    %v240 = vld [vmem:[#allocation2 + $0x1b0] sm:$0xff]
    %v241 = vld [vmem:[#allocation2 + $0x1b8] sm:$0xff]
    %v242 = vld [vmem:[#allocation2 + $0x1c0] sm:$0xff]
    %v243 = vld [vmem:[#allocation2 + $0x1c8] sm:$0xff]
    %v244 = vld [vmem:[#allocation2 + $0x1d0] sm:$0xff]
    %v245 = vld [vmem:[#allocation2 + $0x1d8] sm:$0xff]
    %v246 = vld [vmem:[#allocation2 + $0x1e0] sm:$0xff]
    %v247 = vld [vmem:[#allocation2 + $0x1e8] sm:$0xff]
    %v248 = vld [vmem:[#allocation2 + $0x1f0] sm:$0xff]
    %v249 = vld [vmem:[#allocation2 + $0x1f8] sm:$0xff]
    %v250 = vld [vmem:[#allocation2 + $0x200] sm:$0xff]
    %v251 = vld [vmem:[#allocation2 + $0x208] sm:$0xff]
    %v252 = vld [vmem:[#allocation2 + $0x210] sm:$0xff]
    %v253 = vld [vmem:[#allocation2 + $0x218] sm:$0xff]
    %v254 = vld [vmem:[#allocation2 + $0x220] sm:$0xff]
    %v255 = vld [vmem:[#allocation2 + $0x228] sm:$0xff]
    %v256 = vld [vmem:[#allocation2 + $0x230] sm:$0xff]
    %v257 = vld [vmem:[#allocation2 + $0x238] sm:$0xff]
    %v258 = vld [vmem:[#allocation2 + $0x240] sm:$0xff]
    %v259 = vld [vmem:[#allocation2 + $0x248] sm:$0xff]
    %v260 = vld [vmem:[#allocation2 + $0x250] sm:$0xff]
    %v261 = vld [vmem:[#allocation2 + $0x258] sm:$0xff]
    %v262 = vld [vmem:[#allocation2 + $0x260] sm:$0xff]
    %v263 = vld [vmem:[#allocation2 + $0x268] sm:$0xff]
    %v264 = vld [vmem:[#allocation2 + $0x270] sm:$0xff]
    %v265 = vld [vmem:[#allocation2 + $0x278] sm:$0xff]
    %v266 = vld [vmem:[#allocation2 + $0x280] sm:$0xff]
    %v267 = vld [vmem:[#allocation2 + $0x288] sm:$0xff]
    %v268 = vld [vmem:[#allocation2 + $0x290] sm:$0xff]
    %v269 = vld [vmem:[#allocation2 + $0x298] sm:$0xff]
    %v270 = vld [vmem:[#allocation2 + $0x2a0] sm:$0xff]
    %v271 = vld [vmem:[#allocation2 + $0x2a8] sm:$0xff]
    %v272 = vld [vmem:[#allocation2 + $0x2b0] sm:$0xff]
    %v273 = vld [vmem:[#allocation2 + $0x2b8] sm:$0xff]
    %v274 = vld [vmem:[#allocation2 + $0x2c0] sm:$0xff]
    %v275 = vld [vmem:[#allocation2 + $0x2c8] sm:$0xff]
    %v276 = vld [vmem:[#allocation2 + $0x2d0] sm:$0xff]
    %v277 = vld [vmem:[#allocation2 + $0x2d8] sm:$0xff]
    %v278 = vld [vmem:[#allocation2 + $0x2e0] sm:$0xff]
    %v279 = vld [vmem:[#allocation2 + $0x2e8] sm:$0xff]
    %v280 = vld [vmem:[#allocation2 + $0x2f0] sm:$0xff]
    %v281 = vld [vmem:[#allocation2 + $0x2f8] sm:$0xff]
    %v282 = vld [vmem:[#allocation2 + $0x300] sm:$0xff]
    %v283 = vld [vmem:[#allocation2 + $0x308] sm:$0xff]
    %v284 = vld [vmem:[#allocation2 + $0x310] sm:$0xff]
    %v285 = vld [vmem:[#allocation2 + $0x318] sm:$0xff]
    %v286 = vld [vmem:[#allocation2 + $0x320] sm:$0xff]
    %v287 = vld [vmem:[#allocation2 + $0x328] sm:$0xff]
    %v288 = vld [vmem:[#allocation2 + $0x330] sm:$0xff]
    %v289 = vld [vmem:[#allocation2 + $0x338] sm:$0xff]
    %v290 = vld [vmem:[#allocation2 + $0x340] sm:$0xff]
    %v291 = vld [vmem:[#allocation2 + $0x348] sm:$0xff]
    %v292 = vld [vmem:[#allocation2 + $0x350] sm:$0xff]
    %v293 = vld [vmem:[#allocation2 + $0x358] sm:$0xff]
    %v294 = vld [vmem:[#allocation2 + $0x360] sm:$0xff]
    %v295 = vld [vmem:[#allocation2 + $0x368] sm:$0xff]
    %v296 = vld [vmem:[#allocation2 + $0x370] sm:$0xff]
    %v297 = vld [vmem:[#allocation2 + $0x378] sm:$0xff]
    %v298 = vld [vmem:[#allocation2 + $0x380] sm:$0xff]
    %v299 = vld [vmem:[#allocation2 + $0x388] sm:$0xff]
    %v300 = vld [vmem:[#allocation2 + $0x390] sm:$0xff]
    %v301 = vld [vmem:[#allocation2 + $0x398] sm:$0xff]
    %v302 = vld [vmem:[#allocation2 + $0x3a0] sm:$0xff]
    %v303 = vld [vmem:[#allocation2 + $0x3a8] sm:$0xff]
    %v304 = vld [vmem:[#allocation2 + $0x3b0] sm:$0xff]
    %v305 = vld [vmem:[#allocation2 + $0x3b8] sm:$0xff]
    %v306 = vld [vmem:[#allocation2 + $0x3c0] sm:$0xff]
    %v307 = vld [vmem:[#allocation2 + $0x3c8] sm:$0xff]
    %v308 = vld [vmem:[#allocation2 + $0x3d0] sm:$0xff]
    %v309 = vld [vmem:[#allocation2 + $0x3d8] sm:$0xff]
    %v310 = vld [vmem:[#allocation2 + $0x3e0] sm:$0xff]
    %v311 = vld [vmem:[#allocation2 + $0x3e8] sm:$0xff]
    %v312 = vld [vmem:[#allocation2 + $0x3f0] sm:$0xff]
    %v313 = vld [vmem:[#allocation2 + $0x3f8] sm:$0xff]
    %v314 = vld [vmem:[#allocation2 + $0x400] sm:$0xff]
    %v315 = vld [vmem:[#allocation2 + $0x408] sm:$0xff]
    %v316 = vld [vmem:[#allocation2 + $0x410] sm:$0xff]
    %v317 = vld [vmem:[#allocation2 + $0x418] sm:$0xff]
    %v318 = vld [vmem:[#allocation2 + $0x420] sm:$0xff]
    %v319 = vld [vmem:[#allocation2 + $0x428] sm:$0xff]
    %v320 = vld [vmem:[#allocation2 + $0x430] sm:$0xff]
    %v321 = vld [vmem:[#allocation2 + $0x438] sm:$0xff]
    %v322 = vld [vmem:[#allocation2 + $0x440] sm:$0xff]
    %v323 = vld [vmem:[#allocation2 + $0x448] sm:$0xff]
    %v324 = vld [vmem:[#allocation2 + $0x450] sm:$0xff]
    %v325 = vld [vmem:[#allocation2 + $0x458] sm:$0xff]
    %v326 = vld [vmem:[#allocation2 + $0x460] sm:$0xff]
    %v327 = vld [vmem:[#allocation2 + $0x468] sm:$0xff]
    %v328 = vld [vmem:[#allocation2 + $0x470] sm:$0xff]
    %v329 = vld [vmem:[#allocation2 + $0x478] sm:$0xff]
    %v330 = vld [vmem:[#allocation2 + $0x480] sm:$0xff]
    %v331 = vld [vmem:[#allocation2 + $0x488] sm:$0xff]
    %v332 = vld [vmem:[#allocation2 + $0x490] sm:$0xff]
    %v333 = vld [vmem:[#allocation2 + $0x498] sm:$0xff]
    %v334 = vld [vmem:[#allocation2 + $0x4a0] sm:$0xff]
    %v335 = vld [vmem:[#allocation2 + $0x4a8] sm:$0xff]
    %v336 = vld [vmem:[#allocation2 + $0x4b0] sm:$0xff]
    %v337 = vld [vmem:[#allocation2 + $0x4b8] sm:$0xff]
    %v338 = vld [vmem:[#allocation2 + $0x4c0] sm:$0xff]
    %v339 = vld [vmem:[#allocation2 + $0x4c8] sm:$0xff]
    %v340 = vld [vmem:[#allocation2 + $0x4d0] sm:$0xff]
    %v341 = vld [vmem:[#allocation2 + $0x4d8] sm:$0xff]
    %v342 = vld [vmem:[#allocation2 + $0x4e0] sm:$0xff]
    %v343 = vld [vmem:[#allocation2 + $0x4e8] sm:$0xff]
    %v344 = vld [vmem:[#allocation2 + $0x4f0] sm:$0xff]
    %v345 = vld [vmem:[#allocation2 + $0x4f8] sm:$0xff]
    %v346 = vld [vmem:[#allocation2 + $0x500] sm:$0xff]
    %v347 = vld [vmem:[#allocation2 + $0x508] sm:$0xff]
    %v348 = vld [vmem:[#allocation2 + $0x510] sm:$0xff]
    %v349 = vld [vmem:[#allocation2 + $0x518] sm:$0xff]
    %v350 = vld [vmem:[#allocation2 + $0x520] sm:$0xff]
    %v351 = vld [vmem:[#allocation2 + $0x528] sm:$0xff]
    %v352 = vld [vmem:[#allocation2 + $0x530] sm:$0xff]
    %v353 = vld [vmem:[#allocation2 + $0x538] sm:$0xff]
    %v354 = vld [vmem:[#allocation2 + $0x540] sm:$0xff]
    %v355 = vld [vmem:[#allocation2 + $0x548] sm:$0xff]
    %v356 = vld [vmem:[#allocation2 + $0x550] sm:$0xff]
    %v357 = vld [vmem:[#allocation2 + $0x558] sm:$0xff]
    %v358 = vld [vmem:[#allocation2 + $0x560] sm:$0xff]
    %v359 = vld [vmem:[#allocation2 + $0x568] sm:$0xff]
    %v360 = vld [vmem:[#allocation2 + $0x570] sm:$0xff]
    %v361 = vld [vmem:[#allocation2 + $0x578] sm:$0xff]
    %v362 = vld [vmem:[#allocation2 + $0x580] sm:$0xff]
    %v363 = vld [vmem:[#allocation2 + $0x588] sm:$0xff]
    %v364 = vld [vmem:[#allocation2 + $0x590] sm:$0xff]
    %v365 = vld [vmem:[#allocation2 + $0x598] sm:$0xff]
    %v366 = vld [vmem:[#allocation2 + $0x5a0] sm:$0xff]
    %v367 = vld [vmem:[#allocation2 + $0x5a8] sm:$0xff]
    %v368 = vld [vmem:[#allocation2 + $0x5b0] sm:$0xff]
    %v369 = vld [vmem:[#allocation2 + $0x5b8] sm:$0xff]
    %v370 = vld [vmem:[#allocation2 + $0x5c0] sm:$0xff]
    %v371 = vld [vmem:[#allocation2 + $0x5c8] sm:$0xff]
    %v372 = vld [vmem:[#allocation2 + $0x5d0] sm:$0xff]
    %v373 = vld [vmem:[#allocation2 + $0x5d8] sm:$0xff]
    %v374 = vld [vmem:[#allocation2 + $0x5e0] sm:$0xff]
    %v375 = vld [vmem:[#allocation2 + $0x5e8] sm:$0xff]
    %v376 = vld [vmem:[#allocation2 + $0x5f0] sm:$0xff]
    %v377 = vld [vmem:[#allocation2 + $0x5f8] sm:$0xff]
    %v378 = vld [vmem:[#allocation2 + $0x600] sm:$0xff]
    %v379 = vld [vmem:[#allocation2 + $0x608] sm:$0xff]
    %v380 = vld [vmem:[#allocation2 + $0x610] sm:$0xff]
    %v381 = vld [vmem:[#allocation2 + $0x618] sm:$0xff]
    %v382 = vld [vmem:[#allocation2 + $0x620] sm:$0xff]
    %v383 = vld [vmem:[#allocation2 + $0x628] sm:$0xff]
    %v384 = vld [vmem:[#allocation2 + $0x630] sm:$0xff]
    %v385 = vld [vmem:[#allocation2 + $0x638] sm:$0xff]
    %v386 = vld [vmem:[#allocation2 + $0x640] sm:$0xff]
    %v387 = vld [vmem:[#allocation2 + $0x648] sm:$0xff]
    %v388 = vld [vmem:[#allocation2 + $0x650] sm:$0xff]
    %v389 = vld [vmem:[#allocation2 + $0x658] sm:$0xff]
    %v390 = vld [vmem:[#allocation2 + $0x660] sm:$0xff]
    %v391 = vld [vmem:[#allocation2 + $0x668] sm:$0xff]
    %v392 = vld [vmem:[#allocation2 + $0x670] sm:$0xff]
    %v393 = vld [vmem:[#allocation2 + $0x678] sm:$0xff]
    %v394 = vld [vmem:[#allocation2 + $0x680] sm:$0xff]
    %v395 = vld [vmem:[#allocation2 + $0x688] sm:$0xff]
    %v396 = vld [vmem:[#allocation2 + $0x690] sm:$0xff]
    %v397 = vld [vmem:[#allocation2 + $0x698] sm:$0xff]
    %v398 = vld [vmem:[#allocation2 + $0x6a0] sm:$0xff]
    %v399 = vld [vmem:[#allocation2 + $0x6a8] sm:$0xff]
    %v400 = vld [vmem:[#allocation2 + $0x6b0] sm:$0xff]
    %v401 = vld [vmem:[#allocation2 + $0x6b8] sm:$0xff]
    %v402 = vld [vmem:[#allocation2 + $0x6c0] sm:$0xff]
    %v403 = vld [vmem:[#allocation2 + $0x6c8] sm:$0xff]
    %v404 = vld [vmem:[#allocation2 + $0x6d0] sm:$0xff]
    %v405 = vld [vmem:[#allocation2 + $0x6d8] sm:$0xff]
    %v406 = vld [vmem:[#allocation2 + $0x6e0] sm:$0xff]
    %v407 = vld [vmem:[#allocation2 + $0x6e8] sm:$0xff]
    %v408 = vld [vmem:[#allocation2 + $0x6f0] sm:$0xff]
    %v409 = vld [vmem:[#allocation2 + $0x6f8] sm:$0xff]
    %v410 = vld [vmem:[#allocation2 + $0x700] sm:$0xff]
    %v411 = vld [vmem:[#allocation2 + $0x708] sm:$0xff]
    %v412 = vld [vmem:[#allocation2 + $0x710] sm:$0xff]
    %v413 = vld [vmem:[#allocation2 + $0x718] sm:$0xff]
    %v414 = vld [vmem:[#allocation2 + $0x720] sm:$0xff]
    %v415 = vld [vmem:[#allocation2 + $0x728] sm:$0xff]
    %v416 = vld [vmem:[#allocation2 + $0x730] sm:$0xff]
    %v417 = vld [vmem:[#allocation2 + $0x738] sm:$0xff]
    %v418 = vld [vmem:[#allocation2 + $0x740] sm:$0xff]
    %v419 = vld [vmem:[#allocation2 + $0x748] sm:$0xff]
    %v420 = vld [vmem:[#allocation2 + $0x750] sm:$0xff]
    %v421 = vld [vmem:[#allocation2 + $0x758] sm:$0xff]
    %v422 = vld [vmem:[#allocation2 + $0x760] sm:$0xff]
    %v423 = vld [vmem:[#allocation2 + $0x768] sm:$0xff]
    %v424 = vld [vmem:[#allocation2 + $0x770] sm:$0xff]
    %v425 = vld [vmem:[#allocation2 + $0x778] sm:$0xff]
    %v426 = vld [vmem:[#allocation2 + $0x780] sm:$0xff]
    %v427 = vld [vmem:[#allocation2 + $0x788] sm:$0xff]
    %v428 = vld [vmem:[#allocation2 + $0x790] sm:$0xff]
    %v429 = vld [vmem:[#allocation2 + $0x798] sm:$0xff]
    %v430 = vld [vmem:[#allocation2 + $0x7a0] sm:$0xff]
    %v431 = vld [vmem:[#allocation2 + $0x7a8] sm:$0xff]
    %v432 = vld [vmem:[#allocation2 + $0x7b0] sm:$0xff]
    %v433 = vld [vmem:[#allocation2 + $0x7b8] sm:$0xff]
    %v434 = vld [vmem:[#allocation2 + $0x7c0] sm:$0xff]
    %v435 = vld [vmem:[#allocation2 + $0x7c8] sm:$0xff]
    %v436 = vld [vmem:[#allocation2 + $0x7d0] sm:$0xff]
    %v437 = vld [vmem:[#allocation2 + $0x7d8] sm:$0xff]
    %v438 = vld [vmem:[#allocation2 + $0x7e0] sm:$0xff]
    %v439 = vld [vmem:[#allocation2 + $0x7e8] sm:$0xff]
    %v440 = vld [vmem:[#allocation2 + $0x7f0] sm:$0xff]
    %v441 = vld [vmem:[#allocation2 + $0x7f8] sm:$0xff]
    %v442 = vld [vmem:[#allocation2 + $0x800] sm:$0xff]
    %v443 = vld [vmem:[#allocation2 + $0x808] sm:$0xff]
    %v444 = vld [vmem:[#allocation2 + $0x810] sm:$0xff]
    %v445 = vld [vmem:[#allocation2 + $0x818] sm:$0xff]
    %v446 = vld [vmem:[#allocation2 + $0x820] sm:$0xff]
    %v447 = vld [vmem:[#allocation2 + $0x828] sm:$0xff]
    %v448 = vld [vmem:[#allocation2 + $0x830] sm:$0xff]
    %v449 = vld [vmem:[#allocation2 + $0x838] sm:$0xff]
    %v450 = vld [vmem:[#allocation2 + $0x840] sm:$0xff]
    %v451 = vld [vmem:[#allocation2 + $0x848] sm:$0xff]
    %v452 = vld [vmem:[#allocation2 + $0x850] sm:$0xff]
    %v453 = vld [vmem:[#allocation2 + $0x858] sm:$0xff]
    %v454 = vld [vmem:[#allocation2 + $0x860] sm:$0xff]
    %v455 = vld [vmem:[#allocation2 + $0x868] sm:$0xff]
    %v456 = vld [vmem:[#allocation2 + $0x870] sm:$0xff]
    %v457 = vld [vmem:[#allocation2 + $0x878] sm:$0xff]
    %v458 = vld [vmem:[#allocation2 + $0x880] sm:$0xff]
    %v459 = vld [vmem:[#allocation2 + $0x888] sm:$0xff]
    %v460 = vld [vmem:[#allocation2 + $0x890] sm:$0xff]
    %v461 = vld [vmem:[#allocation2 + $0x898] sm:$0xff]
    %v462 = vld [vmem:[#allocation2 + $0x8a0] sm:$0xff]
    %v463 = vld [vmem:[#allocation2 + $0x8a8] sm:$0xff]
    %v464 = vld [vmem:[#allocation2 + $0x8b0] sm:$0xff]
    %v465 = vld [vmem:[#allocation2 + $0x8b8] sm:$0xff]
    %v466 = vld [vmem:[#allocation2 + $0x8c0] sm:$0xff]
    %v467 = vld [vmem:[#allocation2 + $0x8c8] sm:$0xff]
    %v468 = vld [vmem:[#allocation2 + $0x8d0] sm:$0xff]
    %v469 = vld [vmem:[#allocation2 + $0x8d8] sm:$0xff]
    %v470 = vld [vmem:[#allocation2 + $0x8e0] sm:$0xff]
    %v471 = vld [vmem:[#allocation2 + $0x8e8] sm:$0xff]
    %v472 = vld [vmem:[#allocation2 + $0x8f0] sm:$0xff]
    %v473 = vld [vmem:[#allocation2 + $0x8f8] sm:$0xff]
    %v474 = vld [vmem:[#allocation2 + $0x900] sm:$0xff]
    %v475 = vld [vmem:[#allocation2 + $0x908] sm:$0xff]
    %v476 = vld [vmem:[#allocation2 + $0x910] sm:$0xff]
    %v477 = vld [vmem:[#allocation2 + $0x918] sm:$0xff]
    %v478 = vld [vmem:[#allocation2 + $0x920] sm:$0xff]
    %v479 = vld [vmem:[#allocation2 + $0x928] sm:$0xff]
    %v480 = vld [vmem:[#allocation2 + $0x930] sm:$0xff]
    %v481 = vld [vmem:[#allocation2 + $0x938] sm:$0xff]
    %v482 = vld [vmem:[#allocation2 + $0x940] sm:$0xff]
    %v483 = vld [vmem:[#allocation2 + $0x948] sm:$0xff]
    %v484 = vld [vmem:[#allocation2 + $0x950] sm:$0xff]
    %v485 = vld [vmem:[#allocation2 + $0x958] sm:$0xff]
    %v486 = vld [vmem:[#allocation2 + $0x960] sm:$0xff]
    %v487 = vld [vmem:[#allocation2 + $0x968] sm:$0xff]
    %v488 = vld [vmem:[#allocation2 + $0x970] sm:$0xff]
    %v489 = vld [vmem:[#allocation2 + $0x978] sm:$0xff]
    %v490 = vld [vmem:[#allocation2 + $0x980] sm:$0xff]
    %v491 = vld [vmem:[#allocation2 + $0x988] sm:$0xff]
    %v492 = vld [vmem:[#allocation2 + $0x990] sm:$0xff]
    %v493 = vld [vmem:[#allocation2 + $0x998] sm:$0xff]
    %v494 = vld [vmem:[#allocation2 + $0x9a0] sm:$0xff]
    %v495 = vld [vmem:[#allocation2 + $0x9a8] sm:$0xff]
    %v496 = vld [vmem:[#allocation2 + $0x9b0] sm:$0xff]
    %v497 = vld [vmem:[#allocation2 + $0x9b8] sm:$0xff]
    %v498 = vld [vmem:[#allocation2 + $0x9c0] sm:$0xff]
    %v499 = vld [vmem:[#allocation2 + $0x9c8] sm:$0xff]
    %v500 = vld [vmem:[#allocation2 + $0x9d0] sm:$0xff]
    %v501 = vld [vmem:[#allocation2 + $0x9d8] sm:$0xff]
    %v502 = vld [vmem:[#allocation2 + $0x9e0] sm:$0xff]
    %v503 = vld [vmem:[#allocation2 + $0x9e8] sm:$0xff]
    %v504 = vld [vmem:[#allocation2 + $0x9f0] sm:$0xff]
    %v505 = vld [vmem:[#allocation2 + $0x9f8] sm:$0xff]
    %v506 = vld [vmem:[#allocation2 + $0xa00] sm:$0xff]
    %v507 = vld [vmem:[#allocation2 + $0xa08] sm:$0xff]
    %v508 = vld [vmem:[#allocation2 + $0xa10] sm:$0xff]
    %v509 = vld [vmem:[#allocation2 + $0xa18] sm:$0xff]
    %v510 = vld [vmem:[#allocation2 + $0xa20] sm:$0xff]
    %v511 = vld [vmem:[#allocation2 + $0xa28] sm:$0xff]
    %v512 = vld [vmem:[#allocation2 + $0xa30] sm:$0xff]
    %v513 = vld [vmem:[#allocation2 + $0xa38] sm:$0xff]
    %v514 = vld [vmem:[#allocation2 + $0xa40] sm:$0xff]
    %v515 = vld [vmem:[#allocation2 + $0xa48] sm:$0xff]
    %v516 = vld [vmem:[#allocation2 + $0xa50] sm:$0xff]
    %v517 = vld [vmem:[#allocation2 + $0xa58] sm:$0xff]
    %v518 = vld [vmem:[#allocation2 + $0xa60] sm:$0xff]
    %v519 = vld [vmem:[#allocation2 + $0xa68] sm:$0xff]
    %v520 = vld [vmem:[#allocation2 + $0xa70] sm:$0xff]
    %v521 = vld [vmem:[#allocation2 + $0xa78] sm:$0xff]
    %v522 = vld [vmem:[#allocation2 + $0xa80] sm:$0xff]
    %v523 = vld [vmem:[#allocation2 + $0xa88] sm:$0xff]
    %v524 = vld [vmem:[#allocation2 + $0xa90] sm:$0xff]
    %v525 = vld [vmem:[#allocation2 + $0xa98] sm:$0xff]
    %v526 = vld [vmem:[#allocation2 + $0xaa0] sm:$0xff]
    %v527 = vld [vmem:[#allocation2 + $0xaa8] sm:$0xff]
    %v528 = vld [vmem:[#allocation2 + $0xab0] sm:$0xff]
    %v529 = vld [vmem:[#allocation2 + $0xab8] sm:$0xff]
    %v530 = vld [vmem:[#allocation2 + $0xac0] sm:$0xff]
    %v531 = vld [vmem:[#allocation2 + $0xac8] sm:$0xff]
    %v532 = vld [vmem:[#allocation2 + $0xad0] sm:$0xff]
    %v533 = vld [vmem:[#allocation2 + $0xad8] sm:$0xff]
    %v534 = vld [vmem:[#allocation2 + $0xae0] sm:$0xff]
    %v535 = vld [vmem:[#allocation2 + $0xae8] sm:$0xff]
    %v536 = vld [vmem:[#allocation2 + $0xaf0] sm:$0xff]
    %v537 = vld [vmem:[#allocation2 + $0xaf8] sm:$0xff]
    %v538 = vld [vmem:[#allocation2 + $0xb00] sm:$0xff]
    %v539 = vld [vmem:[#allocation2 + $0xb08] sm:$0xff]
    %v540 = vld [vmem:[#allocation2 + $0xb10] sm:$0xff]
    %v541 = vld [vmem:[#allocation2 + $0xb18] sm:$0xff]
    %v542 = vld [vmem:[#allocation2 + $0xb20] sm:$0xff]
    %v543 = vld [vmem:[#allocation2 + $0xb28] sm:$0xff]
    %v544 = vld [vmem:[#allocation2 + $0xb30] sm:$0xff]
    %v545 = vld [vmem:[#allocation2 + $0xb38] sm:$0xff]
    %v546 = vld [vmem:[#allocation2 + $0xb40] sm:$0xff]
    %v547 = vld [vmem:[#allocation2 + $0xb48] sm:$0xff]
    %v548 = vld [vmem:[#allocation2 + $0xb50] sm:$0xff]
    %v549 = vld [vmem:[#allocation2 + $0xb58] sm:$0xff]
    %v550 = vld [vmem:[#allocation2 + $0xb60] sm:$0xff]
    %v551 = vld [vmem:[#allocation2 + $0xb68] sm:$0xff]
    %v552 = vld [vmem:[#allocation2 + $0xb70] sm:$0xff]
    %v553 = vld [vmem:[#allocation2 + $0xb78] sm:$0xff]
    %v554 = vld [vmem:[#allocation2 + $0xb80] sm:$0xff]
    %v555 = vld [vmem:[#allocation2 + $0xb88] sm:$0xff]
    %v556 = vld [vmem:[#allocation2 + $0xb90] sm:$0xff]
    %v557 = vld [vmem:[#allocation2 + $0xb98] sm:$0xff]
    %v558 = vld [vmem:[#allocation2 + $0xba0] sm:$0xff]
    %v559 = vld [vmem:[#allocation2 + $0xba8] sm:$0xff]
    %v560 = vld [vmem:[#allocation2 + $0xbb0] sm:$0xff]
    %v561 = vld [vmem:[#allocation2 + $0xbb8] sm:$0xff]
    %v562 = vld [vmem:[#allocation2 + $0xbc0] sm:$0xff]
    %v563 = vld [vmem:[#allocation2 + $0xbc8] sm:$0xff]
    %v564 = vld [vmem:[#allocation2 + $0xbd0] sm:$0xff]
    %v565 = vld [vmem:[#allocation2 + $0xbd8] sm:$0xff]
    %v566 = vld [vmem:[#allocation2 + $0xbe0] sm:$0xff]
    %v567 = vld [vmem:[#allocation2 + $0xbe8] sm:$0xff]
    %v568 = vld [vmem:[#allocation2 + $0xbf0] sm:$0xff]
    %v569 = vld [vmem:[#allocation2 + $0xbf8] sm:$0xff]
    %v570 = vld [vmem:[#allocation2 + $0xc00] sm:$0xff]
    %v571 = vld [vmem:[#allocation2 + $0xc08] sm:$0xff]
    %v572 = vld [vmem:[#allocation2 + $0xc10] sm:$0xff]
    %v573 = vld [vmem:[#allocation2 + $0xc18] sm:$0xff]
    %v574 = vld [vmem:[#allocation2 + $0xc20] sm:$0xff]
    %v575 = vld [vmem:[#allocation2 + $0xc28] sm:$0xff]
    %v576 = vld [vmem:[#allocation2 + $0xc30] sm:$0xff]
    %v577 = vld [vmem:[#allocation2 + $0xc38] sm:$0xff]
    %v578 = vld [vmem:[#allocation2 + $0xc40] sm:$0xff]
    %v579 = vld [vmem:[#allocation2 + $0xc48] sm:$0xff]
    %v580 = vld [vmem:[#allocation2 + $0xc50] sm:$0xff]
    %v581 = vld [vmem:[#allocation2 + $0xc58] sm:$0xff]
    %v582 = vld [vmem:[#allocation2 + $0xc60] sm:$0xff]
    %v583 = vld [vmem:[#allocation2 + $0xc68] sm:$0xff]
    %v584 = vld [vmem:[#allocation2 + $0xc70] sm:$0xff]
    %v585 = vld [vmem:[#allocation2 + $0xc78] sm:$0xff]
    %v586 = vld [vmem:[#allocation2 + $0xc80] sm:$0xff]
    %v587 = vld [vmem:[#allocation2 + $0xc88] sm:$0xff]
    %v588 = vld [vmem:[#allocation2 + $0xc90] sm:$0xff]
    %v589 = vld [vmem:[#allocation2 + $0xc98] sm:$0xff]
    %v590 = vld [vmem:[#allocation2 + $0xca0] sm:$0xff]
    %v591 = vld [vmem:[#allocation2 + $0xca8] sm:$0xff]
    %v592 = vld [vmem:[#allocation2 + $0xcb0] sm:$0xff]
    %v593 = vld [vmem:[#allocation2 + $0xcb8] sm:$0xff]
    %v594 = vld [vmem:[#allocation2 + $0xcc0] sm:$0xff]
    %v595 = vld [vmem:[#allocation2 + $0xcc8] sm:$0xff]
    %v596 = vld [vmem:[#allocation2 + $0xcd0] sm:$0xff]
    %v597 = vld [vmem:[#allocation2 + $0xcd8] sm:$0xff]
    %v598 = vld [vmem:[#allocation2 + $0xce0] sm:$0xff]
    %v599 = vld [vmem:[#allocation2 + $0xce8] sm:$0xff]
    %v600 = vld [vmem:[#allocation2 + $0xcf0] sm:$0xff]
    %v601 = vld [vmem:[#allocation2 + $0xcf8] sm:$0xff]
    %v602 = vld [vmem:[#allocation2 + $0xd00] sm:$0xff]
    %v603 = vld [vmem:[#allocation2 + $0xd08] sm:$0xff]
    %v604 = vld [vmem:[#allocation2 + $0xd10] sm:$0xff]
    %v605 = vld [vmem:[#allocation2 + $0xd18] sm:$0xff]
    %v606 = vld [vmem:[#allocation2 + $0xd20] sm:$0xff]
    %v607 = vld [vmem:[#allocation2 + $0xd28] sm:$0xff]
    %v608 = vld [vmem:[#allocation2 + $0xd30] sm:$0xff]
    %v609 = vld [vmem:[#allocation2 + $0xd38] sm:$0xff]
    %v610 = vld [vmem:[#allocation2 + $0xd40] sm:$0xff]
    %v611 = vld [vmem:[#allocation2 + $0xd48] sm:$0xff]
    %v612 = vld [vmem:[#allocation2 + $0xd50] sm:$0xff]
    %v613 = vld [vmem:[#allocation2 + $0xd58] sm:$0xff]
    %v614 = vld [vmem:[#allocation2 + $0xd60] sm:$0xff]
    %v615 = vld [vmem:[#allocation2 + $0xd68] sm:$0xff]
    %v616 = vld [vmem:[#allocation2 + $0xd70] sm:$0xff]
    %v617 = vld [vmem:[#allocation2 + $0xd78] sm:$0xff]
    %v618 = vld [vmem:[#allocation2 + $0xd80] sm:$0xff]
    %v619 = vld [vmem:[#allocation2 + $0xd88] sm:$0xff]
    %v620 = vld [vmem:[#allocation2 + $0xd90] sm:$0xff]
    %v621 = vld [vmem:[#allocation2 + $0xd98] sm:$0xff]
    %v622 = vld [vmem:[#allocation2 + $0xda0] sm:$0xff]
    %v623 = vld [vmem:[#allocation2 + $0xda8] sm:$0xff]
    %v624 = vld [vmem:[#allocation2 + $0xdb0] sm:$0xff]
    %v625 = vld [vmem:[#allocation2 + $0xdb8] sm:$0xff]
    %v626 = vld [vmem:[#allocation2 + $0xdc0] sm:$0xff]
    %v627 = vld [vmem:[#allocation2 + $0xdc8] sm:$0xff]
    %v628 = vld [vmem:[#allocation2 + $0xdd0] sm:$0xff]
    %v629 = vld [vmem:[#allocation2 + $0xdd8] sm:$0xff]
    %v630 = vld [vmem:[#allocation2 + $0xde0] sm:$0xff]
    %v631 = vld [vmem:[#allocation2 + $0xde8] sm:$0xff]
    %v632 = vld [vmem:[#allocation2 + $0xdf0] sm:$0xff]
    %v633 = vld [vmem:[#allocation2 + $0xdf8] sm:$0xff]
    %v634 = vld [vmem:[#allocation2 + $0xe00] sm:$0xff]
    %v635 = vld [vmem:[#allocation2 + $0xe08] sm:$0xff]
    %v636 = vld [vmem:[#allocation2 + $0xe10] sm:$0xff]
    %v637 = vld [vmem:[#allocation2 + $0xe18] sm:$0xff]
    %v638 = vld [vmem:[#allocation2 + $0xe20] sm:$0xff]
    %v639 = vld [vmem:[#allocation2 + $0xe28] sm:$0xff]
    %v640 = vld [vmem:[#allocation2 + $0xe30] sm:$0xff]
    %v641 = vld [vmem:[#allocation2 + $0xe38] sm:$0xff]
    %v642 = vld [vmem:[#allocation2 + $0xe40] sm:$0xff]
    %v643 = vld [vmem:[#allocation2 + $0xe48] sm:$0xff]
    %v644 = vld [vmem:[#allocation2 + $0xe50] sm:$0xff]
    %v645 = vld [vmem:[#allocation2 + $0xe58] sm:$0xff]
    %v646 = vld [vmem:[#allocation2 + $0xe60] sm:$0xff]
    %v647 = vld [vmem:[#allocation2 + $0xe68] sm:$0xff]
    %v648 = vld [vmem:[#allocation2 + $0xe70] sm:$0xff]
    %v649 = vld [vmem:[#allocation2 + $0xe78] sm:$0xff]
    %v650 = vld [vmem:[#allocation2 + $0xe80] sm:$0xff]
    %v651 = vld [vmem:[#allocation2 + $0xe88] sm:$0xff]
    %v652 = vld [vmem:[#allocation2 + $0xe90] sm:$0xff]
    %v653 = vld [vmem:[#allocation2 + $0xe98] sm:$0xff]
    %v654 = vld [vmem:[#allocation2 + $0xea0] sm:$0xff]
    %v655 = vld [vmem:[#allocation2 + $0xea8] sm:$0xff]
    %v656 = vld [vmem:[#allocation2 + $0xeb0] sm:$0xff]
    %v657 = vld [vmem:[#allocation2 + $0xeb8] sm:$0xff]
    %v658 = vld [vmem:[#allocation2 + $0xec0] sm:$0xff]
    %v659 = vld [vmem:[#allocation2 + $0xec8] sm:$0xff]
    %v660 = vld [vmem:[#allocation2 + $0xed0] sm:$0xff]
    %v661 = vld [vmem:[#allocation2 + $0xed8] sm:$0xff]
    %v662 = vld [vmem:[#allocation2 + $0xee0] sm:$0xff]
    %v663 = vld [vmem:[#allocation2 + $0xee8] sm:$0xff]
    %v664 = vld [vmem:[#allocation2 + $0xef0] sm:$0xff]
    %v665 = vld [vmem:[#allocation2 + $0xef8] sm:$0xff]
    %v666 = vld [vmem:[#allocation2 + $0xf00] sm:$0xff]
    %v667 = vld [vmem:[#allocation2 + $0xf08] sm:$0xff]
    %v668 = vld [vmem:[#allocation2 + $0xf10] sm:$0xff]
    %v669 = vld [vmem:[#allocation2 + $0xf18] sm:$0xff]
    %v670 = vld [vmem:[#allocation2 + $0xf20] sm:$0xff]
    %v671 = vld [vmem:[#allocation2 + $0xf28] sm:$0xff]
    %v672 = vld [vmem:[#allocation2 + $0xf30] sm:$0xff]
    %v673 = vld [vmem:[#allocation2 + $0xf38] sm:$0xff]
    %v674 = vld [vmem:[#allocation2 + $0xf40] sm:$0xff]
    %v675 = vld [vmem:[#allocation2 + $0xf48] sm:$0xff]
    %v676 = vld [vmem:[#allocation2 + $0xf50] sm:$0xff]
    %v677 = vld [vmem:[#allocation2 + $0xf58] sm:$0xff]
    %v678 = vld [vmem:[#allocation2 + $0xf60] sm:$0xff]
    %v679 = vld [vmem:[#allocation2 + $0xf68] sm:$0xff]
    %v680 = vld [vmem:[#allocation2 + $0xf70] sm:$0xff]
    %v681 = vld [vmem:[#allocation2 + $0xf78] sm:$0xff]
    %v682 = vld [vmem:[#allocation2 + $0xf80] sm:$0xff]
    %v683 = vld [vmem:[#allocation2 + $0xf88] sm:$0xff]
    %v684 = vld [vmem:[#allocation2 + $0xf90] sm:$0xff]
    %v685 = vld [vmem:[#allocation2 + $0xf98] sm:$0xff]
    %v686 = vld [vmem:[#allocation2 + $0xfa0] sm:$0xff]
    %v687 = vld [vmem:[#allocation2 + $0xfa8] sm:$0xff]
    %v688 = vld [vmem:[#allocation2 + $0xfb0] sm:$0xff]
    %v689 = vld [vmem:[#allocation2 + $0xfb8] sm:$0xff]
    %v690 = vld [vmem:[#allocation2 + $0xfc0] sm:$0xff]
    %v691 = vld [vmem:[#allocation2 + $0xfc8] sm:$0xff]
    %v692 = vld [vmem:[#allocation2 + $0xfd0] sm:$0xff]
    %v693 = vld [vmem:[#allocation2 + $0xfd8] sm:$0xff]
    %v694 = vld [vmem:[#allocation2 + $0xfe0] sm:$0xff]
    %v695 = vld [vmem:[#allocation2 + $0xfe8] sm:$0xff]
    %v696 = vld [vmem:[#allocation2 + $0xff0] sm:$0xff]
    %v697 = vld [vmem:[#allocation2 + $0xff8] sm:$0xff]
    %v698 = vld [vmem:[#allocation2 + $0x1000] sm:$0xff]
    %v699 = vld [vmem:[#allocation2 + $0x1008] sm:$0xff]
    %v700 = vld [vmem:[#allocation2 + $0x1010] sm:$0xff]
    %v701 = vld [vmem:[#allocation2 + $0x1018] sm:$0xff]
    %v702 = vld [vmem:[#allocation2 + $0x1020] sm:$0xff]
    %v703 = vld [vmem:[#allocation2 + $0x1028] sm:$0xff]
    %v704 = vld [vmem:[#allocation2 + $0x1030] sm:$0xff]
    %v705 = vld [vmem:[#allocation2 + $0x1038] sm:$0xff]
    %v706 = vld [vmem:[#allocation2 + $0x1040] sm:$0xff]
    %v707 = vld [vmem:[#allocation2 + $0x1048] sm:$0xff]
    %v708 = vld [vmem:[#allocation2 + $0x1050] sm:$0xff]
    %v709 = vld [vmem:[#allocation2 + $0x1058] sm:$0xff]
    %v710 = vld [vmem:[#allocation2 + $0x1060] sm:$0xff]
    %v711 = vld [vmem:[#allocation2 + $0x1068] sm:$0xff]
    %v712 = vld [vmem:[#allocation2 + $0x1070] sm:$0xff]
    %v713 = vld [vmem:[#allocation2 + $0x1078] sm:$0xff]
    %v714 = vld [vmem:[#allocation2 + $0x1080] sm:$0xff]
    %v715 = vld [vmem:[#allocation2 + $0x1088] sm:$0xff]
    %v716 = vld [vmem:[#allocation2 + $0x1090] sm:$0xff]
    %v717 = vld [vmem:[#allocation2 + $0x1098] sm:$0xff]
    %v718 = vld [vmem:[#allocation2 + $0x10a0] sm:$0xff]
    %v719 = vld [vmem:[#allocation2 + $0x10a8] sm:$0xff]
    %v720 = vld [vmem:[#allocation2 + $0x10b0] sm:$0xff]
    %v721 = vld [vmem:[#allocation2 + $0x10b8] sm:$0xff]
    %v722 = vld [vmem:[#allocation2 + $0x10c0] sm:$0xff]
    %v723 = vld [vmem:[#allocation2 + $0x10c8] sm:$0xff]
    %v724 = vld [vmem:[#allocation2 + $0x10d0] sm:$0xff]
    %v725 = vld [vmem:[#allocation2 + $0x10d8] sm:$0xff]
    %v726 = vld [vmem:[#allocation2 + $0x10e0] sm:$0xff]
    %v727 = vld [vmem:[#allocation2 + $0x10e8] sm:$0xff]
    %v728 = vld [vmem:[#allocation2 + $0x10f0] sm:$0xff]
    %v729 = vld [vmem:[#allocation2 + $0x10f8] sm:$0xff]
    %v730 = vld [vmem:[#allocation2 + $0x1100] sm:$0xff]
    %v731 = vld [vmem:[#allocation2 + $0x1108] sm:$0xff]
    %v732 = vld [vmem:[#allocation2 + $0x1110] sm:$0xff]
    %v733 = vld [vmem:[#allocation2 + $0x1118] sm:$0xff]
    %v734 = vld [vmem:[#allocation2 + $0x1120] sm:$0xff]
    %v735 = vld [vmem:[#allocation2 + $0x1128] sm:$0xff]
    %v736 = vld [vmem:[#allocation2 + $0x1130] sm:$0xff]
    %v737 = vld [vmem:[#allocation2 + $0x1138] sm:$0xff]
    %v738 = vld [vmem:[#allocation2 + $0x1140] sm:$0xff]
    %v739 = vld [vmem:[#allocation2 + $0x1148] sm:$0xff]
    %v740 = vld [vmem:[#allocation2 + $0x1150] sm:$0xff]
    %v741 = vld [vmem:[#allocation2 + $0x1158] sm:$0xff]
    %v742 = vld [vmem:[#allocation2 + $0x1160] sm:$0xff]
    %v743 = vld [vmem:[#allocation2 + $0x1168] sm:$0xff]
    %v744 = vld [vmem:[#allocation2 + $0x1170] sm:$0xff]
    %v745 = vld [vmem:[#allocation2 + $0x1178] sm:$0xff]
    %v746 = vld [vmem:[#allocation2 + $0x1180] sm:$0xff]
    %v747 = vld [vmem:[#allocation2 + $0x1188] sm:$0xff]
    %v748 = vld [vmem:[#allocation2 + $0x1190] sm:$0xff]
    %v749 = vld [vmem:[#allocation2 + $0x1198] sm:$0xff]
    %v750 = vld [vmem:[#allocation2 + $0x11a0] sm:$0xff]
    %v751 = vld [vmem:[#allocation2 + $0x11a8] sm:$0xff]
    %v752 = vld [vmem:[#allocation2 + $0x11b0] sm:$0xff]
    %v753 = vld [vmem:[#allocation2 + $0x11b8] sm:$0xff]
    %v754 = vld [vmem:[#allocation2 + $0x11c0] sm:$0xff]
    %v755 = vld [vmem:[#allocation2 + $0x11c8] sm:$0xff]
    %v756 = vld [vmem:[#allocation2 + $0x11d0] sm:$0xff]
    %v757 = vld [vmem:[#allocation2 + $0x11d8] sm:$0xff]
    %v758 = vld [vmem:[#allocation2 + $0x11e0] sm:$0xff]
    %v759 = vld [vmem:[#allocation2 + $0x11e8] sm:$0xff]
    %v760 = vld [vmem:[#allocation2 + $0x11f0] sm:$0xff]
    %v761 = vld [vmem:[#allocation2 + $0x11f8] sm:$0xff]
    %v762 = vld [vmem:[#allocation2 + $0x1200] sm:$0xff]
    %v763 = vld [vmem:[#allocation2 + $0x1208] sm:$0xff]
    %v764 = vld [vmem:[#allocation2 + $0x1210] sm:$0xff]
    %v765 = vld [vmem:[#allocation2 + $0x1218] sm:$0xff]
    %v766 = vld [vmem:[#allocation2 + $0x1220] sm:$0xff]
    %v767 = vld [vmem:[#allocation2 + $0x1228] sm:$0xff]
    %v768 = vld [vmem:[#allocation2 + $0x1230] sm:$0xff]
    %v769 = vld [vmem:[#allocation2 + $0x1238] sm:$0xff]
    %v770 = vld [vmem:[#allocation2 + $0x1240] sm:$0xff]
    %v771 = vld [vmem:[#allocation2 + $0x1248] sm:$0xff]
    %v772 = vld [vmem:[#allocation2 + $0x1250] sm:$0xff]
    %v773 = vld [vmem:[#allocation2 + $0x1258] sm:$0xff]
    %v774 = vld [vmem:[#allocation2 + $0x1260] sm:$0xff]
    %v775 = vld [vmem:[#allocation2 + $0x1268] sm:$0xff]
    %v776 = vld [vmem:[#allocation2 + $0x1270] sm:$0xff]
    %v777 = vld [vmem:[#allocation2 + $0x1278] sm:$0xff]
    %v778 = vld [vmem:[#allocation2 + $0x1280] sm:$0xff]
    %v779 = vld [vmem:[#allocation2 + $0x1288] sm:$0xff]
    %v780 = vld [vmem:[#allocation2 + $0x1290] sm:$0xff]
    %v781 = vld [vmem:[#allocation2 + $0x1298] sm:$0xff]
    %v782 = vld [vmem:[#allocation2 + $0x12a0] sm:$0xff]
    %v783 = vld [vmem:[#allocation2 + $0x12a8] sm:$0xff]
    %v784 = vld [vmem:[#allocation2 + $0x12b0] sm:$0xff]
    %v785 = vld [vmem:[#allocation2 + $0x12b8] sm:$0xff]
    %v786 = vld [vmem:[#allocation2 + $0x12c0] sm:$0xff]
    %v787 = vld [vmem:[#allocation2 + $0x12c8] sm:$0xff]
    %v788 = vld [vmem:[#allocation2 + $0x12d0] sm:$0xff]
    %v789 = vld [vmem:[#allocation2 + $0x12d8] sm:$0xff]
    %v790 = vld [vmem:[#allocation2 + $0x12e0] sm:$0xff]
    %v791 = vld [vmem:[#allocation2 + $0x12e8] sm:$0xff]
    %v792 = vld [vmem:[#allocation2 + $0x12f0] sm:$0xff]
    %v793 = vld [vmem:[#allocation2 + $0x12f8] sm:$0xff]
    %v794 = vld [vmem:[#allocation2 + $0x1300] sm:$0xff]
    %v795 = vld [vmem:[#allocation2 + $0x1308] sm:$0xff]
    %v796 = vld [vmem:[#allocation2 + $0x1310] sm:$0xff]
    %v797 = vld [vmem:[#allocation2 + $0x1318] sm:$0xff]
    %v798 = vld [vmem:[#allocation2 + $0x1320] sm:$0xff]
    %v799 = vld [vmem:[#allocation2 + $0x1328] sm:$0xff]
    %v800 = vld [vmem:[#allocation2 + $0x1330] sm:$0xff]
    %v801 = vld [vmem:[#allocation2 + $0x1338] sm:$0xff]
    %v802 = vld [vmem:[#allocation2 + $0x1340] sm:$0xff]
    %v803 = vld [vmem:[#allocation2 + $0x1348] sm:$0xff]
    %v804 = vld [vmem:[#allocation2 + $0x1350] sm:$0xff]
    %v805 = vld [vmem:[#allocation2 + $0x1358] sm:$0xff]
    %v806 = vld [vmem:[#allocation2 + $0x1360] sm:$0xff]
    %v807 = vld [vmem:[#allocation2 + $0x1368] sm:$0xff]
    %v808 = vld [vmem:[#allocation2 + $0x1370] sm:$0xff]
    %v809 = vld [vmem:[#allocation2 + $0x1378] sm:$0xff]
    %v810 = vld [vmem:[#allocation2 + $0x1380] sm:$0xff]
    %v811 = vld [vmem:[#allocation2 + $0x1388] sm:$0xff]
    %v812 = vld [vmem:[#allocation2 + $0x1390] sm:$0xff]
    %v813 = vld [vmem:[#allocation2 + $0x1398] sm:$0xff]
    %v814 = vld [vmem:[#allocation2 + $0x13a0] sm:$0xff]
    %v815 = vld [vmem:[#allocation2 + $0x13a8] sm:$0xff]
    %v816 = vld [vmem:[#allocation2 + $0x13b0] sm:$0xff]
    %v817 = vld [vmem:[#allocation2 + $0x13b8] sm:$0xff]
    %v818 = vld [vmem:[#allocation2 + $0x13c0] sm:$0xff]
    %v819 = vld [vmem:[#allocation2 + $0x13c8] sm:$0xff]
    %v820 = vld [vmem:[#allocation2 + $0x13d0] sm:$0xff]
    %v821 = vld [vmem:[#allocation2 + $0x13d8] sm:$0xff]
    %v822 = vld [vmem:[#allocation2 + $0x13e0] sm:$0xff]
    %v823 = vld [vmem:[#allocation2 + $0x13e8] sm:$0xff]
    %v824 = vld [vmem:[#allocation2 + $0x13f0] sm:$0xff]
    %v825 = vld [vmem:[#allocation2 + $0x13f8] sm:$0xff]
    %v826 = vld [vmem:[#allocation5] sm:$0xff]
    %v828 = vlaneseq
    %v829 = vshrl.u32 %v828, 7
    %v830 = vsub.s32 0, %v829
    %v831 = vrot.slane %v826, %v830
    %v832 = vlaneseq
    %v833 = vshrl.u32 %v832, 7
    %v834 = vsub.s32 1, %v833
    %v835 = vrot.slane %v826, %v834
    %v836 = vlaneseq
    %v837 = vshrl.u32 %v836, 7
    %v838 = vsub.s32 2, %v837
    %v839 = vrot.slane %v826, %v838
    %v840 = vlaneseq
    %v841 = vshrl.u32 %v840, 7
    %v842 = vsub.s32 3, %v841
    %v843 = vrot.slane %v826, %v842
    %v844 = vlaneseq
    %v845 = vshrl.u32 %v844, 7
    %v846 = vsub.s32 4, %v845
    %v847 = vrot.slane %v826, %v846
    %v848 = vlaneseq
    %v849 = vshrl.u32 %v848, 7
    %v850 = vsub.s32 5, %v849
    %v851 = vrot.slane %v826, %v850
    %v852 = vlaneseq
    %v853 = vshrl.u32 %v852, 7
    %v854 = vsub.s32 6, %v853
    %v855 = vrot.slane %v826, %v854
    %v856 = vlaneseq
    %v857 = vshrl.u32 %v856, 7
    %v858 = vsub.s32 7, %v857
    %v859 = vrot.slane %v826, %v858
    %v888 = vunpack.c.l.b16 %v166
    %v889 = vunpack.c.l.b16 %v167
    %v890 = vunpack.c.l.b16 %v168
    %v891 = vunpack.c.l.b16 %v169
    %v892 = vunpack.c.l.b16 %v170
    %v893 = vunpack.c.l.b16 %v171
    %v894 = vunpack.c.l.b16 %v172
    %v895 = vunpack.c.l.b16 %v173
    %v896 = vunpack.c.l.b16 %v174
    %v897 = vunpack.c.l.b16 %v175
    %v898 = vunpack.c.l.b16 %v176
    %v899 = vunpack.c.l.b16 %v177
    %v900 = vunpack.c.l.b16 %v178
    %v901 = vunpack.c.l.b16 %v179
    %v902 = vunpack.c.l.b16 %v180
    %v903 = vunpack.c.l.b16 %v181
    %v904 = vunpack.c.l.b16 %v182
    %v905 = vunpack.c.l.b16 %v183
    %v906 = vunpack.c.l.b16 %v184
    %v907 = vunpack.c.l.b16 %v185
    %v908 = vrot.slane %v898, 7
    %vm909 = vcmask 1041409
    %v910 = vsel %vm909, %v908, %v888
    %v911 = vrot.slane %v899, 7
    %v912 = vsel %vm909, %v911, %v889
    %v913 = vrot.slane %v900, 7
    %v914 = vsel %vm909, %v913, %v890
    %v915 = vrot.slane %v901, 7
    %v916 = vsel %vm909, %v915, %v891
    %v917 = vrot.slane %v902, 7
    %v918 = vsel %vm909, %v917, %v892
    %v919 = vrot.slane %v903, 7
    %v920 = vsel %vm909, %v919, %v893
    %v921 = vrot.slane %v904, 7
    %v922 = vsel %vm909, %v921, %v894
    %v923 = vrot.slane %v905, 7
    %v924 = vsel %vm909, %v923, %v895
    %v925 = vrot.slane %v906, 7
    %v926 = vsel %vm909, %v925, %v896
    %v927 = vrot.slane %v907, 7
    %v928 = vsel %vm909, %v927, %v897
    %v929 = vpack.c.b16 %v910, %v910
    %v930 = vpack.c.b16 %v912, %v912
    %v931 = vpack.c.b16 %v914, %v914
    %v932 = vpack.c.b16 %v916, %v916
    %v933 = vpack.c.b16 %v918, %v918
    %v934 = vpack.c.b16 %v920, %v920
    %v935 = vpack.c.b16 %v922, %v922
    %v936 = vpack.c.b16 %v924, %v924
    %v937 = vpack.c.b16 %v926, %v926
    %v938 = vpack.c.b16 %v928, %v928
    %v1589 = vunpack.c.l.b16 %v186
    %v1590 = vunpack.c.h.b16 %v186
    %v1591 = vunpack.c.l.b16 %v187
    %v1592 = vunpack.c.h.b16 %v187
    %v1593 = vunpack.c.l.b16 %v188
    %v1594 = vunpack.c.h.b16 %v188
    %v1595 = vunpack.c.l.b16 %v189
    %v1596 = vunpack.c.h.b16 %v189
    %v1597 = vunpack.c.l.b16 %v190
    %v1598 = vunpack.c.h.b16 %v190
    %v1599 = vunpack.c.l.b16 %v191
    %v1600 = vunpack.c.h.b16 %v191
    %v1601 = vunpack.c.l.b16 %v192
    %v1602 = vunpack.c.h.b16 %v192
    %v1603 = vunpack.c.l.b16 %v193
    %v1604 = vunpack.c.h.b16 %v193
    %v1605 = vunpack.c.l.b16 %v194
    %v1606 = vunpack.c.h.b16 %v194
    %v1607 = vunpack.c.l.b16 %v195
    %v1608 = vunpack.c.h.b16 %v195
    %v1609 = vunpack.c.l.b16 %v196
    %v1610 = vunpack.c.h.b16 %v196
    %v1611 = vunpack.c.l.b16 %v197
    %v1612 = vunpack.c.h.b16 %v197
    %v1613 = vunpack.c.l.b16 %v198
    %v1614 = vunpack.c.h.b16 %v198
    %v1615 = vunpack.c.l.b16 %v199
    %v1616 = vunpack.c.h.b16 %v199
    %v1617 = vunpack.c.l.b16 %v200
    %v1618 = vunpack.c.h.b16 %v200
    %v1619 = vunpack.c.l.b16 %v201
    %v1620 = vunpack.c.h.b16 %v201
    %v1621 = vunpack.c.l.b16 %v202
    %v1622 = vunpack.c.h.b16 %v202
    %v1623 = vunpack.c.l.b16 %v203
    %v1624 = vunpack.c.h.b16 %v203
    %v1625 = vunpack.c.l.b16 %v204
    %v1626 = vunpack.c.h.b16 %v204
    %v1627 = vunpack.c.l.b16 %v205
    %v1628 = vunpack.c.h.b16 %v205
    %v1629 = vunpack.c.l.b16 %v206
    %v1630 = vunpack.c.h.b16 %v206
    %v1631 = vunpack.c.l.b16 %v207
    %v1632 = vunpack.c.h.b16 %v207
    %v1633 = vunpack.c.l.b16 %v208
    %v1634 = vunpack.c.h.b16 %v208
    %v1635 = vunpack.c.l.b16 %v209
    %v1636 = vunpack.c.h.b16 %v209
    %v1637 = vunpack.c.l.b16 %v210
    %v1638 = vunpack.c.h.b16 %v210
    %v1639 = vunpack.c.l.b16 %v211
    %v1640 = vunpack.c.h.b16 %v211
    %v1641 = vunpack.c.l.b16 %v212
    %v1642 = vunpack.c.h.b16 %v212
    %v1643 = vunpack.c.l.b16 %v213
    %v1644 = vunpack.c.h.b16 %v213
    %v1645 = vunpack.c.l.b16 %v214
    %v1646 = vunpack.c.h.b16 %v214
    %v1647 = vunpack.c.l.b16 %v215
    %v1648 = vunpack.c.h.b16 %v215
    %v1649 = vunpack.c.l.b16 %v216
    %v1650 = vunpack.c.h.b16 %v216
    %v1651 = vunpack.c.l.b16 %v217
    %v1652 = vunpack.c.h.b16 %v217
    %v1653 = vunpack.c.l.b16 %v218
    %v1654 = vunpack.c.h.b16 %v218
    %v1655 = vunpack.c.l.b16 %v219
    %v1656 = vunpack.c.h.b16 %v219
    %v1657 = vunpack.c.l.b16 %v220
    %v1658 = vunpack.c.h.b16 %v220
    %v1659 = vunpack.c.l.b16 %v221
    %v1660 = vunpack.c.h.b16 %v221
    %v1661 = vunpack.c.l.b16 %v222
    %v1662 = vunpack.c.h.b16 %v222
    %v1663 = vunpack.c.l.b16 %v223
    %v1664 = vunpack.c.h.b16 %v223
    %v1665 = vunpack.c.l.b16 %v224
    %v1666 = vunpack.c.h.b16 %v224
    %v1667 = vunpack.c.l.b16 %v225
    %v1668 = vunpack.c.h.b16 %v225
    %v1669 = vunpack.c.l.b16 %v226
    %v1670 = vunpack.c.h.b16 %v226
    %v1671 = vunpack.c.l.b16 %v227
    %v1672 = vunpack.c.h.b16 %v227
    %v1673 = vunpack.c.l.b16 %v228
    %v1674 = vunpack.c.h.b16 %v228
    %v1675 = vunpack.c.l.b16 %v229
    %v1676 = vunpack.c.h.b16 %v229
    %v1677 = vunpack.c.l.b16 %v230
    %v1678 = vunpack.c.h.b16 %v230
    %v1679 = vunpack.c.l.b16 %v231
    %v1680 = vunpack.c.h.b16 %v231
    %v1681 = vunpack.c.l.b16 %v232
    %v1682 = vunpack.c.h.b16 %v232
    %v1683 = vunpack.c.l.b16 %v233
    %v1684 = vunpack.c.h.b16 %v233
    %v1685 = vunpack.c.l.b16 %v234
    %v1686 = vunpack.c.h.b16 %v234
    %v1687 = vunpack.c.l.b16 %v235
    %v1688 = vunpack.c.h.b16 %v235
    %v1689 = vunpack.c.l.b16 %v236
    %v1690 = vunpack.c.h.b16 %v236
    %v1691 = vunpack.c.l.b16 %v237
    %v1692 = vunpack.c.h.b16 %v237
    %v1693 = vunpack.c.l.b16 %v238
    %v1694 = vunpack.c.h.b16 %v238
    %v1695 = vunpack.c.l.b16 %v239
    %v1696 = vunpack.c.h.b16 %v239
    %v1697 = vunpack.c.l.b16 %v240
    %v1698 = vunpack.c.h.b16 %v240
    %v1699 = vunpack.c.l.b16 %v241
    %v1700 = vunpack.c.h.b16 %v241
    %v1701 = vunpack.c.l.b16 %v242
    %v1702 = vunpack.c.h.b16 %v242
    %v1703 = vunpack.c.l.b16 %v243
    %v1704 = vunpack.c.h.b16 %v243
    %v1705 = vunpack.c.l.b16 %v244
    %v1706 = vunpack.c.h.b16 %v244
    %v1707 = vunpack.c.l.b16 %v245
    %v1708 = vunpack.c.h.b16 %v245
    %v1709 = vunpack.c.l.b16 %v246
    %v1710 = vunpack.c.h.b16 %v246
    %v1711 = vunpack.c.l.b16 %v247
    %v1712 = vunpack.c.h.b16 %v247
    %v1713 = vunpack.c.l.b16 %v248
    %v1714 = vunpack.c.h.b16 %v248
    %v1715 = vunpack.c.l.b16 %v249
    %v1716 = vunpack.c.h.b16 %v249
    %v1717 = vunpack.c.l.b16 %v250
    %v1718 = vunpack.c.h.b16 %v250
    %v1719 = vunpack.c.l.b16 %v251
    %v1720 = vunpack.c.h.b16 %v251
    %v1721 = vunpack.c.l.b16 %v252
    %v1722 = vunpack.c.h.b16 %v252
    %v1723 = vunpack.c.l.b16 %v253
    %v1724 = vunpack.c.h.b16 %v253
    %v1725 = vunpack.c.l.b16 %v254
    %v1726 = vunpack.c.h.b16 %v254
    %v1727 = vunpack.c.l.b16 %v255
    %v1728 = vunpack.c.h.b16 %v255
    %v1729 = vunpack.c.l.b16 %v256
    %v1730 = vunpack.c.h.b16 %v256
    %v1731 = vunpack.c.l.b16 %v257
    %v1732 = vunpack.c.h.b16 %v257
    %v1733 = vunpack.c.l.b16 %v258
    %v1734 = vunpack.c.h.b16 %v258
    %v1735 = vunpack.c.l.b16 %v259
    %v1736 = vunpack.c.h.b16 %v259
    %v1737 = vunpack.c.l.b16 %v260
    %v1738 = vunpack.c.h.b16 %v260
    %v1739 = vunpack.c.l.b16 %v261
    %v1740 = vunpack.c.h.b16 %v261
    %v1741 = vunpack.c.l.b16 %v262
    %v1742 = vunpack.c.h.b16 %v262
    %v1743 = vunpack.c.l.b16 %v263
    %v1744 = vunpack.c.h.b16 %v263
    %v1745 = vunpack.c.l.b16 %v264
    %v1746 = vunpack.c.h.b16 %v264
    %v1747 = vunpack.c.l.b16 %v265
    %v1748 = vunpack.c.h.b16 %v265
    %v1749 = vunpack.c.l.b16 %v266
    %v1750 = vunpack.c.h.b16 %v266
    %v1751 = vunpack.c.l.b16 %v267
    %v1752 = vunpack.c.h.b16 %v267
    %v1753 = vunpack.c.l.b16 %v268
    %v1754 = vunpack.c.h.b16 %v268
    %v1755 = vunpack.c.l.b16 %v269
    %v1756 = vunpack.c.h.b16 %v269
    %v1757 = vunpack.c.l.b16 %v270
    %v1758 = vunpack.c.h.b16 %v270
    %v1759 = vunpack.c.l.b16 %v271
    %v1760 = vunpack.c.h.b16 %v271
    %v1761 = vunpack.c.l.b16 %v272
    %v1762 = vunpack.c.h.b16 %v272
    %v1763 = vunpack.c.l.b16 %v273
    %v1764 = vunpack.c.h.b16 %v273
    %v1765 = vunpack.c.l.b16 %v274
    %v1766 = vunpack.c.h.b16 %v274
    %v1767 = vunpack.c.l.b16 %v275
    %v1768 = vunpack.c.h.b16 %v275
    %v1769 = vunpack.c.l.b16 %v276
    %v1770 = vunpack.c.h.b16 %v276
    %v1771 = vunpack.c.l.b16 %v277
    %v1772 = vunpack.c.h.b16 %v277
    %v1773 = vunpack.c.l.b16 %v278
    %v1774 = vunpack.c.h.b16 %v278
    %v1775 = vunpack.c.l.b16 %v279
    %v1776 = vunpack.c.h.b16 %v279
    %v1777 = vunpack.c.l.b16 %v280
    %v1778 = vunpack.c.h.b16 %v280
    %v1779 = vunpack.c.l.b16 %v281
    %v1780 = vunpack.c.h.b16 %v281
    %v1781 = vunpack.c.l.b16 %v282
    %v1782 = vunpack.c.h.b16 %v282
    %v1783 = vunpack.c.l.b16 %v283
    %v1784 = vunpack.c.h.b16 %v283
    %v1785 = vunpack.c.l.b16 %v284
    %v1786 = vunpack.c.h.b16 %v284
    %v1787 = vunpack.c.l.b16 %v285
    %v1788 = vunpack.c.h.b16 %v285
    %v1789 = vunpack.c.l.b16 %v286
    %v1790 = vunpack.c.h.b16 %v286
    %v1791 = vunpack.c.l.b16 %v287
    %v1792 = vunpack.c.h.b16 %v287
    %v1793 = vunpack.c.l.b16 %v288
    %v1794 = vunpack.c.h.b16 %v288
    %v1795 = vunpack.c.l.b16 %v289
    %v1796 = vunpack.c.h.b16 %v289
    %v1797 = vunpack.c.l.b16 %v290
    %v1798 = vunpack.c.h.b16 %v290
    %v1799 = vunpack.c.l.b16 %v291
    %v1800 = vunpack.c.h.b16 %v291
    %v1801 = vunpack.c.l.b16 %v292
    %v1802 = vunpack.c.h.b16 %v292
    %v1803 = vunpack.c.l.b16 %v293
    %v1804 = vunpack.c.h.b16 %v293
    %v1805 = vunpack.c.l.b16 %v294
    %v1806 = vunpack.c.h.b16 %v294
    %v1807 = vunpack.c.l.b16 %v295
    %v1808 = vunpack.c.h.b16 %v295
    %v1809 = vunpack.c.l.b16 %v296
    %v1810 = vunpack.c.h.b16 %v296
    %v1811 = vunpack.c.l.b16 %v297
    %v1812 = vunpack.c.h.b16 %v297
    %v1813 = vunpack.c.l.b16 %v298
    %v1814 = vunpack.c.h.b16 %v298
    %v1815 = vunpack.c.l.b16 %v299
    %v1816 = vunpack.c.h.b16 %v299
    %v1817 = vunpack.c.l.b16 %v300
    %v1818 = vunpack.c.h.b16 %v300
    %v1819 = vunpack.c.l.b16 %v301
    %v1820 = vunpack.c.h.b16 %v301
    %v1821 = vunpack.c.l.b16 %v302
    %v1822 = vunpack.c.h.b16 %v302
    %v1823 = vunpack.c.l.b16 %v303
    %v1824 = vunpack.c.h.b16 %v303
    %v1825 = vunpack.c.l.b16 %v304
    %v1826 = vunpack.c.h.b16 %v304
    %v1827 = vunpack.c.l.b16 %v305
    %v1828 = vunpack.c.h.b16 %v305
    %v1829 = vunpack.c.l.b16 %v306
    %v1830 = vunpack.c.h.b16 %v306
    %v1831 = vunpack.c.l.b16 %v307
    %v1832 = vunpack.c.h.b16 %v307
    %v1833 = vunpack.c.l.b16 %v308
    %v1834 = vunpack.c.h.b16 %v308
    %v1835 = vunpack.c.l.b16 %v309
    %v1836 = vunpack.c.h.b16 %v309
    %v1837 = vunpack.c.l.b16 %v310
    %v1838 = vunpack.c.h.b16 %v310
    %v1839 = vunpack.c.l.b16 %v311
    %v1840 = vunpack.c.h.b16 %v311
    %v1841 = vunpack.c.l.b16 %v312
    %v1842 = vunpack.c.h.b16 %v312
    %v1843 = vunpack.c.l.b16 %v313
    %v1844 = vunpack.c.h.b16 %v313
    %v1845 = vunpack.c.l.b16 %v314
    %v1846 = vunpack.c.h.b16 %v314
    %v1847 = vunpack.c.l.b16 %v315
    %v1848 = vunpack.c.h.b16 %v315
    %v1849 = vunpack.c.l.b16 %v316
    %v1850 = vunpack.c.h.b16 %v316
    %v1851 = vunpack.c.l.b16 %v317
    %v1852 = vunpack.c.h.b16 %v317
    %v1853 = vunpack.c.l.b16 %v318
    %v1854 = vunpack.c.h.b16 %v318
    %v1855 = vunpack.c.l.b16 %v319
    %v1856 = vunpack.c.h.b16 %v319
    %v1857 = vunpack.c.l.b16 %v320
    %v1858 = vunpack.c.h.b16 %v320
    %v1859 = vunpack.c.l.b16 %v321
    %v1860 = vunpack.c.h.b16 %v321
    %v1861 = vunpack.c.l.b16 %v322
    %v1862 = vunpack.c.h.b16 %v322
    %v1863 = vunpack.c.l.b16 %v323
    %v1864 = vunpack.c.h.b16 %v323
    %v1865 = vunpack.c.l.b16 %v324
    %v1866 = vunpack.c.h.b16 %v324
    %v1867 = vunpack.c.l.b16 %v325
    %v1868 = vunpack.c.h.b16 %v325
    %v1869 = vunpack.c.l.b16 %v326
    %v1870 = vunpack.c.h.b16 %v326
    %v1871 = vunpack.c.l.b16 %v327
    %v1872 = vunpack.c.h.b16 %v327
    %v1873 = vunpack.c.l.b16 %v328
    %v1874 = vunpack.c.h.b16 %v328
    %v1875 = vunpack.c.l.b16 %v329
    %v1876 = vunpack.c.h.b16 %v329
    %v1877 = vunpack.c.l.b16 %v330
    %v1878 = vunpack.c.h.b16 %v330
    %v1879 = vunpack.c.l.b16 %v331
    %v1880 = vunpack.c.h.b16 %v331
    %v1881 = vunpack.c.l.b16 %v332
    %v1882 = vunpack.c.h.b16 %v332
    %v1883 = vunpack.c.l.b16 %v333
    %v1884 = vunpack.c.h.b16 %v333
    %v1885 = vunpack.c.l.b16 %v334
    %v1886 = vunpack.c.h.b16 %v334
    %v1887 = vunpack.c.l.b16 %v335
    %v1888 = vunpack.c.h.b16 %v335
    %v1889 = vunpack.c.l.b16 %v336
    %v1890 = vunpack.c.h.b16 %v336
    %v1891 = vunpack.c.l.b16 %v337
    %v1892 = vunpack.c.h.b16 %v337
    %v1893 = vunpack.c.l.b16 %v338
    %v1894 = vunpack.c.h.b16 %v338
    %v1895 = vunpack.c.l.b16 %v339
    %v1896 = vunpack.c.h.b16 %v339
    %v1897 = vunpack.c.l.b16 %v340
    %v1898 = vunpack.c.h.b16 %v340
    %v1899 = vunpack.c.l.b16 %v341
    %v1900 = vunpack.c.h.b16 %v341
    %v1901 = vunpack.c.l.b16 %v342
    %v1902 = vunpack.c.h.b16 %v342
    %v1903 = vunpack.c.l.b16 %v343
    %v1904 = vunpack.c.h.b16 %v343
    %v1905 = vunpack.c.l.b16 %v344
    %v1906 = vunpack.c.h.b16 %v344
    %v1907 = vunpack.c.l.b16 %v345
    %v1908 = vunpack.c.h.b16 %v345
    %v1909 = vunpack.c.l.b16 %v346
    %v1910 = vunpack.c.h.b16 %v346
    %v1911 = vunpack.c.l.b16 %v347
    %v1912 = vunpack.c.h.b16 %v347
    %v1913 = vunpack.c.l.b16 %v348
    %v1914 = vunpack.c.h.b16 %v348
    %v1915 = vunpack.c.l.b16 %v349
    %v1916 = vunpack.c.h.b16 %v349
    %v1917 = vunpack.c.l.b16 %v350
    %v1918 = vunpack.c.h.b16 %v350
    %v1919 = vunpack.c.l.b16 %v351
    %v1920 = vunpack.c.h.b16 %v351
    %v1921 = vunpack.c.l.b16 %v352
    %v1922 = vunpack.c.h.b16 %v352
    %v1923 = vunpack.c.l.b16 %v353
    %v1924 = vunpack.c.h.b16 %v353
    %v1925 = vunpack.c.l.b16 %v354
    %v1926 = vunpack.c.h.b16 %v354
    %v1927 = vunpack.c.l.b16 %v355
    %v1928 = vunpack.c.h.b16 %v355
    %v1929 = vunpack.c.l.b16 %v356
    %v1930 = vunpack.c.h.b16 %v356
    %v1931 = vunpack.c.l.b16 %v357
    %v1932 = vunpack.c.h.b16 %v357
    %v1933 = vunpack.c.l.b16 %v358
    %v1934 = vunpack.c.h.b16 %v358
    %v1935 = vunpack.c.l.b16 %v359
    %v1936 = vunpack.c.h.b16 %v359
    %v1937 = vunpack.c.l.b16 %v360
    %v1938 = vunpack.c.h.b16 %v360
    %v1939 = vunpack.c.l.b16 %v361
    %v1940 = vunpack.c.h.b16 %v361
    %v1941 = vunpack.c.l.b16 %v362
    %v1942 = vunpack.c.h.b16 %v362
    %v1943 = vunpack.c.l.b16 %v363
    %v1944 = vunpack.c.h.b16 %v363
    %v1945 = vunpack.c.l.b16 %v364
    %v1946 = vunpack.c.h.b16 %v364
    %v1947 = vunpack.c.l.b16 %v365
    %v1948 = vunpack.c.h.b16 %v365
    %v1949 = vunpack.c.l.b16 %v366
    %v1950 = vunpack.c.h.b16 %v366
    %v1951 = vunpack.c.l.b16 %v367
    %v1952 = vunpack.c.h.b16 %v367
    %v1953 = vunpack.c.l.b16 %v368
    %v1954 = vunpack.c.h.b16 %v368
    %v1955 = vunpack.c.l.b16 %v369
    %v1956 = vunpack.c.h.b16 %v369
    %v1957 = vunpack.c.l.b16 %v370
    %v1958 = vunpack.c.h.b16 %v370
    %v1959 = vunpack.c.l.b16 %v371
    %v1960 = vunpack.c.h.b16 %v371
    %v1961 = vunpack.c.l.b16 %v372
    %v1962 = vunpack.c.h.b16 %v372
    %v1963 = vunpack.c.l.b16 %v373
    %v1964 = vunpack.c.h.b16 %v373
    %v1965 = vunpack.c.l.b16 %v374
    %v1966 = vunpack.c.h.b16 %v374
    %v1967 = vunpack.c.l.b16 %v375
    %v1968 = vunpack.c.h.b16 %v375
    %v1969 = vunpack.c.l.b16 %v376
    %v1970 = vunpack.c.h.b16 %v376
    %v1971 = vunpack.c.l.b16 %v377
    %v1972 = vunpack.c.h.b16 %v377
    %v1973 = vunpack.c.l.b16 %v378
    %v1974 = vunpack.c.h.b16 %v378
    %v1975 = vunpack.c.l.b16 %v379
    %v1976 = vunpack.c.h.b16 %v379
    %v1977 = vunpack.c.l.b16 %v380
    %v1978 = vunpack.c.h.b16 %v380
    %v1979 = vunpack.c.l.b16 %v381
    %v1980 = vunpack.c.h.b16 %v381
    %v1981 = vunpack.c.l.b16 %v382
    %v1982 = vunpack.c.h.b16 %v382
    %v1983 = vunpack.c.l.b16 %v383
    %v1984 = vunpack.c.h.b16 %v383
    %v1985 = vunpack.c.l.b16 %v384
    %v1986 = vunpack.c.h.b16 %v384
    %v1987 = vunpack.c.l.b16 %v385
    %v1988 = vunpack.c.h.b16 %v385
    %v1989 = vunpack.c.l.b16 %v386
    %v1990 = vunpack.c.h.b16 %v386
    %v1991 = vunpack.c.l.b16 %v387
    %v1992 = vunpack.c.h.b16 %v387
    %v1993 = vunpack.c.l.b16 %v388
    %v1994 = vunpack.c.h.b16 %v388
    %v1995 = vunpack.c.l.b16 %v389
    %v1996 = vunpack.c.h.b16 %v389
    %v1997 = vunpack.c.l.b16 %v390
    %v1998 = vunpack.c.h.b16 %v390
    %v1999 = vunpack.c.l.b16 %v391
    %v2000 = vunpack.c.h.b16 %v391
    %v2001 = vunpack.c.l.b16 %v392
    %v2002 = vunpack.c.h.b16 %v392
    %v2003 = vunpack.c.l.b16 %v393
    %v2004 = vunpack.c.h.b16 %v393
    %v2005 = vunpack.c.l.b16 %v394
    %v2006 = vunpack.c.h.b16 %v394
    %v2007 = vunpack.c.l.b16 %v395
    %v2008 = vunpack.c.h.b16 %v395
    %v2009 = vunpack.c.l.b16 %v396
    %v2010 = vunpack.c.h.b16 %v396
    %v2011 = vunpack.c.l.b16 %v397
    %v2012 = vunpack.c.h.b16 %v397
    %v2013 = vunpack.c.l.b16 %v398
    %v2014 = vunpack.c.h.b16 %v398
    %v2015 = vunpack.c.l.b16 %v399
    %v2016 = vunpack.c.h.b16 %v399
    %v2017 = vunpack.c.l.b16 %v400
    %v2018 = vunpack.c.h.b16 %v400
    %v2019 = vunpack.c.l.b16 %v401
    %v2020 = vunpack.c.h.b16 %v401
    %v2021 = vunpack.c.l.b16 %v402
    %v2022 = vunpack.c.h.b16 %v402
    %v2023 = vunpack.c.l.b16 %v403
    %v2024 = vunpack.c.h.b16 %v403
    %v2025 = vunpack.c.l.b16 %v404
    %v2026 = vunpack.c.h.b16 %v404
    %v2027 = vunpack.c.l.b16 %v405
    %v2028 = vunpack.c.h.b16 %v405
    %v2029 = vunpack.c.l.b16 %v406
    %v2030 = vunpack.c.h.b16 %v406
    %v2031 = vunpack.c.l.b16 %v407
    %v2032 = vunpack.c.h.b16 %v407
    %v2033 = vunpack.c.l.b16 %v408
    %v2034 = vunpack.c.h.b16 %v408
    %v2035 = vunpack.c.l.b16 %v409
    %v2036 = vunpack.c.h.b16 %v409
    %v2037 = vunpack.c.l.b16 %v410
    %v2038 = vunpack.c.h.b16 %v410
    %v2039 = vunpack.c.l.b16 %v411
    %v2040 = vunpack.c.h.b16 %v411
    %v2041 = vunpack.c.l.b16 %v412
    %v2042 = vunpack.c.h.b16 %v412
    %v2043 = vunpack.c.l.b16 %v413
    %v2044 = vunpack.c.h.b16 %v413
    %v2045 = vunpack.c.l.b16 %v414
    %v2046 = vunpack.c.h.b16 %v414
    %v2047 = vunpack.c.l.b16 %v415
    %v2048 = vunpack.c.h.b16 %v415
    %v2049 = vunpack.c.l.b16 %v416
    %v2050 = vunpack.c.h.b16 %v416
    %v2051 = vunpack.c.l.b16 %v417
    %v2052 = vunpack.c.h.b16 %v417
    %v2053 = vunpack.c.l.b16 %v418
    %v2054 = vunpack.c.h.b16 %v418
    %v2055 = vunpack.c.l.b16 %v419
    %v2056 = vunpack.c.h.b16 %v419
    %v2057 = vunpack.c.l.b16 %v420
    %v2058 = vunpack.c.h.b16 %v420
    %v2059 = vunpack.c.l.b16 %v421
    %v2060 = vunpack.c.h.b16 %v421
    %v2061 = vunpack.c.l.b16 %v422
    %v2062 = vunpack.c.h.b16 %v422
    %v2063 = vunpack.c.l.b16 %v423
    %v2064 = vunpack.c.h.b16 %v423
    %v2065 = vunpack.c.l.b16 %v424
    %v2066 = vunpack.c.h.b16 %v424
    %v2067 = vunpack.c.l.b16 %v425
    %v2068 = vunpack.c.h.b16 %v425
    %v2069 = vunpack.c.l.b16 %v426
    %v2070 = vunpack.c.h.b16 %v426
    %v2071 = vunpack.c.l.b16 %v427
    %v2072 = vunpack.c.h.b16 %v427
    %v2073 = vunpack.c.l.b16 %v428
    %v2074 = vunpack.c.h.b16 %v428
    %v2075 = vunpack.c.l.b16 %v429
    %v2076 = vunpack.c.h.b16 %v429
    %v2077 = vunpack.c.l.b16 %v430
    %v2078 = vunpack.c.h.b16 %v430
    %v2079 = vunpack.c.l.b16 %v431
    %v2080 = vunpack.c.h.b16 %v431
    %v2081 = vunpack.c.l.b16 %v432
    %v2082 = vunpack.c.h.b16 %v432
    %v2083 = vunpack.c.l.b16 %v433
    %v2084 = vunpack.c.h.b16 %v433
    %v2085 = vunpack.c.l.b16 %v434
    %v2086 = vunpack.c.h.b16 %v434
    %v2087 = vunpack.c.l.b16 %v435
    %v2088 = vunpack.c.h.b16 %v435
    %v2089 = vunpack.c.l.b16 %v436
    %v2090 = vunpack.c.h.b16 %v436
    %v2091 = vunpack.c.l.b16 %v437
    %v2092 = vunpack.c.h.b16 %v437
    %v2093 = vunpack.c.l.b16 %v438
    %v2094 = vunpack.c.h.b16 %v438
    %v2095 = vunpack.c.l.b16 %v439
    %v2096 = vunpack.c.h.b16 %v439
    %v2097 = vunpack.c.l.b16 %v440
    %v2098 = vunpack.c.h.b16 %v440
    %v2099 = vunpack.c.l.b16 %v441
    %v2100 = vunpack.c.h.b16 %v441
    %v2101 = vunpack.c.l.b16 %v442
    %v2102 = vunpack.c.h.b16 %v442
    %v2103 = vunpack.c.l.b16 %v443
    %v2104 = vunpack.c.h.b16 %v443
    %v2105 = vunpack.c.l.b16 %v444
    %v2106 = vunpack.c.h.b16 %v444
    %v2107 = vunpack.c.l.b16 %v445
    %v2108 = vunpack.c.h.b16 %v445
    %v2109 = vunpack.c.l.b16 %v446
    %v2110 = vunpack.c.h.b16 %v446
    %v2111 = vunpack.c.l.b16 %v447
    %v2112 = vunpack.c.h.b16 %v447
    %v2113 = vunpack.c.l.b16 %v448
    %v2114 = vunpack.c.h.b16 %v448
    %v2115 = vunpack.c.l.b16 %v449
    %v2116 = vunpack.c.h.b16 %v449
    %v2117 = vunpack.c.l.b16 %v450
    %v2118 = vunpack.c.h.b16 %v450
    %v2119 = vunpack.c.l.b16 %v451
    %v2120 = vunpack.c.h.b16 %v451
    %v2121 = vunpack.c.l.b16 %v452
    %v2122 = vunpack.c.h.b16 %v452
    %v2123 = vunpack.c.l.b16 %v453
    %v2124 = vunpack.c.h.b16 %v453
    %v2125 = vunpack.c.l.b16 %v454
    %v2126 = vunpack.c.h.b16 %v454
    %v2127 = vunpack.c.l.b16 %v455
    %v2128 = vunpack.c.h.b16 %v455
    %v2129 = vunpack.c.l.b16 %v456
    %v2130 = vunpack.c.h.b16 %v456
    %v2131 = vunpack.c.l.b16 %v457
    %v2132 = vunpack.c.h.b16 %v457
    %v2133 = vunpack.c.l.b16 %v458
    %v2134 = vunpack.c.h.b16 %v458
    %v2135 = vunpack.c.l.b16 %v459
    %v2136 = vunpack.c.h.b16 %v459
    %v2137 = vunpack.c.l.b16 %v460
    %v2138 = vunpack.c.h.b16 %v460
    %v2139 = vunpack.c.l.b16 %v461
    %v2140 = vunpack.c.h.b16 %v461
    %v2141 = vunpack.c.l.b16 %v462
    %v2142 = vunpack.c.h.b16 %v462
    %v2143 = vunpack.c.l.b16 %v463
    %v2144 = vunpack.c.h.b16 %v463
    %v2145 = vunpack.c.l.b16 %v464
    %v2146 = vunpack.c.h.b16 %v464
    %v2147 = vunpack.c.l.b16 %v465
    %v2148 = vunpack.c.h.b16 %v465
    %v2149 = vunpack.c.l.b16 %v466
    %v2150 = vunpack.c.h.b16 %v466
    %v2151 = vunpack.c.l.b16 %v467
    %v2152 = vunpack.c.h.b16 %v467
    %v2153 = vunpack.c.l.b16 %v468
    %v2154 = vunpack.c.h.b16 %v468
    %v2155 = vunpack.c.l.b16 %v469
    %v2156 = vunpack.c.h.b16 %v469
    %v2157 = vunpack.c.l.b16 %v470
    %v2158 = vunpack.c.h.b16 %v470
    %v2159 = vunpack.c.l.b16 %v471
    %v2160 = vunpack.c.h.b16 %v471
    %v2161 = vunpack.c.l.b16 %v472
    %v2162 = vunpack.c.h.b16 %v472
    %v2163 = vunpack.c.l.b16 %v473
    %v2164 = vunpack.c.h.b16 %v473
    %v2165 = vunpack.c.l.b16 %v474
    %v2166 = vunpack.c.h.b16 %v474
    %v2167 = vunpack.c.l.b16 %v475
    %v2168 = vunpack.c.h.b16 %v475
    %v2169 = vunpack.c.l.b16 %v476
    %v2170 = vunpack.c.h.b16 %v476
    %v2171 = vunpack.c.l.b16 %v477
    %v2172 = vunpack.c.h.b16 %v477
    %v2173 = vunpack.c.l.b16 %v478
    %v2174 = vunpack.c.h.b16 %v478
    %v2175 = vunpack.c.l.b16 %v479
    %v2176 = vunpack.c.h.b16 %v479
    %v2177 = vunpack.c.l.b16 %v480
    %v2178 = vunpack.c.h.b16 %v480
    %v2179 = vunpack.c.l.b16 %v481
    %v2180 = vunpack.c.h.b16 %v481
    %v2181 = vunpack.c.l.b16 %v482
    %v2182 = vunpack.c.h.b16 %v482
    %v2183 = vunpack.c.l.b16 %v483
    %v2184 = vunpack.c.h.b16 %v483
    %v2185 = vunpack.c.l.b16 %v484
    %v2186 = vunpack.c.h.b16 %v484
    %v2187 = vunpack.c.l.b16 %v485
    %v2188 = vunpack.c.h.b16 %v485
    %v2189 = vunpack.c.l.b16 %v486
    %v2190 = vunpack.c.h.b16 %v486
    %v2191 = vunpack.c.l.b16 %v487
    %v2192 = vunpack.c.h.b16 %v487
    %v2193 = vunpack.c.l.b16 %v488
    %v2194 = vunpack.c.h.b16 %v488
    %v2195 = vunpack.c.l.b16 %v489
    %v2196 = vunpack.c.h.b16 %v489
    %v2197 = vunpack.c.l.b16 %v490
    %v2198 = vunpack.c.h.b16 %v490
    %v2199 = vunpack.c.l.b16 %v491
    %v2200 = vunpack.c.h.b16 %v491
    %v2201 = vunpack.c.l.b16 %v492
    %v2202 = vunpack.c.h.b16 %v492
    %v2203 = vunpack.c.l.b16 %v493
    %v2204 = vunpack.c.h.b16 %v493
    %v2205 = vunpack.c.l.b16 %v494
    %v2206 = vunpack.c.h.b16 %v494
    %v2207 = vunpack.c.l.b16 %v495
    %v2208 = vunpack.c.h.b16 %v495
    %v2209 = vunpack.c.l.b16 %v496
    %v2210 = vunpack.c.h.b16 %v496
    %v2211 = vunpack.c.l.b16 %v497
    %v2212 = vunpack.c.h.b16 %v497
    %v2213 = vunpack.c.l.b16 %v498
    %v2214 = vunpack.c.h.b16 %v498
    %v2215 = vunpack.c.l.b16 %v499
    %v2216 = vunpack.c.h.b16 %v499
    %v2217 = vunpack.c.l.b16 %v500
    %v2218 = vunpack.c.h.b16 %v500
    %v2219 = vunpack.c.l.b16 %v501
    %v2220 = vunpack.c.h.b16 %v501
    %v2221 = vunpack.c.l.b16 %v502
    %v2222 = vunpack.c.h.b16 %v502
    %v2223 = vunpack.c.l.b16 %v503
    %v2224 = vunpack.c.h.b16 %v503
    %v2225 = vunpack.c.l.b16 %v504
    %v2226 = vunpack.c.h.b16 %v504
    %v2227 = vunpack.c.l.b16 %v505
    %v2228 = vunpack.c.h.b16 %v505
    %v2229 = vunpack.c.l.b16 %v506
    %v2230 = vunpack.c.h.b16 %v506
    %v2231 = vunpack.c.l.b16 %v507
    %v2232 = vunpack.c.h.b16 %v507
    %v2233 = vunpack.c.l.b16 %v508
    %v2234 = vunpack.c.h.b16 %v508
    %v2235 = vunpack.c.l.b16 %v509
    %v2236 = vunpack.c.h.b16 %v509
    %v2237 = vunpack.c.l.b16 %v510
    %v2238 = vunpack.c.h.b16 %v510
    %v2239 = vunpack.c.l.b16 %v511
    %v2240 = vunpack.c.h.b16 %v511
    %v2241 = vunpack.c.l.b16 %v512
    %v2242 = vunpack.c.h.b16 %v512
    %v2243 = vunpack.c.l.b16 %v513
    %v2244 = vunpack.c.h.b16 %v513
    %v2245 = vunpack.c.l.b16 %v514
    %v2246 = vunpack.c.h.b16 %v514
    %v2247 = vunpack.c.l.b16 %v515
    %v2248 = vunpack.c.h.b16 %v515
    %v2249 = vunpack.c.l.b16 %v516
    %v2250 = vunpack.c.h.b16 %v516
    %v2251 = vunpack.c.l.b16 %v517
    %v2252 = vunpack.c.h.b16 %v517
    %v2253 = vunpack.c.l.b16 %v518
    %v2254 = vunpack.c.h.b16 %v518
    %v2255 = vunpack.c.l.b16 %v519
    %v2256 = vunpack.c.h.b16 %v519
    %v2257 = vunpack.c.l.b16 %v520
    %v2258 = vunpack.c.h.b16 %v520
    %v2259 = vunpack.c.l.b16 %v521
    %v2260 = vunpack.c.h.b16 %v521
    %v2261 = vunpack.c.l.b16 %v522
    %v2262 = vunpack.c.h.b16 %v522
    %v2263 = vunpack.c.l.b16 %v523
    %v2264 = vunpack.c.h.b16 %v523
    %v2265 = vunpack.c.l.b16 %v524
    %v2266 = vunpack.c.h.b16 %v524
    %v2267 = vunpack.c.l.b16 %v525
    %v2268 = vunpack.c.h.b16 %v525
    %v2269 = vunpack.c.l.b16 %v526
    %v2270 = vunpack.c.h.b16 %v526
    %v2271 = vunpack.c.l.b16 %v527
    %v2272 = vunpack.c.h.b16 %v527
    %v2273 = vunpack.c.l.b16 %v528
    %v2274 = vunpack.c.h.b16 %v528
    %v2275 = vunpack.c.l.b16 %v529
    %v2276 = vunpack.c.h.b16 %v529
    %v2277 = vunpack.c.l.b16 %v530
    %v2278 = vunpack.c.h.b16 %v530
    %v2279 = vunpack.c.l.b16 %v531
    %v2280 = vunpack.c.h.b16 %v531
    %v2281 = vunpack.c.l.b16 %v532
    %v2282 = vunpack.c.h.b16 %v532
    %v2283 = vunpack.c.l.b16 %v533
    %v2284 = vunpack.c.h.b16 %v533
    %v2285 = vunpack.c.l.b16 %v534
    %v2286 = vunpack.c.h.b16 %v534
    %v2287 = vunpack.c.l.b16 %v535
    %v2288 = vunpack.c.h.b16 %v535
    %v2289 = vunpack.c.l.b16 %v536
    %v2290 = vunpack.c.h.b16 %v536
    %v2291 = vunpack.c.l.b16 %v537
    %v2292 = vunpack.c.h.b16 %v537
    %v2293 = vunpack.c.l.b16 %v538
    %v2294 = vunpack.c.h.b16 %v538
    %v2295 = vunpack.c.l.b16 %v539
    %v2296 = vunpack.c.h.b16 %v539
    %v2297 = vunpack.c.l.b16 %v540
    %v2298 = vunpack.c.h.b16 %v540
    %v2299 = vunpack.c.l.b16 %v541
    %v2300 = vunpack.c.h.b16 %v541
    %v2301 = vunpack.c.l.b16 %v542
    %v2302 = vunpack.c.h.b16 %v542
    %v2303 = vunpack.c.l.b16 %v543
    %v2304 = vunpack.c.h.b16 %v543
    %v2305 = vunpack.c.l.b16 %v544
    %v2306 = vunpack.c.h.b16 %v544
    %v2307 = vunpack.c.l.b16 %v545
    %v2308 = vunpack.c.h.b16 %v545
    %v2309 = vunpack.c.l.b16 %v546
    %v2310 = vunpack.c.h.b16 %v546
    %v2311 = vunpack.c.l.b16 %v547
    %v2312 = vunpack.c.h.b16 %v547
    %v2313 = vunpack.c.l.b16 %v548
    %v2314 = vunpack.c.h.b16 %v548
    %v2315 = vunpack.c.l.b16 %v549
    %v2316 = vunpack.c.h.b16 %v549
    %v2317 = vunpack.c.l.b16 %v550
    %v2318 = vunpack.c.h.b16 %v550
    %v2319 = vunpack.c.l.b16 %v551
    %v2320 = vunpack.c.h.b16 %v551
    %v2321 = vunpack.c.l.b16 %v552
    %v2322 = vunpack.c.h.b16 %v552
    %v2323 = vunpack.c.l.b16 %v553
    %v2324 = vunpack.c.h.b16 %v553
    %v2325 = vunpack.c.l.b16 %v554
    %v2326 = vunpack.c.h.b16 %v554
    %v2327 = vunpack.c.l.b16 %v555
    %v2328 = vunpack.c.h.b16 %v555
    %v2329 = vunpack.c.l.b16 %v556
    %v2330 = vunpack.c.h.b16 %v556
    %v2331 = vunpack.c.l.b16 %v557
    %v2332 = vunpack.c.h.b16 %v557
    %v2333 = vunpack.c.l.b16 %v558
    %v2334 = vunpack.c.h.b16 %v558
    %v2335 = vunpack.c.l.b16 %v559
    %v2336 = vunpack.c.h.b16 %v559
    %v2337 = vunpack.c.l.b16 %v560
    %v2338 = vunpack.c.h.b16 %v560
    %v2339 = vunpack.c.l.b16 %v561
    %v2340 = vunpack.c.h.b16 %v561
    %v2341 = vunpack.c.l.b16 %v562
    %v2342 = vunpack.c.h.b16 %v562
    %v2343 = vunpack.c.l.b16 %v563
    %v2344 = vunpack.c.h.b16 %v563
    %v2345 = vunpack.c.l.b16 %v564
    %v2346 = vunpack.c.h.b16 %v564
    %v2347 = vunpack.c.l.b16 %v565
    %v2348 = vunpack.c.h.b16 %v565
    %v2349 = vunpack.c.l.b16 %v566
    %v2350 = vunpack.c.h.b16 %v566
    %v2351 = vunpack.c.l.b16 %v567
    %v2352 = vunpack.c.h.b16 %v567
    %v2353 = vunpack.c.l.b16 %v568
    %v2354 = vunpack.c.h.b16 %v568
    %v2355 = vunpack.c.l.b16 %v569
    %v2356 = vunpack.c.h.b16 %v569
    %v2357 = vunpack.c.l.b16 %v570
    %v2358 = vunpack.c.h.b16 %v570
    %v2359 = vunpack.c.l.b16 %v571
    %v2360 = vunpack.c.h.b16 %v571
    %v2361 = vunpack.c.l.b16 %v572
    %v2362 = vunpack.c.h.b16 %v572
    %v2363 = vunpack.c.l.b16 %v573
    %v2364 = vunpack.c.h.b16 %v573
    %v2365 = vunpack.c.l.b16 %v574
    %v2366 = vunpack.c.h.b16 %v574
    %v2367 = vunpack.c.l.b16 %v575
    %v2368 = vunpack.c.h.b16 %v575
    %v2369 = vunpack.c.l.b16 %v576
    %v2370 = vunpack.c.h.b16 %v576
    %v2371 = vunpack.c.l.b16 %v577
    %v2372 = vunpack.c.h.b16 %v577
    %v2373 = vunpack.c.l.b16 %v578
    %v2374 = vunpack.c.h.b16 %v578
    %v2375 = vunpack.c.l.b16 %v579
    %v2376 = vunpack.c.h.b16 %v579
    %v2377 = vunpack.c.l.b16 %v580
    %v2378 = vunpack.c.h.b16 %v580
    %v2379 = vunpack.c.l.b16 %v581
    %v2380 = vunpack.c.h.b16 %v581
    %v2381 = vunpack.c.l.b16 %v582
    %v2382 = vunpack.c.h.b16 %v582
    %v2383 = vunpack.c.l.b16 %v583
    %v2384 = vunpack.c.h.b16 %v583
    %v2385 = vunpack.c.l.b16 %v584
    %v2386 = vunpack.c.h.b16 %v584
    %v2387 = vunpack.c.l.b16 %v585
    %v2388 = vunpack.c.h.b16 %v585
    %v2389 = vunpack.c.l.b16 %v586
    %v2390 = vunpack.c.h.b16 %v586
    %v2391 = vunpack.c.l.b16 %v587
    %v2392 = vunpack.c.h.b16 %v587
    %v2393 = vunpack.c.l.b16 %v588
    %v2394 = vunpack.c.h.b16 %v588
    %v2395 = vunpack.c.l.b16 %v589
    %v2396 = vunpack.c.h.b16 %v589
    %v2397 = vunpack.c.l.b16 %v590
    %v2398 = vunpack.c.h.b16 %v590
    %v2399 = vunpack.c.l.b16 %v591
    %v2400 = vunpack.c.h.b16 %v591
    %v2401 = vunpack.c.l.b16 %v592
    %v2402 = vunpack.c.h.b16 %v592
    %v2403 = vunpack.c.l.b16 %v593
    %v2404 = vunpack.c.h.b16 %v593
    %v2405 = vunpack.c.l.b16 %v594
    %v2406 = vunpack.c.h.b16 %v594
    %v2407 = vunpack.c.l.b16 %v595
    %v2408 = vunpack.c.h.b16 %v595
    %v2409 = vunpack.c.l.b16 %v596
    %v2410 = vunpack.c.h.b16 %v596
    %v2411 = vunpack.c.l.b16 %v597
    %v2412 = vunpack.c.h.b16 %v597
    %v2413 = vunpack.c.l.b16 %v598
    %v2414 = vunpack.c.h.b16 %v598
    %v2415 = vunpack.c.l.b16 %v599
    %v2416 = vunpack.c.h.b16 %v599
    %v2417 = vunpack.c.l.b16 %v600
    %v2418 = vunpack.c.h.b16 %v600
    %v2419 = vunpack.c.l.b16 %v601
    %v2420 = vunpack.c.h.b16 %v601
    %v2421 = vunpack.c.l.b16 %v602
    %v2422 = vunpack.c.h.b16 %v602
    %v2423 = vunpack.c.l.b16 %v603
    %v2424 = vunpack.c.h.b16 %v603
    %v2425 = vunpack.c.l.b16 %v604
    %v2426 = vunpack.c.h.b16 %v604
    %v2427 = vunpack.c.l.b16 %v605
    %v2428 = vunpack.c.h.b16 %v605
    %v2429 = vunpack.c.l.b16 %v606
    %v2430 = vunpack.c.h.b16 %v606
    %v2431 = vunpack.c.l.b16 %v607
    %v2432 = vunpack.c.h.b16 %v607
    %v2433 = vunpack.c.l.b16 %v608
    %v2434 = vunpack.c.h.b16 %v608
    %v2435 = vunpack.c.l.b16 %v609
    %v2436 = vunpack.c.h.b16 %v609
    %v2437 = vunpack.c.l.b16 %v610
    %v2438 = vunpack.c.h.b16 %v610
    %v2439 = vunpack.c.l.b16 %v611
    %v2440 = vunpack.c.h.b16 %v611
    %v2441 = vunpack.c.l.b16 %v612
    %v2442 = vunpack.c.h.b16 %v612
    %v2443 = vunpack.c.l.b16 %v613
    %v2444 = vunpack.c.h.b16 %v613
    %v2445 = vunpack.c.l.b16 %v614
    %v2446 = vunpack.c.h.b16 %v614
    %v2447 = vunpack.c.l.b16 %v615
    %v2448 = vunpack.c.h.b16 %v615
    %v2449 = vunpack.c.l.b16 %v616
    %v2450 = vunpack.c.h.b16 %v616
    %v2451 = vunpack.c.l.b16 %v617
    %v2452 = vunpack.c.h.b16 %v617
    %v2453 = vunpack.c.l.b16 %v618
    %v2454 = vunpack.c.h.b16 %v618
    %v2455 = vunpack.c.l.b16 %v619
    %v2456 = vunpack.c.h.b16 %v619
    %v2457 = vunpack.c.l.b16 %v620
    %v2458 = vunpack.c.h.b16 %v620
    %v2459 = vunpack.c.l.b16 %v621
    %v2460 = vunpack.c.h.b16 %v621
    %v2461 = vunpack.c.l.b16 %v622
    %v2462 = vunpack.c.h.b16 %v622
    %v2463 = vunpack.c.l.b16 %v623
    %v2464 = vunpack.c.h.b16 %v623
    %v2465 = vunpack.c.l.b16 %v624
    %v2466 = vunpack.c.h.b16 %v624
    %v2467 = vunpack.c.l.b16 %v625
    %v2468 = vunpack.c.h.b16 %v625
    %v2469 = vunpack.c.l.b16 %v626
    %v2470 = vunpack.c.h.b16 %v626
    %v2471 = vunpack.c.l.b16 %v627
    %v2472 = vunpack.c.h.b16 %v627
    %v2473 = vunpack.c.l.b16 %v628
    %v2474 = vunpack.c.h.b16 %v628
    %v2475 = vunpack.c.l.b16 %v629
    %v2476 = vunpack.c.h.b16 %v629
    %v2477 = vunpack.c.l.b16 %v630
    %v2478 = vunpack.c.h.b16 %v630
    %v2479 = vunpack.c.l.b16 %v631
    %v2480 = vunpack.c.h.b16 %v631
    %v2481 = vunpack.c.l.b16 %v632
    %v2482 = vunpack.c.h.b16 %v632
    %v2483 = vunpack.c.l.b16 %v633
    %v2484 = vunpack.c.h.b16 %v633
    %v2485 = vunpack.c.l.b16 %v634
    %v2486 = vunpack.c.h.b16 %v634
    %v2487 = vunpack.c.l.b16 %v635
    %v2488 = vunpack.c.h.b16 %v635
    %v2489 = vunpack.c.l.b16 %v636
    %v2490 = vunpack.c.h.b16 %v636
    %v2491 = vunpack.c.l.b16 %v637
    %v2492 = vunpack.c.h.b16 %v637
    %v2493 = vunpack.c.l.b16 %v638
    %v2494 = vunpack.c.h.b16 %v638
    %v2495 = vunpack.c.l.b16 %v639
    %v2496 = vunpack.c.h.b16 %v639
    %v2497 = vunpack.c.l.b16 %v640
    %v2498 = vunpack.c.h.b16 %v640
    %v2499 = vunpack.c.l.b16 %v641
    %v2500 = vunpack.c.h.b16 %v641
    %v2501 = vunpack.c.l.b16 %v642
    %v2502 = vunpack.c.h.b16 %v642
    %v2503 = vunpack.c.l.b16 %v643
    %v2504 = vunpack.c.h.b16 %v643
    %v2505 = vunpack.c.l.b16 %v644
    %v2506 = vunpack.c.h.b16 %v644
    %v2507 = vunpack.c.l.b16 %v645
    %v2508 = vunpack.c.h.b16 %v645
    %v2509 = vunpack.c.l.b16 %v646
    %v2510 = vunpack.c.h.b16 %v646
    %v2511 = vunpack.c.l.b16 %v647
    %v2512 = vunpack.c.h.b16 %v647
    %v2513 = vunpack.c.l.b16 %v648
    %v2514 = vunpack.c.h.b16 %v648
    %v2515 = vunpack.c.l.b16 %v649
    %v2516 = vunpack.c.h.b16 %v649
    %v2517 = vunpack.c.l.b16 %v650
    %v2518 = vunpack.c.h.b16 %v650
    %v2519 = vunpack.c.l.b16 %v651
    %v2520 = vunpack.c.h.b16 %v651
    %v2521 = vunpack.c.l.b16 %v652
    %v2522 = vunpack.c.h.b16 %v652
    %v2523 = vunpack.c.l.b16 %v653
    %v2524 = vunpack.c.h.b16 %v653
    %v2525 = vunpack.c.l.b16 %v654
    %v2526 = vunpack.c.h.b16 %v654
    %v2527 = vunpack.c.l.b16 %v655
    %v2528 = vunpack.c.h.b16 %v655
    %v2529 = vunpack.c.l.b16 %v656
    %v2530 = vunpack.c.h.b16 %v656
    %v2531 = vunpack.c.l.b16 %v657
    %v2532 = vunpack.c.h.b16 %v657
    %v2533 = vunpack.c.l.b16 %v658
    %v2534 = vunpack.c.h.b16 %v658
    %v2535 = vunpack.c.l.b16 %v659
    %v2536 = vunpack.c.h.b16 %v659
    %v2537 = vunpack.c.l.b16 %v660
    %v2538 = vunpack.c.h.b16 %v660
    %v2539 = vunpack.c.l.b16 %v661
    %v2540 = vunpack.c.h.b16 %v661
    %v2541 = vunpack.c.l.b16 %v662
    %v2542 = vunpack.c.h.b16 %v662
    %v2543 = vunpack.c.l.b16 %v663
    %v2544 = vunpack.c.h.b16 %v663
    %v2545 = vunpack.c.l.b16 %v664
    %v2546 = vunpack.c.h.b16 %v664
    %v2547 = vunpack.c.l.b16 %v665
    %v2548 = vunpack.c.h.b16 %v665
    %v2549 = vunpack.c.l.b16 %v666
    %v2550 = vunpack.c.h.b16 %v666
    %v2551 = vunpack.c.l.b16 %v667
    %v2552 = vunpack.c.h.b16 %v667
    %v2553 = vunpack.c.l.b16 %v668
    %v2554 = vunpack.c.h.b16 %v668
    %v2555 = vunpack.c.l.b16 %v669
    %v2556 = vunpack.c.h.b16 %v669
    %v2557 = vunpack.c.l.b16 %v670
    %v2558 = vunpack.c.h.b16 %v670
    %v2559 = vunpack.c.l.b16 %v671
    %v2560 = vunpack.c.h.b16 %v671
    %v2561 = vunpack.c.l.b16 %v672
    %v2562 = vunpack.c.h.b16 %v672
    %v2563 = vunpack.c.l.b16 %v673
    %v2564 = vunpack.c.h.b16 %v673
    %v2565 = vunpack.c.l.b16 %v674
    %v2566 = vunpack.c.h.b16 %v674
    %v2567 = vunpack.c.l.b16 %v675
    %v2568 = vunpack.c.h.b16 %v675
    %v2569 = vunpack.c.l.b16 %v676
    %v2570 = vunpack.c.h.b16 %v676
    %v2571 = vunpack.c.l.b16 %v677
    %v2572 = vunpack.c.h.b16 %v677
    %v2573 = vunpack.c.l.b16 %v678
    %v2574 = vunpack.c.h.b16 %v678
    %v2575 = vunpack.c.l.b16 %v679
    %v2576 = vunpack.c.h.b16 %v679
    %v2577 = vunpack.c.l.b16 %v680
    %v2578 = vunpack.c.h.b16 %v680
    %v2579 = vunpack.c.l.b16 %v681
    %v2580 = vunpack.c.h.b16 %v681
    %v2581 = vunpack.c.l.b16 %v682
    %v2582 = vunpack.c.h.b16 %v682
    %v2583 = vunpack.c.l.b16 %v683
    %v2584 = vunpack.c.h.b16 %v683
    %v2585 = vunpack.c.l.b16 %v684
    %v2586 = vunpack.c.h.b16 %v684
    %v2587 = vunpack.c.l.b16 %v685
    %v2588 = vunpack.c.h.b16 %v685
    %v2589 = vunpack.c.l.b16 %v686
    %v2590 = vunpack.c.h.b16 %v686
    %v2591 = vunpack.c.l.b16 %v687
    %v2592 = vunpack.c.h.b16 %v687
    %v2593 = vunpack.c.l.b16 %v688
    %v2594 = vunpack.c.h.b16 %v688
    %v2595 = vunpack.c.l.b16 %v689
    %v2596 = vunpack.c.h.b16 %v689
    %v2597 = vunpack.c.l.b16 %v690
    %v2598 = vunpack.c.h.b16 %v690
    %v2599 = vunpack.c.l.b16 %v691
    %v2600 = vunpack.c.h.b16 %v691
    %v2601 = vunpack.c.l.b16 %v692
    %v2602 = vunpack.c.h.b16 %v692
    %v2603 = vunpack.c.l.b16 %v693
    %v2604 = vunpack.c.h.b16 %v693
    %v2605 = vunpack.c.l.b16 %v694
    %v2606 = vunpack.c.h.b16 %v694
    %v2607 = vunpack.c.l.b16 %v695
    %v2608 = vunpack.c.h.b16 %v695
    %v2609 = vunpack.c.l.b16 %v696
    %v2610 = vunpack.c.h.b16 %v696
    %v2611 = vunpack.c.l.b16 %v697
    %v2612 = vunpack.c.h.b16 %v697
    %v2613 = vunpack.c.l.b16 %v698
    %v2614 = vunpack.c.h.b16 %v698
    %v2615 = vunpack.c.l.b16 %v699
    %v2616 = vunpack.c.h.b16 %v699
    %v2617 = vunpack.c.l.b16 %v700
    %v2618 = vunpack.c.h.b16 %v700
    %v2619 = vunpack.c.l.b16 %v701
    %v2620 = vunpack.c.h.b16 %v701
    %v2621 = vunpack.c.l.b16 %v702
    %v2622 = vunpack.c.h.b16 %v702
    %v2623 = vunpack.c.l.b16 %v703
    %v2624 = vunpack.c.h.b16 %v703
    %v2625 = vunpack.c.l.b16 %v704
    %v2626 = vunpack.c.h.b16 %v704
    %v2627 = vunpack.c.l.b16 %v705
    %v2628 = vunpack.c.h.b16 %v705
    %v2629 = vunpack.c.l.b16 %v706
    %v2630 = vunpack.c.h.b16 %v706
    %v2631 = vunpack.c.l.b16 %v707
    %v2632 = vunpack.c.h.b16 %v707
    %v2633 = vunpack.c.l.b16 %v708
    %v2634 = vunpack.c.h.b16 %v708
    %v2635 = vunpack.c.l.b16 %v709
    %v2636 = vunpack.c.h.b16 %v709
    %v2637 = vunpack.c.l.b16 %v710
    %v2638 = vunpack.c.h.b16 %v710
    %v2639 = vunpack.c.l.b16 %v711
    %v2640 = vunpack.c.h.b16 %v711
    %v2641 = vunpack.c.l.b16 %v712
    %v2642 = vunpack.c.h.b16 %v712
    %v2643 = vunpack.c.l.b16 %v713
    %v2644 = vunpack.c.h.b16 %v713
    %v2645 = vunpack.c.l.b16 %v714
    %v2646 = vunpack.c.h.b16 %v714
    %v2647 = vunpack.c.l.b16 %v715
    %v2648 = vunpack.c.h.b16 %v715
    %v2649 = vunpack.c.l.b16 %v716
    %v2650 = vunpack.c.h.b16 %v716
    %v2651 = vunpack.c.l.b16 %v717
    %v2652 = vunpack.c.h.b16 %v717
    %v2653 = vunpack.c.l.b16 %v718
    %v2654 = vunpack.c.h.b16 %v718
    %v2655 = vunpack.c.l.b16 %v719
    %v2656 = vunpack.c.h.b16 %v719
    %v2657 = vunpack.c.l.b16 %v720
    %v2658 = vunpack.c.h.b16 %v720
    %v2659 = vunpack.c.l.b16 %v721
    %v2660 = vunpack.c.h.b16 %v721
    %v2661 = vunpack.c.l.b16 %v722
    %v2662 = vunpack.c.h.b16 %v722
    %v2663 = vunpack.c.l.b16 %v723
    %v2664 = vunpack.c.h.b16 %v723
    %v2665 = vunpack.c.l.b16 %v724
    %v2666 = vunpack.c.h.b16 %v724
    %v2667 = vunpack.c.l.b16 %v725
    %v2668 = vunpack.c.h.b16 %v725
    %v2669 = vunpack.c.l.b16 %v726
    %v2670 = vunpack.c.h.b16 %v726
    %v2671 = vunpack.c.l.b16 %v727
    %v2672 = vunpack.c.h.b16 %v727
    %v2673 = vunpack.c.l.b16 %v728
    %v2674 = vunpack.c.h.b16 %v728
    %v2675 = vunpack.c.l.b16 %v729
    %v2676 = vunpack.c.h.b16 %v729
    %v2677 = vunpack.c.l.b16 %v730
    %v2678 = vunpack.c.h.b16 %v730
    %v2679 = vunpack.c.l.b16 %v731
    %v2680 = vunpack.c.h.b16 %v731
    %v2681 = vunpack.c.l.b16 %v732
    %v2682 = vunpack.c.h.b16 %v732
    %v2683 = vunpack.c.l.b16 %v733
    %v2684 = vunpack.c.h.b16 %v733
    %v2685 = vunpack.c.l.b16 %v734
    %v2686 = vunpack.c.h.b16 %v734
    %v2687 = vunpack.c.l.b16 %v735
    %v2688 = vunpack.c.h.b16 %v735
    %v2689 = vunpack.c.l.b16 %v736
    %v2690 = vunpack.c.h.b16 %v736
    %v2691 = vunpack.c.l.b16 %v737
    %v2692 = vunpack.c.h.b16 %v737
    %v2693 = vunpack.c.l.b16 %v738
    %v2694 = vunpack.c.h.b16 %v738
    %v2695 = vunpack.c.l.b16 %v739
    %v2696 = vunpack.c.h.b16 %v739
    %v2697 = vunpack.c.l.b16 %v740
    %v2698 = vunpack.c.h.b16 %v740
    %v2699 = vunpack.c.l.b16 %v741
    %v2700 = vunpack.c.h.b16 %v741
    %v2701 = vunpack.c.l.b16 %v742
    %v2702 = vunpack.c.h.b16 %v742
    %v2703 = vunpack.c.l.b16 %v743
    %v2704 = vunpack.c.h.b16 %v743
    %v2705 = vunpack.c.l.b16 %v744
    %v2706 = vunpack.c.h.b16 %v744
    %v2707 = vunpack.c.l.b16 %v745
    %v2708 = vunpack.c.h.b16 %v745
    %v2709 = vunpack.c.l.b16 %v746
    %v2710 = vunpack.c.h.b16 %v746
    %v2711 = vunpack.c.l.b16 %v747
    %v2712 = vunpack.c.h.b16 %v747
    %v2713 = vunpack.c.l.b16 %v748
    %v2714 = vunpack.c.h.b16 %v748
    %v2715 = vunpack.c.l.b16 %v749
    %v2716 = vunpack.c.h.b16 %v749
    %v2717 = vunpack.c.l.b16 %v750
    %v2718 = vunpack.c.h.b16 %v750
    %v2719 = vunpack.c.l.b16 %v751
    %v2720 = vunpack.c.h.b16 %v751
    %v2721 = vunpack.c.l.b16 %v752
    %v2722 = vunpack.c.h.b16 %v752
    %v2723 = vunpack.c.l.b16 %v753
    %v2724 = vunpack.c.h.b16 %v753
    %v2725 = vunpack.c.l.b16 %v754
    %v2726 = vunpack.c.h.b16 %v754
    %v2727 = vunpack.c.l.b16 %v755
    %v2728 = vunpack.c.h.b16 %v755
    %v2729 = vunpack.c.l.b16 %v756
    %v2730 = vunpack.c.h.b16 %v756
    %v2731 = vunpack.c.l.b16 %v757
    %v2732 = vunpack.c.h.b16 %v757
    %v2733 = vunpack.c.l.b16 %v758
    %v2734 = vunpack.c.h.b16 %v758
    %v2735 = vunpack.c.l.b16 %v759
    %v2736 = vunpack.c.h.b16 %v759
    %v2737 = vunpack.c.l.b16 %v760
    %v2738 = vunpack.c.h.b16 %v760
    %v2739 = vunpack.c.l.b16 %v761
    %v2740 = vunpack.c.h.b16 %v761
    %v2741 = vunpack.c.l.b16 %v762
    %v2742 = vunpack.c.h.b16 %v762
    %v2743 = vunpack.c.l.b16 %v763
    %v2744 = vunpack.c.h.b16 %v763
    %v2745 = vunpack.c.l.b16 %v764
    %v2746 = vunpack.c.h.b16 %v764
    %v2747 = vunpack.c.l.b16 %v765
    %v2748 = vunpack.c.h.b16 %v765
    %v2749 = vunpack.c.l.b16 %v766
    %v2750 = vunpack.c.h.b16 %v766
    %v2751 = vunpack.c.l.b16 %v767
    %v2752 = vunpack.c.h.b16 %v767
    %v2753 = vunpack.c.l.b16 %v768
    %v2754 = vunpack.c.h.b16 %v768
    %v2755 = vunpack.c.l.b16 %v769
    %v2756 = vunpack.c.h.b16 %v769
    %v2757 = vunpack.c.l.b16 %v770
    %v2758 = vunpack.c.h.b16 %v770
    %v2759 = vunpack.c.l.b16 %v771
    %v2760 = vunpack.c.h.b16 %v771
    %v2761 = vunpack.c.l.b16 %v772
    %v2762 = vunpack.c.h.b16 %v772
    %v2763 = vunpack.c.l.b16 %v773
    %v2764 = vunpack.c.h.b16 %v773
    %v2765 = vunpack.c.l.b16 %v774
    %v2766 = vunpack.c.h.b16 %v774
    %v2767 = vunpack.c.l.b16 %v775
    %v2768 = vunpack.c.h.b16 %v775
    %v2769 = vunpack.c.l.b16 %v776
    %v2770 = vunpack.c.h.b16 %v776
    %v2771 = vunpack.c.l.b16 %v777
    %v2772 = vunpack.c.h.b16 %v777
    %v2773 = vunpack.c.l.b16 %v778
    %v2774 = vunpack.c.h.b16 %v778
    %v2775 = vunpack.c.l.b16 %v779
    %v2776 = vunpack.c.h.b16 %v779
    %v2777 = vunpack.c.l.b16 %v780
    %v2778 = vunpack.c.h.b16 %v780
    %v2779 = vunpack.c.l.b16 %v781
    %v2780 = vunpack.c.h.b16 %v781
    %v2781 = vunpack.c.l.b16 %v782
    %v2782 = vunpack.c.h.b16 %v782
    %v2783 = vunpack.c.l.b16 %v783
    %v2784 = vunpack.c.h.b16 %v783
    %v2785 = vunpack.c.l.b16 %v784
    %v2786 = vunpack.c.h.b16 %v784
    %v2787 = vunpack.c.l.b16 %v785
    %v2788 = vunpack.c.h.b16 %v785
    %v2789 = vunpack.c.l.b16 %v786
    %v2790 = vunpack.c.h.b16 %v786
    %v2791 = vunpack.c.l.b16 %v787
    %v2792 = vunpack.c.h.b16 %v787
    %v2793 = vunpack.c.l.b16 %v788
    %v2794 = vunpack.c.h.b16 %v788
    %v2795 = vunpack.c.l.b16 %v789
    %v2796 = vunpack.c.h.b16 %v789
    %v2797 = vunpack.c.l.b16 %v790
    %v2798 = vunpack.c.h.b16 %v790
    %v2799 = vunpack.c.l.b16 %v791
    %v2800 = vunpack.c.h.b16 %v791
    %v2801 = vunpack.c.l.b16 %v792
    %v2802 = vunpack.c.h.b16 %v792
    %v2803 = vunpack.c.l.b16 %v793
    %v2804 = vunpack.c.h.b16 %v793
    %v2805 = vunpack.c.l.b16 %v794
    %v2806 = vunpack.c.h.b16 %v794
    %v2807 = vunpack.c.l.b16 %v795
    %v2808 = vunpack.c.h.b16 %v795
    %v2809 = vunpack.c.l.b16 %v796
    %v2810 = vunpack.c.h.b16 %v796
    %v2811 = vunpack.c.l.b16 %v797
    %v2812 = vunpack.c.h.b16 %v797
    %v2813 = vunpack.c.l.b16 %v798
    %v2814 = vunpack.c.h.b16 %v798
    %v2815 = vunpack.c.l.b16 %v799
    %v2816 = vunpack.c.h.b16 %v799
    %v2817 = vunpack.c.l.b16 %v800
    %v2818 = vunpack.c.h.b16 %v800
    %v2819 = vunpack.c.l.b16 %v801
    %v2820 = vunpack.c.h.b16 %v801
    %v2821 = vunpack.c.l.b16 %v802
    %v2822 = vunpack.c.h.b16 %v802
    %v2823 = vunpack.c.l.b16 %v803
    %v2824 = vunpack.c.h.b16 %v803
    %v2825 = vunpack.c.l.b16 %v804
    %v2826 = vunpack.c.h.b16 %v804
    %v2827 = vunpack.c.l.b16 %v805
    %v2828 = vunpack.c.h.b16 %v805
    %v2829 = vunpack.c.l.b16 %v806
    %v2830 = vunpack.c.h.b16 %v806
    %v2831 = vunpack.c.l.b16 %v807
    %v2832 = vunpack.c.h.b16 %v807
    %v2833 = vunpack.c.l.b16 %v808
    %v2834 = vunpack.c.h.b16 %v808
    %v2835 = vunpack.c.l.b16 %v809
    %v2836 = vunpack.c.h.b16 %v809
    %v2837 = vunpack.c.l.b16 %v810
    %v2838 = vunpack.c.h.b16 %v810
    %v2839 = vunpack.c.l.b16 %v811
    %v2840 = vunpack.c.h.b16 %v811
    %v2841 = vunpack.c.l.b16 %v812
    %v2842 = vunpack.c.h.b16 %v812
    %v2843 = vunpack.c.l.b16 %v813
    %v2844 = vunpack.c.h.b16 %v813
    %v2845 = vunpack.c.l.b16 %v814
    %v2846 = vunpack.c.h.b16 %v814
    %v2847 = vunpack.c.l.b16 %v815
    %v2848 = vunpack.c.h.b16 %v815
    %v2849 = vunpack.c.l.b16 %v816
    %v2850 = vunpack.c.h.b16 %v816
    %v2851 = vunpack.c.l.b16 %v817
    %v2852 = vunpack.c.h.b16 %v817
    %v2853 = vunpack.c.l.b16 %v818
    %v2854 = vunpack.c.h.b16 %v818
    %v2855 = vunpack.c.l.b16 %v819
    %v2856 = vunpack.c.h.b16 %v819
    %v2857 = vunpack.c.l.b16 %v820
    %v2858 = vunpack.c.h.b16 %v820
    %v2859 = vunpack.c.l.b16 %v821
    %v2860 = vunpack.c.h.b16 %v821
    %v2861 = vunpack.c.l.b16 %v822
    %v2862 = vunpack.c.h.b16 %v822
    %v2863 = vunpack.c.l.b16 %v823
    %v2864 = vunpack.c.h.b16 %v823
    %v2865 = vunpack.c.l.b16 %v824
    %v2866 = vunpack.c.h.b16 %v824
    %v2867 = vunpack.c.l.b16 %v825
    %v2868 = vunpack.c.h.b16 %v825
    %v2869 = vpack.c.b16 %v1597, %v1589
    %v2870 = vpack.c.b16 %v1598, %v1590
    %v2871 = vpack.c.b16 %v1599, %v1591
    %v2872 = vpack.c.b16 %v1600, %v1592
    %v2873 = vpack.c.b16 %v1601, %v1593
    %v2874 = vpack.c.b16 %v1602, %v1594
    %v2875 = vpack.c.b16 %v1603, %v1595
    %v2876 = vpack.c.b16 %v1604, %v1596
    %v2877 = vpack.c.b16 %v1613, %v1605
    %v2878 = vpack.c.b16 %v1614, %v1606
    %v2879 = vpack.c.b16 %v1615, %v1607
    %v2880 = vpack.c.b16 %v1616, %v1608
    %v2881 = vpack.c.b16 %v1617, %v1609
    %v2882 = vpack.c.b16 %v1618, %v1610
    %v2883 = vpack.c.b16 %v1619, %v1611
    %v2884 = vpack.c.b16 %v1620, %v1612
    %v2885 = vpack.c.b16 %v1629, %v1621
    %v2886 = vpack.c.b16 %v1630, %v1622
    %v2887 = vpack.c.b16 %v1631, %v1623
    %v2888 = vpack.c.b16 %v1632, %v1624
    %v2889 = vpack.c.b16 %v1633, %v1625
    %v2890 = vpack.c.b16 %v1634, %v1626
    %v2891 = vpack.c.b16 %v1635, %v1627
    %v2892 = vpack.c.b16 %v1636, %v1628
    %v2893 = vpack.c.b16 %v1645, %v1637
    %v2894 = vpack.c.b16 %v1646, %v1638
    %v2895 = vpack.c.b16 %v1647, %v1639
    %v2896 = vpack.c.b16 %v1648, %v1640
    %v2897 = vpack.c.b16 %v1649, %v1641
    %v2898 = vpack.c.b16 %v1650, %v1642
    %v2899 = vpack.c.b16 %v1651, %v1643
    %v2900 = vpack.c.b16 %v1652, %v1644
    %v2901 = vpack.c.b16 %v1661, %v1653
    %v2902 = vpack.c.b16 %v1662, %v1654
    %v2903 = vpack.c.b16 %v1663, %v1655
    %v2904 = vpack.c.b16 %v1664, %v1656
    %v2905 = vpack.c.b16 %v1665, %v1657
    %v2906 = vpack.c.b16 %v1666, %v1658
    %v2907 = vpack.c.b16 %v1667, %v1659
    %v2908 = vpack.c.b16 %v1668, %v1660
    %v2909 = vpack.c.b16 %v1677, %v1669
    %v2910 = vpack.c.b16 %v1678, %v1670
    %v2911 = vpack.c.b16 %v1679, %v1671
    %v2912 = vpack.c.b16 %v1680, %v1672
    %v2913 = vpack.c.b16 %v1681, %v1673
    %v2914 = vpack.c.b16 %v1682, %v1674
    %v2915 = vpack.c.b16 %v1683, %v1675
    %v2916 = vpack.c.b16 %v1684, %v1676
    %v2917 = vpack.c.b16 %v1693, %v1685
    %v2918 = vpack.c.b16 %v1694, %v1686
    %v2919 = vpack.c.b16 %v1695, %v1687
    %v2920 = vpack.c.b16 %v1696, %v1688
    %v2921 = vpack.c.b16 %v1697, %v1689
    %v2922 = vpack.c.b16 %v1698, %v1690
    %v2923 = vpack.c.b16 %v1699, %v1691
    %v2924 = vpack.c.b16 %v1700, %v1692
    %v2925 = vpack.c.b16 %v1709, %v1701
    %v2926 = vpack.c.b16 %v1710, %v1702
    %v2927 = vpack.c.b16 %v1711, %v1703
    %v2928 = vpack.c.b16 %v1712, %v1704
    %v2929 = vpack.c.b16 %v1713, %v1705
    %v2930 = vpack.c.b16 %v1714, %v1706
    %v2931 = vpack.c.b16 %v1715, %v1707
    %v2932 = vpack.c.b16 %v1716, %v1708
    %v2933 = vpack.c.b16 %v1725, %v1717
    %v2934 = vpack.c.b16 %v1726, %v1718
    %v2935 = vpack.c.b16 %v1727, %v1719
    %v2936 = vpack.c.b16 %v1728, %v1720
    %v2937 = vpack.c.b16 %v1729, %v1721
    %v2938 = vpack.c.b16 %v1730, %v1722
    %v2939 = vpack.c.b16 %v1731, %v1723
    %v2940 = vpack.c.b16 %v1732, %v1724
    %v2941 = vpack.c.b16 %v1741, %v1733
    %v2942 = vpack.c.b16 %v1742, %v1734
    %v2943 = vpack.c.b16 %v1743, %v1735
    %v2944 = vpack.c.b16 %v1744, %v1736
    %v2945 = vpack.c.b16 %v1745, %v1737
    %v2946 = vpack.c.b16 %v1746, %v1738
    %v2947 = vpack.c.b16 %v1747, %v1739
    %v2948 = vpack.c.b16 %v1748, %v1740
    %v2949 = vpack.c.b16 %v1757, %v1749
    %v2950 = vpack.c.b16 %v1758, %v1750
    %v2951 = vpack.c.b16 %v1759, %v1751
    %v2952 = vpack.c.b16 %v1760, %v1752
    %v2953 = vpack.c.b16 %v1761, %v1753
    %v2954 = vpack.c.b16 %v1762, %v1754
    %v2955 = vpack.c.b16 %v1763, %v1755
    %v2956 = vpack.c.b16 %v1764, %v1756
    %v2957 = vpack.c.b16 %v1773, %v1765
    %v2958 = vpack.c.b16 %v1774, %v1766
    %v2959 = vpack.c.b16 %v1775, %v1767
    %v2960 = vpack.c.b16 %v1776, %v1768
    %v2961 = vpack.c.b16 %v1777, %v1769
    %v2962 = vpack.c.b16 %v1778, %v1770
    %v2963 = vpack.c.b16 %v1779, %v1771
    %v2964 = vpack.c.b16 %v1780, %v1772
    %v2965 = vpack.c.b16 %v1789, %v1781
    %v2966 = vpack.c.b16 %v1790, %v1782
    %v2967 = vpack.c.b16 %v1791, %v1783
    %v2968 = vpack.c.b16 %v1792, %v1784
    %v2969 = vpack.c.b16 %v1793, %v1785
    %v2970 = vpack.c.b16 %v1794, %v1786
    %v2971 = vpack.c.b16 %v1795, %v1787
    %v2972 = vpack.c.b16 %v1796, %v1788
    %v2973 = vpack.c.b16 %v1805, %v1797
    %v2974 = vpack.c.b16 %v1806, %v1798
    %v2975 = vpack.c.b16 %v1807, %v1799
    %v2976 = vpack.c.b16 %v1808, %v1800
    %v2977 = vpack.c.b16 %v1809, %v1801
    %v2978 = vpack.c.b16 %v1810, %v1802
    %v2979 = vpack.c.b16 %v1811, %v1803
    %v2980 = vpack.c.b16 %v1812, %v1804
    %v2981 = vpack.c.b16 %v1821, %v1813
    %v2982 = vpack.c.b16 %v1822, %v1814
    %v2983 = vpack.c.b16 %v1823, %v1815
    %v2984 = vpack.c.b16 %v1824, %v1816
    %v2985 = vpack.c.b16 %v1825, %v1817
    %v2986 = vpack.c.b16 %v1826, %v1818
    %v2987 = vpack.c.b16 %v1827, %v1819
    %v2988 = vpack.c.b16 %v1828, %v1820
    %v2989 = vpack.c.b16 %v1837, %v1829
    %v2990 = vpack.c.b16 %v1838, %v1830
    %v2991 = vpack.c.b16 %v1839, %v1831
    %v2992 = vpack.c.b16 %v1840, %v1832
    %v2993 = vpack.c.b16 %v1841, %v1833
    %v2994 = vpack.c.b16 %v1842, %v1834
    %v2995 = vpack.c.b16 %v1843, %v1835
    %v2996 = vpack.c.b16 %v1844, %v1836
    %v2997 = vpack.c.b16 %v1853, %v1845
    %v2998 = vpack.c.b16 %v1854, %v1846
    %v2999 = vpack.c.b16 %v1855, %v1847
    %v3000 = vpack.c.b16 %v1856, %v1848
    %v3001 = vpack.c.b16 %v1857, %v1849
    %v3002 = vpack.c.b16 %v1858, %v1850
    %v3003 = vpack.c.b16 %v1859, %v1851
    %v3004 = vpack.c.b16 %v1860, %v1852
    %v3005 = vpack.c.b16 %v1869, %v1861
    %v3006 = vpack.c.b16 %v1870, %v1862
    %v3007 = vpack.c.b16 %v1871, %v1863
    %v3008 = vpack.c.b16 %v1872, %v1864
    %v3009 = vpack.c.b16 %v1873, %v1865
    %v3010 = vpack.c.b16 %v1874, %v1866
    %v3011 = vpack.c.b16 %v1875, %v1867
    %v3012 = vpack.c.b16 %v1876, %v1868
    %v3013 = vpack.c.b16 %v1885, %v1877
    %v3014 = vpack.c.b16 %v1886, %v1878
    %v3015 = vpack.c.b16 %v1887, %v1879
    %v3016 = vpack.c.b16 %v1888, %v1880
    %v3017 = vpack.c.b16 %v1889, %v1881
    %v3018 = vpack.c.b16 %v1890, %v1882
    %v3019 = vpack.c.b16 %v1891, %v1883
    %v3020 = vpack.c.b16 %v1892, %v1884
    %v3021 = vpack.c.b16 %v1901, %v1893
    %v3022 = vpack.c.b16 %v1902, %v1894
    %v3023 = vpack.c.b16 %v1903, %v1895
    %v3024 = vpack.c.b16 %v1904, %v1896
    %v3025 = vpack.c.b16 %v1905, %v1897
    %v3026 = vpack.c.b16 %v1906, %v1898
    %v3027 = vpack.c.b16 %v1907, %v1899
    %v3028 = vpack.c.b16 %v1908, %v1900
    %v3029 = vpack.c.b16 %v1917, %v1909
    %v3030 = vpack.c.b16 %v1918, %v1910
    %v3031 = vpack.c.b16 %v1919, %v1911
    %v3032 = vpack.c.b16 %v1920, %v1912
    %v3033 = vpack.c.b16 %v1921, %v1913
    %v3034 = vpack.c.b16 %v1922, %v1914
    %v3035 = vpack.c.b16 %v1923, %v1915
    %v3036 = vpack.c.b16 %v1924, %v1916
    %v3037 = vpack.c.b16 %v1933, %v1925
    %v3038 = vpack.c.b16 %v1934, %v1926
    %v3039 = vpack.c.b16 %v1935, %v1927
    %v3040 = vpack.c.b16 %v1936, %v1928
    %v3041 = vpack.c.b16 %v1937, %v1929
    %v3042 = vpack.c.b16 %v1938, %v1930
    %v3043 = vpack.c.b16 %v1939, %v1931
    %v3044 = vpack.c.b16 %v1940, %v1932
    %v3045 = vpack.c.b16 %v1949, %v1941
    %v3046 = vpack.c.b16 %v1950, %v1942
    %v3047 = vpack.c.b16 %v1951, %v1943
    %v3048 = vpack.c.b16 %v1952, %v1944
    %v3049 = vpack.c.b16 %v1953, %v1945
    %v3050 = vpack.c.b16 %v1954, %v1946
    %v3051 = vpack.c.b16 %v1955, %v1947
    %v3052 = vpack.c.b16 %v1956, %v1948
    %v3053 = vpack.c.b16 %v1965, %v1957
    %v3054 = vpack.c.b16 %v1966, %v1958
    %v3055 = vpack.c.b16 %v1967, %v1959
    %v3056 = vpack.c.b16 %v1968, %v1960
    %v3057 = vpack.c.b16 %v1969, %v1961
    %v3058 = vpack.c.b16 %v1970, %v1962
    %v3059 = vpack.c.b16 %v1971, %v1963
    %v3060 = vpack.c.b16 %v1972, %v1964
    %v3061 = vpack.c.b16 %v1981, %v1973
    %v3062 = vpack.c.b16 %v1982, %v1974
    %v3063 = vpack.c.b16 %v1983, %v1975
    %v3064 = vpack.c.b16 %v1984, %v1976
    %v3065 = vpack.c.b16 %v1985, %v1977
    %v3066 = vpack.c.b16 %v1986, %v1978
    %v3067 = vpack.c.b16 %v1987, %v1979
    %v3068 = vpack.c.b16 %v1988, %v1980
    %v3069 = vpack.c.b16 %v1997, %v1989
    %v3070 = vpack.c.b16 %v1998, %v1990
    %v3071 = vpack.c.b16 %v1999, %v1991
    %v3072 = vpack.c.b16 %v2000, %v1992
    %v3073 = vpack.c.b16 %v2001, %v1993
    %v3074 = vpack.c.b16 %v2002, %v1994
    %v3075 = vpack.c.b16 %v2003, %v1995
    %v3076 = vpack.c.b16 %v2004, %v1996
    %v3077 = vpack.c.b16 %v2013, %v2005
    %v3078 = vpack.c.b16 %v2014, %v2006
    %v3079 = vpack.c.b16 %v2015, %v2007
    %v3080 = vpack.c.b16 %v2016, %v2008
    %v3081 = vpack.c.b16 %v2017, %v2009
    %v3082 = vpack.c.b16 %v2018, %v2010
    %v3083 = vpack.c.b16 %v2019, %v2011
    %v3084 = vpack.c.b16 %v2020, %v2012
    %v3085 = vpack.c.b16 %v2029, %v2021
    %v3086 = vpack.c.b16 %v2030, %v2022
    %v3087 = vpack.c.b16 %v2031, %v2023
    %v3088 = vpack.c.b16 %v2032, %v2024
    %v3089 = vpack.c.b16 %v2033, %v2025
    %v3090 = vpack.c.b16 %v2034, %v2026
    %v3091 = vpack.c.b16 %v2035, %v2027
    %v3092 = vpack.c.b16 %v2036, %v2028
    %v3093 = vpack.c.b16 %v2045, %v2037
    %v3094 = vpack.c.b16 %v2046, %v2038
    %v3095 = vpack.c.b16 %v2047, %v2039
    %v3096 = vpack.c.b16 %v2048, %v2040
    %v3097 = vpack.c.b16 %v2049, %v2041
    %v3098 = vpack.c.b16 %v2050, %v2042
    %v3099 = vpack.c.b16 %v2051, %v2043
    %v3100 = vpack.c.b16 %v2052, %v2044
    %v3101 = vpack.c.b16 %v2061, %v2053
    %v3102 = vpack.c.b16 %v2062, %v2054
    %v3103 = vpack.c.b16 %v2063, %v2055
    %v3104 = vpack.c.b16 %v2064, %v2056
    %v3105 = vpack.c.b16 %v2065, %v2057
    %v3106 = vpack.c.b16 %v2066, %v2058
    %v3107 = vpack.c.b16 %v2067, %v2059
    %v3108 = vpack.c.b16 %v2068, %v2060
    %v3109 = vpack.c.b16 %v2077, %v2069
    %v3110 = vpack.c.b16 %v2078, %v2070
    %v3111 = vpack.c.b16 %v2079, %v2071
    %v3112 = vpack.c.b16 %v2080, %v2072
    %v3113 = vpack.c.b16 %v2081, %v2073
    %v3114 = vpack.c.b16 %v2082, %v2074
    %v3115 = vpack.c.b16 %v2083, %v2075
    %v3116 = vpack.c.b16 %v2084, %v2076
    %v3117 = vpack.c.b16 %v2093, %v2085
    %v3118 = vpack.c.b16 %v2094, %v2086
    %v3119 = vpack.c.b16 %v2095, %v2087
    %v3120 = vpack.c.b16 %v2096, %v2088
    %v3121 = vpack.c.b16 %v2097, %v2089
    %v3122 = vpack.c.b16 %v2098, %v2090
    %v3123 = vpack.c.b16 %v2099, %v2091
    %v3124 = vpack.c.b16 %v2100, %v2092
    %v3125 = vpack.c.b16 %v2109, %v2101
    %v3126 = vpack.c.b16 %v2110, %v2102
    %v3127 = vpack.c.b16 %v2111, %v2103
    %v3128 = vpack.c.b16 %v2112, %v2104
    %v3129 = vpack.c.b16 %v2113, %v2105
    %v3130 = vpack.c.b16 %v2114, %v2106
    %v3131 = vpack.c.b16 %v2115, %v2107
    %v3132 = vpack.c.b16 %v2116, %v2108
    %v3133 = vpack.c.b16 %v2125, %v2117
    %v3134 = vpack.c.b16 %v2126, %v2118
    %v3135 = vpack.c.b16 %v2127, %v2119
    %v3136 = vpack.c.b16 %v2128, %v2120
    %v3137 = vpack.c.b16 %v2129, %v2121
    %v3138 = vpack.c.b16 %v2130, %v2122
    %v3139 = vpack.c.b16 %v2131, %v2123
    %v3140 = vpack.c.b16 %v2132, %v2124
    %v3141 = vpack.c.b16 %v2141, %v2133
    %v3142 = vpack.c.b16 %v2142, %v2134
    %v3143 = vpack.c.b16 %v2143, %v2135
    %v3144 = vpack.c.b16 %v2144, %v2136
    %v3145 = vpack.c.b16 %v2145, %v2137
    %v3146 = vpack.c.b16 %v2146, %v2138
    %v3147 = vpack.c.b16 %v2147, %v2139
    %v3148 = vpack.c.b16 %v2148, %v2140
    %v3149 = vpack.c.b16 %v2157, %v2149
    %v3150 = vpack.c.b16 %v2158, %v2150
    %v3151 = vpack.c.b16 %v2159, %v2151
    %v3152 = vpack.c.b16 %v2160, %v2152
    %v3153 = vpack.c.b16 %v2161, %v2153
    %v3154 = vpack.c.b16 %v2162, %v2154
    %v3155 = vpack.c.b16 %v2163, %v2155
    %v3156 = vpack.c.b16 %v2164, %v2156
    %v3157 = vpack.c.b16 %v2173, %v2165
    %v3158 = vpack.c.b16 %v2174, %v2166
    %v3159 = vpack.c.b16 %v2175, %v2167
    %v3160 = vpack.c.b16 %v2176, %v2168
    %v3161 = vpack.c.b16 %v2177, %v2169
    %v3162 = vpack.c.b16 %v2178, %v2170
    %v3163 = vpack.c.b16 %v2179, %v2171
    %v3164 = vpack.c.b16 %v2180, %v2172
    %v3165 = vpack.c.b16 %v2189, %v2181
    %v3166 = vpack.c.b16 %v2190, %v2182
    %v3167 = vpack.c.b16 %v2191, %v2183
    %v3168 = vpack.c.b16 %v2192, %v2184
    %v3169 = vpack.c.b16 %v2193, %v2185
    %v3170 = vpack.c.b16 %v2194, %v2186
    %v3171 = vpack.c.b16 %v2195, %v2187
    %v3172 = vpack.c.b16 %v2196, %v2188
    %v3173 = vpack.c.b16 %v2205, %v2197
    %v3174 = vpack.c.b16 %v2206, %v2198
    %v3175 = vpack.c.b16 %v2207, %v2199
    %v3176 = vpack.c.b16 %v2208, %v2200
    %v3177 = vpack.c.b16 %v2209, %v2201
    %v3178 = vpack.c.b16 %v2210, %v2202
    %v3179 = vpack.c.b16 %v2211, %v2203
    %v3180 = vpack.c.b16 %v2212, %v2204
    %v3181 = vpack.c.b16 %v2221, %v2213
    %v3182 = vpack.c.b16 %v2222, %v2214
    %v3183 = vpack.c.b16 %v2223, %v2215
    %v3184 = vpack.c.b16 %v2224, %v2216
    %v3185 = vpack.c.b16 %v2225, %v2217
    %v3186 = vpack.c.b16 %v2226, %v2218
    %v3187 = vpack.c.b16 %v2227, %v2219
    %v3188 = vpack.c.b16 %v2228, %v2220
    %v3189 = vpack.c.b16 %v2237, %v2229
    %v3190 = vpack.c.b16 %v2238, %v2230
    %v3191 = vpack.c.b16 %v2239, %v2231
    %v3192 = vpack.c.b16 %v2240, %v2232
    %v3193 = vpack.c.b16 %v2241, %v2233
    %v3194 = vpack.c.b16 %v2242, %v2234
    %v3195 = vpack.c.b16 %v2243, %v2235
    %v3196 = vpack.c.b16 %v2244, %v2236
    %v3197 = vpack.c.b16 %v2253, %v2245
    %v3198 = vpack.c.b16 %v2254, %v2246
    %v3199 = vpack.c.b16 %v2255, %v2247
    %v3200 = vpack.c.b16 %v2256, %v2248
    %v3201 = vpack.c.b16 %v2257, %v2249
    %v3202 = vpack.c.b16 %v2258, %v2250
    %v3203 = vpack.c.b16 %v2259, %v2251
    %v3204 = vpack.c.b16 %v2260, %v2252
    %v3205 = vpack.c.b16 %v2269, %v2261
    %v3206 = vpack.c.b16 %v2270, %v2262
    %v3207 = vpack.c.b16 %v2271, %v2263
    %v3208 = vpack.c.b16 %v2272, %v2264
    %v3209 = vpack.c.b16 %v2273, %v2265
    %v3210 = vpack.c.b16 %v2274, %v2266
    %v3211 = vpack.c.b16 %v2275, %v2267
    %v3212 = vpack.c.b16 %v2276, %v2268
    %v3213 = vpack.c.b16 %v2285, %v2277
    %v3214 = vpack.c.b16 %v2286, %v2278
    %v3215 = vpack.c.b16 %v2287, %v2279
    %v3216 = vpack.c.b16 %v2288, %v2280
    %v3217 = vpack.c.b16 %v2289, %v2281
    %v3218 = vpack.c.b16 %v2290, %v2282
    %v3219 = vpack.c.b16 %v2291, %v2283
    %v3220 = vpack.c.b16 %v2292, %v2284
    %v3221 = vpack.c.b16 %v2301, %v2293
    %v3222 = vpack.c.b16 %v2302, %v2294
    %v3223 = vpack.c.b16 %v2303, %v2295
    %v3224 = vpack.c.b16 %v2304, %v2296
    %v3225 = vpack.c.b16 %v2305, %v2297
    %v3226 = vpack.c.b16 %v2306, %v2298
    %v3227 = vpack.c.b16 %v2307, %v2299
    %v3228 = vpack.c.b16 %v2308, %v2300
    %v3229 = vpack.c.b16 %v2317, %v2309
    %v3230 = vpack.c.b16 %v2318, %v2310
    %v3231 = vpack.c.b16 %v2319, %v2311
    %v3232 = vpack.c.b16 %v2320, %v2312
    %v3233 = vpack.c.b16 %v2321, %v2313
    %v3234 = vpack.c.b16 %v2322, %v2314
    %v3235 = vpack.c.b16 %v2323, %v2315
    %v3236 = vpack.c.b16 %v2324, %v2316
    %v3237 = vpack.c.b16 %v2333, %v2325
    %v3238 = vpack.c.b16 %v2334, %v2326
    %v3239 = vpack.c.b16 %v2335, %v2327
    %v3240 = vpack.c.b16 %v2336, %v2328
    %v3241 = vpack.c.b16 %v2337, %v2329
    %v3242 = vpack.c.b16 %v2338, %v2330
    %v3243 = vpack.c.b16 %v2339, %v2331
    %v3244 = vpack.c.b16 %v2340, %v2332
    %v3245 = vpack.c.b16 %v2349, %v2341
    %v3246 = vpack.c.b16 %v2350, %v2342
    %v3247 = vpack.c.b16 %v2351, %v2343
    %v3248 = vpack.c.b16 %v2352, %v2344
    %v3249 = vpack.c.b16 %v2353, %v2345
    %v3250 = vpack.c.b16 %v2354, %v2346
    %v3251 = vpack.c.b16 %v2355, %v2347
    %v3252 = vpack.c.b16 %v2356, %v2348
    %v3253 = vpack.c.b16 %v2365, %v2357
    %v3254 = vpack.c.b16 %v2366, %v2358
    %v3255 = vpack.c.b16 %v2367, %v2359
    %v3256 = vpack.c.b16 %v2368, %v2360
    %v3257 = vpack.c.b16 %v2369, %v2361
    %v3258 = vpack.c.b16 %v2370, %v2362
    %v3259 = vpack.c.b16 %v2371, %v2363
    %v3260 = vpack.c.b16 %v2372, %v2364
    %v3261 = vpack.c.b16 %v2381, %v2373
    %v3262 = vpack.c.b16 %v2382, %v2374
    %v3263 = vpack.c.b16 %v2383, %v2375
    %v3264 = vpack.c.b16 %v2384, %v2376
    %v3265 = vpack.c.b16 %v2385, %v2377
    %v3266 = vpack.c.b16 %v2386, %v2378
    %v3267 = vpack.c.b16 %v2387, %v2379
    %v3268 = vpack.c.b16 %v2388, %v2380
    %v3269 = vpack.c.b16 %v2397, %v2389
    %v3270 = vpack.c.b16 %v2398, %v2390
    %v3271 = vpack.c.b16 %v2399, %v2391
    %v3272 = vpack.c.b16 %v2400, %v2392
    %v3273 = vpack.c.b16 %v2401, %v2393
    %v3274 = vpack.c.b16 %v2402, %v2394
    %v3275 = vpack.c.b16 %v2403, %v2395
    %v3276 = vpack.c.b16 %v2404, %v2396
    %v3277 = vpack.c.b16 %v2413, %v2405
    %v3278 = vpack.c.b16 %v2414, %v2406
    %v3279 = vpack.c.b16 %v2415, %v2407
    %v3280 = vpack.c.b16 %v2416, %v2408
    %v3281 = vpack.c.b16 %v2417, %v2409
    %v3282 = vpack.c.b16 %v2418, %v2410
    %v3283 = vpack.c.b16 %v2419, %v2411
    %v3284 = vpack.c.b16 %v2420, %v2412
    %v3285 = vpack.c.b16 %v2429, %v2421
    %v3286 = vpack.c.b16 %v2430, %v2422
    %v3287 = vpack.c.b16 %v2431, %v2423
    %v3288 = vpack.c.b16 %v2432, %v2424
    %v3289 = vpack.c.b16 %v2433, %v2425
    %v3290 = vpack.c.b16 %v2434, %v2426
    %v3291 = vpack.c.b16 %v2435, %v2427
    %v3292 = vpack.c.b16 %v2436, %v2428
    %v3293 = vpack.c.b16 %v2445, %v2437
    %v3294 = vpack.c.b16 %v2446, %v2438
    %v3295 = vpack.c.b16 %v2447, %v2439
    %v3296 = vpack.c.b16 %v2448, %v2440
    %v3297 = vpack.c.b16 %v2449, %v2441
    %v3298 = vpack.c.b16 %v2450, %v2442
    %v3299 = vpack.c.b16 %v2451, %v2443
    %v3300 = vpack.c.b16 %v2452, %v2444
    %v3301 = vpack.c.b16 %v2461, %v2453
    %v3302 = vpack.c.b16 %v2462, %v2454
    %v3303 = vpack.c.b16 %v2463, %v2455
    %v3304 = vpack.c.b16 %v2464, %v2456
    %v3305 = vpack.c.b16 %v2465, %v2457
    %v3306 = vpack.c.b16 %v2466, %v2458
    %v3307 = vpack.c.b16 %v2467, %v2459
    %v3308 = vpack.c.b16 %v2468, %v2460
    %v3309 = vpack.c.b16 %v2477, %v2469
    %v3310 = vpack.c.b16 %v2478, %v2470
    %v3311 = vpack.c.b16 %v2479, %v2471
    %v3312 = vpack.c.b16 %v2480, %v2472
    %v3313 = vpack.c.b16 %v2481, %v2473
    %v3314 = vpack.c.b16 %v2482, %v2474
    %v3315 = vpack.c.b16 %v2483, %v2475
    %v3316 = vpack.c.b16 %v2484, %v2476
    %v3317 = vpack.c.b16 %v2493, %v2485
    %v3318 = vpack.c.b16 %v2494, %v2486
    %v3319 = vpack.c.b16 %v2495, %v2487
    %v3320 = vpack.c.b16 %v2496, %v2488
    %v3321 = vpack.c.b16 %v2497, %v2489
    %v3322 = vpack.c.b16 %v2498, %v2490
    %v3323 = vpack.c.b16 %v2499, %v2491
    %v3324 = vpack.c.b16 %v2500, %v2492
    %v3325 = vpack.c.b16 %v2509, %v2501
    %v3326 = vpack.c.b16 %v2510, %v2502
    %v3327 = vpack.c.b16 %v2511, %v2503
    %v3328 = vpack.c.b16 %v2512, %v2504
    %v3329 = vpack.c.b16 %v2513, %v2505
    %v3330 = vpack.c.b16 %v2514, %v2506
    %v3331 = vpack.c.b16 %v2515, %v2507
    %v3332 = vpack.c.b16 %v2516, %v2508
    %v3333 = vpack.c.b16 %v2525, %v2517
    %v3334 = vpack.c.b16 %v2526, %v2518
    %v3335 = vpack.c.b16 %v2527, %v2519
    %v3336 = vpack.c.b16 %v2528, %v2520
    %v3337 = vpack.c.b16 %v2529, %v2521
    %v3338 = vpack.c.b16 %v2530, %v2522
    %v3339 = vpack.c.b16 %v2531, %v2523
    %v3340 = vpack.c.b16 %v2532, %v2524
    %v3341 = vpack.c.b16 %v2541, %v2533
    %v3342 = vpack.c.b16 %v2542, %v2534
    %v3343 = vpack.c.b16 %v2543, %v2535
    %v3344 = vpack.c.b16 %v2544, %v2536
    %v3345 = vpack.c.b16 %v2545, %v2537
    %v3346 = vpack.c.b16 %v2546, %v2538
    %v3347 = vpack.c.b16 %v2547, %v2539
    %v3348 = vpack.c.b16 %v2548, %v2540
    %v3349 = vpack.c.b16 %v2557, %v2549
    %v3350 = vpack.c.b16 %v2558, %v2550
    %v3351 = vpack.c.b16 %v2559, %v2551
    %v3352 = vpack.c.b16 %v2560, %v2552
    %v3353 = vpack.c.b16 %v2561, %v2553
    %v3354 = vpack.c.b16 %v2562, %v2554
    %v3355 = vpack.c.b16 %v2563, %v2555
    %v3356 = vpack.c.b16 %v2564, %v2556
    %v3357 = vpack.c.b16 %v2573, %v2565
    %v3358 = vpack.c.b16 %v2574, %v2566
    %v3359 = vpack.c.b16 %v2575, %v2567
    %v3360 = vpack.c.b16 %v2576, %v2568
    %v3361 = vpack.c.b16 %v2577, %v2569
    %v3362 = vpack.c.b16 %v2578, %v2570
    %v3363 = vpack.c.b16 %v2579, %v2571
    %v3364 = vpack.c.b16 %v2580, %v2572
    %v3365 = vpack.c.b16 %v2589, %v2581
    %v3366 = vpack.c.b16 %v2590, %v2582
    %v3367 = vpack.c.b16 %v2591, %v2583
    %v3368 = vpack.c.b16 %v2592, %v2584
    %v3369 = vpack.c.b16 %v2593, %v2585
    %v3370 = vpack.c.b16 %v2594, %v2586
    %v3371 = vpack.c.b16 %v2595, %v2587
    %v3372 = vpack.c.b16 %v2596, %v2588
    %v3373 = vpack.c.b16 %v2605, %v2597
    %v3374 = vpack.c.b16 %v2606, %v2598
    %v3375 = vpack.c.b16 %v2607, %v2599
    %v3376 = vpack.c.b16 %v2608, %v2600
    %v3377 = vpack.c.b16 %v2609, %v2601
    %v3378 = vpack.c.b16 %v2610, %v2602
    %v3379 = vpack.c.b16 %v2611, %v2603
    %v3380 = vpack.c.b16 %v2612, %v2604
    %v3381 = vpack.c.b16 %v2621, %v2613
    %v3382 = vpack.c.b16 %v2622, %v2614
    %v3383 = vpack.c.b16 %v2623, %v2615
    %v3384 = vpack.c.b16 %v2624, %v2616
    %v3385 = vpack.c.b16 %v2625, %v2617
    %v3386 = vpack.c.b16 %v2626, %v2618
    %v3387 = vpack.c.b16 %v2627, %v2619
    %v3388 = vpack.c.b16 %v2628, %v2620
    %v3389 = vpack.c.b16 %v2637, %v2629
    %v3390 = vpack.c.b16 %v2638, %v2630
    %v3391 = vpack.c.b16 %v2639, %v2631
    %v3392 = vpack.c.b16 %v2640, %v2632
    %v3393 = vpack.c.b16 %v2641, %v2633
    %v3394 = vpack.c.b16 %v2642, %v2634
    %v3395 = vpack.c.b16 %v2643, %v2635
    %v3396 = vpack.c.b16 %v2644, %v2636
    %v3397 = vpack.c.b16 %v2653, %v2645
    %v3398 = vpack.c.b16 %v2654, %v2646
    %v3399 = vpack.c.b16 %v2655, %v2647
    %v3400 = vpack.c.b16 %v2656, %v2648
    %v3401 = vpack.c.b16 %v2657, %v2649
    %v3402 = vpack.c.b16 %v2658, %v2650
    %v3403 = vpack.c.b16 %v2659, %v2651
    %v3404 = vpack.c.b16 %v2660, %v2652
    %v3405 = vpack.c.b16 %v2669, %v2661
    %v3406 = vpack.c.b16 %v2670, %v2662
    %v3407 = vpack.c.b16 %v2671, %v2663
    %v3408 = vpack.c.b16 %v2672, %v2664
    %v3409 = vpack.c.b16 %v2673, %v2665
    %v3410 = vpack.c.b16 %v2674, %v2666
    %v3411 = vpack.c.b16 %v2675, %v2667
    %v3412 = vpack.c.b16 %v2676, %v2668
    %v3413 = vpack.c.b16 %v2685, %v2677
    %v3414 = vpack.c.b16 %v2686, %v2678
    %v3415 = vpack.c.b16 %v2687, %v2679
    %v3416 = vpack.c.b16 %v2688, %v2680
    %v3417 = vpack.c.b16 %v2689, %v2681
    %v3418 = vpack.c.b16 %v2690, %v2682
    %v3419 = vpack.c.b16 %v2691, %v2683
    %v3420 = vpack.c.b16 %v2692, %v2684
    %v3421 = vpack.c.b16 %v2701, %v2693
    %v3422 = vpack.c.b16 %v2702, %v2694
    %v3423 = vpack.c.b16 %v2703, %v2695
    %v3424 = vpack.c.b16 %v2704, %v2696
    %v3425 = vpack.c.b16 %v2705, %v2697
    %v3426 = vpack.c.b16 %v2706, %v2698
    %v3427 = vpack.c.b16 %v2707, %v2699
    %v3428 = vpack.c.b16 %v2708, %v2700
    %v3429 = vpack.c.b16 %v2717, %v2709
    %v3430 = vpack.c.b16 %v2718, %v2710
    %v3431 = vpack.c.b16 %v2719, %v2711
    %v3432 = vpack.c.b16 %v2720, %v2712
    %v3433 = vpack.c.b16 %v2721, %v2713
    %v3434 = vpack.c.b16 %v2722, %v2714
    %v3435 = vpack.c.b16 %v2723, %v2715
    %v3436 = vpack.c.b16 %v2724, %v2716
    %v3437 = vpack.c.b16 %v2733, %v2725
    %v3438 = vpack.c.b16 %v2734, %v2726
    %v3439 = vpack.c.b16 %v2735, %v2727
    %v3440 = vpack.c.b16 %v2736, %v2728
    %v3441 = vpack.c.b16 %v2737, %v2729
    %v3442 = vpack.c.b16 %v2738, %v2730
    %v3443 = vpack.c.b16 %v2739, %v2731
    %v3444 = vpack.c.b16 %v2740, %v2732
    %v3445 = vpack.c.b16 %v2749, %v2741
    %v3446 = vpack.c.b16 %v2750, %v2742
    %v3447 = vpack.c.b16 %v2751, %v2743
    %v3448 = vpack.c.b16 %v2752, %v2744
    %v3449 = vpack.c.b16 %v2753, %v2745
    %v3450 = vpack.c.b16 %v2754, %v2746
    %v3451 = vpack.c.b16 %v2755, %v2747
    %v3452 = vpack.c.b16 %v2756, %v2748
    %v3453 = vpack.c.b16 %v2765, %v2757
    %v3454 = vpack.c.b16 %v2766, %v2758
    %v3455 = vpack.c.b16 %v2767, %v2759
    %v3456 = vpack.c.b16 %v2768, %v2760
    %v3457 = vpack.c.b16 %v2769, %v2761
    %v3458 = vpack.c.b16 %v2770, %v2762
    %v3459 = vpack.c.b16 %v2771, %v2763
    %v3460 = vpack.c.b16 %v2772, %v2764
    %v3461 = vpack.c.b16 %v2781, %v2773
    %v3462 = vpack.c.b16 %v2782, %v2774
    %v3463 = vpack.c.b16 %v2783, %v2775
    %v3464 = vpack.c.b16 %v2784, %v2776
    %v3465 = vpack.c.b16 %v2785, %v2777
    %v3466 = vpack.c.b16 %v2786, %v2778
    %v3467 = vpack.c.b16 %v2787, %v2779
    %v3468 = vpack.c.b16 %v2788, %v2780
    %v3469 = vpack.c.b16 %v2797, %v2789
    %v3470 = vpack.c.b16 %v2798, %v2790
    %v3471 = vpack.c.b16 %v2799, %v2791
    %v3472 = vpack.c.b16 %v2800, %v2792
    %v3473 = vpack.c.b16 %v2801, %v2793
    %v3474 = vpack.c.b16 %v2802, %v2794
    %v3475 = vpack.c.b16 %v2803, %v2795
    %v3476 = vpack.c.b16 %v2804, %v2796
    %v3477 = vpack.c.b16 %v2813, %v2805
    %v3478 = vpack.c.b16 %v2814, %v2806
    %v3479 = vpack.c.b16 %v2815, %v2807
    %v3480 = vpack.c.b16 %v2816, %v2808
    %v3481 = vpack.c.b16 %v2817, %v2809
    %v3482 = vpack.c.b16 %v2818, %v2810
    %v3483 = vpack.c.b16 %v2819, %v2811
    %v3484 = vpack.c.b16 %v2820, %v2812
    %v3485 = vpack.c.b16 %v2829, %v2821
    %v3486 = vpack.c.b16 %v2830, %v2822
    %v3487 = vpack.c.b16 %v2831, %v2823
    %v3488 = vpack.c.b16 %v2832, %v2824
    %v3489 = vpack.c.b16 %v2833, %v2825
    %v3490 = vpack.c.b16 %v2834, %v2826
    %v3491 = vpack.c.b16 %v2835, %v2827
    %v3492 = vpack.c.b16 %v2836, %v2828
    %v3493 = vpack.c.b16 %v2845, %v2837
    %v3494 = vpack.c.b16 %v2846, %v2838
    %v3495 = vpack.c.b16 %v2847, %v2839
    %v3496 = vpack.c.b16 %v2848, %v2840
    %v3497 = vpack.c.b16 %v2849, %v2841
    %v3498 = vpack.c.b16 %v2850, %v2842
    %v3499 = vpack.c.b16 %v2851, %v2843
    %v3500 = vpack.c.b16 %v2852, %v2844
    %v3501 = vpack.c.b16 %v2861, %v2853
    %v3502 = vpack.c.b16 %v2862, %v2854
    %v3503 = vpack.c.b16 %v2863, %v2855
    %v3504 = vpack.c.b16 %v2864, %v2856
    %v3505 = vpack.c.b16 %v2865, %v2857
    %v3506 = vpack.c.b16 %v2866, %v2858
    %v3507 = vpack.c.b16 %v2867, %v2859
    %v3508 = vpack.c.b16 %v2868, %v2860
    %4149 = vmatprep.subr.bf16.mxu0 %v2926
    %4150 = vmatpush1.bf16.msra.mxu0 %v2925
    %4151 = vmatprep.subr.bf16.mxu0 %v2918
    %4152 = vmatpush1.bf16.msra.mxu0 %v2917
    %4153 = vmatprep.subr.bf16.mxu0 %v2910
    %4154 = vmatpush1.bf16.msra.mxu0 %v2909
    %4155 = vmatprep.subr.bf16.mxu0 %v2902
    %4156 = vmatpush1.bf16.msra.mxu0 %v2901
    %4157 = vmatprep.subr.bf16.mxu0 %v2894
    %4158 = vmatpush1.bf16.msra.mxu0 %v2893
    %4159 = vmatprep.subr.bf16.mxu0 %v2886
    %4160 = vmatpush1.bf16.msra.mxu0 %v2885
    %4161 = vmatprep.subr.bf16.mxu0 %v2878
    %4162 = vmatpush1.bf16.msra.mxu0 %v2877
    %4163 = vmatprep.subr.bf16.mxu0 %v2870
    %4164 = vmatpush1.bf16.msra.mxu0 %v2869
    %4165 = vmatprep.subr.bf16.mxu0 %v2990
    %4166 = vmatpush2.bf16.msra.mxu0 %v2989
    %4167 = vmatprep.subr.bf16.mxu0 %v2982
    %4168 = vmatpush2.bf16.msra.mxu0 %v2981
    %4169 = vmatprep.subr.bf16.mxu0 %v2974
    %4170 = vmatpush2.bf16.msra.mxu0 %v2973
    %4171 = vmatprep.subr.bf16.mxu0 %v2966
    %4172 = vmatpush2.bf16.msra.mxu0 %v2965
    %4173 = vmatprep.subr.bf16.mxu0 %v2958
    %4174 = vmatpush2.bf16.msra.mxu0 %v2957
    %4175 = vmatprep.subr.bf16.mxu0 %v2950
    %4176 = vmatpush2.bf16.msra.mxu0 %v2949
    %4177 = vmatprep.subr.bf16.mxu0 %v2942
    %4178 = vmatpush2.bf16.msra.mxu0 %v2941
    %4179 = vmatprep.subr.bf16.mxu0 %v2934
    %4180 = vmatpush2.bf16.msra.mxu0 %v2933
    %4181 = vmatprep.mubr.bf16.mxu0 %v930
    %4182 = vmatmul.mubr.bf16.gmra.mxu0 %v929
    %v4183 = vpop.f32.mrf.mxu0
    %v4184 = vadd.f32 %v831, %v4183
    %v4185 = vpop.f32.mrf.mxu0
    %v4186 = vadd.f32 %v835, %v4185
    %v4187 = vpop.f32.mrf.mxu0
    %v4188 = vpop.f32.mrf.mxu0
    %4189 = vdwg.mxu0
    %4190 = vmatprep.subr.bf16.mxu0 %v3054
    %4191 = vmatpush1.bf16.msra.mxu0 %v3053
    %4192 = vmatprep.subr.bf16.mxu0 %v3046
    %4193 = vmatpush1.bf16.msra.mxu0 %v3045
    %4194 = vmatprep.subr.bf16.mxu0 %v3038
    %4195 = vmatpush1.bf16.msra.mxu0 %v3037
    %4196 = vmatprep.subr.bf16.mxu0 %v3030
    %4197 = vmatpush1.bf16.msra.mxu0 %v3029
    %4198 = vmatprep.subr.bf16.mxu0 %v3022
    %4199 = vmatpush1.bf16.msra.mxu0 %v3021
    %4200 = vmatprep.subr.bf16.mxu0 %v3014
    %4201 = vmatpush1.bf16.msra.mxu0 %v3013
    %4202 = vmatprep.subr.bf16.mxu0 %v3006
    %4203 = vmatpush1.bf16.msra.mxu0 %v3005
    %4204 = vmatprep.subr.bf16.mxu0 %v2998
    %4205 = vmatpush1.bf16.msra.mxu0 %v2997
    %4206 = vmatprep.subr.bf16.mxu0 %v3118
    %4207 = vmatpush2.bf16.msra.mxu0 %v3117
    %4208 = vmatprep.subr.bf16.mxu0 %v3110
    %4209 = vmatpush2.bf16.msra.mxu0 %v3109
    %4210 = vmatprep.subr.bf16.mxu0 %v3102
    %4211 = vmatpush2.bf16.msra.mxu0 %v3101
    %4212 = vmatprep.subr.bf16.mxu0 %v3094
    %4213 = vmatpush2.bf16.msra.mxu0 %v3093
    %4214 = vmatprep.subr.bf16.mxu0 %v3086
    %4215 = vmatpush2.bf16.msra.mxu0 %v3085
    %4216 = vmatprep.subr.bf16.mxu0 %v3078
    %4217 = vmatpush2.bf16.msra.mxu0 %v3077
    %4218 = vmatprep.subr.bf16.mxu0 %v3070
    %4219 = vmatpush2.bf16.msra.mxu0 %v3069
    %4220 = vmatprep.subr.bf16.mxu0 %v3062
    %4221 = vmatpush2.bf16.msra.mxu0 %v3061
    %4222 = vmatprep.mubr.bf16.mxu0 %v932
    %4223 = vmatmul.mubr.bf16.gmra.mxu0 %v931
    %v4224 = vpop.f32.mrf.mxu0
    %v4225 = vadd.f32 %v4184, %v4224
    %v4226 = vpop.f32.mrf.mxu0
    %v4227 = vadd.f32 %v4186, %v4226
    %v4228 = vpop.f32.mrf.mxu0
    %v4229 = vpop.f32.mrf.mxu0
    %4230 = vdwg.mxu0
    %4231 = vmatprep.subr.bf16.mxu0 %v3182
    %4232 = vmatpush1.bf16.msra.mxu0 %v3181
    %4233 = vmatprep.subr.bf16.mxu0 %v3174
    %4234 = vmatpush1.bf16.msra.mxu0 %v3173
    %4235 = vmatprep.subr.bf16.mxu0 %v3166
    %4236 = vmatpush1.bf16.msra.mxu0 %v3165
    %4237 = vmatprep.subr.bf16.mxu0 %v3158
    %4238 = vmatpush1.bf16.msra.mxu0 %v3157
    %4239 = vmatprep.subr.bf16.mxu0 %v3150
    %4240 = vmatpush1.bf16.msra.mxu0 %v3149
    %4241 = vmatprep.subr.bf16.mxu0 %v3142
    %4242 = vmatpush1.bf16.msra.mxu0 %v3141
    %4243 = vmatprep.subr.bf16.mxu0 %v3134
    %4244 = vmatpush1.bf16.msra.mxu0 %v3133
    %4245 = vmatprep.subr.bf16.mxu0 %v3126
    %4246 = vmatpush1.bf16.msra.mxu0 %v3125
    %4247 = vmatprep.subr.bf16.mxu0 %v3246
    %4248 = vmatpush2.bf16.msra.mxu0 %v3245
    %4249 = vmatprep.subr.bf16.mxu0 %v3238
    %4250 = vmatpush2.bf16.msra.mxu0 %v3237
    %4251 = vmatprep.subr.bf16.mxu0 %v3230
    %4252 = vmatpush2.bf16.msra.mxu0 %v3229
    %4253 = vmatprep.subr.bf16.mxu0 %v3222
    %4254 = vmatpush2.bf16.msra.mxu0 %v3221
    %4255 = vmatprep.subr.bf16.mxu0 %v3214
    %4256 = vmatpush2.bf16.msra.mxu0 %v3213
    %4257 = vmatprep.subr.bf16.mxu0 %v3206
    %4258 = vmatpush2.bf16.msra.mxu0 %v3205
    %4259 = vmatprep.subr.bf16.mxu0 %v3198
    %4260 = vmatpush2.bf16.msra.mxu0 %v3197
    %4261 = vmatprep.subr.bf16.mxu0 %v3190
    %4262 = vmatpush2.bf16.msra.mxu0 %v3189
    %4263 = vmatprep.mubr.bf16.mxu0 %v934
    %4264 = vmatmul.mubr.bf16.gmra.mxu0 %v933
    %v4265 = vpop.f32.mrf.mxu0
    %v4266 = vadd.f32 %v4225, %v4265
    %v4267 = vpop.f32.mrf.mxu0
    %v4268 = vadd.f32 %v4227, %v4267
    %v4269 = vpop.f32.mrf.mxu0
    %v4270 = vpop.f32.mrf.mxu0
    %4271 = vdwg.mxu0
    %4272 = vmatprep.subr.bf16.mxu0 %v3310
    %4273 = vmatpush1.bf16.msra.mxu0 %v3309
    %4274 = vmatprep.subr.bf16.mxu0 %v3302
    %4275 = vmatpush1.bf16.msra.mxu0 %v3301
    %4276 = vmatprep.subr.bf16.mxu0 %v3294
    %4277 = vmatpush1.bf16.msra.mxu0 %v3293
    %4278 = vmatprep.subr.bf16.mxu0 %v3286
    %4279 = vmatpush1.bf16.msra.mxu0 %v3285
    %4280 = vmatprep.subr.bf16.mxu0 %v3278
    %4281 = vmatpush1.bf16.msra.mxu0 %v3277
    %4282 = vmatprep.subr.bf16.mxu0 %v3270
    %4283 = vmatpush1.bf16.msra.mxu0 %v3269
    %4284 = vmatprep.subr.bf16.mxu0 %v3262
    %4285 = vmatpush1.bf16.msra.mxu0 %v3261
    %4286 = vmatprep.subr.bf16.mxu0 %v3254
    %4287 = vmatpush1.bf16.msra.mxu0 %v3253
    %4288 = vmatprep.subr.bf16.mxu0 %v3374
    %4289 = vmatpush2.bf16.msra.mxu0 %v3373
    %4290 = vmatprep.subr.bf16.mxu0 %v3366
    %4291 = vmatpush2.bf16.msra.mxu0 %v3365
    %4292 = vmatprep.subr.bf16.mxu0 %v3358
    %4293 = vmatpush2.bf16.msra.mxu0 %v3357
    %4294 = vmatprep.subr.bf16.mxu0 %v3350
    %4295 = vmatpush2.bf16.msra.mxu0 %v3349
    %4296 = vmatprep.subr.bf16.mxu0 %v3342
    %4297 = vmatpush2.bf16.msra.mxu0 %v3341
    %4298 = vmatprep.subr.bf16.mxu0 %v3334
    %4299 = vmatpush2.bf16.msra.mxu0 %v3333
    %4300 = vmatprep.subr.bf16.mxu0 %v3326
    %4301 = vmatpush2.bf16.msra.mxu0 %v3325
    %4302 = vmatprep.subr.bf16.mxu0 %v3318
    %4303 = vmatpush2.bf16.msra.mxu0 %v3317
    %4304 = vmatprep.mubr.bf16.mxu0 %v936
    %4305 = vmatmul.mubr.bf16.gmra.mxu0 %v935
    %v4306 = vpop.f32.mrf.mxu0
    %v4307 = vadd.f32 %v4266, %v4306
    %v4308 = vpop.f32.mrf.mxu0
    %v4309 = vadd.f32 %v4268, %v4308
    %v4310 = vpop.f32.mrf.mxu0
    %v4311 = vpop.f32.mrf.mxu0
    %4312 = vdwg.mxu0
    %4313 = vmatprep.subr.bf16.mxu0 %v3438
    %4314 = vmatpush1.bf16.msra.mxu0 %v3437
    %4315 = vmatprep.subr.bf16.mxu0 %v3430
    %4316 = vmatpush1.bf16.msra.mxu0 %v3429
    %4317 = vmatprep.subr.bf16.mxu0 %v3422
    %4318 = vmatpush1.bf16.msra.mxu0 %v3421
    %4319 = vmatprep.subr.bf16.mxu0 %v3414
    %4320 = vmatpush1.bf16.msra.mxu0 %v3413
    %4321 = vmatprep.subr.bf16.mxu0 %v3406
    %4322 = vmatpush1.bf16.msra.mxu0 %v3405
    %4323 = vmatprep.subr.bf16.mxu0 %v3398
    %4324 = vmatpush1.bf16.msra.mxu0 %v3397
    %4325 = vmatprep.subr.bf16.mxu0 %v3390
    %4326 = vmatpush1.bf16.msra.mxu0 %v3389
    %4327 = vmatprep.subr.bf16.mxu0 %v3382
    %4328 = vmatpush1.bf16.msra.mxu0 %v3381
    %4329 = vmatprep.subr.bf16.mxu0 %v3502
    %4330 = vmatpush2.bf16.msra.mxu0 %v3501
    %4331 = vmatprep.subr.bf16.mxu0 %v3494
    %4332 = vmatpush2.bf16.msra.mxu0 %v3493
    %4333 = vmatprep.subr.bf16.mxu0 %v3486
    %4334 = vmatpush2.bf16.msra.mxu0 %v3485
    %4335 = vmatprep.subr.bf16.mxu0 %v3478
    %4336 = vmatpush2.bf16.msra.mxu0 %v3477
    %4337 = vmatprep.subr.bf16.mxu0 %v3470
    %4338 = vmatpush2.bf16.msra.mxu0 %v3469
    %4339 = vmatprep.subr.bf16.mxu0 %v3462
    %4340 = vmatpush2.bf16.msra.mxu0 %v3461
    %4341 = vmatprep.subr.bf16.mxu0 %v3454
    %4342 = vmatpush2.bf16.msra.mxu0 %v3453
    %4343 = vmatprep.subr.bf16.mxu0 %v3446
    %4344 = vmatpush2.bf16.msra.mxu0 %v3445
    %4345 = vmatprep.mubr.bf16.mxu0 %v938
    %4346 = vmatmul.mubr.bf16.gmra.mxu0 %v937
    %v4347 = vpop.f32.mrf.mxu0
    %v4348 = vadd.f32 %v4307, %v4347
    %v4349 = vpop.f32.mrf.mxu0
    %v4350 = vadd.f32 %v4309, %v4349
    %v4351 = vpop.f32.mrf.mxu0
    %v4352 = vpop.f32.mrf.mxu0
    %4353 = vdwg.mxu0
    %4354 = vmatprep.subr.bf16.mxu0 %v2928
    %4355 = vmatpush1.bf16.msra.mxu0 %v2927
    %4356 = vmatprep.subr.bf16.mxu0 %v2920
    %4357 = vmatpush1.bf16.msra.mxu0 %v2919
    %4358 = vmatprep.subr.bf16.mxu0 %v2912
    %4359 = vmatpush1.bf16.msra.mxu0 %v2911
    %4360 = vmatprep.subr.bf16.mxu0 %v2904
    %4361 = vmatpush1.bf16.msra.mxu0 %v2903
    %4362 = vmatprep.subr.bf16.mxu0 %v2896
    %4363 = vmatpush1.bf16.msra.mxu0 %v2895
    %4364 = vmatprep.subr.bf16.mxu0 %v2888
    %4365 = vmatpush1.bf16.msra.mxu0 %v2887
    %4366 = vmatprep.subr.bf16.mxu0 %v2880
    %4367 = vmatpush1.bf16.msra.mxu0 %v2879
    %4368 = vmatprep.subr.bf16.mxu0 %v2872
    %4369 = vmatpush1.bf16.msra.mxu0 %v2871
    %4370 = vmatprep.subr.bf16.mxu0 %v2992
    %4371 = vmatpush2.bf16.msra.mxu0 %v2991
    %4372 = vmatprep.subr.bf16.mxu0 %v2984
    %4373 = vmatpush2.bf16.msra.mxu0 %v2983
    %4374 = vmatprep.subr.bf16.mxu0 %v2976
    %4375 = vmatpush2.bf16.msra.mxu0 %v2975
    %4376 = vmatprep.subr.bf16.mxu0 %v2968
    %4377 = vmatpush2.bf16.msra.mxu0 %v2967
    %4378 = vmatprep.subr.bf16.mxu0 %v2960
    %4379 = vmatpush2.bf16.msra.mxu0 %v2959
    %4380 = vmatprep.subr.bf16.mxu0 %v2952
    %4381 = vmatpush2.bf16.msra.mxu0 %v2951
    %4382 = vmatprep.subr.bf16.mxu0 %v2944
    %4383 = vmatpush2.bf16.msra.mxu0 %v2943
    %4384 = vmatprep.subr.bf16.mxu0 %v2936
    %4385 = vmatpush2.bf16.msra.mxu0 %v2935
    %4386 = vmatprep.mubr.bf16.mxu0 %v930
    %4387 = vmatmul.mubr.bf16.gmra.mxu0 %v929
    %v4388 = vpop.f32.mrf.mxu0
    %v4389 = vadd.f32 %v839, %v4388
    %v4390 = vpop.f32.mrf.mxu0
    %v4391 = vadd.f32 %v843, %v4390
    %v4392 = vpop.f32.mrf.mxu0
    %v4393 = vpop.f32.mrf.mxu0
    %4394 = vdwg.mxu0
    %4395 = vmatprep.subr.bf16.mxu0 %v3056
    %4396 = vmatpush1.bf16.msra.mxu0 %v3055
    %4397 = vmatprep.subr.bf16.mxu0 %v3048
    %4398 = vmatpush1.bf16.msra.mxu0 %v3047
    %4399 = vmatprep.subr.bf16.mxu0 %v3040
    %4400 = vmatpush1.bf16.msra.mxu0 %v3039
    %4401 = vmatprep.subr.bf16.mxu0 %v3032
    %4402 = vmatpush1.bf16.msra.mxu0 %v3031
    %4403 = vmatprep.subr.bf16.mxu0 %v3024
    %4404 = vmatpush1.bf16.msra.mxu0 %v3023
    %4405 = vmatprep.subr.bf16.mxu0 %v3016
    %4406 = vmatpush1.bf16.msra.mxu0 %v3015
    %4407 = vmatprep.subr.bf16.mxu0 %v3008
    %4408 = vmatpush1.bf16.msra.mxu0 %v3007
    %4409 = vmatprep.subr.bf16.mxu0 %v3000
    %4410 = vmatpush1.bf16.msra.mxu0 %v2999
    %4411 = vmatprep.subr.bf16.mxu0 %v3120
    %4412 = vmatpush2.bf16.msra.mxu0 %v3119
    %4413 = vmatprep.subr.bf16.mxu0 %v3112
    %4414 = vmatpush2.bf16.msra.mxu0 %v3111
    %4415 = vmatprep.subr.bf16.mxu0 %v3104
    %4416 = vmatpush2.bf16.msra.mxu0 %v3103
    %4417 = vmatprep.subr.bf16.mxu0 %v3096
    %4418 = vmatpush2.bf16.msra.mxu0 %v3095
    %4419 = vmatprep.subr.bf16.mxu0 %v3088
    %4420 = vmatpush2.bf16.msra.mxu0 %v3087
    %4421 = vmatprep.subr.bf16.mxu0 %v3080
    %4422 = vmatpush2.bf16.msra.mxu0 %v3079
    %4423 = vmatprep.subr.bf16.mxu0 %v3072
    %4424 = vmatpush2.bf16.msra.mxu0 %v3071
    %4425 = vmatprep.subr.bf16.mxu0 %v3064
    %4426 = vmatpush2.bf16.msra.mxu0 %v3063
    %4427 = vmatprep.mubr.bf16.mxu0 %v932
    %4428 = vmatmul.mubr.bf16.gmra.mxu0 %v931
    %v4429 = vpop.f32.mrf.mxu0
    %v4430 = vadd.f32 %v4389, %v4429
    %v4431 = vpop.f32.mrf.mxu0
    %v4432 = vadd.f32 %v4391, %v4431
    %v4433 = vpop.f32.mrf.mxu0
    %v4434 = vpop.f32.mrf.mxu0
    %4435 = vdwg.mxu0
    %4436 = vmatprep.subr.bf16.mxu0 %v3184
    %4437 = vmatpush1.bf16.msra.mxu0 %v3183
    %4438 = vmatprep.subr.bf16.mxu0 %v3176
    %4439 = vmatpush1.bf16.msra.mxu0 %v3175
    %4440 = vmatprep.subr.bf16.mxu0 %v3168
    %4441 = vmatpush1.bf16.msra.mxu0 %v3167
    %4442 = vmatprep.subr.bf16.mxu0 %v3160
    %4443 = vmatpush1.bf16.msra.mxu0 %v3159
    %4444 = vmatprep.subr.bf16.mxu0 %v3152
    %4445 = vmatpush1.bf16.msra.mxu0 %v3151
    %4446 = vmatprep.subr.bf16.mxu0 %v3144
    %4447 = vmatpush1.bf16.msra.mxu0 %v3143
    %4448 = vmatprep.subr.bf16.mxu0 %v3136
    %4449 = vmatpush1.bf16.msra.mxu0 %v3135
    %4450 = vmatprep.subr.bf16.mxu0 %v3128
    %4451 = vmatpush1.bf16.msra.mxu0 %v3127
    %4452 = vmatprep.subr.bf16.mxu0 %v3248
    %4453 = vmatpush2.bf16.msra.mxu0 %v3247
    %4454 = vmatprep.subr.bf16.mxu0 %v3240
    %4455 = vmatpush2.bf16.msra.mxu0 %v3239
    %4456 = vmatprep.subr.bf16.mxu0 %v3232
    %4457 = vmatpush2.bf16.msra.mxu0 %v3231
    %4458 = vmatprep.subr.bf16.mxu0 %v3224
    %4459 = vmatpush2.bf16.msra.mxu0 %v3223
    %4460 = vmatprep.subr.bf16.mxu0 %v3216
    %4461 = vmatpush2.bf16.msra.mxu0 %v3215
    %4462 = vmatprep.subr.bf16.mxu0 %v3208
    %4463 = vmatpush2.bf16.msra.mxu0 %v3207
    %4464 = vmatprep.subr.bf16.mxu0 %v3200
    %4465 = vmatpush2.bf16.msra.mxu0 %v3199
    %4466 = vmatprep.subr.bf16.mxu0 %v3192
    %4467 = vmatpush2.bf16.msra.mxu0 %v3191
    %4468 = vmatprep.mubr.bf16.mxu0 %v934
    %4469 = vmatmul.mubr.bf16.gmra.mxu0 %v933
    %v4470 = vpop.f32.mrf.mxu0
    %v4471 = vadd.f32 %v4430, %v4470
    %v4472 = vpop.f32.mrf.mxu0
    %v4473 = vadd.f32 %v4432, %v4472
    %v4474 = vpop.f32.mrf.mxu0
    %v4475 = vpop.f32.mrf.mxu0
    %4476 = vdwg.mxu0
    %4477 = vmatprep.subr.bf16.mxu0 %v3312
    %4478 = vmatpush1.bf16.msra.mxu0 %v3311
    %4479 = vmatprep.subr.bf16.mxu0 %v3304
    %4480 = vmatpush1.bf16.msra.mxu0 %v3303
    %4481 = vmatprep.subr.bf16.mxu0 %v3296
    %4482 = vmatpush1.bf16.msra.mxu0 %v3295
    %4483 = vmatprep.subr.bf16.mxu0 %v3288
    %4484 = vmatpush1.bf16.msra.mxu0 %v3287
    %4485 = vmatprep.subr.bf16.mxu0 %v3280
    %4486 = vmatpush1.bf16.msra.mxu0 %v3279
    %4487 = vmatprep.subr.bf16.mxu0 %v3272
    %4488 = vmatpush1.bf16.msra.mxu0 %v3271
    %4489 = vmatprep.subr.bf16.mxu0 %v3264
    %4490 = vmatpush1.bf16.msra.mxu0 %v3263
    %4491 = vmatprep.subr.bf16.mxu0 %v3256
    %4492 = vmatpush1.bf16.msra.mxu0 %v3255
    %4493 = vmatprep.subr.bf16.mxu0 %v3376
    %4494 = vmatpush2.bf16.msra.mxu0 %v3375
    %4495 = vmatprep.subr.bf16.mxu0 %v3368
    %4496 = vmatpush2.bf16.msra.mxu0 %v3367
    %4497 = vmatprep.subr.bf16.mxu0 %v3360
    %4498 = vmatpush2.bf16.msra.mxu0 %v3359
    %4499 = vmatprep.subr.bf16.mxu0 %v3352
    %4500 = vmatpush2.bf16.msra.mxu0 %v3351
    %4501 = vmatprep.subr.bf16.mxu0 %v3344
    %4502 = vmatpush2.bf16.msra.mxu0 %v3343
    %4503 = vmatprep.subr.bf16.mxu0 %v3336
    %4504 = vmatpush2.bf16.msra.mxu0 %v3335
    %4505 = vmatprep.subr.bf16.mxu0 %v3328
    %4506 = vmatpush2.bf16.msra.mxu0 %v3327
    %4507 = vmatprep.subr.bf16.mxu0 %v3320
    %4508 = vmatpush2.bf16.msra.mxu0 %v3319
    %4509 = vmatprep.mubr.bf16.mxu0 %v936
    %4510 = vmatmul.mubr.bf16.gmra.mxu0 %v935
    %v4511 = vpop.f32.mrf.mxu0
    %v4512 = vadd.f32 %v4471, %v4511
    %v4513 = vpop.f32.mrf.mxu0
    %v4514 = vadd.f32 %v4473, %v4513
    %v4515 = vpop.f32.mrf.mxu0
    %v4516 = vpop.f32.mrf.mxu0
    %4517 = vdwg.mxu0
    %4518 = vmatprep.subr.bf16.mxu0 %v3440
    %4519 = vmatpush1.bf16.msra.mxu0 %v3439
    %4520 = vmatprep.subr.bf16.mxu0 %v3432
    %4521 = vmatpush1.bf16.msra.mxu0 %v3431
    %4522 = vmatprep.subr.bf16.mxu0 %v3424
    %4523 = vmatpush1.bf16.msra.mxu0 %v3423
    %4524 = vmatprep.subr.bf16.mxu0 %v3416
    %4525 = vmatpush1.bf16.msra.mxu0 %v3415
    %4526 = vmatprep.subr.bf16.mxu0 %v3408
    %4527 = vmatpush1.bf16.msra.mxu0 %v3407
    %4528 = vmatprep.subr.bf16.mxu0 %v3400
    %4529 = vmatpush1.bf16.msra.mxu0 %v3399
    %4530 = vmatprep.subr.bf16.mxu0 %v3392
    %4531 = vmatpush1.bf16.msra.mxu0 %v3391
    %4532 = vmatprep.subr.bf16.mxu0 %v3384
    %4533 = vmatpush1.bf16.msra.mxu0 %v3383
    %4534 = vmatprep.subr.bf16.mxu0 %v3504
    %4535 = vmatpush2.bf16.msra.mxu0 %v3503
    %4536 = vmatprep.subr.bf16.mxu0 %v3496
    %4537 = vmatpush2.bf16.msra.mxu0 %v3495
    %4538 = vmatprep.subr.bf16.mxu0 %v3488
    %4539 = vmatpush2.bf16.msra.mxu0 %v3487
    %4540 = vmatprep.subr.bf16.mxu0 %v3480
    %4541 = vmatpush2.bf16.msra.mxu0 %v3479
    %4542 = vmatprep.subr.bf16.mxu0 %v3472
    %4543 = vmatpush2.bf16.msra.mxu0 %v3471
    %4544 = vmatprep.subr.bf16.mxu0 %v3464
    %4545 = vmatpush2.bf16.msra.mxu0 %v3463
    %4546 = vmatprep.subr.bf16.mxu0 %v3456
    %4547 = vmatpush2.bf16.msra.mxu0 %v3455
    %4548 = vmatprep.subr.bf16.mxu0 %v3448
    %4549 = vmatpush2.bf16.msra.mxu0 %v3447
    %4550 = vmatprep.mubr.bf16.mxu0 %v938
    %4551 = vmatmul.mubr.bf16.gmra.mxu0 %v937
    %v4552 = vpop.f32.mrf.mxu0
    %v4553 = vadd.f32 %v4512, %v4552
    %v4554 = vpop.f32.mrf.mxu0
    %v4555 = vadd.f32 %v4514, %v4554
    %v4556 = vpop.f32.mrf.mxu0
    %v4557 = vpop.f32.mrf.mxu0
    %4558 = vdwg.mxu0
    %4559 = vmatprep.subr.bf16.mxu0 %v2930
    %4560 = vmatpush1.bf16.msra.mxu0 %v2929
    %4561 = vmatprep.subr.bf16.mxu0 %v2922
    %4562 = vmatpush1.bf16.msra.mxu0 %v2921
    %4563 = vmatprep.subr.bf16.mxu0 %v2914
    %4564 = vmatpush1.bf16.msra.mxu0 %v2913
    %4565 = vmatprep.subr.bf16.mxu0 %v2906
    %4566 = vmatpush1.bf16.msra.mxu0 %v2905
    %4567 = vmatprep.subr.bf16.mxu0 %v2898
    %4568 = vmatpush1.bf16.msra.mxu0 %v2897
    %4569 = vmatprep.subr.bf16.mxu0 %v2890
    %4570 = vmatpush1.bf16.msra.mxu0 %v2889
    %4571 = vmatprep.subr.bf16.mxu0 %v2882
    %4572 = vmatpush1.bf16.msra.mxu0 %v2881
    %4573 = vmatprep.subr.bf16.mxu0 %v2874
    %4574 = vmatpush1.bf16.msra.mxu0 %v2873
    %4575 = vmatprep.subr.bf16.mxu0 %v2994
    %4576 = vmatpush2.bf16.msra.mxu0 %v2993
    %4577 = vmatprep.subr.bf16.mxu0 %v2986
    %4578 = vmatpush2.bf16.msra.mxu0 %v2985
    %4579 = vmatprep.subr.bf16.mxu0 %v2978
    %4580 = vmatpush2.bf16.msra.mxu0 %v2977
    %4581 = vmatprep.subr.bf16.mxu0 %v2970
    %4582 = vmatpush2.bf16.msra.mxu0 %v2969
    %4583 = vmatprep.subr.bf16.mxu0 %v2962
    %4584 = vmatpush2.bf16.msra.mxu0 %v2961
    %4585 = vmatprep.subr.bf16.mxu0 %v2954
    %4586 = vmatpush2.bf16.msra.mxu0 %v2953
    %4587 = vmatprep.subr.bf16.mxu0 %v2946
    %4588 = vmatpush2.bf16.msra.mxu0 %v2945
    %4589 = vmatprep.subr.bf16.mxu0 %v2938
    %4590 = vmatpush2.bf16.msra.mxu0 %v2937
    %4591 = vmatprep.mubr.bf16.mxu0 %v930
    %4592 = vmatmul.mubr.bf16.gmra.mxu0 %v929
    %v4593 = vpop.f32.mrf.mxu0
    %v4594 = vadd.f32 %v847, %v4593
    %v4595 = vpop.f32.mrf.mxu0
    %v4596 = vadd.f32 %v851, %v4595
    %v4597 = vpop.f32.mrf.mxu0
    %v4598 = vpop.f32.mrf.mxu0
    %4599 = vdwg.mxu0
    %4600 = vmatprep.subr.bf16.mxu0 %v3058
    %4601 = vmatpush1.bf16.msra.mxu0 %v3057
    %4602 = vmatprep.subr.bf16.mxu0 %v3050
    %4603 = vmatpush1.bf16.msra.mxu0 %v3049
    %4604 = vmatprep.subr.bf16.mxu0 %v3042
    %4605 = vmatpush1.bf16.msra.mxu0 %v3041
    %4606 = vmatprep.subr.bf16.mxu0 %v3034
    %4607 = vmatpush1.bf16.msra.mxu0 %v3033
    %4608 = vmatprep.subr.bf16.mxu0 %v3026
    %4609 = vmatpush1.bf16.msra.mxu0 %v3025
    %4610 = vmatprep.subr.bf16.mxu0 %v3018
    %4611 = vmatpush1.bf16.msra.mxu0 %v3017
    %4612 = vmatprep.subr.bf16.mxu0 %v3010
    %4613 = vmatpush1.bf16.msra.mxu0 %v3009
    %4614 = vmatprep.subr.bf16.mxu0 %v3002
    %4615 = vmatpush1.bf16.msra.mxu0 %v3001
    %4616 = vmatprep.subr.bf16.mxu0 %v3122
    %4617 = vmatpush2.bf16.msra.mxu0 %v3121
    %4618 = vmatprep.subr.bf16.mxu0 %v3114
    %4619 = vmatpush2.bf16.msra.mxu0 %v3113
    %4620 = vmatprep.subr.bf16.mxu0 %v3106
    %4621 = vmatpush2.bf16.msra.mxu0 %v3105
    %4622 = vmatprep.subr.bf16.mxu0 %v3098
    %4623 = vmatpush2.bf16.msra.mxu0 %v3097
    %4624 = vmatprep.subr.bf16.mxu0 %v3090
    %4625 = vmatpush2.bf16.msra.mxu0 %v3089
    %4626 = vmatprep.subr.bf16.mxu0 %v3082
    %4627 = vmatpush2.bf16.msra.mxu0 %v3081
    %4628 = vmatprep.subr.bf16.mxu0 %v3074
    %4629 = vmatpush2.bf16.msra.mxu0 %v3073
    %4630 = vmatprep.subr.bf16.mxu0 %v3066
    %4631 = vmatpush2.bf16.msra.mxu0 %v3065
    %4632 = vmatprep.mubr.bf16.mxu0 %v932
    %4633 = vmatmul.mubr.bf16.gmra.mxu0 %v931
    %v4634 = vpop.f32.mrf.mxu0
    %v4635 = vadd.f32 %v4594, %v4634
    %v4636 = vpop.f32.mrf.mxu0
    %v4637 = vadd.f32 %v4596, %v4636
    %v4638 = vpop.f32.mrf.mxu0
    %v4639 = vpop.f32.mrf.mxu0
    %4640 = vdwg.mxu0
    %4641 = vmatprep.subr.bf16.mxu0 %v3186
    %4642 = vmatpush1.bf16.msra.mxu0 %v3185
    %4643 = vmatprep.subr.bf16.mxu0 %v3178
    %4644 = vmatpush1.bf16.msra.mxu0 %v3177
    %4645 = vmatprep.subr.bf16.mxu0 %v3170
    %4646 = vmatpush1.bf16.msra.mxu0 %v3169
    %4647 = vmatprep.subr.bf16.mxu0 %v3162
    %4648 = vmatpush1.bf16.msra.mxu0 %v3161
    %4649 = vmatprep.subr.bf16.mxu0 %v3154
    %4650 = vmatpush1.bf16.msra.mxu0 %v3153
    %4651 = vmatprep.subr.bf16.mxu0 %v3146
    %4652 = vmatpush1.bf16.msra.mxu0 %v3145
    %4653 = vmatprep.subr.bf16.mxu0 %v3138
    %4654 = vmatpush1.bf16.msra.mxu0 %v3137
    %4655 = vmatprep.subr.bf16.mxu0 %v3130
    %4656 = vmatpush1.bf16.msra.mxu0 %v3129
    %4657 = vmatprep.subr.bf16.mxu0 %v3250
    %4658 = vmatpush2.bf16.msra.mxu0 %v3249
    %4659 = vmatprep.subr.bf16.mxu0 %v3242
    %4660 = vmatpush2.bf16.msra.mxu0 %v3241
    %4661 = vmatprep.subr.bf16.mxu0 %v3234
    %4662 = vmatpush2.bf16.msra.mxu0 %v3233
    %4663 = vmatprep.subr.bf16.mxu0 %v3226
    %4664 = vmatpush2.bf16.msra.mxu0 %v3225
    %4665 = vmatprep.subr.bf16.mxu0 %v3218
    %4666 = vmatpush2.bf16.msra.mxu0 %v3217
    %4667 = vmatprep.subr.bf16.mxu0 %v3210
    %4668 = vmatpush2.bf16.msra.mxu0 %v3209
    %4669 = vmatprep.subr.bf16.mxu0 %v3202
    %4670 = vmatpush2.bf16.msra.mxu0 %v3201
    %4671 = vmatprep.subr.bf16.mxu0 %v3194
    %4672 = vmatpush2.bf16.msra.mxu0 %v3193
    %4673 = vmatprep.mubr.bf16.mxu0 %v934
    %4674 = vmatmul.mubr.bf16.gmra.mxu0 %v933
    %v4675 = vpop.f32.mrf.mxu0
    %v4676 = vadd.f32 %v4635, %v4675
    %v4677 = vpop.f32.mrf.mxu0
    %v4678 = vadd.f32 %v4637, %v4677
    %v4679 = vpop.f32.mrf.mxu0
    %v4680 = vpop.f32.mrf.mxu0
    %4681 = vdwg.mxu0
    %4682 = vmatprep.subr.bf16.mxu0 %v3314
    %4683 = vmatpush1.bf16.msra.mxu0 %v3313
    %4684 = vmatprep.subr.bf16.mxu0 %v3306
    %4685 = vmatpush1.bf16.msra.mxu0 %v3305
    %4686 = vmatprep.subr.bf16.mxu0 %v3298
    %4687 = vmatpush1.bf16.msra.mxu0 %v3297
    %4688 = vmatprep.subr.bf16.mxu0 %v3290
    %4689 = vmatpush1.bf16.msra.mxu0 %v3289
    %4690 = vmatprep.subr.bf16.mxu0 %v3282
    %4691 = vmatpush1.bf16.msra.mxu0 %v3281
    %4692 = vmatprep.subr.bf16.mxu0 %v3274
    %4693 = vmatpush1.bf16.msra.mxu0 %v3273
    %4694 = vmatprep.subr.bf16.mxu0 %v3266
    %4695 = vmatpush1.bf16.msra.mxu0 %v3265
    %4696 = vmatprep.subr.bf16.mxu0 %v3258
    %4697 = vmatpush1.bf16.msra.mxu0 %v3257
    %4698 = vmatprep.subr.bf16.mxu0 %v3378
    %4699 = vmatpush2.bf16.msra.mxu0 %v3377
    %4700 = vmatprep.subr.bf16.mxu0 %v3370
    %4701 = vmatpush2.bf16.msra.mxu0 %v3369
    %4702 = vmatprep.subr.bf16.mxu0 %v3362
    %4703 = vmatpush2.bf16.msra.mxu0 %v3361
    %4704 = vmatprep.subr.bf16.mxu0 %v3354
    %4705 = vmatpush2.bf16.msra.mxu0 %v3353
    %4706 = vmatprep.subr.bf16.mxu0 %v3346
    %4707 = vmatpush2.bf16.msra.mxu0 %v3345
    %4708 = vmatprep.subr.bf16.mxu0 %v3338
    %4709 = vmatpush2.bf16.msra.mxu0 %v3337
    %4710 = vmatprep.subr.bf16.mxu0 %v3330
    %4711 = vmatpush2.bf16.msra.mxu0 %v3329
    %4712 = vmatprep.subr.bf16.mxu0 %v3322
    %4713 = vmatpush2.bf16.msra.mxu0 %v3321
    %4714 = vmatprep.mubr.bf16.mxu0 %v936
    %4715 = vmatmul.mubr.bf16.gmra.mxu0 %v935
    %v4716 = vpop.f32.mrf.mxu0
    %v4717 = vadd.f32 %v4676, %v4716
    %v4718 = vpop.f32.mrf.mxu0
    %v4719 = vadd.f32 %v4678, %v4718
    %v4720 = vpop.f32.mrf.mxu0
    %v4721 = vpop.f32.mrf.mxu0
    %4722 = vdwg.mxu0
    %4723 = vmatprep.subr.bf16.mxu0 %v3442
    %4724 = vmatpush1.bf16.msra.mxu0 %v3441
    %4725 = vmatprep.subr.bf16.mxu0 %v3434
    %4726 = vmatpush1.bf16.msra.mxu0 %v3433
    %4727 = vmatprep.subr.bf16.mxu0 %v3426
    %4728 = vmatpush1.bf16.msra.mxu0 %v3425
    %4729 = vmatprep.subr.bf16.mxu0 %v3418
    %4730 = vmatpush1.bf16.msra.mxu0 %v3417
    %4731 = vmatprep.subr.bf16.mxu0 %v3410
    %4732 = vmatpush1.bf16.msra.mxu0 %v3409
    %4733 = vmatprep.subr.bf16.mxu0 %v3402
    %4734 = vmatpush1.bf16.msra.mxu0 %v3401
    %4735 = vmatprep.subr.bf16.mxu0 %v3394
    %4736 = vmatpush1.bf16.msra.mxu0 %v3393
    %4737 = vmatprep.subr.bf16.mxu0 %v3386
    %4738 = vmatpush1.bf16.msra.mxu0 %v3385
    %4739 = vmatprep.subr.bf16.mxu0 %v3506
    %4740 = vmatpush2.bf16.msra.mxu0 %v3505
    %4741 = vmatprep.subr.bf16.mxu0 %v3498
    %4742 = vmatpush2.bf16.msra.mxu0 %v3497
    %4743 = vmatprep.subr.bf16.mxu0 %v3490
    %4744 = vmatpush2.bf16.msra.mxu0 %v3489
    %4745 = vmatprep.subr.bf16.mxu0 %v3482
    %4746 = vmatpush2.bf16.msra.mxu0 %v3481
    %4747 = vmatprep.subr.bf16.mxu0 %v3474
    %4748 = vmatpush2.bf16.msra.mxu0 %v3473
    %4749 = vmatprep.subr.bf16.mxu0 %v3466
    %4750 = vmatpush2.bf16.msra.mxu0 %v3465
    %4751 = vmatprep.subr.bf16.mxu0 %v3458
    %4752 = vmatpush2.bf16.msra.mxu0 %v3457
    %4753 = vmatprep.subr.bf16.mxu0 %v3450
    %4754 = vmatpush2.bf16.msra.mxu0 %v3449
    %4755 = vmatprep.mubr.bf16.mxu0 %v938
    %4756 = vmatmul.mubr.bf16.gmra.mxu0 %v937
    %v4757 = vpop.f32.mrf.mxu0
    %v4758 = vadd.f32 %v4717, %v4757
    %v4759 = vpop.f32.mrf.mxu0
    %v4760 = vadd.f32 %v4719, %v4759
    %v4761 = vpop.f32.mrf.mxu0
    %v4762 = vpop.f32.mrf.mxu0
    %4763 = vdwg.mxu0
    %4764 = vmatprep.subr.bf16.mxu0 %v2932
    %4765 = vmatpush1.bf16.msra.mxu0 %v2931
    %4766 = vmatprep.subr.bf16.mxu0 %v2924
    %4767 = vmatpush1.bf16.msra.mxu0 %v2923
    %4768 = vmatprep.subr.bf16.mxu0 %v2916
    %4769 = vmatpush1.bf16.msra.mxu0 %v2915
    %4770 = vmatprep.subr.bf16.mxu0 %v2908
    %4771 = vmatpush1.bf16.msra.mxu0 %v2907
    %4772 = vmatprep.subr.bf16.mxu0 %v2900
    %4773 = vmatpush1.bf16.msra.mxu0 %v2899
    %4774 = vmatprep.subr.bf16.mxu0 %v2892
    %4775 = vmatpush1.bf16.msra.mxu0 %v2891
    %4776 = vmatprep.subr.bf16.mxu0 %v2884
    %4777 = vmatpush1.bf16.msra.mxu0 %v2883
    %4778 = vmatprep.subr.bf16.mxu0 %v2876
    %4779 = vmatpush1.bf16.msra.mxu0 %v2875
    %4780 = vmatprep.subr.bf16.mxu0 %v2996
    %4781 = vmatpush2.bf16.msra.mxu0 %v2995
    %4782 = vmatprep.subr.bf16.mxu0 %v2988
    %4783 = vmatpush2.bf16.msra.mxu0 %v2987
    %4784 = vmatprep.subr.bf16.mxu0 %v2980
    %4785 = vmatpush2.bf16.msra.mxu0 %v2979
    %4786 = vmatprep.subr.bf16.mxu0 %v2972
    %4787 = vmatpush2.bf16.msra.mxu0 %v2971
    %4788 = vmatprep.subr.bf16.mxu0 %v2964
    %4789 = vmatpush2.bf16.msra.mxu0 %v2963
    %4790 = vmatprep.subr.bf16.mxu0 %v2956
    %4791 = vmatpush2.bf16.msra.mxu0 %v2955
    %4792 = vmatprep.subr.bf16.mxu0 %v2948
    %4793 = vmatpush2.bf16.msra.mxu0 %v2947
    %4794 = vmatprep.subr.bf16.mxu0 %v2940
    %4795 = vmatpush2.bf16.msra.mxu0 %v2939
    %4796 = vmatprep.mubr.bf16.mxu0 %v930
    %4797 = vmatmul.mubr.bf16.gmra.mxu0 %v929
    %v4798 = vpop.f32.mrf.mxu0
    %v4799 = vadd.f32 %v855, %v4798
    %v4800 = vpop.f32.mrf.mxu0
    %v4801 = vadd.f32 %v859, %v4800
    %v4802 = vpop.f32.mrf.mxu0
    %v4803 = vpop.f32.mrf.mxu0
    %4804 = vdwg.mxu0
    %4805 = vmatprep.subr.bf16.mxu0 %v3060
    %4806 = vmatpush1.bf16.msra.mxu0 %v3059
    %4807 = vmatprep.subr.bf16.mxu0 %v3052
    %4808 = vmatpush1.bf16.msra.mxu0 %v3051
    %4809 = vmatprep.subr.bf16.mxu0 %v3044
    %4810 = vmatpush1.bf16.msra.mxu0 %v3043
    %4811 = vmatprep.subr.bf16.mxu0 %v3036
    %4812 = vmatpush1.bf16.msra.mxu0 %v3035
    %4813 = vmatprep.subr.bf16.mxu0 %v3028
    %4814 = vmatpush1.bf16.msra.mxu0 %v3027
    %4815 = vmatprep.subr.bf16.mxu0 %v3020
    %4816 = vmatpush1.bf16.msra.mxu0 %v3019
    %4817 = vmatprep.subr.bf16.mxu0 %v3012
    %4818 = vmatpush1.bf16.msra.mxu0 %v3011
    %4819 = vmatprep.subr.bf16.mxu0 %v3004
    %4820 = vmatpush1.bf16.msra.mxu0 %v3003
    %4821 = vmatprep.subr.bf16.mxu0 %v3124
    %4822 = vmatpush2.bf16.msra.mxu0 %v3123
    %4823 = vmatprep.subr.bf16.mxu0 %v3116
    %4824 = vmatpush2.bf16.msra.mxu0 %v3115
    %4825 = vmatprep.subr.bf16.mxu0 %v3108
    %4826 = vmatpush2.bf16.msra.mxu0 %v3107
    %4827 = vmatprep.subr.bf16.mxu0 %v3100
    %4828 = vmatpush2.bf16.msra.mxu0 %v3099
    %4829 = vmatprep.subr.bf16.mxu0 %v3092
    %4830 = vmatpush2.bf16.msra.mxu0 %v3091
    %4831 = vmatprep.subr.bf16.mxu0 %v3084
    %4832 = vmatpush2.bf16.msra.mxu0 %v3083
    %4833 = vmatprep.subr.bf16.mxu0 %v3076
    %4834 = vmatpush2.bf16.msra.mxu0 %v3075
    %4835 = vmatprep.subr.bf16.mxu0 %v3068
    %4836 = vmatpush2.bf16.msra.mxu0 %v3067
    %4837 = vmatprep.mubr.bf16.mxu0 %v932
    %4838 = vmatmul.mubr.bf16.gmra.mxu0 %v931
    %v4839 = vpop.f32.mrf.mxu0
    %v4840 = vadd.f32 %v4799, %v4839
    %v4841 = vpop.f32.mrf.mxu0
    %v4842 = vadd.f32 %v4801, %v4841
    %v4843 = vpop.f32.mrf.mxu0
    %v4844 = vpop.f32.mrf.mxu0
    %4845 = vdwg.mxu0
    %4846 = vmatprep.subr.bf16.mxu0 %v3188
    %4847 = vmatpush1.bf16.msra.mxu0 %v3187
    %4848 = vmatprep.subr.bf16.mxu0 %v3180
    %4849 = vmatpush1.bf16.msra.mxu0 %v3179
    %4850 = vmatprep.subr.bf16.mxu0 %v3172
    %4851 = vmatpush1.bf16.msra.mxu0 %v3171
    %4852 = vmatprep.subr.bf16.mxu0 %v3164
    %4853 = vmatpush1.bf16.msra.mxu0 %v3163
    %4854 = vmatprep.subr.bf16.mxu0 %v3156
    %4855 = vmatpush1.bf16.msra.mxu0 %v3155
    %4856 = vmatprep.subr.bf16.mxu0 %v3148
    %4857 = vmatpush1.bf16.msra.mxu0 %v3147
    %4858 = vmatprep.subr.bf16.mxu0 %v3140
    %4859 = vmatpush1.bf16.msra.mxu0 %v3139
    %4860 = vmatprep.subr.bf16.mxu0 %v3132
    %4861 = vmatpush1.bf16.msra.mxu0 %v3131
    %4862 = vmatprep.subr.bf16.mxu0 %v3252
    %4863 = vmatpush2.bf16.msra.mxu0 %v3251
    %4864 = vmatprep.subr.bf16.mxu0 %v3244
    %4865 = vmatpush2.bf16.msra.mxu0 %v3243
    %4866 = vmatprep.subr.bf16.mxu0 %v3236
    %4867 = vmatpush2.bf16.msra.mxu0 %v3235
    %4868 = vmatprep.subr.bf16.mxu0 %v3228
    %4869 = vmatpush2.bf16.msra.mxu0 %v3227
    %4870 = vmatprep.subr.bf16.mxu0 %v3220
    %4871 = vmatpush2.bf16.msra.mxu0 %v3219
    %4872 = vmatprep.subr.bf16.mxu0 %v3212
    %4873 = vmatpush2.bf16.msra.mxu0 %v3211
    %4874 = vmatprep.subr.bf16.mxu0 %v3204
    %4875 = vmatpush2.bf16.msra.mxu0 %v3203
    %4876 = vmatprep.subr.bf16.mxu0 %v3196
    %4877 = vmatpush2.bf16.msra.mxu0 %v3195
    %4878 = vmatprep.mubr.bf16.mxu0 %v934
    %4879 = vmatmul.mubr.bf16.gmra.mxu0 %v933
    %v4880 = vpop.f32.mrf.mxu0
    %v4881 = vadd.f32 %v4840, %v4880
    %v4882 = vpop.f32.mrf.mxu0
    %v4883 = vadd.f32 %v4842, %v4882
    %v4884 = vpop.f32.mrf.mxu0
    %v4885 = vpop.f32.mrf.mxu0
    %4886 = vdwg.mxu0
    %4887 = vmatprep.subr.bf16.mxu0 %v3316
    %4888 = vmatpush1.bf16.msra.mxu0 %v3315
    %4889 = vmatprep.subr.bf16.mxu0 %v3308
    %4890 = vmatpush1.bf16.msra.mxu0 %v3307
    %4891 = vmatprep.subr.bf16.mxu0 %v3300
    %4892 = vmatpush1.bf16.msra.mxu0 %v3299
    %4893 = vmatprep.subr.bf16.mxu0 %v3292
    %4894 = vmatpush1.bf16.msra.mxu0 %v3291
    %4895 = vmatprep.subr.bf16.mxu0 %v3284
    %4896 = vmatpush1.bf16.msra.mxu0 %v3283
    %4897 = vmatprep.subr.bf16.mxu0 %v3276
    %4898 = vmatpush1.bf16.msra.mxu0 %v3275
    %4899 = vmatprep.subr.bf16.mxu0 %v3268
    %4900 = vmatpush1.bf16.msra.mxu0 %v3267
    %4901 = vmatprep.subr.bf16.mxu0 %v3260
    %4902 = vmatpush1.bf16.msra.mxu0 %v3259
    %4903 = vmatprep.subr.bf16.mxu0 %v3380
    %4904 = vmatpush2.bf16.msra.mxu0 %v3379
    %4905 = vmatprep.subr.bf16.mxu0 %v3372
    %4906 = vmatpush2.bf16.msra.mxu0 %v3371
    %4907 = vmatprep.subr.bf16.mxu0 %v3364
    %4908 = vmatpush2.bf16.msra.mxu0 %v3363
    %4909 = vmatprep.subr.bf16.mxu0 %v3356
    %4910 = vmatpush2.bf16.msra.mxu0 %v3355
    %4911 = vmatprep.subr.bf16.mxu0 %v3348
    %4912 = vmatpush2.bf16.msra.mxu0 %v3347
    %4913 = vmatprep.subr.bf16.mxu0 %v3340
    %4914 = vmatpush2.bf16.msra.mxu0 %v3339
    %4915 = vmatprep.subr.bf16.mxu0 %v3332
    %4916 = vmatpush2.bf16.msra.mxu0 %v3331
    %4917 = vmatprep.subr.bf16.mxu0 %v3324
    %4918 = vmatpush2.bf16.msra.mxu0 %v3323
    %4919 = vmatprep.mubr.bf16.mxu0 %v936
    %4920 = vmatmul.mubr.bf16.gmra.mxu0 %v935
    %v4921 = vpop.f32.mrf.mxu0
    %v4922 = vadd.f32 %v4881, %v4921
    %v4923 = vpop.f32.mrf.mxu0
    %v4924 = vadd.f32 %v4883, %v4923
    %v4925 = vpop.f32.mrf.mxu0
    %v4926 = vpop.f32.mrf.mxu0
    %4927 = vdwg.mxu0
    %4928 = vmatprep.subr.bf16.mxu0 %v3444
    %4929 = vmatpush1.bf16.msra.mxu0 %v3443
    %4930 = vmatprep.subr.bf16.mxu0 %v3436
    %4931 = vmatpush1.bf16.msra.mxu0 %v3435
    %4932 = vmatprep.subr.bf16.mxu0 %v3428
    %4933 = vmatpush1.bf16.msra.mxu0 %v3427
    %4934 = vmatprep.subr.bf16.mxu0 %v3420
    %4935 = vmatpush1.bf16.msra.mxu0 %v3419
    %4936 = vmatprep.subr.bf16.mxu0 %v3412
    %4937 = vmatpush1.bf16.msra.mxu0 %v3411
    %4938 = vmatprep.subr.bf16.mxu0 %v3404
    %4939 = vmatpush1.bf16.msra.mxu0 %v3403
    %4940 = vmatprep.subr.bf16.mxu0 %v3396
    %4941 = vmatpush1.bf16.msra.mxu0 %v3395
    %4942 = vmatprep.subr.bf16.mxu0 %v3388
    %4943 = vmatpush1.bf16.msra.mxu0 %v3387
    %4944 = vmatprep.subr.bf16.mxu0 %v3508
    %4945 = vmatpush2.bf16.msra.mxu0 %v3507
    %4946 = vmatprep.subr.bf16.mxu0 %v3500
    %4947 = vmatpush2.bf16.msra.mxu0 %v3499
    %4948 = vmatprep.subr.bf16.mxu0 %v3492
    %4949 = vmatpush2.bf16.msra.mxu0 %v3491
    %4950 = vmatprep.subr.bf16.mxu0 %v3484
    %4951 = vmatpush2.bf16.msra.mxu0 %v3483
    %4952 = vmatprep.subr.bf16.mxu0 %v3476
    %4953 = vmatpush2.bf16.msra.mxu0 %v3475
    %4954 = vmatprep.subr.bf16.mxu0 %v3468
    %4955 = vmatpush2.bf16.msra.mxu0 %v3467
    %4956 = vmatprep.subr.bf16.mxu0 %v3460
    %4957 = vmatpush2.bf16.msra.mxu0 %v3459
    %4958 = vmatprep.subr.bf16.mxu0 %v3452
    %4959 = vmatpush2.bf16.msra.mxu0 %v3451
    %4960 = vmatprep.mubr.bf16.mxu0 %v938
    %4961 = vmatmul.mubr.bf16.gmra.mxu0 %v937
    %v4962 = vpop.f32.mrf.mxu0
    %v4963 = vadd.f32 %v4922, %v4962
    %v4964 = vpop.f32.mrf.mxu0
    %v4965 = vadd.f32 %v4924, %v4964
    %v4966 = vpop.f32.mrf.mxu0
    %v4967 = vpop.f32.mrf.mxu0
    %4968 = vdwg.mxu0
    %v4969 = vld [vmem:[%s3] sm:$0xff]
    %v4970 = vld [vmem:[%s3 + $0x8] sm:$0xff]
    %v4971 = vld [vmem:[%s3 + $0x10] sm:$0xff]
    %v4972 = vld [vmem:[%s3 + $0x18] sm:$0xff]
    %v4973 = vld [vmem:[%s3 + $0x20] sm:$0xff]
    %v4974 = vld [vmem:[%s3 + $0x28] sm:$0xff]
    %v4975 = vld [vmem:[%s3 + $0x30] sm:$0xff]
    %v4976 = vld [vmem:[%s3 + $0x38] sm:$0xff]
    %v4977 = vld [vmem:[%s3 + $0x40] sm:$0xff]
    %v4978 = vld [vmem:[%s3 + $0x48] sm:$0xff]
    %v4979 = vld [vmem:[%s3 + $0x50] sm:$0xff]
    %v4980 = vld [vmem:[%s3 + $0x58] sm:$0xff]
    %v4981 = vld [vmem:[%s3 + $0x60] sm:$0xff]
    %v4982 = vld [vmem:[%s3 + $0x68] sm:$0xff]
    %v4983 = vld [vmem:[%s3 + $0x70] sm:$0xff]
    %v4984 = vld [vmem:[%s3 + $0x78] sm:$0xff]
    %v4985 = vld [vmem:[%s3 + $0x80] sm:$0xff]
    %v4986 = vld [vmem:[%s3 + $0x88] sm:$0xff]
    %v4987 = vld [vmem:[%s3 + $0x90] sm:$0xff]
    %v4988 = vld [vmem:[%s3 + $0x98] sm:$0xff]
    %v4989 = vld [vmem:[%s3 + $0xa0] sm:$0xff]
    %v4990 = vld [vmem:[%s3 + $0xa8] sm:$0xff]
    %v4991 = vld [vmem:[%s3 + $0xb0] sm:$0xff]
    %v4992 = vld [vmem:[%s3 + $0xb8] sm:$0xff]
    %v4993 = vld [vmem:[%s3 + $0xc0] sm:$0xff]
    %v4994 = vld [vmem:[%s3 + $0xc8] sm:$0xff]
    %v4995 = vld [vmem:[%s3 + $0xd0] sm:$0xff]
    %v4996 = vld [vmem:[%s3 + $0xd8] sm:$0xff]
    %v4997 = vld [vmem:[%s3 + $0xe0] sm:$0xff]
    %v4998 = vld [vmem:[%s3 + $0xe8] sm:$0xff]
    %v4999 = vld [vmem:[%s3 + $0xf0] sm:$0xff]
    %v5000 = vld [vmem:[%s3 + $0xf8] sm:$0xff]
    %v5001 = vld [vmem:[%s3 + $0x100] sm:$0xff]
    %v5002 = vld [vmem:[%s3 + $0x108] sm:$0xff]
    %v5003 = vld [vmem:[%s3 + $0x110] sm:$0xff]
    %v5004 = vld [vmem:[%s3 + $0x118] sm:$0xff]
    %v5005 = vld [vmem:[%s3 + $0x120] sm:$0xff]
    %v5006 = vld [vmem:[%s3 + $0x128] sm:$0xff]
    %v5007 = vld [vmem:[%s3 + $0x130] sm:$0xff]
    %v5008 = vld [vmem:[%s3 + $0x138] sm:$0xff]
    %v5009 = vld [vmem:[%s3 + $0x140] sm:$0xff]
    %v5010 = vld [vmem:[%s3 + $0x148] sm:$0xff]
    %v5011 = vld [vmem:[%s3 + $0x150] sm:$0xff]
    %v5012 = vld [vmem:[%s3 + $0x158] sm:$0xff]
    %v5013 = vld [vmem:[%s3 + $0x160] sm:$0xff]
    %v5014 = vld [vmem:[%s3 + $0x168] sm:$0xff]
    %v5015 = vld [vmem:[%s3 + $0x170] sm:$0xff]
    %v5016 = vld [vmem:[%s3 + $0x178] sm:$0xff]
    %v5017 = vld [vmem:[%s3 + $0x180] sm:$0xff]
    %v5018 = vld [vmem:[%s3 + $0x188] sm:$0xff]
    %v5019 = vld [vmem:[%s3 + $0x190] sm:$0xff]
    %v5020 = vld [vmem:[%s3 + $0x198] sm:$0xff]
    %v5021 = vld [vmem:[%s3 + $0x1a0] sm:$0xff]
    %v5022 = vld [vmem:[%s3 + $0x1a8] sm:$0xff]
    %v5023 = vld [vmem:[%s3 + $0x1b0] sm:$0xff]
    %v5024 = vld [vmem:[%s3 + $0x1b8] sm:$0xff]
    %v5025 = vld [vmem:[%s3 + $0x1c0] sm:$0xff]
    %v5026 = vld [vmem:[%s3 + $0x1c8] sm:$0xff]
    %v5027 = vld [vmem:[%s3 + $0x1d0] sm:$0xff]
    %v5028 = vld [vmem:[%s3 + $0x1d8] sm:$0xff]
    %v5029 = vld [vmem:[%s3 + $0x1e0] sm:$0xff]
    %v5030 = vld [vmem:[%s3 + $0x1e8] sm:$0xff]
    %v5031 = vld [vmem:[%s3 + $0x1f0] sm:$0xff]
    %v5032 = vld [vmem:[%s3 + $0x1f8] sm:$0xff]
    %v5033 = vld [vmem:[%s3 + $0x200] sm:$0xff]
    %v5034 = vld [vmem:[%s3 + $0x208] sm:$0xff]
    %v5035 = vld [vmem:[%s3 + $0x210] sm:$0xff]
    %v5036 = vld [vmem:[%s3 + $0x218] sm:$0xff]
    %v5037 = vld [vmem:[%s3 + $0x220] sm:$0xff]
    %v5038 = vld [vmem:[%s3 + $0x228] sm:$0xff]
    %v5039 = vld [vmem:[%s3 + $0x230] sm:$0xff]
    %v5040 = vld [vmem:[%s3 + $0x238] sm:$0xff]
    %v5041 = vld [vmem:[%s3 + $0x240] sm:$0xff]
    %v5042 = vld [vmem:[%s3 + $0x248] sm:$0xff]
    %v5043 = vld [vmem:[%s3 + $0x250] sm:$0xff]
    %v5044 = vld [vmem:[%s3 + $0x258] sm:$0xff]
    %v5045 = vld [vmem:[%s3 + $0x260] sm:$0xff]
    %v5046 = vld [vmem:[%s3 + $0x268] sm:$0xff]
    %v5047 = vld [vmem:[%s3 + $0x270] sm:$0xff]
    %v5048 = vld [vmem:[%s3 + $0x278] sm:$0xff]
    %v5049 = vld [vmem:[%s3 + $0x280] sm:$0xff]
    %v5050 = vld [vmem:[%s3 + $0x288] sm:$0xff]
    %v5051 = vld [vmem:[%s3 + $0x290] sm:$0xff]
    %v5052 = vld [vmem:[%s3 + $0x298] sm:$0xff]
    %v5053 = vld [vmem:[%s3 + $0x2a0] sm:$0xff]
    %v5054 = vld [vmem:[%s3 + $0x2a8] sm:$0xff]
    %v5055 = vld [vmem:[%s3 + $0x2b0] sm:$0xff]
    %v5056 = vld [vmem:[%s3 + $0x2b8] sm:$0xff]
    %v5057 = vld [vmem:[%s3 + $0x2c0] sm:$0xff]
    %v5058 = vld [vmem:[%s3 + $0x2c8] sm:$0xff]
    %v5059 = vld [vmem:[%s3 + $0x2d0] sm:$0xff]
    %v5060 = vld [vmem:[%s3 + $0x2d8] sm:$0xff]
    %v5061 = vld [vmem:[%s3 + $0x2e0] sm:$0xff]
    %v5062 = vld [vmem:[%s3 + $0x2e8] sm:$0xff]
    %v5063 = vld [vmem:[%s3 + $0x2f0] sm:$0xff]
    %v5064 = vld [vmem:[%s3 + $0x2f8] sm:$0xff]
    %v5065 = vld [vmem:[%s3 + $0x300] sm:$0xff]
    %v5066 = vld [vmem:[%s3 + $0x308] sm:$0xff]
    %v5067 = vld [vmem:[%s3 + $0x310] sm:$0xff]
    %v5068 = vld [vmem:[%s3 + $0x318] sm:$0xff]
    %v5069 = vld [vmem:[%s3 + $0x320] sm:$0xff]
    %v5070 = vld [vmem:[%s3 + $0x328] sm:$0xff]
    %v5071 = vld [vmem:[%s3 + $0x330] sm:$0xff]
    %v5072 = vld [vmem:[%s3 + $0x338] sm:$0xff]
    %v5073 = vld [vmem:[%s3 + $0x340] sm:$0xff]
    %v5074 = vld [vmem:[%s3 + $0x348] sm:$0xff]
    %v5075 = vld [vmem:[%s3 + $0x350] sm:$0xff]
    %v5076 = vld [vmem:[%s3 + $0x358] sm:$0xff]
    %v5077 = vld [vmem:[%s3 + $0x360] sm:$0xff]
    %v5078 = vld [vmem:[%s3 + $0x368] sm:$0xff]
    %v5079 = vld [vmem:[%s3 + $0x370] sm:$0xff]
    %v5080 = vld [vmem:[%s3 + $0x378] sm:$0xff]
    %v5081 = vld [vmem:[%s3 + $0x380] sm:$0xff]
    %v5082 = vld [vmem:[%s3 + $0x388] sm:$0xff]
    %v5083 = vld [vmem:[%s3 + $0x390] sm:$0xff]
    %v5084 = vld [vmem:[%s3 + $0x398] sm:$0xff]
    %v5085 = vld [vmem:[%s3 + $0x3a0] sm:$0xff]
    %v5086 = vld [vmem:[%s3 + $0x3a8] sm:$0xff]
    %v5087 = vld [vmem:[%s3 + $0x3b0] sm:$0xff]
    %v5088 = vld [vmem:[%s3 + $0x3b8] sm:$0xff]
    %v5089 = vld [vmem:[%s3 + $0x3c0] sm:$0xff]
    %v5090 = vld [vmem:[%s3 + $0x3c8] sm:$0xff]
    %v5091 = vld [vmem:[%s3 + $0x3d0] sm:$0xff]
    %v5092 = vld [vmem:[%s3 + $0x3d8] sm:$0xff]
    %v5093 = vld [vmem:[%s3 + $0x3e0] sm:$0xff]
    %v5094 = vld [vmem:[%s3 + $0x3e8] sm:$0xff]
    %v5095 = vld [vmem:[%s3 + $0x3f0] sm:$0xff]
    %v5096 = vld [vmem:[%s3 + $0x3f8] sm:$0xff]
    %v5097 = vld [vmem:[#allocation7] sm:$0x1]
    %v5099 = vlaneseq
    %v5100 = vshrl.u32 %v5099, 7
    %v5101 = vsub.s32 0, %v5100
    %v5102 = vrot.slane %v5097, %v5101
    %5104 = vmatprep.subr.mxu0 0.0
    %5105 = vmatpush1.msra.mxu0 %v4984
    %5106 = vmatprep.subr.mxu0 0.0
    %5107 = vmatpush1.msra.mxu0 %v4983
    %5108 = vmatprep.subr.mxu0 0.0
    %5109 = vmatpush1.msra.mxu0 %v4982
    %5110 = vmatprep.subr.mxu0 0.0
    %5111 = vmatpush1.msra.mxu0 %v4981
    %5112 = vmatprep.subr.mxu0 0.0
    %5113 = vmatpush1.msra.mxu0 %v4980
    %5114 = vmatprep.subr.mxu0 0.0
    %5115 = vmatpush1.msra.mxu0 %v4979
    %5116 = vmatprep.subr.mxu0 0.0
    %5117 = vmatpush1.msra.mxu0 %v4978
    %5118 = vmatprep.subr.mxu0 0.0
    %5119 = vmatpush1.msra.mxu0 %v4977
    %5120 = vmatprep.subr.mxu0 0.0
    %5121 = vmatpush1.msra.mxu0 %v4976
    %5122 = vmatprep.subr.mxu0 0.0
    %5123 = vmatpush1.msra.mxu0 %v4975
    %5124 = vmatprep.subr.mxu0 0.0
    %5125 = vmatpush1.msra.mxu0 %v4974
    %5126 = vmatprep.subr.mxu0 0.0
    %5127 = vmatpush1.msra.mxu0 %v4973
    %5128 = vmatprep.subr.mxu0 0.0
    %5129 = vmatpush1.msra.mxu0 %v4972
    %5130 = vmatprep.subr.mxu0 0.0
    %5131 = vmatpush1.msra.mxu0 %v4971
    %5132 = vmatprep.subr.mxu0 0.0
    %5133 = vmatpush1.msra.mxu0 %v4970
    %5134 = vmatprep.subr.mxu0 0.0
    %5135 = vmatpush1.msra.mxu0 %v4969
    %5136 = vmatprep.subr.mxu0 0.0
    %5137 = vmatpush2.msra.mxu0 %v5000
    %5138 = vmatprep.subr.mxu0 0.0
    %5139 = vmatpush2.msra.mxu0 %v4999
    %5140 = vmatprep.subr.mxu0 0.0
    %5141 = vmatpush2.msra.mxu0 %v4998
    %5142 = vmatprep.subr.mxu0 0.0
    %5143 = vmatpush2.msra.mxu0 %v4997
    %5144 = vmatprep.subr.mxu0 0.0
    %5145 = vmatpush2.msra.mxu0 %v4996
    %5146 = vmatprep.subr.mxu0 0.0
    %5147 = vmatpush2.msra.mxu0 %v4995
    %5148 = vmatprep.subr.mxu0 0.0
    %5149 = vmatpush2.msra.mxu0 %v4994
    %5150 = vmatprep.subr.mxu0 0.0
    %5151 = vmatpush2.msra.mxu0 %v4993
    %5152 = vmatprep.subr.mxu0 0.0
    %5153 = vmatpush2.msra.mxu0 %v4992
    %5154 = vmatprep.subr.mxu0 0.0
    %5155 = vmatpush2.msra.mxu0 %v4991
    %5156 = vmatprep.subr.mxu0 0.0
    %5157 = vmatpush2.msra.mxu0 %v4990
    %5158 = vmatprep.subr.mxu0 0.0
    %5159 = vmatpush2.msra.mxu0 %v4989
    %5160 = vmatprep.subr.mxu0 0.0
    %5161 = vmatpush2.msra.mxu0 %v4988
    %5162 = vmatprep.subr.mxu0 0.0
    %5163 = vmatpush2.msra.mxu0 %v4987
    %5164 = vmatprep.subr.mxu0 0.0
    %5165 = vmatpush2.msra.mxu0 %v4986
    %5166 = vmatprep.subr.mxu0 0.0
    %5167 = vmatpush2.msra.mxu0 %v4985
    %5168 = vmatprep.mubr.f32.mxu0 %v4350
    %5169 = vmatmul.mubr.f32.gmra.mxu0 %v4348
    %v5170 = vpop.f32.mrf.mxu0
    %v5171 = vadd.f32 %v5102, %v5170
    %v5172 = vpop.f32.mrf.mxu0
    %5173 = vdwg.mxu0
    %5174 = vmatprep.subr.mxu0 0.0
    %5175 = vmatpush1.msra.mxu0 %v5016
    %5176 = vmatprep.subr.mxu0 0.0
    %5177 = vmatpush1.msra.mxu0 %v5015
    %5178 = vmatprep.subr.mxu0 0.0
    %5179 = vmatpush1.msra.mxu0 %v5014
    %5180 = vmatprep.subr.mxu0 0.0
    %5181 = vmatpush1.msra.mxu0 %v5013
    %5182 = vmatprep.subr.mxu0 0.0
    %5183 = vmatpush1.msra.mxu0 %v5012
    %5184 = vmatprep.subr.mxu0 0.0
    %5185 = vmatpush1.msra.mxu0 %v5011
    %5186 = vmatprep.subr.mxu0 0.0
    %5187 = vmatpush1.msra.mxu0 %v5010
    %5188 = vmatprep.subr.mxu0 0.0
    %5189 = vmatpush1.msra.mxu0 %v5009
    %5190 = vmatprep.subr.mxu0 0.0
    %5191 = vmatpush1.msra.mxu0 %v5008
    %5192 = vmatprep.subr.mxu0 0.0
    %5193 = vmatpush1.msra.mxu0 %v5007
    %5194 = vmatprep.subr.mxu0 0.0
    %5195 = vmatpush1.msra.mxu0 %v5006
    %5196 = vmatprep.subr.mxu0 0.0
    %5197 = vmatpush1.msra.mxu0 %v5005
    %5198 = vmatprep.subr.mxu0 0.0
    %5199 = vmatpush1.msra.mxu0 %v5004
    %5200 = vmatprep.subr.mxu0 0.0
    %5201 = vmatpush1.msra.mxu0 %v5003
    %5202 = vmatprep.subr.mxu0 0.0
    %5203 = vmatpush1.msra.mxu0 %v5002
    %5204 = vmatprep.subr.mxu0 0.0
    %5205 = vmatpush1.msra.mxu0 %v5001
    %5206 = vmatprep.subr.mxu0 0.0
    %5207 = vmatpush2.msra.mxu0 %v5032
    %5208 = vmatprep.subr.mxu0 0.0
    %5209 = vmatpush2.msra.mxu0 %v5031
    %5210 = vmatprep.subr.mxu0 0.0
    %5211 = vmatpush2.msra.mxu0 %v5030
    %5212 = vmatprep.subr.mxu0 0.0
    %5213 = vmatpush2.msra.mxu0 %v5029
    %5214 = vmatprep.subr.mxu0 0.0
    %5215 = vmatpush2.msra.mxu0 %v5028
    %5216 = vmatprep.subr.mxu0 0.0
    %5217 = vmatpush2.msra.mxu0 %v5027
    %5218 = vmatprep.subr.mxu0 0.0
    %5219 = vmatpush2.msra.mxu0 %v5026
    %5220 = vmatprep.subr.mxu0 0.0
    %5221 = vmatpush2.msra.mxu0 %v5025
    %5222 = vmatprep.subr.mxu0 0.0
    %5223 = vmatpush2.msra.mxu0 %v5024
    %5224 = vmatprep.subr.mxu0 0.0
    %5225 = vmatpush2.msra.mxu0 %v5023
    %5226 = vmatprep.subr.mxu0 0.0
    %5227 = vmatpush2.msra.mxu0 %v5022
    %5228 = vmatprep.subr.mxu0 0.0
    %5229 = vmatpush2.msra.mxu0 %v5021
    %5230 = vmatprep.subr.mxu0 0.0
    %5231 = vmatpush2.msra.mxu0 %v5020
    %5232 = vmatprep.subr.mxu0 0.0
    %5233 = vmatpush2.msra.mxu0 %v5019
    %5234 = vmatprep.subr.mxu0 0.0
    %5235 = vmatpush2.msra.mxu0 %v5018
    %5236 = vmatprep.subr.mxu0 0.0
    %5237 = vmatpush2.msra.mxu0 %v5017
    %5238 = vmatprep.mubr.f32.mxu0 %v4555
    %5239 = vmatmul.mubr.f32.gmra.mxu0 %v4553
    %v5240 = vpop.f32.mrf.mxu0
    %v5241 = vadd.f32 %v5171, %v5240
    %v5242 = vpop.f32.mrf.mxu0
    %5243 = vdwg.mxu0
    %5244 = vmatprep.subr.mxu0 0.0
    %5245 = vmatpush1.msra.mxu0 %v5048
    %5246 = vmatprep.subr.mxu0 0.0
    %5247 = vmatpush1.msra.mxu0 %v5047
    %5248 = vmatprep.subr.mxu0 0.0
    %5249 = vmatpush1.msra.mxu0 %v5046
    %5250 = vmatprep.subr.mxu0 0.0
    %5251 = vmatpush1.msra.mxu0 %v5045
    %5252 = vmatprep.subr.mxu0 0.0
    %5253 = vmatpush1.msra.mxu0 %v5044
    %5254 = vmatprep.subr.mxu0 0.0
    %5255 = vmatpush1.msra.mxu0 %v5043
    %5256 = vmatprep.subr.mxu0 0.0
    %5257 = vmatpush1.msra.mxu0 %v5042
    %5258 = vmatprep.subr.mxu0 0.0
    %5259 = vmatpush1.msra.mxu0 %v5041
    %5260 = vmatprep.subr.mxu0 0.0
    %5261 = vmatpush1.msra.mxu0 %v5040
    %5262 = vmatprep.subr.mxu0 0.0
    %5263 = vmatpush1.msra.mxu0 %v5039
    %5264 = vmatprep.subr.mxu0 0.0
    %5265 = vmatpush1.msra.mxu0 %v5038
    %5266 = vmatprep.subr.mxu0 0.0
    %5267 = vmatpush1.msra.mxu0 %v5037
    %5268 = vmatprep.subr.mxu0 0.0
    %5269 = vmatpush1.msra.mxu0 %v5036
    %5270 = vmatprep.subr.mxu0 0.0
    %5271 = vmatpush1.msra.mxu0 %v5035
    %5272 = vmatprep.subr.mxu0 0.0
    %5273 = vmatpush1.msra.mxu0 %v5034
    %5274 = vmatprep.subr.mxu0 0.0
    %5275 = vmatpush1.msra.mxu0 %v5033
    %5276 = vmatprep.subr.mxu0 0.0
    %5277 = vmatpush2.msra.mxu0 %v5064
    %5278 = vmatprep.subr.mxu0 0.0
    %5279 = vmatpush2.msra.mxu0 %v5063
    %5280 = vmatprep.subr.mxu0 0.0
    %5281 = vmatpush2.msra.mxu0 %v5062
    %5282 = vmatprep.subr.mxu0 0.0
    %5283 = vmatpush2.msra.mxu0 %v5061
    %5284 = vmatprep.subr.mxu0 0.0
    %5285 = vmatpush2.msra.mxu0 %v5060
    %5286 = vmatprep.subr.mxu0 0.0
    %5287 = vmatpush2.msra.mxu0 %v5059
    %5288 = vmatprep.subr.mxu0 0.0
    %5289 = vmatpush2.msra.mxu0 %v5058
    %5290 = vmatprep.subr.mxu0 0.0
    %5291 = vmatpush2.msra.mxu0 %v5057
    %5292 = vmatprep.subr.mxu0 0.0
    %5293 = vmatpush2.msra.mxu0 %v5056
    %5294 = vmatprep.subr.mxu0 0.0
    %5295 = vmatpush2.msra.mxu0 %v5055
    %5296 = vmatprep.subr.mxu0 0.0
    %5297 = vmatpush2.msra.mxu0 %v5054
    %5298 = vmatprep.subr.mxu0 0.0
    %5299 = vmatpush2.msra.mxu0 %v5053
    %5300 = vmatprep.subr.mxu0 0.0
    %5301 = vmatpush2.msra.mxu0 %v5052
    %5302 = vmatprep.subr.mxu0 0.0
    %5303 = vmatpush2.msra.mxu0 %v5051
    %5304 = vmatprep.subr.mxu0 0.0
    %5305 = vmatpush2.msra.mxu0 %v5050
    %5306 = vmatprep.subr.mxu0 0.0
    %5307 = vmatpush2.msra.mxu0 %v5049
    %5308 = vmatprep.mubr.f32.mxu0 %v4760
    %5309 = vmatmul.mubr.f32.gmra.mxu0 %v4758
    %v5310 = vpop.f32.mrf.mxu0
    %v5311 = vadd.f32 %v5241, %v5310
    %v5312 = vpop.f32.mrf.mxu0
    %5313 = vdwg.mxu0
    %5314 = vmatprep.subr.mxu0 0.0
    %5315 = vmatpush1.msra.mxu0 %v5080
    %5316 = vmatprep.subr.mxu0 0.0
    %5317 = vmatpush1.msra.mxu0 %v5079
    %5318 = vmatprep.subr.mxu0 0.0
    %5319 = vmatpush1.msra.mxu0 %v5078
    %5320 = vmatprep.subr.mxu0 0.0
    %5321 = vmatpush1.msra.mxu0 %v5077
    %5322 = vmatprep.subr.mxu0 0.0
    %5323 = vmatpush1.msra.mxu0 %v5076
    %5324 = vmatprep.subr.mxu0 0.0
    %5325 = vmatpush1.msra.mxu0 %v5075
    %5326 = vmatprep.subr.mxu0 0.0
    %5327 = vmatpush1.msra.mxu0 %v5074
    %5328 = vmatprep.subr.mxu0 0.0
    %5329 = vmatpush1.msra.mxu0 %v5073
    %5330 = vmatprep.subr.mxu0 0.0
    %5331 = vmatpush1.msra.mxu0 %v5072
    %5332 = vmatprep.subr.mxu0 0.0
    %5333 = vmatpush1.msra.mxu0 %v5071
    %5334 = vmatprep.subr.mxu0 0.0
    %5335 = vmatpush1.msra.mxu0 %v5070
    %5336 = vmatprep.subr.mxu0 0.0
    %5337 = vmatpush1.msra.mxu0 %v5069
    %5338 = vmatprep.subr.mxu0 0.0
    %5339 = vmatpush1.msra.mxu0 %v5068
    %5340 = vmatprep.subr.mxu0 0.0
    %5341 = vmatpush1.msra.mxu0 %v5067
    %5342 = vmatprep.subr.mxu0 0.0
    %5343 = vmatpush1.msra.mxu0 %v5066
    %5344 = vmatprep.subr.mxu0 0.0
    %5345 = vmatpush1.msra.mxu0 %v5065
    %5346 = vmatprep.subr.mxu0 0.0
    %5347 = vmatpush2.msra.mxu0 %v5096
    %5348 = vmatprep.subr.mxu0 0.0
    %5349 = vmatpush2.msra.mxu0 %v5095
    %5350 = vmatprep.subr.mxu0 0.0
    %5351 = vmatpush2.msra.mxu0 %v5094
    %5352 = vmatprep.subr.mxu0 0.0
    %5353 = vmatpush2.msra.mxu0 %v5093
    %5354 = vmatprep.subr.mxu0 0.0
    %5355 = vmatpush2.msra.mxu0 %v5092
    %5356 = vmatprep.subr.mxu0 0.0
    %5357 = vmatpush2.msra.mxu0 %v5091
    %5358 = vmatprep.subr.mxu0 0.0
    %5359 = vmatpush2.msra.mxu0 %v5090
    %5360 = vmatprep.subr.mxu0 0.0
    %5361 = vmatpush2.msra.mxu0 %v5089
    %5362 = vmatprep.subr.mxu0 0.0
    %5363 = vmatpush2.msra.mxu0 %v5088
    %5364 = vmatprep.subr.mxu0 0.0
    %5365 = vmatpush2.msra.mxu0 %v5087
    %5366 = vmatprep.subr.mxu0 0.0
    %5367 = vmatpush2.msra.mxu0 %v5086
    %5368 = vmatprep.subr.mxu0 0.0
    %5369 = vmatpush2.msra.mxu0 %v5085
    %5370 = vmatprep.subr.mxu0 0.0
    %5371 = vmatpush2.msra.mxu0 %v5084
    %5372 = vmatprep.subr.mxu0 0.0
    %5373 = vmatpush2.msra.mxu0 %v5083
    %5374 = vmatprep.subr.mxu0 0.0
    %5375 = vmatpush2.msra.mxu0 %v5082
    %5376 = vmatprep.subr.mxu0 0.0
    %5377 = vmatpush2.msra.mxu0 %v5081
    %5378 = vmatprep.mubr.f32.mxu0 %v4965
    %5379 = vmatmul.mubr.f32.gmra.mxu0 %v4963
    %v5380 = vpop.f32.mrf.mxu0
    %v5381 = vadd.f32 %v5311, %v5380
    %v5382 = vpop.f32.mrf.mxu0
    %5383 = vdwg.mxu0
    %5384 = vst [vmem:[#allocation8] sm:$0x3] %v5381
    // Predicated region
    $region34: #{age_model_forward.15} parent=1 // pred_check
      _
    $region35: #{age_model_forward.15} parent=1 // pred_check_branch
      %5386 = sbr.rel (0) target = $region37
    $region36: #{age_model_forward.15} parent=1 // pred_region
      %s5388 = ssub.s32 32, 32
      %5389 = vsyncadd [#allocation4], %s5388
      %s5391 = sshll.u32 [#allocation8], 4
      %s5392 = int_to_ptr.vmem [resolvable:$true] %s5391
      %5394 = dma.vmem_to_hbm [thread:$0]  %s5392, 32, %s5, [#allocation4]
    $region37: #{age_model_forward.15} parent=1 // pred_fallthru
      _
    // Predicated region
    $region38: #{age_model_forward.15} parent=1 // pred_check
      _
    $region39: #{age_model_forward.15} parent=1 // pred_check_branch
      %5396 = sbr.rel (0) target = $region41
    $region40: #{age_model_forward.15} parent=1 // pred_region
      %5397 = dma.done [#allocation4], 32
    $region41: #{age_model_forward.15} parent=1 // pred_fallthru
      _
    %5398 = vsyncpa [#allocation3], 1
    %5399 = vsyncpa [#allocation6], 1
    %5400 = vsyncpa [#allocation4], 1

</llo_original>
